<compile_context>
chip_gen: v7x
topology: tpu7x:2x2x1
jax: 0.10.0
libtpu: 0.0.40
codegen_flags: <defaults>
</compile_context>

<pallas_src>
import numpy as np
import jax
import jax.numpy as jnp
from jax.experimental import pallas as pl
from jax.experimental.pallas import tpu as pltpu

NEG_SLOPE = 0.01            # PyTorch nn.LeakyReLU default
C = 64                      # trunk channel width
NUM_RES = 4                 # number of ResBlocks
N_CONV64 = 2 * NUM_RES + 1  # 8 resblock convs + 1 head conv
K64 = 9 * C                 # im2col K for the 64-channel convs


def _leaky(v):
    return jnp.where(v > 0, v, NEG_SLOPE * v)


def _fused_kernel_body(H, W):
    """Kernel body for a fixed spatial size (H, W)."""
    HW = H * W

    def kernel(sp_ref, sw_ref, sb_ref, cw_ref, cb_ref, o_ref, act_ref):
        # act_ref: (H+2, W+2, C) zero-padded activation buffer kept in VMEM for
        # the whole network -> same-padding borders are free, no HBM traffic
        # between layers.
        act_ref[...] = jnp.zeros((H + 2, W + 2, C), jnp.float32)

        def store_act(cur):
            # write layer output (HW, C) into the interior of the padded buffer
            act_ref[1:H + 1, 1:W + 1, :] = cur.reshape(H, W, C)

        def im2col():
            # (HW, 9*C) patch matrix; per-tap reshape is layout-free
            # (W == sublane tile), the lane-concat happens once per layer.
            taps = [act_ref[ky:ky + H, kx:kx + W, :].reshape(HW, C)
                    for ky in range(3) for kx in range(3)]
            return jnp.concatenate(taps, axis=-1)

        def conv64(idx):
            # one fused 3x3 conv = a single (HW, 576) @ (576, 64) MXU matmul
            return jnp.dot(im2col(), cw_ref[idx],
                           preferred_element_type=jnp.float32) + cb_ref[idx]

        # ---- stem: Conv2d(6,64)+LeakyReLU via precomputed im2col (K 54->64) ----
        cur = _leaky(jnp.dot(sp_ref[0], sw_ref[...],
                             preferred_element_type=jnp.float32) + sb_ref[...])
        store_act(cur)

        # ---- 4 ResBlocks: x1 = leaky(conv2(leaky(conv1(x)))); out = leaky(x1+x) ----
        for rb in range(NUM_RES):
            res = cur
            cur = _leaky(conv64(2 * rb))
            store_act(cur)
            cur = _leaky(conv64(2 * rb + 1))
            cur = _leaky(cur + res)
            store_act(cur)

        # ---- head: Conv2d(64,64)+LeakyReLU, written straight to the output ----
        o_ref[0] = _leaky(conv64(2 * NUM_RES)).astype(o_ref.dtype)

    return kernel


def _fused_forward(stem_patches, stem_w, stem_b, conv_w, conv_b, H, W):
    N = stem_patches.shape[0]
    HW = H * W
    return pl.pallas_call(
        _fused_kernel_body(H, W),
        out_shape=jax.ShapeDtypeStruct((N, HW, C), jnp.float32),
        grid=(N,),
        in_specs=[
            pl.BlockSpec((1, HW, C), lambda n: (n, 0, 0)),         # stem im2col patches
            pl.BlockSpec((C, C), lambda n: (0, 0)),                # stem weight (K padded)
            pl.BlockSpec((1, C), lambda n: (0, 0)),                # stem bias
            pl.BlockSpec((N_CONV64, K64, C), lambda n: (0, 0, 0)), # 9x (576,64) conv weights
            pl.BlockSpec((N_CONV64, 1, C), lambda n: (0, 0, 0)),   # 9x (1,64) conv biases
        ],
        out_specs=pl.BlockSpec((1, HW, C), lambda n: (n, 0, 0)),
        scratch_shapes=[pltpu.VMEM((H + 2, W + 2, C), jnp.float32)],
        compiler_params=pltpu.CompilerParams(
            dimension_semantics=("parallel",)),  # batch axis shardable on v7x megacore
    )(stem_patches, stem_w, stem_b, conv_w, conv_b)


# ----------------------------- parameter init ------------------------------

def _init_conv(key, cin, cout):
    """Deterministic synthetic init (Kaiming-ish scale); stored as (3,3,Cin,Cout)."""
    kw, kb = jax.random.split(key)
    fan_in = cin * 9
    w = jax.random.normal(kw, (3, 3, cin, cout), jnp.float32) / np.sqrt(fan_in)
    b = jax.random.normal(kb, (cout,), jnp.float32) * 0.01
    return w, b


def init_move_processor_params(key):
    keys = jax.random.split(key, 10)
    return {
        "stem": _init_conv(keys[0], 6, C),
        "res": [(_init_conv(keys[1 + 2 * i], C, C),
                 _init_conv(keys[2 + 2 * i], C, C)) for i in range(NUM_RES)],
        "head": _init_conv(keys[9], C, C),
    }


# ------------------------------- forward -----------------------------------

def move_processor(x_nchw, params):
    """Matches MoveProcessor.forward. Input/output are NCHW like PyTorch."""
    N, Cin, H, W = x_nchw.shape
    x = jnp.transpose(x_nchw, (0, 2, 3, 1)).astype(jnp.float32)      # -> NHWC

    # One-time stem im2col in the wrapper (tiny tensor); K = 9*Cin padded to 64.
    assert 9 * Cin <= C, "stem im2col K must fit the padded 64-wide K slot"
    xp = jnp.pad(x, ((0, 0), (1, 1), (1, 1), (0, 0)))
    taps = [xp[:, ky:ky + H, kx:kx + W, :] for ky in range(3) for kx in range(3)]
    k0 = 9 * Cin
    stem_patches = jnp.concatenate(taps, axis=-1).reshape(N, H * W, k0)
    stem_patches = jnp.pad(stem_patches, ((0, 0), (0, 0), (0, C - k0)))

    w0, b0 = params["stem"]
    stem_w = jnp.pad(w0.reshape(k0, C), ((0, C - k0), (0, 0)))       # (64, 64)
    stem_b = b0.reshape(1, C)

    conv_ws, conv_bs = [], []
    for (w1, b1), (w2, b2) in params["res"]:
        conv_ws += [w1.reshape(K64, C), w2.reshape(K64, C)]
        conv_bs += [b1.reshape(1, C), b2.reshape(1, C)]
    wf, bf = params["head"]
    conv_ws.append(wf.reshape(K64, C))
    conv_bs.append(bf.reshape(1, C))
    conv_w = jnp.stack(conv_ws)      # (9, 576, 64) ~1.3 MiB, stays in VMEM
    conv_b = jnp.stack(conv_bs)      # (9, 1, 64)

    out = _fused_forward(stem_patches, stem_w, stem_b, conv_w, conv_b, H, W)
    return jnp.transpose(out.reshape(N, H, W, C), (0, 3, 1, 2))      # -> NCHW


if __name__ == "__main__":
    key = jax.random.PRNGKey(0)
    kp, kx = jax.random.split(key)
    params = init_move_processor_params(kp)

    # Small NCHW input consistent with Conv2d(6, ...): batch=2, C=6, 8x8 spatial.
    x = jax.random.normal(kx, (2, 6, 8, 8), jnp.float32)

    fwd = jax.jit(move_processor)
    out = fwd(x, params)
    jax.block_until_ready(out)
    assert out.shape == (2, 64, 8, 8)
    print("KERNEL_OK")
</pallas_src>

<mosaic_0001>
module attributes {stable_mosaic.version = 11 : i64} {
  func.func @kernel(%arg0: i32, %arg1: memref<1x64x64xf32, #tpu.memory_space<vmem>>, %arg2: memref<64x64xf32, #tpu.memory_space<vmem>>, %arg3: memref<1x64xf32, #tpu.memory_space<vmem>>, %arg4: memref<9x576x64xf32, #tpu.memory_space<vmem>>, %arg5: memref<9x1x64xf32, #tpu.memory_space<vmem>>, %arg6: memref<1x64x64xf32, #tpu.memory_space<vmem>>, %arg7: memref<10x10x64xf32, #tpu.memory_space<vmem>>) attributes {dimension_semantics = [#tpu.dimension_semantics<parallel>], iteration_bounds = array<i64: 2>, scalar_prefetch = 0 : i64, scratch_operands = 1 : i64, tpu.core_type = #tpu.core_type<tc>, window_params = [{transform_indices = @transform_0, window_bounds = array<i64: 1, 64, 64>}, {pipeline_mode = #tpu.pipeline_mode<synchronous>, transform_indices = @transform_1, window_bounds = array<i64: 64, 64>}, {pipeline_mode = #tpu.pipeline_mode<synchronous>, transform_indices = @transform_2, window_bounds = array<i64: 1, 64>}, {pipeline_mode = #tpu.pipeline_mode<synchronous>, transform_indices = @transform_3, window_bounds = array<i64: 9, 576, 64>}, {pipeline_mode = #tpu.pipeline_mode<synchronous>, transform_indices = @transform_4, window_bounds = array<i64: 9, 1, 64>}, {transform_indices = @transform_5, window_bounds = array<i64: 1, 64, 64>}]} {
    %cst = arith.constant 0.000000e+00 : f32
    %0 = vector.broadcast %cst : f32 to vector<10x10x64xf32>
    %c0 = arith.constant 0 : index
    %c0_0 = arith.constant 0 : index
    %c0_1 = arith.constant 0 : index
    %1 = vector.load %arg7[%c0, %c0_0, %c0_1] : memref<10x10x64xf32, #tpu.memory_space<vmem>>, vector<10x10x64xf32>
    tpu.vector_store %arg7[%c0, %c0_0, %c0_1], %0 {strides = array<i32>} : memref<10x10x64xf32, #tpu.memory_space<vmem>>, vector<10x10x64xf32>,
    %c0_2 = arith.constant 0 : index
    %c0_3 = arith.constant 0 : index
    %c0_4 = arith.constant 0 : index
    %2 = vector.load %arg1[%c0_2, %c0_3, %c0_4] : memref<1x64x64xf32, #tpu.memory_space<vmem>>, vector<1x64x64xf32>
    %3 = vector.shape_cast %2 : vector<1x64x64xf32> to vector<64x64xf32>
    %c0_5 = arith.constant 0 : index
    %c0_6 = arith.constant 0 : index
    %4 = vector.load %arg2[%c0_5, %c0_6] : memref<64x64xf32, #tpu.memory_space<vmem>>, vector<64x64xf32>
    %cst_7 = arith.constant dense<0.000000e+00> : vector<64x64xf32>
    %5 = tpu.matmul %3, %4, %cst_7 {dimension_numbers = #tpu.dot_dimension_numbers<[1], [0], [0], [1], [0, 0, 1, 1], [], []>} : vector<64x64xf32>, vector<64x64xf32>, vector<64x64xf32> -> vector<64x64xf32>
    %c0_8 = arith.constant 0 : index
    %c0_9 = arith.constant 0 : index
    %6 = vector.load %arg3[%c0_8, %c0_9] : memref<1x64xf32, #tpu.memory_space<vmem>>, vector<1x64xf32>
    %7 = vector.broadcast %6 : vector<1x64xf32> to vector<64x64xf32>
    %8 = arith.addf %5, %7 : vector<64x64xf32>
    %cst_10 = arith.constant 0.000000e+00 : f32
    %9 = vector.broadcast %cst_10 : f32 to vector<64x64xf32>
    %10 = arith.cmpf ogt, %8, %9 : vector<64x64xf32>
    %cst_11 = arith.constant 0.00999999977 : f32
    %11 = vector.broadcast %cst_11 : f32 to vector<64x64xf32>
    %12 = arith.mulf %11, %8 : vector<64x64xf32>
    %13 = arith.select %10, %8, %12 : vector<64x64xi1>, vector<64x64xf32>
    %14 = vector.shape_cast %13 : vector<64x64xf32> to vector<8x8x64xf32>
    %c1 = arith.constant 1 : index
    %c1_12 = arith.constant 1 : index
    %c0_13 = arith.constant 0 : index
    %15 = vector.load %arg7[%c1, %c1_12, %c0_13] : memref<10x10x64xf32, #tpu.memory_space<vmem>>, vector<8x8x64xf32>
    tpu.vector_store %arg7[%c1, %c1_12, %c0_13], %14 {strides = array<i32>} : memref<10x10x64xf32, #tpu.memory_space<vmem>>, vector<8x8x64xf32>,
    %c0_14 = arith.constant 0 : index
    %c0_15 = arith.constant 0 : index
    %c0_16 = arith.constant 0 : index
    %16 = vector.load %arg7[%c0_14, %c0_15, %c0_16] : memref<10x10x64xf32, #tpu.memory_space<vmem>>, vector<8x8x64xf32>
    %17 = vector.shape_cast %16 : vector<8x8x64xf32> to vector<64x64xf32>
    %c0_17 = arith.constant 0 : index
    %c1_18 = arith.constant 1 : index
    %c0_19 = arith.constant 0 : index
    %18 = vector.load %arg7[%c0_17, %c1_18, %c0_19] : memref<10x10x64xf32, #tpu.memory_space<vmem>>, vector<8x8x64xf32>
    %19 = vector.shape_cast %18 : vector<8x8x64xf32> to vector<64x64xf32>
    %c0_20 = arith.constant 0 : index
    %c2 = arith.constant 2 : index
    %c0_21 = arith.constant 0 : index
    %20 = vector.load %arg7[%c0_20, %c2, %c0_21] : memref<10x10x64xf32, #tpu.memory_space<vmem>>, vector<8x8x64xf32>
    %21 = vector.shape_cast %20 : vector<8x8x64xf32> to vector<64x64xf32>
    %c1_22 = arith.constant 1 : index
    %c0_23 = arith.constant 0 : index
    %c0_24 = arith.constant 0 : index
    %22 = vector.load %arg7[%c1_22, %c0_23, %c0_24] : memref<10x10x64xf32, #tpu.memory_space<vmem>>, vector<8x8x64xf32>
    %23 = vector.shape_cast %22 : vector<8x8x64xf32> to vector<64x64xf32>
    %c1_25 = arith.constant 1 : index
    %c1_26 = arith.constant 1 : index
    %c0_27 = arith.constant 0 : index
    %24 = vector.load %arg7[%c1_25, %c1_26, %c0_27] : memref<10x10x64xf32, #tpu.memory_space<vmem>>, vector<8x8x64xf32>
    %25 = vector.shape_cast %24 : vector<8x8x64xf32> to vector<64x64xf32>
    %c1_28 = arith.constant 1 : index
    %c2_29 = arith.constant 2 : index
    %c0_30 = arith.constant 0 : index
    %26 = vector.load %arg7[%c1_28, %c2_29, %c0_30] : memref<10x10x64xf32, #tpu.memory_space<vmem>>, vector<8x8x64xf32>
    %27 = vector.shape_cast %26 : vector<8x8x64xf32> to vector<64x64xf32>
    %c2_31 = arith.constant 2 : index
    %c0_32 = arith.constant 0 : index
    %c0_33 = arith.constant 0 : index
    %28 = vector.load %arg7[%c2_31, %c0_32, %c0_33] : memref<10x10x64xf32, #tpu.memory_space<vmem>>, vector<8x8x64xf32>
    %29 = vector.shape_cast %28 : vector<8x8x64xf32> to vector<64x64xf32>
    %c2_34 = arith.constant 2 : index
    %c1_35 = arith.constant 1 : index
    %c0_36 = arith.constant 0 : index
    %30 = vector.load %arg7[%c2_34, %c1_35, %c0_36] : memref<10x10x64xf32, #tpu.memory_space<vmem>>, vector<8x8x64xf32>
    %31 = vector.shape_cast %30 : vector<8x8x64xf32> to vector<64x64xf32>
    %c2_37 = arith.constant 2 : index
    %c2_38 = arith.constant 2 : index
    %c0_39 = arith.constant 0 : index
    %32 = vector.load %arg7[%c2_37, %c2_38, %c0_39] : memref<10x10x64xf32, #tpu.memory_space<vmem>>, vector<8x8x64xf32>
    %33 = vector.shape_cast %32 : vector<8x8x64xf32> to vector<64x64xf32>
    %34 = tpu.concatenate %17, %19, %21, %23, %25, %27, %29, %31, %33 in 1 : vector<64x64xf32>, vector<64x64xf32>, vector<64x64xf32>, vector<64x64xf32>, vector<64x64xf32>, vector<64x64xf32>, vector<64x64xf32>, vector<64x64xf32>, vector<64x64xf32> -> vector<64x576xf32>
    %c0_40 = arith.constant 0 : index
    %c0_41 = arith.constant 0 : index
    %c0_42 = arith.constant 0 : index
    %35 = vector.load %arg4[%c0_40, %c0_41, %c0_42] : memref<9x576x64xf32, #tpu.memory_space<vmem>>, vector<1x576x64xf32>
    %36 = vector.shape_cast %35 : vector<1x576x64xf32> to vector<576x64xf32>
    %cst_43 = arith.constant dense<0.000000e+00> : vector<64x64xf32>
    %37 = tpu.matmul %34, %36, %cst_43 {dimension_numbers = #tpu.dot_dimension_numbers<[1], [0], [0], [1], [0, 0, 1, 1], [], []>} : vector<64x576xf32>, vector<576x64xf32>, vector<64x64xf32> -> vector<64x64xf32>
    %c0_44 = arith.constant 0 : index
    %c0_45 = arith.constant 0 : index
    %c0_46 = arith.constant 0 : index
    %38 = vector.load %arg5[%c0_44, %c0_45, %c0_46] : memref<9x1x64xf32, #tpu.memory_space<vmem>>, vector<1x1x64xf32>
    %39 = vector.shape_cast %38 : vector<1x1x64xf32> to vector<1x64xf32>
    %40 = vector.broadcast %39 : vector<1x64xf32> to vector<64x64xf32>
    %41 = arith.addf %37, %40 : vector<64x64xf32>
    %cst_47 = arith.constant 0.000000e+00 : f32
    %42 = vector.broadcast %cst_47 : f32 to vector<64x64xf32>
    %43 = arith.cmpf ogt, %41, %42 : vector<64x64xf32>
    %cst_48 = arith.constant 0.00999999977 : f32
    %44 = vector.broadcast %cst_48 : f32 to vector<64x64xf32>
    %45 = arith.mulf %44, %41 : vector<64x64xf32>
    %46 = arith.select %43, %41, %45 : vector<64x64xi1>, vector<64x64xf32>
    %47 = vector.shape_cast %46 : vector<64x64xf32> to vector<8x8x64xf32>
    %c1_49 = arith.constant 1 : index
    %c1_50 = arith.constant 1 : index
    %c0_51 = arith.constant 0 : index
    %48 = vector.load %arg7[%c1_49, %c1_50, %c0_51] : memref<10x10x64xf32, #tpu.memory_space<vmem>>, vector<8x8x64xf32>
    tpu.vector_store %arg7[%c1_49, %c1_50, %c0_51], %47 {strides = array<i32>} : memref<10x10x64xf32, #tpu.memory_space<vmem>>, vector<8x8x64xf32>,
    %c0_52 = arith.constant 0 : index
    %c0_53 = arith.constant 0 : index
    %c0_54 = arith.constant 0 : index
    %49 = vector.load %arg7[%c0_52, %c0_53, %c0_54] : memref<10x10x64xf32, #tpu.memory_space<vmem>>, vector<8x8x64xf32>
    %50 = vector.shape_cast %49 : vector<8x8x64xf32> to vector<64x64xf32>
    %c0_55 = arith.constant 0 : index
    %c1_56 = arith.constant 1 : index
    %c0_57 = arith.constant 0 : index
    %51 = vector.load %arg7[%c0_55, %c1_56, %c0_57] : memref<10x10x64xf32, #tpu.memory_space<vmem>>, vector<8x8x64xf32>
    %52 = vector.shape_cast %51 : vector<8x8x64xf32> to vector<64x64xf32>
    %c0_58 = arith.constant 0 : index
    %c2_59 = arith.constant 2 : index
    %c0_60 = arith.constant 0 : index
    %53 = vector.load %arg7[%c0_58, %c2_59, %c0_60] : memref<10x10x64xf32, #tpu.memory_space<vmem>>, vector<8x8x64xf32>
    %54 = vector.shape_cast %53 : vector<8x8x64xf32> to vector<64x64xf32>
    %c1_61 = arith.constant 1 : index
    %c0_62 = arith.constant 0 : index
    %c0_63 = arith.constant 0 : index
    %55 = vector.load %arg7[%c1_61, %c0_62, %c0_63] : memref<10x10x64xf32, #tpu.memory_space<vmem>>, vector<8x8x64xf32>
    %56 = vector.shape_cast %55 : vector<8x8x64xf32> to vector<64x64xf32>
    %c1_64 = arith.constant 1 : index
    %c1_65 = arith.constant 1 : index
    %c0_66 = arith.constant 0 : index
    %57 = vector.load %arg7[%c1_64, %c1_65, %c0_66] : memref<10x10x64xf32, #tpu.memory_space<vmem>>, vector<8x8x64xf32>
    %58 = vector.shape_cast %57 : vector<8x8x64xf32> to vector<64x64xf32>
    %c1_67 = arith.constant 1 : index
    %c2_68 = arith.constant 2 : index
    %c0_69 = arith.constant 0 : index
    %59 = vector.load %arg7[%c1_67, %c2_68, %c0_69] : memref<10x10x64xf32, #tpu.memory_space<vmem>>, vector<8x8x64xf32>
    %60 = vector.shape_cast %59 : vector<8x8x64xf32> to vector<64x64xf32>
    %c2_70 = arith.constant 2 : index
    %c0_71 = arith.constant 0 : index
    %c0_72 = arith.constant 0 : index
    %61 = vector.load %arg7[%c2_70, %c0_71, %c0_72] : memref<10x10x64xf32, #tpu.memory_space<vmem>>, vector<8x8x64xf32>
    %62 = vector.shape_cast %61 : vector<8x8x64xf32> to vector<64x64xf32>
    %c2_73 = arith.constant 2 : index
    %c1_74 = arith.constant 1 : index
    %c0_75 = arith.constant 0 : index
    %63 = vector.load %arg7[%c2_73, %c1_74, %c0_75] : memref<10x10x64xf32, #tpu.memory_space<vmem>>, vector<8x8x64xf32>
    %64 = vector.shape_cast %63 : vector<8x8x64xf32> to vector<64x64xf32>
    %c2_76 = arith.constant 2 : index
    %c2_77 = arith.constant 2 : index
    %c0_78 = arith.constant 0 : index
    %65 = vector.load %arg7[%c2_76, %c2_77, %c0_78] : memref<10x10x64xf32, #tpu.memory_space<vmem>>, vector<8x8x64xf32>
    %66 = vector.shape_cast %65 : vector<8x8x64xf32> to vector<64x64xf32>
    %67 = tpu.concatenate %50, %52, %54, %56, %58, %60, %62, %64, %66 in 1 : vector<64x64xf32>, vector<64x64xf32>, vector<64x64xf32>, vector<64x64xf32>, vector<64x64xf32>, vector<64x64xf32>, vector<64x64xf32>, vector<64x64xf32>, vector<64x64xf32> -> vector<64x576xf32>
    %c1_79 = arith.constant 1 : index
    %c0_80 = arith.constant 0 : index
    %c0_81 = arith.constant 0 : index
    %68 = vector.load %arg4[%c1_79, %c0_80, %c0_81] : memref<9x576x64xf32, #tpu.memory_space<vmem>>, vector<1x576x64xf32>
    %69 = vector.shape_cast %68 : vector<1x576x64xf32> to vector<576x64xf32>
    %cst_82 = arith.constant dense<0.000000e+00> : vector<64x64xf32>
    %70 = tpu.matmul %67, %69, %cst_82 {dimension_numbers = #tpu.dot_dimension_numbers<[1], [0], [0], [1], [0, 0, 1, 1], [], []>} : vector<64x576xf32>, vector<576x64xf32>, vector<64x64xf32> -> vector<64x64xf32>
    %c1_83 = arith.constant 1 : index
    %c0_84 = arith.constant 0 : index
    %c0_85 = arith.constant 0 : index
    %71 = vector.load %arg5[%c1_83, %c0_84, %c0_85] : memref<9x1x64xf32, #tpu.memory_space<vmem>>, vector<1x1x64xf32>
    %72 = vector.shape_cast %71 : vector<1x1x64xf32> to vector<1x64xf32>
    %73 = vector.broadcast %72 : vector<1x64xf32> to vector<64x64xf32>
    %74 = arith.addf %70, %73 : vector<64x64xf32>
    %cst_86 = arith.constant 0.000000e+00 : f32
    %75 = vector.broadcast %cst_86 : f32 to vector<64x64xf32>
    %76 = arith.cmpf ogt, %74, %75 : vector<64x64xf32>
    %cst_87 = arith.constant 0.00999999977 : f32
    %77 = vector.broadcast %cst_87 : f32 to vector<64x64xf32>
    %78 = arith.mulf %77, %74 : vector<64x64xf32>
    %79 = arith.select %76, %74, %78 : vector<64x64xi1>, vector<64x64xf32>
    %80 = arith.addf %79, %13 : vector<64x64xf32>
    %cst_88 = arith.constant 0.000000e+00 : f32
    %81 = vector.broadcast %cst_88 : f32 to vector<64x64xf32>
    %82 = arith.cmpf ogt, %80, %81 : vector<64x64xf32>
    %cst_89 = arith.constant 0.00999999977 : f32
    %83 = vector.broadcast %cst_89 : f32 to vector<64x64xf32>
    %84 = arith.mulf %83, %80 : vector<64x64xf32>
    %85 = arith.select %82, %80, %84 : vector<64x64xi1>, vector<64x64xf32>
    %86 = vector.shape_cast %85 : vector<64x64xf32> to vector<8x8x64xf32>
    %c1_90 = arith.constant 1 : index
    %c1_91 = arith.constant 1 : index
    %c0_92 = arith.constant 0 : index
    %87 = vector.load %arg7[%c1_90, %c1_91, %c0_92] : memref<10x10x64xf32, #tpu.memory_space<vmem>>, vector<8x8x64xf32>
    tpu.vector_store %arg7[%c1_90, %c1_91, %c0_92], %86 {strides = array<i32>} : memref<10x10x64xf32, #tpu.memory_space<vmem>>, vector<8x8x64xf32>,
    %c0_93 = arith.constant 0 : index
    %c0_94 = arith.constant 0 : index
    %c0_95 = arith.constant 0 : index
    %88 = vector.load %arg7[%c0_93, %c0_94, %c0_95] : memref<10x10x64xf32, #tpu.memory_space<vmem>>, vector<8x8x64xf32>
    %89 = vector.shape_cast %88 : vector<8x8x64xf32> to vector<64x64xf32>
    %c0_96 = arith.constant 0 : index
    %c1_97 = arith.constant 1 : index
    %c0_98 = arith.constant 0 : index
    %90 = vector.load %arg7[%c0_96, %c1_97, %c0_98] : memref<10x10x64xf32, #tpu.memory_space<vmem>>, vector<8x8x64xf32>
    %91 = vector.shape_cast %90 : vector<8x8x64xf32> to vector<64x64xf32>
    %c0_99 = arith.constant 0 : index
    %c2_100 = arith.constant 2 : index
    %c0_101 = arith.constant 0 : index
    %92 = vector.load %arg7[%c0_99, %c2_100, %c0_101] : memref<10x10x64xf32, #tpu.memory_space<vmem>>, vector<8x8x64xf32>
    %93 = vector.shape_cast %92 : vector<8x8x64xf32> to vector<64x64xf32>
    %c1_102 = arith.constant 1 : index
    %c0_103 = arith.constant 0 : index
    %c0_104 = arith.constant 0 : index
    %94 = vector.load %arg7[%c1_102, %c0_103, %c0_104] : memref<10x10x64xf32, #tpu.memory_space<vmem>>, vector<8x8x64xf32>
    %95 = vector.shape_cast %94 : vector<8x8x64xf32> to vector<64x64xf32>
    %c1_105 = arith.constant 1 : index
    %c1_106 = arith.constant 1 : index
    %c0_107 = arith.constant 0 : index
    %96 = vector.load %arg7[%c1_105, %c1_106, %c0_107] : memref<10x10x64xf32, #tpu.memory_space<vmem>>, vector<8x8x64xf32>
    %97 = vector.shape_cast %96 : vector<8x8x64xf32> to vector<64x64xf32>
    %c1_108 = arith.constant 1 : index
    %c2_109 = arith.constant 2 : index
    %c0_110 = arith.constant 0 : index
    %98 = vector.load %arg7[%c1_108, %c2_109, %c0_110] : memref<10x10x64xf32, #tpu.memory_space<vmem>>, vector<8x8x64xf32>
    %99 = vector.shape_cast %98 : vector<8x8x64xf32> to vector<64x64xf32>
    %c2_111 = arith.constant 2 : index
    %c0_112 = arith.constant 0 : index
    %c0_113 = arith.constant 0 : index
    %100 = vector.load %arg7[%c2_111, %c0_112, %c0_113] : memref<10x10x64xf32, #tpu.memory_space<vmem>>, vector<8x8x64xf32>
    %101 = vector.shape_cast %100 : vector<8x8x64xf32> to vector<64x64xf32>
    %c2_114 = arith.constant 2 : index
    %c1_115 = arith.constant 1 : index
    %c0_116 = arith.constant 0 : index
    %102 = vector.load %arg7[%c2_114, %c1_115, %c0_116] : memref<10x10x64xf32, #tpu.memory_space<vmem>>, vector<8x8x64xf32>
    %103 = vector.shape_cast %102 : vector<8x8x64xf32> to vector<64x64xf32>
    %c2_117 = arith.constant 2 : index
    %c2_118 = arith.constant 2 : index
    %c0_119 = arith.constant 0 : index
    %104 = vector.load %arg7[%c2_117, %c2_118, %c0_119] : memref<10x10x64xf32, #tpu.memory_space<vmem>>, vector<8x8x64xf32>
    %105 = vector.shape_cast %104 : vector<8x8x64xf32> to vector<64x64xf32>
    %106 = tpu.concatenate %89, %91, %93, %95, %97, %99, %101, %103, %105 in 1 : vector<64x64xf32>, vector<64x64xf32>, vector<64x64xf32>, vector<64x64xf32>, vector<64x64xf32>, vector<64x64xf32>, vector<64x64xf32>, vector<64x64xf32>, vector<64x64xf32> -> vector<64x576xf32>
    %c2_120 = arith.constant 2 : index
    %c0_121 = arith.constant 0 : index
    %c0_122 = arith.constant 0 : index
    %107 = vector.load %arg4[%c2_120, %c0_121, %c0_122] : memref<9x576x64xf32, #tpu.memory_space<vmem>>, vector<1x576x64xf32>
    %108 = vector.shape_cast %107 : vector<1x576x64xf32> to vector<576x64xf32>
    %cst_123 = arith.constant dense<0.000000e+00> : vector<64x64xf32>
    %109 = tpu.matmul %106, %108, %cst_123 {dimension_numbers = #tpu.dot_dimension_numbers<[1], [0], [0], [1], [0, 0, 1, 1], [], []>} : vector<64x576xf32>, vector<576x64xf32>, vector<64x64xf32> -> vector<64x64xf32>
    %c2_124 = arith.constant 2 : index
    %c0_125 = arith.constant 0 : index
    %c0_126 = arith.constant 0 : index
    %110 = vector.load %arg5[%c2_124, %c0_125, %c0_126] : memref<9x1x64xf32, #tpu.memory_space<vmem>>, vector<1x1x64xf32>
    %111 = vector.shape_cast %110 : vector<1x1x64xf32> to vector<1x64xf32>
    %112 = vector.broadcast %111 : vector<1x64xf32> to vector<64x64xf32>
    %113 = arith.addf %109, %112 : vector<64x64xf32>
    %cst_127 = arith.constant 0.000000e+00 : f32
    %114 = vector.broadcast %cst_127 : f32 to vector<64x64xf32>
    %115 = arith.cmpf ogt, %113, %114 : vector<64x64xf32>
    %cst_128 = arith.constant 0.00999999977 : f32
    %116 = vector.broadcast %cst_128 : f32 to vector<64x64xf32>
    %117 = arith.mulf %116, %113 : vector<64x64xf32>
    %118 = arith.select %115, %113, %117 : vector<64x64xi1>, vector<64x64xf32>
    %119 = vector.shape_cast %118 : vector<64x64xf32> to vector<8x8x64xf32>
    %c1_129 = arith.constant 1 : index
    %c1_130 = arith.constant 1 : index
    %c0_131 = arith.constant 0 : index
    %120 = vector.load %arg7[%c1_129, %c1_130, %c0_131] : memref<10x10x64xf32, #tpu.memory_space<vmem>>, vector<8x8x64xf32>
    tpu.vector_store %arg7[%c1_129, %c1_130, %c0_131], %119 {strides = array<i32>} : memref<10x10x64xf32, #tpu.memory_space<vmem>>, vector<8x8x64xf32>,
    %c0_132 = arith.constant 0 : index
    %c0_133 = arith.constant 0 : index
    %c0_134 = arith.constant 0 : index
    %121 = vector.load %arg7[%c0_132, %c0_133, %c0_134] : memref<10x10x64xf32, #tpu.memory_space<vmem>>, vector<8x8x64xf32>
    %122 = vector.shape_cast %121 : vector<8x8x64xf32> to vector<64x64xf32>
    %c0_135 = arith.constant 0 : index
    %c1_136 = arith.constant 1 : index
    %c0_137 = arith.constant 0 : index
    %123 = vector.load %arg7[%c0_135, %c1_136, %c0_137] : memref<10x10x64xf32, #tpu.memory_space<vmem>>, vector<8x8x64xf32>
    %124 = vector.shape_cast %123 : vector<8x8x64xf32> to vector<64x64xf32>
    %c0_138 = arith.constant 0 : index
    %c2_139 = arith.constant 2 : index
    %c0_140 = arith.constant 0 : index
    %125 = vector.load %arg7[%c0_138, %c2_139, %c0_140] : memref<10x10x64xf32, #tpu.memory_space<vmem>>, vector<8x8x64xf32>
    %126 = vector.shape_cast %125 : vector<8x8x64xf32> to vector<64x64xf32>
    %c1_141 = arith.constant 1 : index
    %c0_142 = arith.constant 0 : index
    %c0_143 = arith.constant 0 : index
    %127 = vector.load %arg7[%c1_141, %c0_142, %c0_143] : memref<10x10x64xf32, #tpu.memory_space<vmem>>, vector<8x8x64xf32>
    %128 = vector.shape_cast %127 : vector<8x8x64xf32> to vector<64x64xf32>
    %c1_144 = arith.constant 1 : index
    %c1_145 = arith.constant 1 : index
    %c0_146 = arith.constant 0 : index
    %129 = vector.load %arg7[%c1_144, %c1_145, %c0_146] : memref<10x10x64xf32, #tpu.memory_space<vmem>>, vector<8x8x64xf32>
    %130 = vector.shape_cast %129 : vector<8x8x64xf32> to vector<64x64xf32>
    %c1_147 = arith.constant 1 : index
    %c2_148 = arith.constant 2 : index
    %c0_149 = arith.constant 0 : index
    %131 = vector.load %arg7[%c1_147, %c2_148, %c0_149] : memref<10x10x64xf32, #tpu.memory_space<vmem>>, vector<8x8x64xf32>
    %132 = vector.shape_cast %131 : vector<8x8x64xf32> to vector<64x64xf32>
    %c2_150 = arith.constant 2 : index
    %c0_151 = arith.constant 0 : index
    %c0_152 = arith.constant 0 : index
    %133 = vector.load %arg7[%c2_150, %c0_151, %c0_152] : memref<10x10x64xf32, #tpu.memory_space<vmem>>, vector<8x8x64xf32>
    %134 = vector.shape_cast %133 : vector<8x8x64xf32> to vector<64x64xf32>
    %c2_153 = arith.constant 2 : index
    %c1_154 = arith.constant 1 : index
    %c0_155 = arith.constant 0 : index
    %135 = vector.load %arg7[%c2_153, %c1_154, %c0_155] : memref<10x10x64xf32, #tpu.memory_space<vmem>>, vector<8x8x64xf32>
    %136 = vector.shape_cast %135 : vector<8x8x64xf32> to vector<64x64xf32>
    %c2_156 = arith.constant 2 : index
    %c2_157 = arith.constant 2 : index
    %c0_158 = arith.constant 0 : index
    %137 = vector.load %arg7[%c2_156, %c2_157, %c0_158] : memref<10x10x64xf32, #tpu.memory_space<vmem>>, vector<8x8x64xf32>
    %138 = vector.shape_cast %137 : vector<8x8x64xf32> to vector<64x64xf32>
    %139 = tpu.concatenate %122, %124, %126, %128, %130, %132, %134, %136, %138 in 1 : vector<64x64xf32>, vector<64x64xf32>, vector<64x64xf32>, vector<64x64xf32>, vector<64x64xf32>, vector<64x64xf32>, vector<64x64xf32>, vector<64x64xf32>, vector<64x64xf32> -> vector<64x576xf32>
    %c3 = arith.constant 3 : index
    %c0_159 = arith.constant 0 : index
    %c0_160 = arith.constant 0 : index
    %140 = vector.load %arg4[%c3, %c0_159, %c0_160] : memref<9x576x64xf32, #tpu.memory_space<vmem>>, vector<1x576x64xf32>
    %141 = vector.shape_cast %140 : vector<1x576x64xf32> to vector<576x64xf32>
    %cst_161 = arith.constant dense<0.000000e+00> : vector<64x64xf32>
    %142 = tpu.matmul %139, %141, %cst_161 {dimension_numbers = #tpu.dot_dimension_numbers<[1], [0], [0], [1], [0, 0, 1, 1], [], []>} : vector<64x576xf32>, vector<576x64xf32>, vector<64x64xf32> -> vector<64x64xf32>
    %c3_162 = arith.constant 3 : index
    %c0_163 = arith.constant 0 : index
    %c0_164 = arith.constant 0 : index
    %143 = vector.load %arg5[%c3_162, %c0_163, %c0_164] : memref<9x1x64xf32, #tpu.memory_space<vmem>>, vector<1x1x64xf32>
    %144 = vector.shape_cast %143 : vector<1x1x64xf32> to vector<1x64xf32>
    %145 = vector.broadcast %144 : vector<1x64xf32> to vector<64x64xf32>
    %146 = arith.addf %142, %145 : vector<64x64xf32>
    %cst_165 = arith.constant 0.000000e+00 : f32
    %147 = vector.broadcast %cst_165 : f32 to vector<64x64xf32>
    %148 = arith.cmpf ogt, %146, %147 : vector<64x64xf32>
    %cst_166 = arith.constant 0.00999999977 : f32
    %149 = vector.broadcast %cst_166 : f32 to vector<64x64xf32>
    %150 = arith.mulf %149, %146 : vector<64x64xf32>
    %151 = arith.select %148, %146, %150 : vector<64x64xi1>, vector<64x64xf32>
    %152 = arith.addf %151, %85 : vector<64x64xf32>
    %cst_167 = arith.constant 0.000000e+00 : f32
    %153 = vector.broadcast %cst_167 : f32 to vector<64x64xf32>
    %154 = arith.cmpf ogt, %152, %153 : vector<64x64xf32>
    %cst_168 = arith.constant 0.00999999977 : f32
    %155 = vector.broadcast %cst_168 : f32 to vector<64x64xf32>
    %156 = arith.mulf %155, %152 : vector<64x64xf32>
    %157 = arith.select %154, %152, %156 : vector<64x64xi1>, vector<64x64xf32>
    %158 = vector.shape_cast %157 : vector<64x64xf32> to vector<8x8x64xf32>
    %c1_169 = arith.constant 1 : index
    %c1_170 = arith.constant 1 : index
    %c0_171 = arith.constant 0 : index
    %159 = vector.load %arg7[%c1_169, %c1_170, %c0_171] : memref<10x10x64xf32, #tpu.memory_space<vmem>>, vector<8x8x64xf32>
    tpu.vector_store %arg7[%c1_169, %c1_170, %c0_171], %158 {strides = array<i32>} : memref<10x10x64xf32, #tpu.memory_space<vmem>>, vector<8x8x64xf32>,
    %c0_172 = arith.constant 0 : index
    %c0_173 = arith.constant 0 : index
    %c0_174 = arith.constant 0 : index
    %160 = vector.load %arg7[%c0_172, %c0_173, %c0_174] : memref<10x10x64xf32, #tpu.memory_space<vmem>>, vector<8x8x64xf32>
    %161 = vector.shape_cast %160 : vector<8x8x64xf32> to vector<64x64xf32>
    %c0_175 = arith.constant 0 : index
    %c1_176 = arith.constant 1 : index
    %c0_177 = arith.constant 0 : index
    %162 = vector.load %arg7[%c0_175, %c1_176, %c0_177] : memref<10x10x64xf32, #tpu.memory_space<vmem>>, vector<8x8x64xf32>
    %163 = vector.shape_cast %162 : vector<8x8x64xf32> to vector<64x64xf32>
    %c0_178 = arith.constant 0 : index
    %c2_179 = arith.constant 2 : index
    %c0_180 = arith.constant 0 : index
    %164 = vector.load %arg7[%c0_178, %c2_179, %c0_180] : memref<10x10x64xf32, #tpu.memory_space<vmem>>, vector<8x8x64xf32>
    %165 = vector.shape_cast %164 : vector<8x8x64xf32> to vector<64x64xf32>
    %c1_181 = arith.constant 1 : index
    %c0_182 = arith.constant 0 : index
    %c0_183 = arith.constant 0 : index
    %166 = vector.load %arg7[%c1_181, %c0_182, %c0_183] : memref<10x10x64xf32, #tpu.memory_space<vmem>>, vector<8x8x64xf32>
    %167 = vector.shape_cast %166 : vector<8x8x64xf32> to vector<64x64xf32>
    %c1_184 = arith.constant 1 : index
    %c1_185 = arith.constant 1 : index
    %c0_186 = arith.constant 0 : index
    %168 = vector.load %arg7[%c1_184, %c1_185, %c0_186] : memref<10x10x64xf32, #tpu.memory_space<vmem>>, vector<8x8x64xf32>
    %169 = vector.shape_cast %168 : vector<8x8x64xf32> to vector<64x64xf32>
    %c1_187 = arith.constant 1 : index
    %c2_188 = arith.constant 2 : index
    %c0_189 = arith.constant 0 : index
    %170 = vector.load %arg7[%c1_187, %c2_188, %c0_189] : memref<10x10x64xf32, #tpu.memory_space<vmem>>, vector<8x8x64xf32>
    %171 = vector.shape_cast %170 : vector<8x8x64xf32> to vector<64x64xf32>
    %c2_190 = arith.constant 2 : index
    %c0_191 = arith.constant 0 : index
    %c0_192 = arith.constant 0 : index
    %172 = vector.load %arg7[%c2_190, %c0_191, %c0_192] : memref<10x10x64xf32, #tpu.memory_space<vmem>>, vector<8x8x64xf32>
    %173 = vector.shape_cast %172 : vector<8x8x64xf32> to vector<64x64xf32>
    %c2_193 = arith.constant 2 : index
    %c1_194 = arith.constant 1 : index
    %c0_195 = arith.constant 0 : index
    %174 = vector.load %arg7[%c2_193, %c1_194, %c0_195] : memref<10x10x64xf32, #tpu.memory_space<vmem>>, vector<8x8x64xf32>
    %175 = vector.shape_cast %174 : vector<8x8x64xf32> to vector<64x64xf32>
    %c2_196 = arith.constant 2 : index
    %c2_197 = arith.constant 2 : index
    %c0_198 = arith.constant 0 : index
    %176 = vector.load %arg7[%c2_196, %c2_197, %c0_198] : memref<10x10x64xf32, #tpu.memory_space<vmem>>, vector<8x8x64xf32>
    %177 = vector.shape_cast %176 : vector<8x8x64xf32> to vector<64x64xf32>
    %178 = tpu.concatenate %161, %163, %165, %167, %169, %171, %173, %175, %177 in 1 : vector<64x64xf32>, vector<64x64xf32>, vector<64x64xf32>, vector<64x64xf32>, vector<64x64xf32>, vector<64x64xf32>, vector<64x64xf32>, vector<64x64xf32>, vector<64x64xf32> -> vector<64x576xf32>
    %c4 = arith.constant 4 : index
    %c0_199 = arith.constant 0 : index
    %c0_200 = arith.constant 0 : index
    %179 = vector.load %arg4[%c4, %c0_199, %c0_200] : memref<9x576x64xf32, #tpu.memory_space<vmem>>, vector<1x576x64xf32>
    %180 = vector.shape_cast %179 : vector<1x576x64xf32> to vector<576x64xf32>
    %cst_201 = arith.constant dense<0.000000e+00> : vector<64x64xf32>
    %181 = tpu.matmul %178, %180, %cst_201 {dimension_numbers = #tpu.dot_dimension_numbers<[1], [0], [0], [1], [0, 0, 1, 1], [], []>} : vector<64x576xf32>, vector<576x64xf32>, vector<64x64xf32> -> vector<64x64xf32>
    %c4_202 = arith.constant 4 : index
    %c0_203 = arith.constant 0 : index
    %c0_204 = arith.constant 0 : index
    %182 = vector.load %arg5[%c4_202, %c0_203, %c0_204] : memref<9x1x64xf32, #tpu.memory_space<vmem>>, vector<1x1x64xf32>
    %183 = vector.shape_cast %182 : vector<1x1x64xf32> to vector<1x64xf32>
    %184 = vector.broadcast %183 : vector<1x64xf32> to vector<64x64xf32>
    %185 = arith.addf %181, %184 : vector<64x64xf32>
    %cst_205 = arith.constant 0.000000e+00 : f32
    %186 = vector.broadcast %cst_205 : f32 to vector<64x64xf32>
    %187 = arith.cmpf ogt, %185, %186 : vector<64x64xf32>
    %cst_206 = arith.constant 0.00999999977 : f32
    %188 = vector.broadcast %cst_206 : f32 to vector<64x64xf32>
    %189 = arith.mulf %188, %185 : vector<64x64xf32>
    %190 = arith.select %187, %185, %189 : vector<64x64xi1>, vector<64x64xf32>
    %191 = vector.shape_cast %190 : vector<64x64xf32> to vector<8x8x64xf32>
    %c1_207 = arith.constant 1 : index
    %c1_208 = arith.constant 1 : index
    %c0_209 = arith.constant 0 : index
    %192 = vector.load %arg7[%c1_207, %c1_208, %c0_209] : memref<10x10x64xf32, #tpu.memory_space<vmem>>, vector<8x8x64xf32>
    tpu.vector_store %arg7[%c1_207, %c1_208, %c0_209], %191 {strides = array<i32>} : memref<10x10x64xf32, #tpu.memory_space<vmem>>, vector<8x8x64xf32>,
    %c0_210 = arith.constant 0 : index
    %c0_211 = arith.constant 0 : index
    %c0_212 = arith.constant 0 : index
    %193 = vector.load %arg7[%c0_210, %c0_211, %c0_212] : memref<10x10x64xf32, #tpu.memory_space<vmem>>, vector<8x8x64xf32>
    %194 = vector.shape_cast %193 : vector<8x8x64xf32> to vector<64x64xf32>
    %c0_213 = arith.constant 0 : index
    %c1_214 = arith.constant 1 : index
    %c0_215 = arith.constant 0 : index
    %195 = vector.load %arg7[%c0_213, %c1_214, %c0_215] : memref<10x10x64xf32, #tpu.memory_space<vmem>>, vector<8x8x64xf32>
    %196 = vector.shape_cast %195 : vector<8x8x64xf32> to vector<64x64xf32>
    %c0_216 = arith.constant 0 : index
    %c2_217 = arith.constant 2 : index
    %c0_218 = arith.constant 0 : index
    %197 = vector.load %arg7[%c0_216, %c2_217, %c0_218] : memref<10x10x64xf32, #tpu.memory_space<vmem>>, vector<8x8x64xf32>
    %198 = vector.shape_cast %197 : vector<8x8x64xf32> to vector<64x64xf32>
    %c1_219 = arith.constant 1 : index
    %c0_220 = arith.constant 0 : index
    %c0_221 = arith.constant 0 : index
    %199 = vector.load %arg7[%c1_219, %c0_220, %c0_221] : memref<10x10x64xf32, #tpu.memory_space<vmem>>, vector<8x8x64xf32>
    %200 = vector.shape_cast %199 : vector<8x8x64xf32> to vector<64x64xf32>
    %c1_222 = arith.constant 1 : index
    %c1_223 = arith.constant 1 : index
    %c0_224 = arith.constant 0 : index
    %201 = vector.load %arg7[%c1_222, %c1_223, %c0_224] : memref<10x10x64xf32, #tpu.memory_space<vmem>>, vector<8x8x64xf32>
    %202 = vector.shape_cast %201 : vector<8x8x64xf32> to vector<64x64xf32>
    %c1_225 = arith.constant 1 : index
    %c2_226 = arith.constant 2 : index
    %c0_227 = arith.constant 0 : index
    %203 = vector.load %arg7[%c1_225, %c2_226, %c0_227] : memref<10x10x64xf32, #tpu.memory_space<vmem>>, vector<8x8x64xf32>
    %204 = vector.shape_cast %203 : vector<8x8x64xf32> to vector<64x64xf32>
    %c2_228 = arith.constant 2 : index
    %c0_229 = arith.constant 0 : index
    %c0_230 = arith.constant 0 : index
    %205 = vector.load %arg7[%c2_228, %c0_229, %c0_230] : memref<10x10x64xf32, #tpu.memory_space<vmem>>, vector<8x8x64xf32>
    %206 = vector.shape_cast %205 : vector<8x8x64xf32> to vector<64x64xf32>
    %c2_231 = arith.constant 2 : index
    %c1_232 = arith.constant 1 : index
    %c0_233 = arith.constant 0 : index
    %207 = vector.load %arg7[%c2_231, %c1_232, %c0_233] : memref<10x10x64xf32, #tpu.memory_space<vmem>>, vector<8x8x64xf32>
    %208 = vector.shape_cast %207 : vector<8x8x64xf32> to vector<64x64xf32>
    %c2_234 = arith.constant 2 : index
    %c2_235 = arith.constant 2 : index
    %c0_236 = arith.constant 0 : index
    %209 = vector.load %arg7[%c2_234, %c2_235, %c0_236] : memref<10x10x64xf32, #tpu.memory_space<vmem>>, vector<8x8x64xf32>
    %210 = vector.shape_cast %209 : vector<8x8x64xf32> to vector<64x64xf32>
    %211 = tpu.concatenate %194, %196, %198, %200, %202, %204, %206, %208, %210 in 1 : vector<64x64xf32>, vector<64x64xf32>, vector<64x64xf32>, vector<64x64xf32>, vector<64x64xf32>, vector<64x64xf32>, vector<64x64xf32>, vector<64x64xf32>, vector<64x64xf32> -> vector<64x576xf32>
    %c5 = arith.constant 5 : index
    %c0_237 = arith.constant 0 : index
    %c0_238 = arith.constant 0 : index
    %212 = vector.load %arg4[%c5, %c0_237, %c0_238] : memref<9x576x64xf32, #tpu.memory_space<vmem>>, vector<1x576x64xf32>
    %213 = vector.shape_cast %212 : vector<1x576x64xf32> to vector<576x64xf32>
    %cst_239 = arith.constant dense<0.000000e+00> : vector<64x64xf32>
    %214 = tpu.matmul %211, %213, %cst_239 {dimension_numbers = #tpu.dot_dimension_numbers<[1], [0], [0], [1], [0, 0, 1, 1], [], []>} : vector<64x576xf32>, vector<576x64xf32>, vector<64x64xf32> -> vector<64x64xf32>
    %c5_240 = arith.constant 5 : index
    %c0_241 = arith.constant 0 : index
    %c0_242 = arith.constant 0 : index
    %215 = vector.load %arg5[%c5_240, %c0_241, %c0_242] : memref<9x1x64xf32, #tpu.memory_space<vmem>>, vector<1x1x64xf32>
    %216 = vector.shape_cast %215 : vector<1x1x64xf32> to vector<1x64xf32>
    %217 = vector.broadcast %216 : vector<1x64xf32> to vector<64x64xf32>
    %218 = arith.addf %214, %217 : vector<64x64xf32>
    %cst_243 = arith.constant 0.000000e+00 : f32
    %219 = vector.broadcast %cst_243 : f32 to vector<64x64xf32>
    %220 = arith.cmpf ogt, %218, %219 : vector<64x64xf32>
    %cst_244 = arith.constant 0.00999999977 : f32
    %221 = vector.broadcast %cst_244 : f32 to vector<64x64xf32>
    %222 = arith.mulf %221, %218 : vector<64x64xf32>
    %223 = arith.select %220, %218, %222 : vector<64x64xi1>, vector<64x64xf32>
    %224 = arith.addf %223, %157 : vector<64x64xf32>
    %cst_245 = arith.constant 0.000000e+00 : f32
    %225 = vector.broadcast %cst_245 : f32 to vector<64x64xf32>
    %226 = arith.cmpf ogt, %224, %225 : vector<64x64xf32>
    %cst_246 = arith.constant 0.00999999977 : f32
    %227 = vector.broadcast %cst_246 : f32 to vector<64x64xf32>
    %228 = arith.mulf %227, %224 : vector<64x64xf32>
    %229 = arith.select %226, %224, %228 : vector<64x64xi1>, vector<64x64xf32>
    %230 = vector.shape_cast %229 : vector<64x64xf32> to vector<8x8x64xf32>
    %c1_247 = arith.constant 1 : index
    %c1_248 = arith.constant 1 : index
    %c0_249 = arith.constant 0 : index
    %231 = vector.load %arg7[%c1_247, %c1_248, %c0_249] : memref<10x10x64xf32, #tpu.memory_space<vmem>>, vector<8x8x64xf32>
    tpu.vector_store %arg7[%c1_247, %c1_248, %c0_249], %230 {strides = array<i32>} : memref<10x10x64xf32, #tpu.memory_space<vmem>>, vector<8x8x64xf32>,
    %c0_250 = arith.constant 0 : index
    %c0_251 = arith.constant 0 : index
    %c0_252 = arith.constant 0 : index
    %232 = vector.load %arg7[%c0_250, %c0_251, %c0_252] : memref<10x10x64xf32, #tpu.memory_space<vmem>>, vector<8x8x64xf32>
    %233 = vector.shape_cast %232 : vector<8x8x64xf32> to vector<64x64xf32>
    %c0_253 = arith.constant 0 : index
    %c1_254 = arith.constant 1 : index
    %c0_255 = arith.constant 0 : index
    %234 = vector.load %arg7[%c0_253, %c1_254, %c0_255] : memref<10x10x64xf32, #tpu.memory_space<vmem>>, vector<8x8x64xf32>
    %235 = vector.shape_cast %234 : vector<8x8x64xf32> to vector<64x64xf32>
    %c0_256 = arith.constant 0 : index
    %c2_257 = arith.constant 2 : index
    %c0_258 = arith.constant 0 : index
    %236 = vector.load %arg7[%c0_256, %c2_257, %c0_258] : memref<10x10x64xf32, #tpu.memory_space<vmem>>, vector<8x8x64xf32>
    %237 = vector.shape_cast %236 : vector<8x8x64xf32> to vector<64x64xf32>
    %c1_259 = arith.constant 1 : index
    %c0_260 = arith.constant 0 : index
    %c0_261 = arith.constant 0 : index
    %238 = vector.load %arg7[%c1_259, %c0_260, %c0_261] : memref<10x10x64xf32, #tpu.memory_space<vmem>>, vector<8x8x64xf32>
    %239 = vector.shape_cast %238 : vector<8x8x64xf32> to vector<64x64xf32>
    %c1_262 = arith.constant 1 : index
    %c1_263 = arith.constant 1 : index
    %c0_264 = arith.constant 0 : index
    %240 = vector.load %arg7[%c1_262, %c1_263, %c0_264] : memref<10x10x64xf32, #tpu.memory_space<vmem>>, vector<8x8x64xf32>
    %241 = vector.shape_cast %240 : vector<8x8x64xf32> to vector<64x64xf32>
    %c1_265 = arith.constant 1 : index
    %c2_266 = arith.constant 2 : index
    %c0_267 = arith.constant 0 : index
    %242 = vector.load %arg7[%c1_265, %c2_266, %c0_267] : memref<10x10x64xf32, #tpu.memory_space<vmem>>, vector<8x8x64xf32>
    %243 = vector.shape_cast %242 : vector<8x8x64xf32> to vector<64x64xf32>
    %c2_268 = arith.constant 2 : index
    %c0_269 = arith.constant 0 : index
    %c0_270 = arith.constant 0 : index
    %244 = vector.load %arg7[%c2_268, %c0_269, %c0_270] : memref<10x10x64xf32, #tpu.memory_space<vmem>>, vector<8x8x64xf32>
    %245 = vector.shape_cast %244 : vector<8x8x64xf32> to vector<64x64xf32>
    %c2_271 = arith.constant 2 : index
    %c1_272 = arith.constant 1 : index
    %c0_273 = arith.constant 0 : index
    %246 = vector.load %arg7[%c2_271, %c1_272, %c0_273] : memref<10x10x64xf32, #tpu.memory_space<vmem>>, vector<8x8x64xf32>
    %247 = vector.shape_cast %246 : vector<8x8x64xf32> to vector<64x64xf32>
    %c2_274 = arith.constant 2 : index
    %c2_275 = arith.constant 2 : index
    %c0_276 = arith.constant 0 : index
    %248 = vector.load %arg7[%c2_274, %c2_275, %c0_276] : memref<10x10x64xf32, #tpu.memory_space<vmem>>, vector<8x8x64xf32>
    %249 = vector.shape_cast %248 : vector<8x8x64xf32> to vector<64x64xf32>
    %250 = tpu.concatenate %233, %235, %237, %239, %241, %243, %245, %247, %249 in 1 : vector<64x64xf32>, vector<64x64xf32>, vector<64x64xf32>, vector<64x64xf32>, vector<64x64xf32>, vector<64x64xf32>, vector<64x64xf32>, vector<64x64xf32>, vector<64x64xf32> -> vector<64x576xf32>
    %c6 = arith.constant 6 : index
    %c0_277 = arith.constant 0 : index
    %c0_278 = arith.constant 0 : index
    %251 = vector.load %arg4[%c6, %c0_277, %c0_278] : memref<9x576x64xf32, #tpu.memory_space<vmem>>, vector<1x576x64xf32>
    %252 = vector.shape_cast %251 : vector<1x576x64xf32> to vector<576x64xf32>
    %cst_279 = arith.constant dense<0.000000e+00> : vector<64x64xf32>
    %253 = tpu.matmul %250, %252, %cst_279 {dimension_numbers = #tpu.dot_dimension_numbers<[1], [0], [0], [1], [0, 0, 1, 1], [], []>} : vector<64x576xf32>, vector<576x64xf32>, vector<64x64xf32> -> vector<64x64xf32>
    %c6_280 = arith.constant 6 : index
    %c0_281 = arith.constant 0 : index
    %c0_282 = arith.constant 0 : index
    %254 = vector.load %arg5[%c6_280, %c0_281, %c0_282] : memref<9x1x64xf32, #tpu.memory_space<vmem>>, vector<1x1x64xf32>
    %255 = vector.shape_cast %254 : vector<1x1x64xf32> to vector<1x64xf32>
    %256 = vector.broadcast %255 : vector<1x64xf32> to vector<64x64xf32>
    %257 = arith.addf %253, %256 : vector<64x64xf32>
    %cst_283 = arith.constant 0.000000e+00 : f32
    %258 = vector.broadcast %cst_283 : f32 to vector<64x64xf32>
    %259 = arith.cmpf ogt, %257, %258 : vector<64x64xf32>
    %cst_284 = arith.constant 0.00999999977 : f32
    %260 = vector.broadcast %cst_284 : f32 to vector<64x64xf32>
    %261 = arith.mulf %260, %257 : vector<64x64xf32>
    %262 = arith.select %259, %257, %261 : vector<64x64xi1>, vector<64x64xf32>
    %263 = vector.shape_cast %262 : vector<64x64xf32> to vector<8x8x64xf32>
    %c1_285 = arith.constant 1 : index
    %c1_286 = arith.constant 1 : index
    %c0_287 = arith.constant 0 : index
    %264 = vector.load %arg7[%c1_285, %c1_286, %c0_287] : memref<10x10x64xf32, #tpu.memory_space<vmem>>, vector<8x8x64xf32>
    tpu.vector_store %arg7[%c1_285, %c1_286, %c0_287], %263 {strides = array<i32>} : memref<10x10x64xf32, #tpu.memory_space<vmem>>, vector<8x8x64xf32>,
    %c0_288 = arith.constant 0 : index
    %c0_289 = arith.constant 0 : index
    %c0_290 = arith.constant 0 : index
    %265 = vector.load %arg7[%c0_288, %c0_289, %c0_290] : memref<10x10x64xf32, #tpu.memory_space<vmem>>, vector<8x8x64xf32>
    %266 = vector.shape_cast %265 : vector<8x8x64xf32> to vector<64x64xf32>
    %c0_291 = arith.constant 0 : index
    %c1_292 = arith.constant 1 : index
    %c0_293 = arith.constant 0 : index
    %267 = vector.load %arg7[%c0_291, %c1_292, %c0_293] : memref<10x10x64xf32, #tpu.memory_space<vmem>>, vector<8x8x64xf32>
    %268 = vector.shape_cast %267 : vector<8x8x64xf32> to vector<64x64xf32>
    %c0_294 = arith.constant 0 : index
    %c2_295 = arith.constant 2 : index
    %c0_296 = arith.constant 0 : index
    %269 = vector.load %arg7[%c0_294, %c2_295, %c0_296] : memref<10x10x64xf32, #tpu.memory_space<vmem>>, vector<8x8x64xf32>
    %270 = vector.shape_cast %269 : vector<8x8x64xf32> to vector<64x64xf32>
    %c1_297 = arith.constant 1 : index
    %c0_298 = arith.constant 0 : index
    %c0_299 = arith.constant 0 : index
    %271 = vector.load %arg7[%c1_297, %c0_298, %c0_299] : memref<10x10x64xf32, #tpu.memory_space<vmem>>, vector<8x8x64xf32>
    %272 = vector.shape_cast %271 : vector<8x8x64xf32> to vector<64x64xf32>
    %c1_300 = arith.constant 1 : index
    %c1_301 = arith.constant 1 : index
    %c0_302 = arith.constant 0 : index
    %273 = vector.load %arg7[%c1_300, %c1_301, %c0_302] : memref<10x10x64xf32, #tpu.memory_space<vmem>>, vector<8x8x64xf32>
    %274 = vector.shape_cast %273 : vector<8x8x64xf32> to vector<64x64xf32>
    %c1_303 = arith.constant 1 : index
    %c2_304 = arith.constant 2 : index
    %c0_305 = arith.constant 0 : index
    %275 = vector.load %arg7[%c1_303, %c2_304, %c0_305] : memref<10x10x64xf32, #tpu.memory_space<vmem>>, vector<8x8x64xf32>
    %276 = vector.shape_cast %275 : vector<8x8x64xf32> to vector<64x64xf32>
    %c2_306 = arith.constant 2 : index
    %c0_307 = arith.constant 0 : index
    %c0_308 = arith.constant 0 : index
    %277 = vector.load %arg7[%c2_306, %c0_307, %c0_308] : memref<10x10x64xf32, #tpu.memory_space<vmem>>, vector<8x8x64xf32>
    %278 = vector.shape_cast %277 : vector<8x8x64xf32> to vector<64x64xf32>
    %c2_309 = arith.constant 2 : index
    %c1_310 = arith.constant 1 : index
    %c0_311 = arith.constant 0 : index
    %279 = vector.load %arg7[%c2_309, %c1_310, %c0_311] : memref<10x10x64xf32, #tpu.memory_space<vmem>>, vector<8x8x64xf32>
    %280 = vector.shape_cast %279 : vector<8x8x64xf32> to vector<64x64xf32>
    %c2_312 = arith.constant 2 : index
    %c2_313 = arith.constant 2 : index
    %c0_314 = arith.constant 0 : index
    %281 = vector.load %arg7[%c2_312, %c2_313, %c0_314] : memref<10x10x64xf32, #tpu.memory_space<vmem>>, vector<8x8x64xf32>
    %282 = vector.shape_cast %281 : vector<8x8x64xf32> to vector<64x64xf32>
    %283 = tpu.concatenate %266, %268, %270, %272, %274, %276, %278, %280, %282 in 1 : vector<64x64xf32>, vector<64x64xf32>, vector<64x64xf32>, vector<64x64xf32>, vector<64x64xf32>, vector<64x64xf32>, vector<64x64xf32>, vector<64x64xf32>, vector<64x64xf32> -> vector<64x576xf32>
    %c7 = arith.constant 7 : index
    %c0_315 = arith.constant 0 : index
    %c0_316 = arith.constant 0 : index
    %284 = vector.load %arg4[%c7, %c0_315, %c0_316] : memref<9x576x64xf32, #tpu.memory_space<vmem>>, vector<1x576x64xf32>
    %285 = vector.shape_cast %284 : vector<1x576x64xf32> to vector<576x64xf32>
    %cst_317 = arith.constant dense<0.000000e+00> : vector<64x64xf32>
    %286 = tpu.matmul %283, %285, %cst_317 {dimension_numbers = #tpu.dot_dimension_numbers<[1], [0], [0], [1], [0, 0, 1, 1], [], []>} : vector<64x576xf32>, vector<576x64xf32>, vector<64x64xf32> -> vector<64x64xf32>
    %c7_318 = arith.constant 7 : index
    %c0_319 = arith.constant 0 : index
    %c0_320 = arith.constant 0 : index
    %287 = vector.load %arg5[%c7_318, %c0_319, %c0_320] : memref<9x1x64xf32, #tpu.memory_space<vmem>>, vector<1x1x64xf32>
    %288 = vector.shape_cast %287 : vector<1x1x64xf32> to vector<1x64xf32>
    %289 = vector.broadcast %288 : vector<1x64xf32> to vector<64x64xf32>
    %290 = arith.addf %286, %289 : vector<64x64xf32>
    %cst_321 = arith.constant 0.000000e+00 : f32
    %291 = vector.broadcast %cst_321 : f32 to vector<64x64xf32>
    %292 = arith.cmpf ogt, %290, %291 : vector<64x64xf32>
    %cst_322 = arith.constant 0.00999999977 : f32
    %293 = vector.broadcast %cst_322 : f32 to vector<64x64xf32>
    %294 = arith.mulf %293, %290 : vector<64x64xf32>
    %295 = arith.select %292, %290, %294 : vector<64x64xi1>, vector<64x64xf32>
    %296 = arith.addf %295, %229 : vector<64x64xf32>
    %cst_323 = arith.constant 0.000000e+00 : f32
    %297 = vector.broadcast %cst_323 : f32 to vector<64x64xf32>
    %298 = arith.cmpf ogt, %296, %297 : vector<64x64xf32>
    %cst_324 = arith.constant 0.00999999977 : f32
    %299 = vector.broadcast %cst_324 : f32 to vector<64x64xf32>
    %300 = arith.mulf %299, %296 : vector<64x64xf32>
    %301 = arith.select %298, %296, %300 : vector<64x64xi1>, vector<64x64xf32>
    %302 = vector.shape_cast %301 : vector<64x64xf32> to vector<8x8x64xf32>
    %c1_325 = arith.constant 1 : index
    %c1_326 = arith.constant 1 : index
    %c0_327 = arith.constant 0 : index
    %303 = vector.load %arg7[%c1_325, %c1_326, %c0_327] : memref<10x10x64xf32, #tpu.memory_space<vmem>>, vector<8x8x64xf32>
    tpu.vector_store %arg7[%c1_325, %c1_326, %c0_327], %302 {strides = array<i32>} : memref<10x10x64xf32, #tpu.memory_space<vmem>>, vector<8x8x64xf32>,
    %c0_328 = arith.constant 0 : index
    %c0_329 = arith.constant 0 : index
    %c0_330 = arith.constant 0 : index
    %304 = vector.load %arg7[%c0_328, %c0_329, %c0_330] : memref<10x10x64xf32, #tpu.memory_space<vmem>>, vector<8x8x64xf32>
    %305 = vector.shape_cast %304 : vector<8x8x64xf32> to vector<64x64xf32>
    %c0_331 = arith.constant 0 : index
    %c1_332 = arith.constant 1 : index
    %c0_333 = arith.constant 0 : index
    %306 = vector.load %arg7[%c0_331, %c1_332, %c0_333] : memref<10x10x64xf32, #tpu.memory_space<vmem>>, vector<8x8x64xf32>
    %307 = vector.shape_cast %306 : vector<8x8x64xf32> to vector<64x64xf32>
    %c0_334 = arith.constant 0 : index
    %c2_335 = arith.constant 2 : index
    %c0_336 = arith.constant 0 : index
    %308 = vector.load %arg7[%c0_334, %c2_335, %c0_336] : memref<10x10x64xf32, #tpu.memory_space<vmem>>, vector<8x8x64xf32>
    %309 = vector.shape_cast %308 : vector<8x8x64xf32> to vector<64x64xf32>
    %c1_337 = arith.constant 1 : index
    %c0_338 = arith.constant 0 : index
    %c0_339 = arith.constant 0 : index
    %310 = vector.load %arg7[%c1_337, %c0_338, %c0_339] : memref<10x10x64xf32, #tpu.memory_space<vmem>>, vector<8x8x64xf32>
    %311 = vector.shape_cast %310 : vector<8x8x64xf32> to vector<64x64xf32>
    %c1_340 = arith.constant 1 : index
    %c1_341 = arith.constant 1 : index
    %c0_342 = arith.constant 0 : index
    %312 = vector.load %arg7[%c1_340, %c1_341, %c0_342] : memref<10x10x64xf32, #tpu.memory_space<vmem>>, vector<8x8x64xf32>
    %313 = vector.shape_cast %312 : vector<8x8x64xf32> to vector<64x64xf32>
    %c1_343 = arith.constant 1 : index
    %c2_344 = arith.constant 2 : index
    %c0_345 = arith.constant 0 : index
    %314 = vector.load %arg7[%c1_343, %c2_344, %c0_345] : memref<10x10x64xf32, #tpu.memory_space<vmem>>, vector<8x8x64xf32>
    %315 = vector.shape_cast %314 : vector<8x8x64xf32> to vector<64x64xf32>
    %c2_346 = arith.constant 2 : index
    %c0_347 = arith.constant 0 : index
    %c0_348 = arith.constant 0 : index
    %316 = vector.load %arg7[%c2_346, %c0_347, %c0_348] : memref<10x10x64xf32, #tpu.memory_space<vmem>>, vector<8x8x64xf32>
    %317 = vector.shape_cast %316 : vector<8x8x64xf32> to vector<64x64xf32>
    %c2_349 = arith.constant 2 : index
    %c1_350 = arith.constant 1 : index
    %c0_351 = arith.constant 0 : index
    %318 = vector.load %arg7[%c2_349, %c1_350, %c0_351] : memref<10x10x64xf32, #tpu.memory_space<vmem>>, vector<8x8x64xf32>
    %319 = vector.shape_cast %318 : vector<8x8x64xf32> to vector<64x64xf32>
    %c2_352 = arith.constant 2 : index
    %c2_353 = arith.constant 2 : index
    %c0_354 = arith.constant 0 : index
    %320 = vector.load %arg7[%c2_352, %c2_353, %c0_354] : memref<10x10x64xf32, #tpu.memory_space<vmem>>, vector<8x8x64xf32>
    %321 = vector.shape_cast %320 : vector<8x8x64xf32> to vector<64x64xf32>
    %322 = tpu.concatenate %305, %307, %309, %311, %313, %315, %317, %319, %321 in 1 : vector<64x64xf32>, vector<64x64xf32>, vector<64x64xf32>, vector<64x64xf32>, vector<64x64xf32>, vector<64x64xf32>, vector<64x64xf32>, vector<64x64xf32>, vector<64x64xf32> -> vector<64x576xf32>
    %c8 = arith.constant 8 : index
    %c0_355 = arith.constant 0 : index
    %c0_356 = arith.constant 0 : index
    %323 = vector.load %arg4[%c8, %c0_355, %c0_356] : memref<9x576x64xf32, #tpu.memory_space<vmem>>, vector<1x576x64xf32>
    %324 = vector.shape_cast %323 : vector<1x576x64xf32> to vector<576x64xf32>
    %cst_357 = arith.constant dense<0.000000e+00> : vector<64x64xf32>
    %325 = tpu.matmul %322, %324, %cst_357 {dimension_numbers = #tpu.dot_dimension_numbers<[1], [0], [0], [1], [0, 0, 1, 1], [], []>} : vector<64x576xf32>, vector<576x64xf32>, vector<64x64xf32> -> vector<64x64xf32>
    %c8_358 = arith.constant 8 : index
    %c0_359 = arith.constant 0 : index
    %c0_360 = arith.constant 0 : index
    %326 = vector.load %arg5[%c8_358, %c0_359, %c0_360] : memref<9x1x64xf32, #tpu.memory_space<vmem>>, vector<1x1x64xf32>
    %327 = vector.shape_cast %326 : vector<1x1x64xf32> to vector<1x64xf32>
    %328 = vector.broadcast %327 : vector<1x64xf32> to vector<64x64xf32>
    %329 = arith.addf %325, %328 : vector<64x64xf32>
    %cst_361 = arith.constant 0.000000e+00 : f32
    %330 = vector.broadcast %cst_361 : f32 to vector<64x64xf32>
    %331 = arith.cmpf ogt, %329, %330 : vector<64x64xf32>
    %cst_362 = arith.constant 0.00999999977 : f32
    %332 = vector.broadcast %cst_362 : f32 to vector<64x64xf32>
    %333 = arith.mulf %332, %329 : vector<64x64xf32>
    %334 = arith.select %331, %329, %333 : vector<64x64xi1>, vector<64x64xf32>
    %c0_363 = arith.constant 0 : index
    %c0_364 = arith.constant 0 : index
    %c0_365 = arith.constant 0 : index
    %335 = vector.load %arg6[%c0_363, %c0_364, %c0_365] : memref<1x64x64xf32, #tpu.memory_space<vmem>>, vector<1x64x64xf32>
    %336 = vector.shape_cast %335 : vector<1x64x64xf32> to vector<64x64xf32>
    %337 = vector.shape_cast %334 : vector<64x64xf32> to vector<1x64x64xf32>
    tpu.vector_store %arg6[%c0_363, %c0_364, %c0_365], %337 {strides = array<i32>} : memref<1x64x64xf32, #tpu.memory_space<vmem>>, vector<1x64x64xf32>,
    return
  }
  func.func @transform_0(%arg0: i32) -> (i32, i32, i32) {
    %c0_i32 = arith.constant 0 : i32
    %c0_i32_0 = arith.constant 0 : i32
    %c0_i32_1 = arith.constant 0 : i32
    return %arg0, %c0_i32, %c0_i32_0 : i32, i32, i32
  }
  func.func @transform_1(%arg0: i32) -> (i32, i32) {
    %c0_i32 = arith.constant 0 : i32
    %c0_i32_0 = arith.constant 0 : i32
    %c0_i32_1 = arith.constant 0 : i32
    return %c0_i32, %c0_i32_0 : i32, i32
  }
  func.func @transform_2(%arg0: i32) -> (i32, i32) {
    %c0_i32 = arith.constant 0 : i32
    %c0_i32_0 = arith.constant 0 : i32
    %c0_i32_1 = arith.constant 0 : i32
    return %c0_i32, %c0_i32_0 : i32, i32
  }
  func.func @transform_3(%arg0: i32) -> (i32, i32, i32) {
    %c0_i32 = arith.constant 0 : i32
    %c0_i32_0 = arith.constant 0 : i32
    %c0_i32_1 = arith.constant 0 : i32
    %c0_i32_2 = arith.constant 0 : i32
    return %c0_i32, %c0_i32_0, %c0_i32_1 : i32, i32, i32
  }
  func.func @transform_4(%arg0: i32) -> (i32, i32, i32) {
    %c0_i32 = arith.constant 0 : i32
    %c0_i32_0 = arith.constant 0 : i32
    %c0_i32_1 = arith.constant 0 : i32
    %c0_i32_2 = arith.constant 0 : i32
    return %c0_i32, %c0_i32_0, %c0_i32_1 : i32, i32, i32
  }
  func.func @transform_5(%arg0: i32) -> (i32, i32, i32) {
    %c0_i32 = arith.constant 0 : i32
    %c0_i32_0 = arith.constant 0 : i32
    %c0_i32_1 = arith.constant 0 : i32
    return %arg0, %c0_i32, %c0_i32_0 : i32, i32, i32
  }
}

</mosaic_0001>

<llo_original>
// kernel: move_processor.1
$region0: #{move_processor.1}
  #allocation0 [shape = 'u32[]', space=smem, size = 0x4, offset = 0x4, fixed_abs, tag = 'smem constant byte address 0x4 - core index']
  #allocation1 [shape = 'u32[144,128]{1,0:T(1,128)}', space=vmem, size = 0x12000, scoped, tag = 'internal scratch']
  #allocation2 [shape = 'f32[10,10,64]{2,1,0:T(8,128)}', space=vmem, size = 0x14000, scoped, tag = 'scratch operand']
  %s0 = inlined_call_operand.vmem [shape: f32[2,64,64], index: 0, kind: input, shape index: {}]
  %s1 = inlined_call_operand.vmem [shape: f32[64,64], index: 1, kind: input, shape index: {}]
  %s2 = inlined_call_operand.vmem [shape: f32[1,64], index: 2, kind: input, shape index: {}]
  %s3 = inlined_call_operand.vmem [shape: f32[9,576,64], index: 3, kind: input, shape index: {}]
  %s4 = inlined_call_operand.vmem [shape: f32[9,1,64], index: 4, kind: input, shape index: {}]
  %s5 = inlined_call_operand.hbm [shape: f32[2,64,64], index: 5, kind: output, shape index: {}]
  %s6 = sld [smem:[#allocation0]]
  $region53: #{move_processor.1} parent=0
    _
  %s8 = ssub.s32 1, %s6
  %s9 = scalar_select 0, %s8, %s6
  $region1: #{move_processor.1} parent=0
    #allocation3 [shape = 'u8[65536]{0}', space=vmem, size = 0x10000, scoped, tag = 'output window, operand 0']
    #allocation4 [shape = 's32[2]{0}', space=sflag, size = 0x8, scoped, tag = 'scoped memory for move_processor.1']
    %10 = vsyncpa [#allocation4], 0
    %s11 = scalar_lea.sflag [#allocation4], 1
    %12 = vsyncpa %s11, 0
    loop: start=0, step=1, limit=4
    $region2: #{move_processor.1} parent=1 // loop_pre_header
      _
    $region3: #{move_processor.1} parent=1 // loop_header
      %s14 = sphi 0, %s18
      %p15 = scmp.ge.s32.totalorder %s14, 4
      %s24 = sphi 0, %s26
      %s27 = sphi 0, %s24
      %s28 = sphi 0, %s27
      %s44 = sphi 0, %s28
      %s48 = sphi 0, %s48
      %s50 = sphi 0, %s48
      %s51 = sphi 0, %s50
      %s65 = sphi 0, %s51
      %s69 = sphi 0, %s69
      %s71 = sphi 0, %s69
      %s72 = sphi 0, %s71
      %s86 = sphi 0, %s72
      %s90 = sphi 0, %s90
      %s92 = sphi 0, %s90
      %s93 = sphi 0, %s92
      %s107 = sphi 0, %s93
      %s111 = sphi 0, %s111
      %s113 = sphi 0, %s111
      %s114 = sphi 0, %s113
      %s128 = sphi 0, %s114
      %s134 = sphi 0, %s136
      %s137 = sphi 0, %s134
      %s138 = sphi 0, %s137
      %s154 = sphi 0, %s138
    $region4: #{move_processor.1} parent=1 // loop_header_branch
      %17 = sbr.rel (%p15) target = $region8
    $region5: #{move_processor.1} parent=1 // loop_body
      %s19 = ssub.s32 %s14, 1
      %s20 = ssub.s32 %s14, 2
      %s21 = sadd.s32 %s14, 1
      %s22 = ssub.s32 %s14, %s21
      %p23 = scmp.eq.s32.totalorder %s22, 0
      %s25 = sadd.s32 %s24, 1
      %s26 = scalar_select %p23, %s24, %s25
      %p29 = pneg %p23
      %p30 = scmp.eq.s32.totalorder %s14, 1
      %p31 = por %p29, %p30
      %p32 = scmp.ne.s32.totalorder %s24, %s27
      %p33 = scmp.eq.s32.totalorder %s14, 0
      %p34 = por %p32, %p33
      %p35 = scmp.ne.s32.totalorder %s24, %s27
      %p36 = scmp.eq.s32.totalorder %s19, 1
      %p37 = por %p35, %p36
      %p38 = scmp.ne.s32.totalorder %s27, %s28
      %p39 = scmp.eq.s32.totalorder %s19, 0
      %p40 = por %p38, %p39
      %p41 = scmp.ne.s32.totalorder %s27, %s28
      %p42 = scmp.eq.s32.totalorder %s20, 1
      %p43 = por %p41, %p42
      %p45 = scmp.ne.s32.totalorder %s28, %s44
      %p46 = scmp.eq.s32.totalorder %s20, 0
      %p47 = por %p45, %p46
      %s49 = sadd.s32 %s48, 1
      %p52 = scmp.eq.s32.totalorder %s14, 1
      %p53 = scmp.ne.s32.totalorder %s48, %s50
      %p54 = scmp.eq.s32.totalorder %s14, 0
      %p55 = por %p53, %p54
      %p56 = scmp.ne.s32.totalorder %s48, %s50
      %p57 = scmp.eq.s32.totalorder %s19, 1
      %p58 = por %p56, %p57
      %p59 = scmp.ne.s32.totalorder %s50, %s51
      %p60 = scmp.eq.s32.totalorder %s19, 0
      %p61 = por %p59, %p60
      %p62 = scmp.ne.s32.totalorder %s50, %s51
      %p63 = scmp.eq.s32.totalorder %s20, 1
      %p64 = por %p62, %p63
      %p66 = scmp.ne.s32.totalorder %s51, %s65
      %p67 = scmp.eq.s32.totalorder %s20, 0
      %p68 = por %p66, %p67
      %s70 = sadd.s32 %s69, 1
      %p73 = scmp.eq.s32.totalorder %s14, 1
      %p74 = scmp.ne.s32.totalorder %s69, %s71
      %p75 = scmp.eq.s32.totalorder %s14, 0
      %p76 = por %p74, %p75
      %p77 = scmp.ne.s32.totalorder %s69, %s71
      %p78 = scmp.eq.s32.totalorder %s19, 1
      %p79 = por %p77, %p78
      %p80 = scmp.ne.s32.totalorder %s71, %s72
      %p81 = scmp.eq.s32.totalorder %s19, 0
      %p82 = por %p80, %p81
      %p83 = scmp.ne.s32.totalorder %s71, %s72
      %p84 = scmp.eq.s32.totalorder %s20, 1
      %p85 = por %p83, %p84
      %p87 = scmp.ne.s32.totalorder %s72, %s86
      %p88 = scmp.eq.s32.totalorder %s20, 0
      %p89 = por %p87, %p88
      %s91 = sadd.s32 %s90, 1
      %p94 = scmp.eq.s32.totalorder %s14, 1
      %p95 = scmp.ne.s32.totalorder %s90, %s92
      %p96 = scmp.eq.s32.totalorder %s14, 0
      %p97 = por %p95, %p96
      %p98 = scmp.ne.s32.totalorder %s90, %s92
      %p99 = scmp.eq.s32.totalorder %s19, 1
      %p100 = por %p98, %p99
      %p101 = scmp.ne.s32.totalorder %s92, %s93
      %p102 = scmp.eq.s32.totalorder %s19, 0
      %p103 = por %p101, %p102
      %p104 = scmp.ne.s32.totalorder %s92, %s93
      %p105 = scmp.eq.s32.totalorder %s20, 1
      %p106 = por %p104, %p105
      %p108 = scmp.ne.s32.totalorder %s93, %s107
      %p109 = scmp.eq.s32.totalorder %s20, 0
      %p110 = por %p108, %p109
      %s112 = sadd.s32 %s111, 1
      %p115 = scmp.eq.s32.totalorder %s14, 1
      %p116 = scmp.ne.s32.totalorder %s111, %s113
      %p117 = scmp.eq.s32.totalorder %s14, 0
      %p118 = por %p116, %p117
      %p119 = scmp.ne.s32.totalorder %s111, %s113
      %p120 = scmp.eq.s32.totalorder %s19, 1
      %p121 = por %p119, %p120
      %p122 = scmp.ne.s32.totalorder %s113, %s114
      %p123 = scmp.eq.s32.totalorder %s19, 0
      %p124 = por %p122, %p123
      %p125 = scmp.ne.s32.totalorder %s113, %s114
      %p126 = scmp.eq.s32.totalorder %s20, 1
      %p127 = por %p125, %p126
      %p129 = scmp.ne.s32.totalorder %s114, %s128
      %p130 = scmp.eq.s32.totalorder %s20, 0
      %p131 = por %p129, %p130
      %s132 = ssub.s32 %s14, %s21
      %p133 = scmp.eq.s32.totalorder %s132, 0
      %s135 = sadd.s32 %s134, 1
      %s136 = scalar_select %p133, %s134, %s135
      %p139 = pneg %p133
      %p140 = scmp.eq.s32.totalorder %s14, 1
      %p141 = por %p139, %p140
      %p142 = scmp.ne.s32.totalorder %s134, %s137
      %p143 = scmp.eq.s32.totalorder %s14, 0
      %p144 = por %p142, %p143
      %p145 = scmp.ne.s32.totalorder %s134, %s137
      %p146 = scmp.eq.s32.totalorder %s19, 1
      %p147 = por %p145, %p146
      %p148 = scmp.ne.s32.totalorder %s137, %s138
      %p149 = scmp.eq.s32.totalorder %s19, 0
      %p150 = por %p148, %p149
      %p151 = scmp.ne.s32.totalorder %s137, %s138
      %p152 = scmp.eq.s32.totalorder %s20, 1
      %p153 = por %p151, %p152
      %p155 = scmp.ne.s32.totalorder %s138, %s154
      %p156 = scmp.eq.s32.totalorder %s20, 0
      %p157 = por %p155, %p156
      %p158 = scmp.le.s32.totalorder 1, %s14
      %p159 = scmp.lt.s32.totalorder %s14, 3
      %p160 = pnand %p158, %p159
      %p161 = pneg %p160
      // Predicated region
      $region9: #{move_processor.1} parent=5 // pred_check
        _
      $region10: #{move_processor.1} parent=5 // pred_check_branch
        %163 = sbr.rel (%p160) target = $region12
      $region11: #{move_processor.1} parent=5 // pred_region
        %s164 = ssub.s32 %s14, 1
        // Predicated region
        $region13: #{move_processor.1} parent=11 // pred_check
          %p165 = pneg %p61
        $region14: #{move_processor.1} parent=11 // pred_check_branch
          %167 = sbr.rel (%p165) target = $region16
        $region15: #{move_processor.1} parent=11 // pred_region
          _
        $region16: #{move_processor.1} parent=11 // pred_fallthru
          _
        // Predicated region
        $region17: #{move_processor.1} parent=11 // pred_check
          %p168 = pneg %p82
        $region18: #{move_processor.1} parent=11 // pred_check_branch
          %170 = sbr.rel (%p168) target = $region20
        $region19: #{move_processor.1} parent=11 // pred_region
          _
        $region20: #{move_processor.1} parent=11 // pred_fallthru
          _
        // Predicated region
        $region21: #{move_processor.1} parent=11 // pred_check
          %p171 = pneg %p103
        $region22: #{move_processor.1} parent=11 // pred_check_branch
          %173 = sbr.rel (%p171) target = $region24
        $region23: #{move_processor.1} parent=11 // pred_region
          _
        $region24: #{move_processor.1} parent=11 // pred_fallthru
          _
        // Predicated region
        $region25: #{move_processor.1} parent=11 // pred_check
          %p174 = pneg %p124
        $region26: #{move_processor.1} parent=11 // pred_check_branch
          %176 = sbr.rel (%p174) target = $region28
        $region27: #{move_processor.1} parent=11 // pred_region
          _
        $region28: #{move_processor.1} parent=11 // pred_fallthru
          _
      $region12: #{move_processor.1} parent=5 // pred_fallthru
        _
      %p177 = scmp.lt.s32.totalorder %s14, 2
      // Predicated region
      $region29: #{move_processor.1} parent=5 // pred_check
        %p178 = pneg %p177
      $region30: #{move_processor.1} parent=5 // pred_check_branch
        %180 = sbr.rel (%p178) target = $region32
      $region31: #{move_processor.1} parent=5 // pred_region
        // Predicated region
        $region33: #{move_processor.1} parent=31 // pred_check
          %p181 = pneg %p34
        $region34: #{move_processor.1} parent=31 // pred_check_branch
          %183 = sbr.rel (%p181) target = $region36
        $region35: #{move_processor.1} parent=31 // pred_region
          %p184 = scmp.lt.s32.totalorder %s14, 1
          %s185 = scalar_select %p184, %s14, 1
          %s186 = smul.addr %s185, 8
          %s187 = smul.addr %s186, 8
          %s188 = scalar_lea.vmem %s0, %s187
        $region36: #{move_processor.1} parent=31 // pred_fallthru
          _
      $region32: #{move_processor.1} parent=5 // pred_fallthru
        _
      %p189 = scmp.le.s32.totalorder 1, %s14
      %p190 = scmp.lt.s32.totalorder %s14, 3
      %p191 = pnand %p189, %p190
      %p192 = pneg %p191
      // Predicated region
      $region37: #{move_processor.1} parent=5 // pred_check
        _
      $region38: #{move_processor.1} parent=5 // pred_check_branch
        %194 = sbr.rel (%p191) target = $region40
      $region39: #{move_processor.1} parent=5 // pred_region
        %s195 = ssub.s32 %s14, 1
        %p196 = scmp.lt.s32.totalorder %s19, 1
        %s197 = scalar_select %p196, %s19, 1
        %s198 = smul.addr %s197, 8
        %s199 = smul.addr %s198, 8
        %s200 = scalar_lea.vmem %s0, %s199
        %p201 = pneg %p40
        %p202 = pneg %p37
        %p203 = pneg %p61
        %p204 = pneg %p58
        %p205 = pneg %p82
        %p206 = pneg %p79
        %p207 = pneg %p103
        %p208 = pneg %p100
        %p209 = pneg %p124
        %p210 = pneg %p121
        %p211 = pneg %p150
        %p212 = pneg %p147
        %s213 = sand.u32 %s137, 1
        %s214 = scalar_lea.sflag [#allocation4], %s213
        %s215 = sand.u32 %s137, 1
        %s216 = smul.addr %s215, 64
        %s217 = scalar_lea.vmem [#allocation3], %s216
        %p218 = scmp.lt.s32.totalorder %s19, 1
        %s219 = scalar_select %p218, %s19, 1
        %s220 = smul.addr %s219, 8
        %s221 = smul.addr %s220, 8
        %s222 = scalar_lea.vmem %s0, %s221
        %vm223 = vcmask 523264
        %224 = vst.msk [vmem:[#allocation2] sm:$0xff] %vm223, 0.0
        %vm225 = vcmask 517120
        %226 = vst.msk [vmem:[#allocation2 + $0x8] sm:$0x3] %vm225, 0.0
        %227 = vst.msk [vmem:[#allocation2 + $0x10] sm:$0xff] %vm223, 0.0
        %228 = vst.msk [vmem:[#allocation2 + $0x18] sm:$0x3] %vm225, 0.0
        %229 = vst.msk [vmem:[#allocation2 + $0x20] sm:$0xff] %vm223, 0.0
        %230 = vst.msk [vmem:[#allocation2 + $0x28] sm:$0x3] %vm225, 0.0
        %231 = vst.msk [vmem:[#allocation2 + $0x30] sm:$0xff] %vm223, 0.0
        %232 = vst.msk [vmem:[#allocation2 + $0x38] sm:$0x3] %vm225, 0.0
        %233 = vst.msk [vmem:[#allocation2 + $0x40] sm:$0xff] %vm223, 0.0
        %234 = vst.msk [vmem:[#allocation2 + $0x48] sm:$0x3] %vm225, 0.0
        %235 = vst.msk [vmem:[#allocation2 + $0x50] sm:$0xff] %vm223, 0.0
        %236 = vst.msk [vmem:[#allocation2 + $0x58] sm:$0x3] %vm225, 0.0
        %237 = vst.msk [vmem:[#allocation2 + $0x60] sm:$0xff] %vm223, 0.0
        %238 = vst.msk [vmem:[#allocation2 + $0x68] sm:$0x3] %vm225, 0.0
        %239 = vst.msk [vmem:[#allocation2 + $0x70] sm:$0xff] %vm223, 0.0
        %240 = vst.msk [vmem:[#allocation2 + $0x78] sm:$0x3] %vm225, 0.0
        %241 = vst.msk [vmem:[#allocation2 + $0x80] sm:$0xff] %vm223, 0.0
        %242 = vst.msk [vmem:[#allocation2 + $0x88] sm:$0x3] %vm225, 0.0
        %243 = vst.msk [vmem:[#allocation2 + $0x90] sm:$0xff] %vm223, 0.0
        %244 = vst.msk [vmem:[#allocation2 + $0x98] sm:$0x3] %vm225, 0.0
        %v245 = vld [vmem:[%s222] sm:$0xff]
        %v246 = vld [vmem:[%s222 + $0x8] sm:$0xff]
        %v247 = vld [vmem:[%s222 + $0x10] sm:$0xff]
        %v248 = vld [vmem:[%s222 + $0x18] sm:$0xff]
        %v249 = vld [vmem:[%s222 + $0x20] sm:$0xff]
        %v250 = vld [vmem:[%s222 + $0x28] sm:$0xff]
        %v251 = vld [vmem:[%s222 + $0x30] sm:$0xff]
        %v252 = vld [vmem:[%s222 + $0x38] sm:$0xff]
        %v253 = vld [vmem:[%s1] sm:$0xff]
        %v254 = vld [vmem:[%s1 + $0x8] sm:$0xff]
        %v255 = vld [vmem:[%s1 + $0x10] sm:$0xff]
        %v256 = vld [vmem:[%s1 + $0x18] sm:$0xff]
        %v257 = vld [vmem:[%s1 + $0x20] sm:$0xff]
        %v258 = vld [vmem:[%s1 + $0x28] sm:$0xff]
        %v259 = vld [vmem:[%s1 + $0x30] sm:$0xff]
        %v260 = vld [vmem:[%s1 + $0x38] sm:$0xff]
        %v261 = vld [vmem:[%s2] sm:$0x1]
        %v263 = vlaneseq
        %v264 = vshrl.u32 %v263, 7
        %v265 = vsub.s32 0, %v264
        %v266 = vrot.slane %v261, %v265
        %v269 = vsel %vm223, %v245, 0
        %v272 = vsel %vm223, %v246, 0
        %v275 = vsel %vm223, %v247, 0
        %v278 = vsel %vm223, %v248, 0
        %v281 = vsel %vm223, %v249, 0
        %v284 = vsel %vm223, %v250, 0
        %v287 = vsel %vm223, %v251, 0
        %v290 = vsel %vm223, %v252, 0
        %292 = vmatprep.subr.mxu0 0.0
        %293 = vmatpush1.msra.mxu0 %v253
        %294 = vmatprep.subr.mxu0 0.0
        %295 = vmatpush1.msra.mxu0 %v254
        %296 = vmatprep.subr.mxu0 0.0
        %297 = vmatpush1.msra.mxu0 %v255
        %298 = vmatprep.subr.mxu0 0.0
        %299 = vmatpush1.msra.mxu0 %v256
        %300 = vmatprep.subr.mxu0 0.0
        %301 = vmatpush1.msra.mxu0 %v257
        %302 = vmatprep.subr.mxu0 0.0
        %303 = vmatpush1.msra.mxu0 %v258
        %304 = vmatprep.subr.mxu0 0.0
        %305 = vmatpush1.msra.mxu0 %v259
        %306 = vmatprep.subr.mxu0 0.0
        %307 = vmatpush1.msra.mxu0 %v260
        %308 = vmatprep.subr.mxu0 0.0
        %309 = vmatpush1.msra.mxu0 0.0
        %310 = vmatprep.subr.mxu0 0.0
        %311 = vmatpush1.msra.mxu0 0.0
        %312 = vmatprep.subr.mxu0 0.0
        %313 = vmatpush1.msra.mxu0 0.0
        %314 = vmatprep.subr.mxu0 0.0
        %315 = vmatpush1.msra.mxu0 0.0
        %316 = vmatprep.subr.mxu0 0.0
        %317 = vmatpush1.msra.mxu0 0.0
        %318 = vmatprep.subr.mxu0 0.0
        %319 = vmatpush1.msra.mxu0 0.0
        %320 = vmatprep.subr.mxu0 0.0
        %321 = vmatpush1.msra.mxu0 0.0
        %322 = vmatprep.subr.mxu0 0.0
        %323 = vmatpush1.msra.mxu0 0.0
        %324 = vmatprep.subr.mxu0 0.0
        %325 = vmatpush1.msra.mxu0 0.0
        %326 = vmatprep.subr.mxu0 0.0
        %327 = vmatpush1.msra.mxu0 0.0
        %328 = vmatprep.subr.mxu0 0.0
        %329 = vmatpush1.msra.mxu0 0.0
        %330 = vmatprep.subr.mxu0 0.0
        %331 = vmatpush1.msra.mxu0 0.0
        %332 = vmatprep.subr.mxu0 0.0
        %333 = vmatpush1.msra.mxu0 0.0
        %334 = vmatprep.subr.mxu0 0.0
        %335 = vmatpush1.msra.mxu0 0.0
        %336 = vmatprep.subr.mxu0 0.0
        %337 = vmatpush1.msra.mxu0 0.0
        %338 = vmatprep.subr.mxu0 0.0
        %339 = vmatpush1.msra.mxu0 0.0
        %340 = vmatprep.subr.mxu0 0.0
        %341 = vmatpush1.msra.mxu0 0.0
        %342 = vmatprep.subr.mxu0 0.0
        %343 = vmatpush1.msra.mxu0 0.0
        %344 = vmatprep.subr.mxu0 0.0
        %345 = vmatpush1.msra.mxu0 0.0
        %346 = vmatprep.subr.mxu0 0.0
        %347 = vmatpush1.msra.mxu0 0.0
        %348 = vmatprep.subr.mxu0 0.0
        %349 = vmatpush1.msra.mxu0 0.0
        %350 = vmatprep.subr.mxu0 0.0
        %351 = vmatpush1.msra.mxu0 0.0
        %352 = vmatprep.subr.mxu0 0.0
        %353 = vmatpush1.msra.mxu0 0.0
        %354 = vmatprep.subr.mxu0 0.0
        %355 = vmatpush1.msra.mxu0 0.0
        %356 = vmatprep.mubr.f32.mxu0 0.0
        %357 = vmatmul.mubr.f32.gmra.mrb[0].mxu0 %v269
        %v358 = vpop.f32.mrb[0].mxu0
        %v359 = vadd.f32 %v266, %v358
        %v360 = vpop.f32.mrb[0].mxu0
        %361 = vmatprep.mubr.f32.mxu0 0.0
        %362 = vmatmul.mubr.f32.gmra.mrb[0].mxu0 %v272
        %v363 = vpop.f32.mrb[0].mxu0
        %v364 = vadd.f32 %v266, %v363
        %v365 = vpop.f32.mrb[0].mxu0
        %366 = vmatprep.mubr.f32.mxu0 0.0
        %367 = vmatmul.mubr.f32.gmra.mrb[0].mxu0 %v275
        %v368 = vpop.f32.mrb[0].mxu0
        %v369 = vadd.f32 %v266, %v368
        %v370 = vpop.f32.mrb[0].mxu0
        %371 = vmatprep.mubr.f32.mxu0 0.0
        %372 = vmatmul.mubr.f32.gmra.mrb[0].mxu0 %v278
        %v373 = vpop.f32.mrb[0].mxu0
        %v374 = vadd.f32 %v266, %v373
        %v375 = vpop.f32.mrb[0].mxu0
        %376 = vmatprep.mubr.f32.mxu0 0.0
        %377 = vmatmul.mubr.f32.gmra.mrb[0].mxu0 %v281
        %v378 = vpop.f32.mrb[0].mxu0
        %v379 = vadd.f32 %v266, %v378
        %v380 = vpop.f32.mrb[0].mxu0
        %381 = vmatprep.mubr.f32.mxu0 0.0
        %382 = vmatmul.mubr.f32.gmra.mrb[0].mxu0 %v284
        %v383 = vpop.f32.mrb[0].mxu0
        %v384 = vadd.f32 %v266, %v383
        %v385 = vpop.f32.mrb[0].mxu0
        %386 = vmatprep.mubr.f32.mxu0 0.0
        %387 = vmatmul.mubr.f32.gmra.mrb[0].mxu0 %v287
        %v388 = vpop.f32.mrb[0].mxu0
        %v389 = vadd.f32 %v266, %v388
        %v390 = vpop.f32.mrb[0].mxu0
        %391 = vmatprep.mubr.f32.mxu0 0.0
        %392 = vmatmul.mubr.f32.gmra.mrb[0].mxu0 %v290
        %v393 = vpop.f32.mrb[0].mxu0
        %v394 = vadd.f32 %v266, %v393
        %v395 = vpop.f32.mrb[0].mxu0
        %396 = vdwg.mxu0
        %vm397 = vcmp.gt.f32.partialorder %v359, 0.0
        %vm398 = vcmp.gt.f32.partialorder %v364, 0.0
        %vm399 = vcmp.gt.f32.partialorder %v369, 0.0
        %vm400 = vcmp.gt.f32.partialorder %v374, 0.0
        %vm401 = vcmp.gt.f32.partialorder %v379, 0.0
        %vm402 = vcmp.gt.f32.partialorder %v384, 0.0
        %vm403 = vcmp.gt.f32.partialorder %v389, 0.0
        %vm404 = vcmp.gt.f32.partialorder %v394, 0.0
        %v405 = vmul.f32 %v359, 0.01
        %v406 = vmul.f32 %v364, 0.01
        %v407 = vmul.f32 %v369, 0.01
        %v408 = vmul.f32 %v374, 0.01
        %v409 = vmul.f32 %v379, 0.01
        %v410 = vmul.f32 %v384, 0.01
        %v411 = vmul.f32 %v389, 0.01
        %v412 = vmul.f32 %v394, 0.01
        %v413 = vsel %vm397, %v359, %v405
        %v414 = vsel %vm398, %v364, %v406
        %v415 = vsel %vm399, %v369, %v407
        %v416 = vsel %vm400, %v374, %v408
        %v417 = vsel %vm401, %v379, %v409
        %v418 = vsel %vm402, %v384, %v410
        %v419 = vsel %vm403, %v389, %v411
        %v420 = vsel %vm404, %v394, %v412
        %s421 = scalar_lea.vmem [#allocation2], 16
        %422 = vst.msk [vmem:[%s421 + $0x1] sm:$0xff] %vm223, %v413
        %423 = vst.msk [vmem:[%s421 + $0x11] sm:$0xff] %vm223, %v414
        %424 = vst.msk [vmem:[%s421 + $0x21] sm:$0xff] %vm223, %v415
        %425 = vst.msk [vmem:[%s421 + $0x31] sm:$0xff] %vm223, %v416
        %426 = vst.msk [vmem:[%s421 + $0x41] sm:$0xff] %vm223, %v417
        %427 = vst.msk [vmem:[%s421 + $0x51] sm:$0xff] %vm223, %v418
        %428 = vst.msk [vmem:[%s421 + $0x61] sm:$0xff] %vm223, %v419
        %429 = vst.msk [vmem:[%s421 + $0x71] sm:$0xff] %vm223, %v420
        %v430 = vld [vmem:[#allocation2] sm:$0xff]
        %v431 = vld [vmem:[#allocation2 + $0x10] sm:$0xff]
        %v432 = vld [vmem:[#allocation2 + $0x20] sm:$0xff]
        %v433 = vld [vmem:[#allocation2 + $0x30] sm:$0xff]
        %v434 = vld [vmem:[#allocation2 + $0x40] sm:$0xff]
        %v435 = vld [vmem:[#allocation2 + $0x50] sm:$0xff]
        %v436 = vld [vmem:[#allocation2 + $0x60] sm:$0xff]
        %v437 = vld [vmem:[#allocation2 + $0x70] sm:$0xff]
        %v438 = vld [vmem:[#allocation2 + $0x1] sm:$0xff]
        %v439 = vld [vmem:[#allocation2 + $0x11] sm:$0xff]
        %v440 = vld [vmem:[#allocation2 + $0x21] sm:$0xff]
        %v441 = vld [vmem:[#allocation2 + $0x31] sm:$0xff]
        %v442 = vld [vmem:[#allocation2 + $0x41] sm:$0xff]
        %v443 = vld [vmem:[#allocation2 + $0x51] sm:$0xff]
        %v444 = vld [vmem:[#allocation2 + $0x61] sm:$0xff]
        %v445 = vld [vmem:[#allocation2 + $0x71] sm:$0xff]
        %v446 = vld [vmem:[#allocation2 + $0x2] sm:$0xff]
        %v447 = vld [vmem:[#allocation2 + $0x12] sm:$0xff]
        %v448 = vld [vmem:[#allocation2 + $0x22] sm:$0xff]
        %v449 = vld [vmem:[#allocation2 + $0x32] sm:$0xff]
        %v450 = vld [vmem:[#allocation2 + $0x42] sm:$0xff]
        %v451 = vld [vmem:[#allocation2 + $0x52] sm:$0xff]
        %v452 = vld [vmem:[#allocation2 + $0x62] sm:$0xff]
        %v453 = vld [vmem:[#allocation2 + $0x72] sm:$0xff]
        %v454 = vld [vmem:[%s421] sm:$0xff]
        %v455 = vld [vmem:[%s421 + $0x10] sm:$0xff]
        %v456 = vld [vmem:[%s421 + $0x20] sm:$0xff]
        %v457 = vld [vmem:[%s421 + $0x30] sm:$0xff]
        %v458 = vld [vmem:[%s421 + $0x40] sm:$0xff]
        %v459 = vld [vmem:[%s421 + $0x50] sm:$0xff]
        %v460 = vld [vmem:[%s421 + $0x60] sm:$0xff]
        %v461 = vld [vmem:[%s421 + $0x70] sm:$0xff]
        %v462 = vld [vmem:[%s421 + $0x1] sm:$0xff]
        %v463 = vld [vmem:[%s421 + $0x11] sm:$0xff]
        %v464 = vld [vmem:[%s421 + $0x21] sm:$0xff]
        %v465 = vld [vmem:[%s421 + $0x31] sm:$0xff]
        %v466 = vld [vmem:[%s421 + $0x41] sm:$0xff]
        %v467 = vld [vmem:[%s421 + $0x51] sm:$0xff]
        %v468 = vld [vmem:[%s421 + $0x61] sm:$0xff]
        %v469 = vld [vmem:[%s421 + $0x71] sm:$0xff]
        %v470 = vld [vmem:[%s421 + $0x2] sm:$0xff]
        %v471 = vld [vmem:[%s421 + $0x12] sm:$0xff]
        %v472 = vld [vmem:[%s421 + $0x22] sm:$0xff]
        %v473 = vld [vmem:[%s421 + $0x32] sm:$0xff]
        %v474 = vld [vmem:[%s421 + $0x42] sm:$0xff]
        %v475 = vld [vmem:[%s421 + $0x52] sm:$0xff]
        %v476 = vld [vmem:[%s421 + $0x62] sm:$0xff]
        %v477 = vld [vmem:[%s421 + $0x72] sm:$0xff]
        %s478 = scalar_lea.vmem [#allocation2], 32
        %v479 = vld [vmem:[%s478] sm:$0xff]
        %v480 = vld [vmem:[%s478 + $0x10] sm:$0xff]
        %v481 = vld [vmem:[%s478 + $0x20] sm:$0xff]
        %v482 = vld [vmem:[%s478 + $0x30] sm:$0xff]
        %v483 = vld [vmem:[%s478 + $0x40] sm:$0xff]
        %v484 = vld [vmem:[%s478 + $0x50] sm:$0xff]
        %v485 = vld [vmem:[%s478 + $0x60] sm:$0xff]
        %v486 = vld [vmem:[%s478 + $0x70] sm:$0xff]
        %v487 = vld [vmem:[%s478 + $0x1] sm:$0xff]
        %v488 = vld [vmem:[%s478 + $0x11] sm:$0xff]
        %v489 = vld [vmem:[%s478 + $0x21] sm:$0xff]
        %v490 = vld [vmem:[%s478 + $0x31] sm:$0xff]
        %v491 = vld [vmem:[%s478 + $0x41] sm:$0xff]
        %v492 = vld [vmem:[%s478 + $0x51] sm:$0xff]
        %v493 = vld [vmem:[%s478 + $0x61] sm:$0xff]
        %v494 = vld [vmem:[%s478 + $0x71] sm:$0xff]
        %v495 = vld [vmem:[%s478 + $0x2] sm:$0xff]
        %v496 = vld [vmem:[%s478 + $0x12] sm:$0xff]
        %v497 = vld [vmem:[%s478 + $0x22] sm:$0xff]
        %v498 = vld [vmem:[%s478 + $0x32] sm:$0xff]
        %v499 = vld [vmem:[%s478 + $0x42] sm:$0xff]
        %v500 = vld [vmem:[%s478 + $0x52] sm:$0xff]
        %v501 = vld [vmem:[%s478 + $0x62] sm:$0xff]
        %v502 = vld [vmem:[%s478 + $0x72] sm:$0xff]
        %511 = vrot.lane.b32.xlu0 %v438, 64
        %v512 = vpop.permute.xlu0 %511
        %513 = vrot.lane.b32.xlu0 %v439, 64
        %v514 = vpop.permute.xlu0 %513
        %515 = vrot.lane.b32.xlu0 %v440, 64
        %v516 = vpop.permute.xlu0 %515
        %517 = vrot.lane.b32.xlu0 %v441, 64
        %v518 = vpop.permute.xlu0 %517
        %519 = vrot.lane.b32.xlu0 %v442, 64
        %v520 = vpop.permute.xlu0 %519
        %521 = vrot.lane.b32.xlu0 %v443, 64
        %v522 = vpop.permute.xlu0 %521
        %523 = vrot.lane.b32.xlu0 %v444, 64
        %v524 = vpop.permute.xlu0 %523
        %525 = vrot.lane.b32.xlu0 %v445, 64
        %v526 = vpop.permute.xlu0 %525
        %543 = vrot.lane.b32.xlu0 %v454, 64
        %v544 = vpop.permute.xlu0 %543
        %545 = vrot.lane.b32.xlu0 %v455, 64
        %v546 = vpop.permute.xlu0 %545
        %547 = vrot.lane.b32.xlu0 %v456, 64
        %v548 = vpop.permute.xlu0 %547
        %549 = vrot.lane.b32.xlu0 %v457, 64
        %v550 = vpop.permute.xlu0 %549
        %551 = vrot.lane.b32.xlu0 %v458, 64
        %v552 = vpop.permute.xlu0 %551
        %553 = vrot.lane.b32.xlu0 %v459, 64
        %v554 = vpop.permute.xlu0 %553
        %555 = vrot.lane.b32.xlu0 %v460, 64
        %v556 = vpop.permute.xlu0 %555
        %557 = vrot.lane.b32.xlu0 %v461, 64
        %v558 = vpop.permute.xlu0 %557
        %575 = vrot.lane.b32.xlu0 %v470, 64
        %v576 = vpop.permute.xlu0 %575
        %577 = vrot.lane.b32.xlu0 %v471, 64
        %v578 = vpop.permute.xlu0 %577
        %579 = vrot.lane.b32.xlu0 %v472, 64
        %v580 = vpop.permute.xlu0 %579
        %581 = vrot.lane.b32.xlu0 %v473, 64
        %v582 = vpop.permute.xlu0 %581
        %583 = vrot.lane.b32.xlu0 %v474, 64
        %v584 = vpop.permute.xlu0 %583
        %585 = vrot.lane.b32.xlu0 %v475, 64
        %v586 = vpop.permute.xlu0 %585
        %587 = vrot.lane.b32.xlu0 %v476, 64
        %v588 = vpop.permute.xlu0 %587
        %589 = vrot.lane.b32.xlu0 %v477, 64
        %v590 = vpop.permute.xlu0 %589
        %607 = vrot.lane.b32.xlu0 %v487, 64
        %v608 = vpop.permute.xlu0 %607
        %609 = vrot.lane.b32.xlu0 %v488, 64
        %v610 = vpop.permute.xlu0 %609
        %611 = vrot.lane.b32.xlu0 %v489, 64
        %v612 = vpop.permute.xlu0 %611
        %613 = vrot.lane.b32.xlu0 %v490, 64
        %v614 = vpop.permute.xlu0 %613
        %615 = vrot.lane.b32.xlu0 %v491, 64
        %v616 = vpop.permute.xlu0 %615
        %617 = vrot.lane.b32.xlu0 %v492, 64
        %v618 = vpop.permute.xlu0 %617
        %619 = vrot.lane.b32.xlu0 %v493, 64
        %v620 = vpop.permute.xlu0 %619
        %621 = vrot.lane.b32.xlu0 %v494, 64
        %v622 = vpop.permute.xlu0 %621
        %v631 = vsel %vm223, %v430, %v512
        %v632 = vsel %vm223, %v431, %v514
        %v633 = vsel %vm223, %v432, %v516
        %v634 = vsel %vm223, %v433, %v518
        %v635 = vsel %vm223, %v434, %v520
        %v636 = vsel %vm223, %v435, %v522
        %v637 = vsel %vm223, %v436, %v524
        %v638 = vsel %vm223, %v437, %v526
        %v639 = vsel %vm223, %v446, %v544
        %v640 = vsel %vm223, %v447, %v546
        %v641 = vsel %vm223, %v448, %v548
        %v642 = vsel %vm223, %v449, %v550
        %v643 = vsel %vm223, %v450, %v552
        %v644 = vsel %vm223, %v451, %v554
        %v645 = vsel %vm223, %v452, %v556
        %v646 = vsel %vm223, %v453, %v558
        %v647 = vsel %vm223, %v462, %v576
        %v648 = vsel %vm223, %v463, %v578
        %v649 = vsel %vm223, %v464, %v580
        %v650 = vsel %vm223, %v465, %v582
        %v651 = vsel %vm223, %v466, %v584
        %v652 = vsel %vm223, %v467, %v586
        %v653 = vsel %vm223, %v468, %v588
        %v654 = vsel %vm223, %v469, %v590
        %v655 = vsel %vm223, %v479, %v608
        %v656 = vsel %vm223, %v480, %v610
        %v657 = vsel %vm223, %v481, %v612
        %v658 = vsel %vm223, %v482, %v614
        %v659 = vsel %vm223, %v483, %v616
        %v660 = vsel %vm223, %v484, %v618
        %v661 = vsel %vm223, %v485, %v620
        %v662 = vsel %vm223, %v486, %v622
        %v663 = vld [vmem:[%s3] sm:$0xff]
        %v664 = vld [vmem:[%s3 + $0x8] sm:$0xff]
        %v665 = vld [vmem:[%s3 + $0x10] sm:$0xff]
        %v666 = vld [vmem:[%s3 + $0x18] sm:$0xff]
        %v667 = vld [vmem:[%s3 + $0x20] sm:$0xff]
        %v668 = vld [vmem:[%s3 + $0x28] sm:$0xff]
        %v669 = vld [vmem:[%s3 + $0x30] sm:$0xff]
        %v670 = vld [vmem:[%s3 + $0x38] sm:$0xff]
        %v671 = vld [vmem:[%s3 + $0x40] sm:$0xff]
        %v672 = vld [vmem:[%s3 + $0x48] sm:$0xff]
        %v673 = vld [vmem:[%s3 + $0x50] sm:$0xff]
        %v674 = vld [vmem:[%s3 + $0x58] sm:$0xff]
        %v675 = vld [vmem:[%s3 + $0x60] sm:$0xff]
        %v676 = vld [vmem:[%s3 + $0x68] sm:$0xff]
        %v677 = vld [vmem:[%s3 + $0x70] sm:$0xff]
        %v678 = vld [vmem:[%s3 + $0x78] sm:$0xff]
        %v679 = vld [vmem:[%s3 + $0x80] sm:$0xff]
        %v680 = vld [vmem:[%s3 + $0x88] sm:$0xff]
        %v681 = vld [vmem:[%s3 + $0x90] sm:$0xff]
        %v682 = vld [vmem:[%s3 + $0x98] sm:$0xff]
        %v683 = vld [vmem:[%s3 + $0xa0] sm:$0xff]
        %v684 = vld [vmem:[%s3 + $0xa8] sm:$0xff]
        %v685 = vld [vmem:[%s3 + $0xb0] sm:$0xff]
        %v686 = vld [vmem:[%s3 + $0xb8] sm:$0xff]
        %v687 = vld [vmem:[%s3 + $0xc0] sm:$0xff]
        %v688 = vld [vmem:[%s3 + $0xc8] sm:$0xff]
        %v689 = vld [vmem:[%s3 + $0xd0] sm:$0xff]
        %v690 = vld [vmem:[%s3 + $0xd8] sm:$0xff]
        %v691 = vld [vmem:[%s3 + $0xe0] sm:$0xff]
        %v692 = vld [vmem:[%s3 + $0xe8] sm:$0xff]
        %v693 = vld [vmem:[%s3 + $0xf0] sm:$0xff]
        %v694 = vld [vmem:[%s3 + $0xf8] sm:$0xff]
        %v695 = vld [vmem:[%s3 + $0x100] sm:$0xff]
        %v696 = vld [vmem:[%s3 + $0x108] sm:$0xff]
        %v697 = vld [vmem:[%s3 + $0x110] sm:$0xff]
        %v698 = vld [vmem:[%s3 + $0x118] sm:$0xff]
        %v699 = vld [vmem:[%s3 + $0x120] sm:$0xff]
        %v700 = vld [vmem:[%s3 + $0x128] sm:$0xff]
        %v701 = vld [vmem:[%s3 + $0x130] sm:$0xff]
        %v702 = vld [vmem:[%s3 + $0x138] sm:$0xff]
        %v703 = vld [vmem:[%s3 + $0x140] sm:$0xff]
        %v704 = vld [vmem:[%s3 + $0x148] sm:$0xff]
        %v705 = vld [vmem:[%s3 + $0x150] sm:$0xff]
        %v706 = vld [vmem:[%s3 + $0x158] sm:$0xff]
        %v707 = vld [vmem:[%s3 + $0x160] sm:$0xff]
        %v708 = vld [vmem:[%s3 + $0x168] sm:$0xff]
        %v709 = vld [vmem:[%s3 + $0x170] sm:$0xff]
        %v710 = vld [vmem:[%s3 + $0x178] sm:$0xff]
        %v711 = vld [vmem:[%s3 + $0x180] sm:$0xff]
        %v712 = vld [vmem:[%s3 + $0x188] sm:$0xff]
        %v713 = vld [vmem:[%s3 + $0x190] sm:$0xff]
        %v714 = vld [vmem:[%s3 + $0x198] sm:$0xff]
        %v715 = vld [vmem:[%s3 + $0x1a0] sm:$0xff]
        %v716 = vld [vmem:[%s3 + $0x1a8] sm:$0xff]
        %v717 = vld [vmem:[%s3 + $0x1b0] sm:$0xff]
        %v718 = vld [vmem:[%s3 + $0x1b8] sm:$0xff]
        %v719 = vld [vmem:[%s3 + $0x1c0] sm:$0xff]
        %v720 = vld [vmem:[%s3 + $0x1c8] sm:$0xff]
        %v721 = vld [vmem:[%s3 + $0x1d0] sm:$0xff]
        %v722 = vld [vmem:[%s3 + $0x1d8] sm:$0xff]
        %v723 = vld [vmem:[%s3 + $0x1e0] sm:$0xff]
        %v724 = vld [vmem:[%s3 + $0x1e8] sm:$0xff]
        %v725 = vld [vmem:[%s3 + $0x1f0] sm:$0xff]
        %v726 = vld [vmem:[%s3 + $0x1f8] sm:$0xff]
        %v727 = vld [vmem:[%s3 + $0x200] sm:$0xff]
        %v728 = vld [vmem:[%s3 + $0x208] sm:$0xff]
        %v729 = vld [vmem:[%s3 + $0x210] sm:$0xff]
        %v730 = vld [vmem:[%s3 + $0x218] sm:$0xff]
        %v731 = vld [vmem:[%s3 + $0x220] sm:$0xff]
        %v732 = vld [vmem:[%s3 + $0x228] sm:$0xff]
        %v733 = vld [vmem:[%s3 + $0x230] sm:$0xff]
        %v734 = vld [vmem:[%s3 + $0x238] sm:$0xff]
        %v735 = vld [vmem:[%s4] sm:$0x1]
        %v737 = vlaneseq
        %v738 = vshrl.u32 %v737, 7
        %v739 = vsub.s32 0, %v738
        %v740 = vrot.slane %v735, %v739
        %v743 = vsel %vm223, %v495, 0
        %v746 = vsel %vm223, %v496, 0
        %v749 = vsel %vm223, %v497, 0
        %v752 = vsel %vm223, %v498, 0
        %v755 = vsel %vm223, %v499, 0
        %v758 = vsel %vm223, %v500, 0
        %v761 = vsel %vm223, %v501, 0
        %v764 = vsel %vm223, %v502, 0
        %766 = vmatprep.subr.mxu0 0.0
        %767 = vmatpush1.msra.mxu0 %v663
        %768 = vmatprep.subr.mxu0 0.0
        %769 = vmatpush1.msra.mxu0 %v664
        %770 = vmatprep.subr.mxu0 0.0
        %771 = vmatpush1.msra.mxu0 %v665
        %772 = vmatprep.subr.mxu0 0.0
        %773 = vmatpush1.msra.mxu0 %v666
        %774 = vmatprep.subr.mxu0 0.0
        %775 = vmatpush1.msra.mxu0 %v667
        %776 = vmatprep.subr.mxu0 0.0
        %777 = vmatpush1.msra.mxu0 %v668
        %778 = vmatprep.subr.mxu0 0.0
        %779 = vmatpush1.msra.mxu0 %v669
        %780 = vmatprep.subr.mxu0 0.0
        %781 = vmatpush1.msra.mxu0 %v670
        %782 = vmatprep.subr.mxu0 0.0
        %783 = vmatpush1.msra.mxu0 %v671
        %784 = vmatprep.subr.mxu0 0.0
        %785 = vmatpush1.msra.mxu0 %v672
        %786 = vmatprep.subr.mxu0 0.0
        %787 = vmatpush1.msra.mxu0 %v673
        %788 = vmatprep.subr.mxu0 0.0
        %789 = vmatpush1.msra.mxu0 %v674
        %790 = vmatprep.subr.mxu0 0.0
        %791 = vmatpush1.msra.mxu0 %v675
        %792 = vmatprep.subr.mxu0 0.0
        %793 = vmatpush1.msra.mxu0 %v676
        %794 = vmatprep.subr.mxu0 0.0
        %795 = vmatpush1.msra.mxu0 %v677
        %796 = vmatprep.subr.mxu0 0.0
        %797 = vmatpush1.msra.mxu0 %v678
        %798 = vmatprep.subr.mxu0 0.0
        %799 = vmatpush1.msra.mxu0 %v679
        %800 = vmatprep.subr.mxu0 0.0
        %801 = vmatpush1.msra.mxu0 %v680
        %802 = vmatprep.subr.mxu0 0.0
        %803 = vmatpush1.msra.mxu0 %v681
        %804 = vmatprep.subr.mxu0 0.0
        %805 = vmatpush1.msra.mxu0 %v682
        %806 = vmatprep.subr.mxu0 0.0
        %807 = vmatpush1.msra.mxu0 %v683
        %808 = vmatprep.subr.mxu0 0.0
        %809 = vmatpush1.msra.mxu0 %v684
        %810 = vmatprep.subr.mxu0 0.0
        %811 = vmatpush1.msra.mxu0 %v685
        %812 = vmatprep.subr.mxu0 0.0
        %813 = vmatpush1.msra.mxu0 %v686
        %814 = vmatprep.subr.mxu0 0.0
        %815 = vmatpush1.msra.mxu0 %v687
        %816 = vmatprep.subr.mxu0 0.0
        %817 = vmatpush1.msra.mxu0 %v688
        %818 = vmatprep.subr.mxu0 0.0
        %819 = vmatpush1.msra.mxu0 %v689
        %820 = vmatprep.subr.mxu0 0.0
        %821 = vmatpush1.msra.mxu0 %v690
        %822 = vmatprep.subr.mxu0 0.0
        %823 = vmatpush1.msra.mxu0 %v691
        %824 = vmatprep.subr.mxu0 0.0
        %825 = vmatpush1.msra.mxu0 %v692
        %826 = vmatprep.subr.mxu0 0.0
        %827 = vmatpush1.msra.mxu0 %v693
        %828 = vmatprep.subr.mxu0 0.0
        %829 = vmatpush1.msra.mxu0 %v694
        %830 = vmatprep.mubr.f32.mxu0 %v639
        %831 = vmatmul.mubr.f32.gmra.mrb[0].mxu0 %v631
        %v832 = vpop.f32.mrb[0].mxu0
        %v833 = vadd.f32 %v740, %v832
        %v834 = vpop.f32.mrb[0].mxu0
        %835 = vmatprep.mubr.f32.mxu0 %v640
        %836 = vmatmul.mubr.f32.gmra.mrb[0].mxu0 %v632
        %v837 = vpop.f32.mrb[0].mxu0
        %v838 = vadd.f32 %v740, %v837
        %v839 = vpop.f32.mrb[0].mxu0
        %840 = vmatprep.mubr.f32.mxu0 %v641
        %841 = vmatmul.mubr.f32.gmra.mrb[0].mxu0 %v633
        %v842 = vpop.f32.mrb[0].mxu0
        %v843 = vadd.f32 %v740, %v842
        %v844 = vpop.f32.mrb[0].mxu0
        %845 = vmatprep.mubr.f32.mxu0 %v642
        %846 = vmatmul.mubr.f32.gmra.mrb[0].mxu0 %v634
        %v847 = vpop.f32.mrb[0].mxu0
        %v848 = vadd.f32 %v740, %v847
        %v849 = vpop.f32.mrb[0].mxu0
        %850 = vmatprep.mubr.f32.mxu0 %v643
        %851 = vmatmul.mubr.f32.gmra.mrb[0].mxu0 %v635
        %v852 = vpop.f32.mrb[0].mxu0
        %v853 = vadd.f32 %v740, %v852
        %v854 = vpop.f32.mrb[0].mxu0
        %855 = vmatprep.mubr.f32.mxu0 %v644
        %856 = vmatmul.mubr.f32.gmra.mrb[0].mxu0 %v636
        %v857 = vpop.f32.mrb[0].mxu0
        %v858 = vadd.f32 %v740, %v857
        %v859 = vpop.f32.mrb[0].mxu0
        %860 = vmatprep.mubr.f32.mxu0 %v645
        %861 = vmatmul.mubr.f32.gmra.mrb[0].mxu0 %v637
        %v862 = vpop.f32.mrb[0].mxu0
        %v863 = vadd.f32 %v740, %v862
        %v864 = vpop.f32.mrb[0].mxu0
        %865 = vmatprep.mubr.f32.mxu0 %v646
        %866 = vmatmul.mubr.f32.gmra.mrb[0].mxu0 %v638
        %v867 = vpop.f32.mrb[0].mxu0
        %v868 = vadd.f32 %v740, %v867
        %v869 = vpop.f32.mrb[0].mxu0
        %870 = vdwg.mxu0
        %871 = vmatprep.subr.mxu0 0.0
        %872 = vmatpush1.msra.mxu0 %v695
        %873 = vmatprep.subr.mxu0 0.0
        %874 = vmatpush1.msra.mxu0 %v696
        %875 = vmatprep.subr.mxu0 0.0
        %876 = vmatpush1.msra.mxu0 %v697
        %877 = vmatprep.subr.mxu0 0.0
        %878 = vmatpush1.msra.mxu0 %v698
        %879 = vmatprep.subr.mxu0 0.0
        %880 = vmatpush1.msra.mxu0 %v699
        %881 = vmatprep.subr.mxu0 0.0
        %882 = vmatpush1.msra.mxu0 %v700
        %883 = vmatprep.subr.mxu0 0.0
        %884 = vmatpush1.msra.mxu0 %v701
        %885 = vmatprep.subr.mxu0 0.0
        %886 = vmatpush1.msra.mxu0 %v702
        %887 = vmatprep.subr.mxu0 0.0
        %888 = vmatpush1.msra.mxu0 %v703
        %889 = vmatprep.subr.mxu0 0.0
        %890 = vmatpush1.msra.mxu0 %v704
        %891 = vmatprep.subr.mxu0 0.0
        %892 = vmatpush1.msra.mxu0 %v705
        %893 = vmatprep.subr.mxu0 0.0
        %894 = vmatpush1.msra.mxu0 %v706
        %895 = vmatprep.subr.mxu0 0.0
        %896 = vmatpush1.msra.mxu0 %v707
        %897 = vmatprep.subr.mxu0 0.0
        %898 = vmatpush1.msra.mxu0 %v708
        %899 = vmatprep.subr.mxu0 0.0
        %900 = vmatpush1.msra.mxu0 %v709
        %901 = vmatprep.subr.mxu0 0.0
        %902 = vmatpush1.msra.mxu0 %v710
        %903 = vmatprep.subr.mxu0 0.0
        %904 = vmatpush1.msra.mxu0 %v711
        %905 = vmatprep.subr.mxu0 0.0
        %906 = vmatpush1.msra.mxu0 %v712
        %907 = vmatprep.subr.mxu0 0.0
        %908 = vmatpush1.msra.mxu0 %v713
        %909 = vmatprep.subr.mxu0 0.0
        %910 = vmatpush1.msra.mxu0 %v714
        %911 = vmatprep.subr.mxu0 0.0
        %912 = vmatpush1.msra.mxu0 %v715
        %913 = vmatprep.subr.mxu0 0.0
        %914 = vmatpush1.msra.mxu0 %v716
        %915 = vmatprep.subr.mxu0 0.0
        %916 = vmatpush1.msra.mxu0 %v717
        %917 = vmatprep.subr.mxu0 0.0
        %918 = vmatpush1.msra.mxu0 %v718
        %919 = vmatprep.subr.mxu0 0.0
        %920 = vmatpush1.msra.mxu0 %v719
        %921 = vmatprep.subr.mxu0 0.0
        %922 = vmatpush1.msra.mxu0 %v720
        %923 = vmatprep.subr.mxu0 0.0
        %924 = vmatpush1.msra.mxu0 %v721
        %925 = vmatprep.subr.mxu0 0.0
        %926 = vmatpush1.msra.mxu0 %v722
        %927 = vmatprep.subr.mxu0 0.0
        %928 = vmatpush1.msra.mxu0 %v723
        %929 = vmatprep.subr.mxu0 0.0
        %930 = vmatpush1.msra.mxu0 %v724
        %931 = vmatprep.subr.mxu0 0.0
        %932 = vmatpush1.msra.mxu0 %v725
        %933 = vmatprep.subr.mxu0 0.0
        %934 = vmatpush1.msra.mxu0 %v726
        %935 = vmatprep.mubr.f32.mxu0 %v655
        %936 = vmatmul.mubr.f32.gmra.mrb[0].mxu0 %v647
        %v937 = vpop.f32.mrb[0].mxu0
        %v938 = vadd.f32 %v833, %v937
        %v939 = vpop.f32.mrb[0].mxu0
        %940 = vmatprep.mubr.f32.mxu0 %v656
        %941 = vmatmul.mubr.f32.gmra.mrb[0].mxu0 %v648
        %v942 = vpop.f32.mrb[0].mxu0
        %v943 = vadd.f32 %v838, %v942
        %v944 = vpop.f32.mrb[0].mxu0
        %945 = vmatprep.mubr.f32.mxu0 %v657
        %946 = vmatmul.mubr.f32.gmra.mrb[0].mxu0 %v649
        %v947 = vpop.f32.mrb[0].mxu0
        %v948 = vadd.f32 %v843, %v947
        %v949 = vpop.f32.mrb[0].mxu0
        %950 = vmatprep.mubr.f32.mxu0 %v658
        %951 = vmatmul.mubr.f32.gmra.mrb[0].mxu0 %v650
        %v952 = vpop.f32.mrb[0].mxu0
        %v953 = vadd.f32 %v848, %v952
        %v954 = vpop.f32.mrb[0].mxu0
        %955 = vmatprep.mubr.f32.mxu0 %v659
        %956 = vmatmul.mubr.f32.gmra.mrb[0].mxu0 %v651
        %v957 = vpop.f32.mrb[0].mxu0
        %v958 = vadd.f32 %v853, %v957
        %v959 = vpop.f32.mrb[0].mxu0
        %960 = vmatprep.mubr.f32.mxu0 %v660
        %961 = vmatmul.mubr.f32.gmra.mrb[0].mxu0 %v652
        %v962 = vpop.f32.mrb[0].mxu0
        %v963 = vadd.f32 %v858, %v962
        %v964 = vpop.f32.mrb[0].mxu0
        %965 = vmatprep.mubr.f32.mxu0 %v661
        %966 = vmatmul.mubr.f32.gmra.mrb[0].mxu0 %v653
        %v967 = vpop.f32.mrb[0].mxu0
        %v968 = vadd.f32 %v863, %v967
        %v969 = vpop.f32.mrb[0].mxu0
        %970 = vmatprep.mubr.f32.mxu0 %v662
        %971 = vmatmul.mubr.f32.gmra.mrb[0].mxu0 %v654
        %v972 = vpop.f32.mrb[0].mxu0
        %v973 = vadd.f32 %v868, %v972
        %v974 = vpop.f32.mrb[0].mxu0
        %975 = vdwg.mxu0
        %976 = vmatprep.subr.mxu0 0.0
        %977 = vmatpush1.msra.mxu0 %v727
        %978 = vmatprep.subr.mxu0 0.0
        %979 = vmatpush1.msra.mxu0 %v728
        %980 = vmatprep.subr.mxu0 0.0
        %981 = vmatpush1.msra.mxu0 %v729
        %982 = vmatprep.subr.mxu0 0.0
        %983 = vmatpush1.msra.mxu0 %v730
        %984 = vmatprep.subr.mxu0 0.0
        %985 = vmatpush1.msra.mxu0 %v731
        %986 = vmatprep.subr.mxu0 0.0
        %987 = vmatpush1.msra.mxu0 %v732
        %988 = vmatprep.subr.mxu0 0.0
        %989 = vmatpush1.msra.mxu0 %v733
        %990 = vmatprep.subr.mxu0 0.0
        %991 = vmatpush1.msra.mxu0 %v734
        %992 = vmatprep.subr.mxu0 0.0
        %993 = vmatpush1.msra.mxu0 0.0
        %994 = vmatprep.subr.mxu0 0.0
        %995 = vmatpush1.msra.mxu0 0.0
        %996 = vmatprep.subr.mxu0 0.0
        %997 = vmatpush1.msra.mxu0 0.0
        %998 = vmatprep.subr.mxu0 0.0
        %999 = vmatpush1.msra.mxu0 0.0
        %1000 = vmatprep.subr.mxu0 0.0
        %1001 = vmatpush1.msra.mxu0 0.0
        %1002 = vmatprep.subr.mxu0 0.0
        %1003 = vmatpush1.msra.mxu0 0.0
        %1004 = vmatprep.subr.mxu0 0.0
        %1005 = vmatpush1.msra.mxu0 0.0
        %1006 = vmatprep.subr.mxu0 0.0
        %1007 = vmatpush1.msra.mxu0 0.0
        %1008 = vmatprep.subr.mxu0 0.0
        %1009 = vmatpush1.msra.mxu0 0.0
        %1010 = vmatprep.subr.mxu0 0.0
        %1011 = vmatpush1.msra.mxu0 0.0
        %1012 = vmatprep.subr.mxu0 0.0
        %1013 = vmatpush1.msra.mxu0 0.0
        %1014 = vmatprep.subr.mxu0 0.0
        %1015 = vmatpush1.msra.mxu0 0.0
        %1016 = vmatprep.subr.mxu0 0.0
        %1017 = vmatpush1.msra.mxu0 0.0
        %1018 = vmatprep.subr.mxu0 0.0
        %1019 = vmatpush1.msra.mxu0 0.0
        %1020 = vmatprep.subr.mxu0 0.0
        %1021 = vmatpush1.msra.mxu0 0.0
        %1022 = vmatprep.subr.mxu0 0.0
        %1023 = vmatpush1.msra.mxu0 0.0
        %1024 = vmatprep.subr.mxu0 0.0
        %1025 = vmatpush1.msra.mxu0 0.0
        %1026 = vmatprep.subr.mxu0 0.0
        %1027 = vmatpush1.msra.mxu0 0.0
        %1028 = vmatprep.subr.mxu0 0.0
        %1029 = vmatpush1.msra.mxu0 0.0
        %1030 = vmatprep.subr.mxu0 0.0
        %1031 = vmatpush1.msra.mxu0 0.0
        %1032 = vmatprep.subr.mxu0 0.0
        %1033 = vmatpush1.msra.mxu0 0.0
        %1034 = vmatprep.subr.mxu0 0.0
        %1035 = vmatpush1.msra.mxu0 0.0
        %1036 = vmatprep.subr.mxu0 0.0
        %1037 = vmatpush1.msra.mxu0 0.0
        %1038 = vmatprep.subr.mxu0 0.0
        %1039 = vmatpush1.msra.mxu0 0.0
        %1040 = vmatprep.mubr.f32.mxu0 0.0
        %1041 = vmatmul.mubr.f32.gmra.mrb[0].mxu0 %v743
        %v1042 = vpop.f32.mrb[0].mxu0
        %v1043 = vadd.f32 %v938, %v1042
        %v1044 = vpop.f32.mrb[0].mxu0
        %1045 = vmatprep.mubr.f32.mxu0 0.0
        %1046 = vmatmul.mubr.f32.gmra.mrb[0].mxu0 %v746
        %v1047 = vpop.f32.mrb[0].mxu0
        %v1048 = vadd.f32 %v943, %v1047
        %v1049 = vpop.f32.mrb[0].mxu0
        %1050 = vmatprep.mubr.f32.mxu0 0.0
        %1051 = vmatmul.mubr.f32.gmra.mrb[0].mxu0 %v749
        %v1052 = vpop.f32.mrb[0].mxu0
        %v1053 = vadd.f32 %v948, %v1052
        %v1054 = vpop.f32.mrb[0].mxu0
        %1055 = vmatprep.mubr.f32.mxu0 0.0
        %1056 = vmatmul.mubr.f32.gmra.mrb[0].mxu0 %v752
        %v1057 = vpop.f32.mrb[0].mxu0
        %v1058 = vadd.f32 %v953, %v1057
        %v1059 = vpop.f32.mrb[0].mxu0
        %1060 = vmatprep.mubr.f32.mxu0 0.0
        %1061 = vmatmul.mubr.f32.gmra.mrb[0].mxu0 %v755
        %v1062 = vpop.f32.mrb[0].mxu0
        %v1063 = vadd.f32 %v958, %v1062
        %v1064 = vpop.f32.mrb[0].mxu0
        %1065 = vmatprep.mubr.f32.mxu0 0.0
        %1066 = vmatmul.mubr.f32.gmra.mrb[0].mxu0 %v758
        %v1067 = vpop.f32.mrb[0].mxu0
        %v1068 = vadd.f32 %v963, %v1067
        %v1069 = vpop.f32.mrb[0].mxu0
        %1070 = vmatprep.mubr.f32.mxu0 0.0
        %1071 = vmatmul.mubr.f32.gmra.mrb[0].mxu0 %v761
        %v1072 = vpop.f32.mrb[0].mxu0
        %v1073 = vadd.f32 %v968, %v1072
        %v1074 = vpop.f32.mrb[0].mxu0
        %1075 = vmatprep.mubr.f32.mxu0 0.0
        %1076 = vmatmul.mubr.f32.gmra.mrb[0].mxu0 %v764
        %v1077 = vpop.f32.mrb[0].mxu0
        %v1078 = vadd.f32 %v973, %v1077
        %v1079 = vpop.f32.mrb[0].mxu0
        %1080 = vdwg.mxu0
        %vm1081 = vcmp.gt.f32.partialorder %v1043, 0.0
        %vm1082 = vcmp.gt.f32.partialorder %v1048, 0.0
        %vm1083 = vcmp.gt.f32.partialorder %v1053, 0.0
        %vm1084 = vcmp.gt.f32.partialorder %v1058, 0.0
        %vm1085 = vcmp.gt.f32.partialorder %v1063, 0.0
        %vm1086 = vcmp.gt.f32.partialorder %v1068, 0.0
        %vm1087 = vcmp.gt.f32.partialorder %v1073, 0.0
        %vm1088 = vcmp.gt.f32.partialorder %v1078, 0.0
        %v1089 = vmul.f32 %v1043, 0.01
        %v1090 = vmul.f32 %v1048, 0.01
        %v1091 = vmul.f32 %v1053, 0.01
        %v1092 = vmul.f32 %v1058, 0.01
        %v1093 = vmul.f32 %v1063, 0.01
        %v1094 = vmul.f32 %v1068, 0.01
        %v1095 = vmul.f32 %v1073, 0.01
        %v1096 = vmul.f32 %v1078, 0.01
        %v1097 = vsel %vm1081, %v1043, %v1089
        %v1098 = vsel %vm1082, %v1048, %v1090
        %v1099 = vsel %vm1083, %v1053, %v1091
        %v1100 = vsel %vm1084, %v1058, %v1092
        %v1101 = vsel %vm1085, %v1063, %v1093
        %v1102 = vsel %vm1086, %v1068, %v1094
        %v1103 = vsel %vm1087, %v1073, %v1095
        %v1104 = vsel %vm1088, %v1078, %v1096
        %1105 = vst.msk [vmem:[%s421 + $0x1] sm:$0xff] %vm223, %v1097
        %1106 = vst.msk [vmem:[%s421 + $0x11] sm:$0xff] %vm223, %v1098
        %1107 = vst.msk [vmem:[%s421 + $0x21] sm:$0xff] %vm223, %v1099
        %1108 = vst.msk [vmem:[%s421 + $0x31] sm:$0xff] %vm223, %v1100
        %1109 = vst.msk [vmem:[%s421 + $0x41] sm:$0xff] %vm223, %v1101
        %1110 = vst.msk [vmem:[%s421 + $0x51] sm:$0xff] %vm223, %v1102
        %1111 = vst.msk [vmem:[%s421 + $0x61] sm:$0xff] %vm223, %v1103
        %1112 = vst.msk [vmem:[%s421 + $0x71] sm:$0xff] %vm223, %v1104
        %v1113 = vld [vmem:[#allocation2] sm:$0xff]
        %v1114 = vld [vmem:[#allocation2 + $0x10] sm:$0xff]
        %v1115 = vld [vmem:[#allocation2 + $0x20] sm:$0xff]
        %v1116 = vld [vmem:[#allocation2 + $0x30] sm:$0xff]
        %v1117 = vld [vmem:[#allocation2 + $0x40] sm:$0xff]
        %v1118 = vld [vmem:[#allocation2 + $0x50] sm:$0xff]
        %v1119 = vld [vmem:[#allocation2 + $0x60] sm:$0xff]
        %v1120 = vld [vmem:[#allocation2 + $0x70] sm:$0xff]
        %v1121 = vld [vmem:[#allocation2 + $0x1] sm:$0xff]
        %v1122 = vld [vmem:[#allocation2 + $0x11] sm:$0xff]
        %v1123 = vld [vmem:[#allocation2 + $0x21] sm:$0xff]
        %v1124 = vld [vmem:[#allocation2 + $0x31] sm:$0xff]
        %v1125 = vld [vmem:[#allocation2 + $0x41] sm:$0xff]
        %v1126 = vld [vmem:[#allocation2 + $0x51] sm:$0xff]
        %v1127 = vld [vmem:[#allocation2 + $0x61] sm:$0xff]
        %v1128 = vld [vmem:[#allocation2 + $0x71] sm:$0xff]
        %v1129 = vld [vmem:[#allocation2 + $0x2] sm:$0xff]
        %v1130 = vld [vmem:[#allocation2 + $0x12] sm:$0xff]
        %v1131 = vld [vmem:[#allocation2 + $0x22] sm:$0xff]
        %v1132 = vld [vmem:[#allocation2 + $0x32] sm:$0xff]
        %v1133 = vld [vmem:[#allocation2 + $0x42] sm:$0xff]
        %v1134 = vld [vmem:[#allocation2 + $0x52] sm:$0xff]
        %v1135 = vld [vmem:[#allocation2 + $0x62] sm:$0xff]
        %v1136 = vld [vmem:[#allocation2 + $0x72] sm:$0xff]
        %v1137 = vld [vmem:[%s421] sm:$0xff]
        %v1138 = vld [vmem:[%s421 + $0x10] sm:$0xff]
        %v1139 = vld [vmem:[%s421 + $0x20] sm:$0xff]
        %v1140 = vld [vmem:[%s421 + $0x30] sm:$0xff]
        %v1141 = vld [vmem:[%s421 + $0x40] sm:$0xff]
        %v1142 = vld [vmem:[%s421 + $0x50] sm:$0xff]
        %v1143 = vld [vmem:[%s421 + $0x60] sm:$0xff]
        %v1144 = vld [vmem:[%s421 + $0x70] sm:$0xff]
        %v1145 = vld [vmem:[%s421 + $0x1] sm:$0xff]
        %v1146 = vld [vmem:[%s421 + $0x11] sm:$0xff]
        %v1147 = vld [vmem:[%s421 + $0x21] sm:$0xff]
        %v1148 = vld [vmem:[%s421 + $0x31] sm:$0xff]
        %v1149 = vld [vmem:[%s421 + $0x41] sm:$0xff]
        %v1150 = vld [vmem:[%s421 + $0x51] sm:$0xff]
        %v1151 = vld [vmem:[%s421 + $0x61] sm:$0xff]
        %v1152 = vld [vmem:[%s421 + $0x71] sm:$0xff]
        %v1153 = vld [vmem:[%s421 + $0x2] sm:$0xff]
        %v1154 = vld [vmem:[%s421 + $0x12] sm:$0xff]
        %v1155 = vld [vmem:[%s421 + $0x22] sm:$0xff]
        %v1156 = vld [vmem:[%s421 + $0x32] sm:$0xff]
        %v1157 = vld [vmem:[%s421 + $0x42] sm:$0xff]
        %v1158 = vld [vmem:[%s421 + $0x52] sm:$0xff]
        %v1159 = vld [vmem:[%s421 + $0x62] sm:$0xff]
        %v1160 = vld [vmem:[%s421 + $0x72] sm:$0xff]
        %v1161 = vld [vmem:[%s478] sm:$0xff]
        %v1162 = vld [vmem:[%s478 + $0x10] sm:$0xff]
        %v1163 = vld [vmem:[%s478 + $0x20] sm:$0xff]
        %v1164 = vld [vmem:[%s478 + $0x30] sm:$0xff]
        %v1165 = vld [vmem:[%s478 + $0x40] sm:$0xff]
        %v1166 = vld [vmem:[%s478 + $0x50] sm:$0xff]
        %v1167 = vld [vmem:[%s478 + $0x60] sm:$0xff]
        %v1168 = vld [vmem:[%s478 + $0x70] sm:$0xff]
        %v1169 = vld [vmem:[%s478 + $0x1] sm:$0xff]
        %v1170 = vld [vmem:[%s478 + $0x11] sm:$0xff]
        %v1171 = vld [vmem:[%s478 + $0x21] sm:$0xff]
        %v1172 = vld [vmem:[%s478 + $0x31] sm:$0xff]
        %v1173 = vld [vmem:[%s478 + $0x41] sm:$0xff]
        %v1174 = vld [vmem:[%s478 + $0x51] sm:$0xff]
        %v1175 = vld [vmem:[%s478 + $0x61] sm:$0xff]
        %v1176 = vld [vmem:[%s478 + $0x71] sm:$0xff]
        %v1177 = vld [vmem:[%s478 + $0x2] sm:$0xff]
        %v1178 = vld [vmem:[%s478 + $0x12] sm:$0xff]
        %v1179 = vld [vmem:[%s478 + $0x22] sm:$0xff]
        %v1180 = vld [vmem:[%s478 + $0x32] sm:$0xff]
        %v1181 = vld [vmem:[%s478 + $0x42] sm:$0xff]
        %v1182 = vld [vmem:[%s478 + $0x52] sm:$0xff]
        %v1183 = vld [vmem:[%s478 + $0x62] sm:$0xff]
        %v1184 = vld [vmem:[%s478 + $0x72] sm:$0xff]
        %1193 = vrot.lane.b32.xlu0 %v1121, 64
        %v1194 = vpop.permute.xlu0 %1193
        %1195 = vrot.lane.b32.xlu0 %v1122, 64
        %v1196 = vpop.permute.xlu0 %1195
        %1197 = vrot.lane.b32.xlu0 %v1123, 64
        %v1198 = vpop.permute.xlu0 %1197
        %1199 = vrot.lane.b32.xlu0 %v1124, 64
        %v1200 = vpop.permute.xlu0 %1199
        %1201 = vrot.lane.b32.xlu0 %v1125, 64
        %v1202 = vpop.permute.xlu0 %1201
        %1203 = vrot.lane.b32.xlu0 %v1126, 64
        %v1204 = vpop.permute.xlu0 %1203
        %1205 = vrot.lane.b32.xlu0 %v1127, 64
        %v1206 = vpop.permute.xlu0 %1205
        %1207 = vrot.lane.b32.xlu0 %v1128, 64
        %v1208 = vpop.permute.xlu0 %1207
        %1225 = vrot.lane.b32.xlu0 %v1137, 64
        %v1226 = vpop.permute.xlu0 %1225
        %1227 = vrot.lane.b32.xlu0 %v1138, 64
        %v1228 = vpop.permute.xlu0 %1227
        %1229 = vrot.lane.b32.xlu0 %v1139, 64
        %v1230 = vpop.permute.xlu0 %1229
        %1231 = vrot.lane.b32.xlu0 %v1140, 64
        %v1232 = vpop.permute.xlu0 %1231
        %1233 = vrot.lane.b32.xlu0 %v1141, 64
        %v1234 = vpop.permute.xlu0 %1233
        %1235 = vrot.lane.b32.xlu0 %v1142, 64
        %v1236 = vpop.permute.xlu0 %1235
        %1237 = vrot.lane.b32.xlu0 %v1143, 64
        %v1238 = vpop.permute.xlu0 %1237
        %1239 = vrot.lane.b32.xlu0 %v1144, 64
        %v1240 = vpop.permute.xlu0 %1239
        %1257 = vrot.lane.b32.xlu0 %v1153, 64
        %v1258 = vpop.permute.xlu0 %1257
        %1259 = vrot.lane.b32.xlu0 %v1154, 64
        %v1260 = vpop.permute.xlu0 %1259
        %1261 = vrot.lane.b32.xlu0 %v1155, 64
        %v1262 = vpop.permute.xlu0 %1261
        %1263 = vrot.lane.b32.xlu0 %v1156, 64
        %v1264 = vpop.permute.xlu0 %1263
        %1265 = vrot.lane.b32.xlu0 %v1157, 64
        %v1266 = vpop.permute.xlu0 %1265
        %1267 = vrot.lane.b32.xlu0 %v1158, 64
        %v1268 = vpop.permute.xlu0 %1267
        %1269 = vrot.lane.b32.xlu0 %v1159, 64
        %v1270 = vpop.permute.xlu0 %1269
        %1271 = vrot.lane.b32.xlu0 %v1160, 64
        %v1272 = vpop.permute.xlu0 %1271
        %1289 = vrot.lane.b32.xlu0 %v1169, 64
        %v1290 = vpop.permute.xlu0 %1289
        %1291 = vrot.lane.b32.xlu0 %v1170, 64
        %v1292 = vpop.permute.xlu0 %1291
        %1293 = vrot.lane.b32.xlu0 %v1171, 64
        %v1294 = vpop.permute.xlu0 %1293
        %1295 = vrot.lane.b32.xlu0 %v1172, 64
        %v1296 = vpop.permute.xlu0 %1295
        %1297 = vrot.lane.b32.xlu0 %v1173, 64
        %v1298 = vpop.permute.xlu0 %1297
        %1299 = vrot.lane.b32.xlu0 %v1174, 64
        %v1300 = vpop.permute.xlu0 %1299
        %1301 = vrot.lane.b32.xlu0 %v1175, 64
        %v1302 = vpop.permute.xlu0 %1301
        %1303 = vrot.lane.b32.xlu0 %v1176, 64
        %v1304 = vpop.permute.xlu0 %1303
        %v1313 = vsel %vm223, %v1113, %v1194
        %v1314 = vsel %vm223, %v1114, %v1196
        %v1315 = vsel %vm223, %v1115, %v1198
        %v1316 = vsel %vm223, %v1116, %v1200
        %v1317 = vsel %vm223, %v1117, %v1202
        %v1318 = vsel %vm223, %v1118, %v1204
        %v1319 = vsel %vm223, %v1119, %v1206
        %v1320 = vsel %vm223, %v1120, %v1208
        %v1321 = vsel %vm223, %v1129, %v1226
        %v1322 = vsel %vm223, %v1130, %v1228
        %v1323 = vsel %vm223, %v1131, %v1230
        %v1324 = vsel %vm223, %v1132, %v1232
        %v1325 = vsel %vm223, %v1133, %v1234
        %v1326 = vsel %vm223, %v1134, %v1236
        %v1327 = vsel %vm223, %v1135, %v1238
        %v1328 = vsel %vm223, %v1136, %v1240
        %v1329 = vsel %vm223, %v1145, %v1258
        %v1330 = vsel %vm223, %v1146, %v1260
        %v1331 = vsel %vm223, %v1147, %v1262
        %v1332 = vsel %vm223, %v1148, %v1264
        %v1333 = vsel %vm223, %v1149, %v1266
        %v1334 = vsel %vm223, %v1150, %v1268
        %v1335 = vsel %vm223, %v1151, %v1270
        %v1336 = vsel %vm223, %v1152, %v1272
        %v1337 = vsel %vm223, %v1161, %v1290
        %v1338 = vsel %vm223, %v1162, %v1292
        %v1339 = vsel %vm223, %v1163, %v1294
        %v1340 = vsel %vm223, %v1164, %v1296
        %v1341 = vsel %vm223, %v1165, %v1298
        %v1342 = vsel %vm223, %v1166, %v1300
        %v1343 = vsel %vm223, %v1167, %v1302
        %v1344 = vsel %vm223, %v1168, %v1304
        %s1345 = scalar_lea.vmem %s3, 576
        %v1346 = vld [vmem:[%s1345] sm:$0xff]
        %v1347 = vld [vmem:[%s1345 + $0x8] sm:$0xff]
        %v1348 = vld [vmem:[%s1345 + $0x10] sm:$0xff]
        %v1349 = vld [vmem:[%s1345 + $0x18] sm:$0xff]
        %v1350 = vld [vmem:[%s1345 + $0x20] sm:$0xff]
        %v1351 = vld [vmem:[%s1345 + $0x28] sm:$0xff]
        %v1352 = vld [vmem:[%s1345 + $0x30] sm:$0xff]
        %v1353 = vld [vmem:[%s1345 + $0x38] sm:$0xff]
        %v1354 = vld [vmem:[%s1345 + $0x40] sm:$0xff]
        %v1355 = vld [vmem:[%s1345 + $0x48] sm:$0xff]
        %v1356 = vld [vmem:[%s1345 + $0x50] sm:$0xff]
        %v1357 = vld [vmem:[%s1345 + $0x58] sm:$0xff]
        %v1358 = vld [vmem:[%s1345 + $0x60] sm:$0xff]
        %v1359 = vld [vmem:[%s1345 + $0x68] sm:$0xff]
        %v1360 = vld [vmem:[%s1345 + $0x70] sm:$0xff]
        %v1361 = vld [vmem:[%s1345 + $0x78] sm:$0xff]
        %v1362 = vld [vmem:[%s1345 + $0x80] sm:$0xff]
        %v1363 = vld [vmem:[%s1345 + $0x88] sm:$0xff]
        %v1364 = vld [vmem:[%s1345 + $0x90] sm:$0xff]
        %v1365 = vld [vmem:[%s1345 + $0x98] sm:$0xff]
        %v1366 = vld [vmem:[%s1345 + $0xa0] sm:$0xff]
        %v1367 = vld [vmem:[%s1345 + $0xa8] sm:$0xff]
        %v1368 = vld [vmem:[%s1345 + $0xb0] sm:$0xff]
        %v1369 = vld [vmem:[%s1345 + $0xb8] sm:$0xff]
        %v1370 = vld [vmem:[%s1345 + $0xc0] sm:$0xff]
        %v1371 = vld [vmem:[%s1345 + $0xc8] sm:$0xff]
        %v1372 = vld [vmem:[%s1345 + $0xd0] sm:$0xff]
        %v1373 = vld [vmem:[%s1345 + $0xd8] sm:$0xff]
        %v1374 = vld [vmem:[%s1345 + $0xe0] sm:$0xff]
        %v1375 = vld [vmem:[%s1345 + $0xe8] sm:$0xff]
        %v1376 = vld [vmem:[%s1345 + $0xf0] sm:$0xff]
        %v1377 = vld [vmem:[%s1345 + $0xf8] sm:$0xff]
        %v1378 = vld [vmem:[%s1345 + $0x100] sm:$0xff]
        %v1379 = vld [vmem:[%s1345 + $0x108] sm:$0xff]
        %v1380 = vld [vmem:[%s1345 + $0x110] sm:$0xff]
        %v1381 = vld [vmem:[%s1345 + $0x118] sm:$0xff]
        %v1382 = vld [vmem:[%s1345 + $0x120] sm:$0xff]
        %v1383 = vld [vmem:[%s1345 + $0x128] sm:$0xff]
        %v1384 = vld [vmem:[%s1345 + $0x130] sm:$0xff]
        %v1385 = vld [vmem:[%s1345 + $0x138] sm:$0xff]
        %v1386 = vld [vmem:[%s1345 + $0x140] sm:$0xff]
        %v1387 = vld [vmem:[%s1345 + $0x148] sm:$0xff]
        %v1388 = vld [vmem:[%s1345 + $0x150] sm:$0xff]
        %v1389 = vld [vmem:[%s1345 + $0x158] sm:$0xff]
        %v1390 = vld [vmem:[%s1345 + $0x160] sm:$0xff]
        %v1391 = vld [vmem:[%s1345 + $0x168] sm:$0xff]
        %v1392 = vld [vmem:[%s1345 + $0x170] sm:$0xff]
        %v1393 = vld [vmem:[%s1345 + $0x178] sm:$0xff]
        %v1394 = vld [vmem:[%s1345 + $0x180] sm:$0xff]
        %v1395 = vld [vmem:[%s1345 + $0x188] sm:$0xff]
        %v1396 = vld [vmem:[%s1345 + $0x190] sm:$0xff]
        %v1397 = vld [vmem:[%s1345 + $0x198] sm:$0xff]
        %v1398 = vld [vmem:[%s1345 + $0x1a0] sm:$0xff]
        %v1399 = vld [vmem:[%s1345 + $0x1a8] sm:$0xff]
        %v1400 = vld [vmem:[%s1345 + $0x1b0] sm:$0xff]
        %v1401 = vld [vmem:[%s1345 + $0x1b8] sm:$0xff]
        %v1402 = vld [vmem:[%s1345 + $0x1c0] sm:$0xff]
        %v1403 = vld [vmem:[%s1345 + $0x1c8] sm:$0xff]
        %v1404 = vld [vmem:[%s1345 + $0x1d0] sm:$0xff]
        %v1405 = vld [vmem:[%s1345 + $0x1d8] sm:$0xff]
        %v1406 = vld [vmem:[%s1345 + $0x1e0] sm:$0xff]
        %v1407 = vld [vmem:[%s1345 + $0x1e8] sm:$0xff]
        %v1408 = vld [vmem:[%s1345 + $0x1f0] sm:$0xff]
        %v1409 = vld [vmem:[%s1345 + $0x1f8] sm:$0xff]
        %v1410 = vld [vmem:[%s1345 + $0x200] sm:$0xff]
        %v1411 = vld [vmem:[%s1345 + $0x208] sm:$0xff]
        %v1412 = vld [vmem:[%s1345 + $0x210] sm:$0xff]
        %v1413 = vld [vmem:[%s1345 + $0x218] sm:$0xff]
        %v1414 = vld [vmem:[%s1345 + $0x220] sm:$0xff]
        %v1415 = vld [vmem:[%s1345 + $0x228] sm:$0xff]
        %v1416 = vld [vmem:[%s1345 + $0x230] sm:$0xff]
        %v1417 = vld [vmem:[%s1345 + $0x238] sm:$0xff]
        %s1418 = scalar_lea.vmem %s4, 1
        %v1419 = vld [vmem:[%s1418] sm:$0x1]
        %v1421 = vlaneseq
        %v1422 = vshrl.u32 %v1421, 7
        %v1423 = vsub.s32 0, %v1422
        %v1424 = vrot.slane %v1419, %v1423
        %v1427 = vsel %vm223, %v1177, 0
        %v1430 = vsel %vm223, %v1178, 0
        %v1433 = vsel %vm223, %v1179, 0
        %v1436 = vsel %vm223, %v1180, 0
        %v1439 = vsel %vm223, %v1181, 0
        %v1442 = vsel %vm223, %v1182, 0
        %v1445 = vsel %vm223, %v1183, 0
        %v1448 = vsel %vm223, %v1184, 0
        %1450 = vmatprep.subr.mxu0 0.0
        %1451 = vmatpush1.msra.mxu0 %v1346
        %1452 = vmatprep.subr.mxu0 0.0
        %1453 = vmatpush1.msra.mxu0 %v1347
        %1454 = vmatprep.subr.mxu0 0.0
        %1455 = vmatpush1.msra.mxu0 %v1348
        %1456 = vmatprep.subr.mxu0 0.0
        %1457 = vmatpush1.msra.mxu0 %v1349
        %1458 = vmatprep.subr.mxu0 0.0
        %1459 = vmatpush1.msra.mxu0 %v1350
        %1460 = vmatprep.subr.mxu0 0.0
        %1461 = vmatpush1.msra.mxu0 %v1351
        %1462 = vmatprep.subr.mxu0 0.0
        %1463 = vmatpush1.msra.mxu0 %v1352
        %1464 = vmatprep.subr.mxu0 0.0
        %1465 = vmatpush1.msra.mxu0 %v1353
        %1466 = vmatprep.subr.mxu0 0.0
        %1467 = vmatpush1.msra.mxu0 %v1354
        %1468 = vmatprep.subr.mxu0 0.0
        %1469 = vmatpush1.msra.mxu0 %v1355
        %1470 = vmatprep.subr.mxu0 0.0
        %1471 = vmatpush1.msra.mxu0 %v1356
        %1472 = vmatprep.subr.mxu0 0.0
        %1473 = vmatpush1.msra.mxu0 %v1357
        %1474 = vmatprep.subr.mxu0 0.0
        %1475 = vmatpush1.msra.mxu0 %v1358
        %1476 = vmatprep.subr.mxu0 0.0
        %1477 = vmatpush1.msra.mxu0 %v1359
        %1478 = vmatprep.subr.mxu0 0.0
        %1479 = vmatpush1.msra.mxu0 %v1360
        %1480 = vmatprep.subr.mxu0 0.0
        %1481 = vmatpush1.msra.mxu0 %v1361
        %1482 = vmatprep.subr.mxu0 0.0
        %1483 = vmatpush1.msra.mxu0 %v1362
        %1484 = vmatprep.subr.mxu0 0.0
        %1485 = vmatpush1.msra.mxu0 %v1363
        %1486 = vmatprep.subr.mxu0 0.0
        %1487 = vmatpush1.msra.mxu0 %v1364
        %1488 = vmatprep.subr.mxu0 0.0
        %1489 = vmatpush1.msra.mxu0 %v1365
        %1490 = vmatprep.subr.mxu0 0.0
        %1491 = vmatpush1.msra.mxu0 %v1366
        %1492 = vmatprep.subr.mxu0 0.0
        %1493 = vmatpush1.msra.mxu0 %v1367
        %1494 = vmatprep.subr.mxu0 0.0
        %1495 = vmatpush1.msra.mxu0 %v1368
        %1496 = vmatprep.subr.mxu0 0.0
        %1497 = vmatpush1.msra.mxu0 %v1369
        %1498 = vmatprep.subr.mxu0 0.0
        %1499 = vmatpush1.msra.mxu0 %v1370
        %1500 = vmatprep.subr.mxu0 0.0
        %1501 = vmatpush1.msra.mxu0 %v1371
        %1502 = vmatprep.subr.mxu0 0.0
        %1503 = vmatpush1.msra.mxu0 %v1372
        %1504 = vmatprep.subr.mxu0 0.0
        %1505 = vmatpush1.msra.mxu0 %v1373
        %1506 = vmatprep.subr.mxu0 0.0
        %1507 = vmatpush1.msra.mxu0 %v1374
        %1508 = vmatprep.subr.mxu0 0.0
        %1509 = vmatpush1.msra.mxu0 %v1375
        %1510 = vmatprep.subr.mxu0 0.0
        %1511 = vmatpush1.msra.mxu0 %v1376
        %1512 = vmatprep.subr.mxu0 0.0
        %1513 = vmatpush1.msra.mxu0 %v1377
        %1514 = vmatprep.mubr.f32.mxu0 %v1321
        %1515 = vmatmul.mubr.f32.gmra.mrb[0].mxu0 %v1313
        %v1516 = vpop.f32.mrb[0].mxu0
        %v1517 = vadd.f32 %v1424, %v1516
        %v1518 = vpop.f32.mrb[0].mxu0
        %1519 = vmatprep.mubr.f32.mxu0 %v1322
        %1520 = vmatmul.mubr.f32.gmra.mrb[0].mxu0 %v1314
        %v1521 = vpop.f32.mrb[0].mxu0
        %v1522 = vadd.f32 %v1424, %v1521
        %v1523 = vpop.f32.mrb[0].mxu0
        %1524 = vmatprep.mubr.f32.mxu0 %v1323
        %1525 = vmatmul.mubr.f32.gmra.mrb[0].mxu0 %v1315
        %v1526 = vpop.f32.mrb[0].mxu0
        %v1527 = vadd.f32 %v1424, %v1526
        %v1528 = vpop.f32.mrb[0].mxu0
        %1529 = vmatprep.mubr.f32.mxu0 %v1324
        %1530 = vmatmul.mubr.f32.gmra.mrb[0].mxu0 %v1316
        %v1531 = vpop.f32.mrb[0].mxu0
        %v1532 = vadd.f32 %v1424, %v1531
        %v1533 = vpop.f32.mrb[0].mxu0
        %1534 = vmatprep.mubr.f32.mxu0 %v1325
        %1535 = vmatmul.mubr.f32.gmra.mrb[0].mxu0 %v1317
        %v1536 = vpop.f32.mrb[0].mxu0
        %v1537 = vadd.f32 %v1424, %v1536
        %v1538 = vpop.f32.mrb[0].mxu0
        %1539 = vmatprep.mubr.f32.mxu0 %v1326
        %1540 = vmatmul.mubr.f32.gmra.mrb[0].mxu0 %v1318
        %v1541 = vpop.f32.mrb[0].mxu0
        %v1542 = vadd.f32 %v1424, %v1541
        %v1543 = vpop.f32.mrb[0].mxu0
        %1544 = vmatprep.mubr.f32.mxu0 %v1327
        %1545 = vmatmul.mubr.f32.gmra.mrb[0].mxu0 %v1319
        %v1546 = vpop.f32.mrb[0].mxu0
        %v1547 = vadd.f32 %v1424, %v1546
        %v1548 = vpop.f32.mrb[0].mxu0
        %1549 = vmatprep.mubr.f32.mxu0 %v1328
        %1550 = vmatmul.mubr.f32.gmra.mrb[0].mxu0 %v1320
        %v1551 = vpop.f32.mrb[0].mxu0
        %v1552 = vadd.f32 %v1424, %v1551
        %v1553 = vpop.f32.mrb[0].mxu0
        %1554 = vdwg.mxu0
        %1555 = vmatprep.subr.mxu0 0.0
        %1556 = vmatpush1.msra.mxu0 %v1378
        %1557 = vmatprep.subr.mxu0 0.0
        %1558 = vmatpush1.msra.mxu0 %v1379
        %1559 = vmatprep.subr.mxu0 0.0
        %1560 = vmatpush1.msra.mxu0 %v1380
        %1561 = vmatprep.subr.mxu0 0.0
        %1562 = vmatpush1.msra.mxu0 %v1381
        %1563 = vmatprep.subr.mxu0 0.0
        %1564 = vmatpush1.msra.mxu0 %v1382
        %1565 = vmatprep.subr.mxu0 0.0
        %1566 = vmatpush1.msra.mxu0 %v1383
        %1567 = vmatprep.subr.mxu0 0.0
        %1568 = vmatpush1.msra.mxu0 %v1384
        %1569 = vmatprep.subr.mxu0 0.0
        %1570 = vmatpush1.msra.mxu0 %v1385
        %1571 = vmatprep.subr.mxu0 0.0
        %1572 = vmatpush1.msra.mxu0 %v1386
        %1573 = vmatprep.subr.mxu0 0.0
        %1574 = vmatpush1.msra.mxu0 %v1387
        %1575 = vmatprep.subr.mxu0 0.0
        %1576 = vmatpush1.msra.mxu0 %v1388
        %1577 = vmatprep.subr.mxu0 0.0
        %1578 = vmatpush1.msra.mxu0 %v1389
        %1579 = vmatprep.subr.mxu0 0.0
        %1580 = vmatpush1.msra.mxu0 %v1390
        %1581 = vmatprep.subr.mxu0 0.0
        %1582 = vmatpush1.msra.mxu0 %v1391
        %1583 = vmatprep.subr.mxu0 0.0
        %1584 = vmatpush1.msra.mxu0 %v1392
        %1585 = vmatprep.subr.mxu0 0.0
        %1586 = vmatpush1.msra.mxu0 %v1393
        %1587 = vmatprep.subr.mxu0 0.0
        %1588 = vmatpush1.msra.mxu0 %v1394
        %1589 = vmatprep.subr.mxu0 0.0
        %1590 = vmatpush1.msra.mxu0 %v1395
        %1591 = vmatprep.subr.mxu0 0.0
        %1592 = vmatpush1.msra.mxu0 %v1396
        %1593 = vmatprep.subr.mxu0 0.0
        %1594 = vmatpush1.msra.mxu0 %v1397
        %1595 = vmatprep.subr.mxu0 0.0
        %1596 = vmatpush1.msra.mxu0 %v1398
        %1597 = vmatprep.subr.mxu0 0.0
        %1598 = vmatpush1.msra.mxu0 %v1399
        %1599 = vmatprep.subr.mxu0 0.0
        %1600 = vmatpush1.msra.mxu0 %v1400
        %1601 = vmatprep.subr.mxu0 0.0
        %1602 = vmatpush1.msra.mxu0 %v1401
        %1603 = vmatprep.subr.mxu0 0.0
        %1604 = vmatpush1.msra.mxu0 %v1402
        %1605 = vmatprep.subr.mxu0 0.0
        %1606 = vmatpush1.msra.mxu0 %v1403
        %1607 = vmatprep.subr.mxu0 0.0
        %1608 = vmatpush1.msra.mxu0 %v1404
        %1609 = vmatprep.subr.mxu0 0.0
        %1610 = vmatpush1.msra.mxu0 %v1405
        %1611 = vmatprep.subr.mxu0 0.0
        %1612 = vmatpush1.msra.mxu0 %v1406
        %1613 = vmatprep.subr.mxu0 0.0
        %1614 = vmatpush1.msra.mxu0 %v1407
        %1615 = vmatprep.subr.mxu0 0.0
        %1616 = vmatpush1.msra.mxu0 %v1408
        %1617 = vmatprep.subr.mxu0 0.0
        %1618 = vmatpush1.msra.mxu0 %v1409
        %1619 = vmatprep.mubr.f32.mxu0 %v1337
        %1620 = vmatmul.mubr.f32.gmra.mrb[0].mxu0 %v1329
        %v1621 = vpop.f32.mrb[0].mxu0
        %v1622 = vadd.f32 %v1517, %v1621
        %v1623 = vpop.f32.mrb[0].mxu0
        %1624 = vmatprep.mubr.f32.mxu0 %v1338
        %1625 = vmatmul.mubr.f32.gmra.mrb[0].mxu0 %v1330
        %v1626 = vpop.f32.mrb[0].mxu0
        %v1627 = vadd.f32 %v1522, %v1626
        %v1628 = vpop.f32.mrb[0].mxu0
        %1629 = vmatprep.mubr.f32.mxu0 %v1339
        %1630 = vmatmul.mubr.f32.gmra.mrb[0].mxu0 %v1331
        %v1631 = vpop.f32.mrb[0].mxu0
        %v1632 = vadd.f32 %v1527, %v1631
        %v1633 = vpop.f32.mrb[0].mxu0
        %1634 = vmatprep.mubr.f32.mxu0 %v1340
        %1635 = vmatmul.mubr.f32.gmra.mrb[0].mxu0 %v1332
        %v1636 = vpop.f32.mrb[0].mxu0
        %v1637 = vadd.f32 %v1532, %v1636
        %v1638 = vpop.f32.mrb[0].mxu0
        %1639 = vmatprep.mubr.f32.mxu0 %v1341
        %1640 = vmatmul.mubr.f32.gmra.mrb[0].mxu0 %v1333
        %v1641 = vpop.f32.mrb[0].mxu0
        %v1642 = vadd.f32 %v1537, %v1641
        %v1643 = vpop.f32.mrb[0].mxu0
        %1644 = vmatprep.mubr.f32.mxu0 %v1342
        %1645 = vmatmul.mubr.f32.gmra.mrb[0].mxu0 %v1334
        %v1646 = vpop.f32.mrb[0].mxu0
        %v1647 = vadd.f32 %v1542, %v1646
        %v1648 = vpop.f32.mrb[0].mxu0
        %1649 = vmatprep.mubr.f32.mxu0 %v1343
        %1650 = vmatmul.mubr.f32.gmra.mrb[0].mxu0 %v1335
        %v1651 = vpop.f32.mrb[0].mxu0
        %v1652 = vadd.f32 %v1547, %v1651
        %v1653 = vpop.f32.mrb[0].mxu0
        %1654 = vmatprep.mubr.f32.mxu0 %v1344
        %1655 = vmatmul.mubr.f32.gmra.mrb[0].mxu0 %v1336
        %v1656 = vpop.f32.mrb[0].mxu0
        %v1657 = vadd.f32 %v1552, %v1656
        %v1658 = vpop.f32.mrb[0].mxu0
        %1659 = vdwg.mxu0
        %1660 = vmatprep.subr.mxu0 0.0
        %1661 = vmatpush1.msra.mxu0 %v1410
        %1662 = vmatprep.subr.mxu0 0.0
        %1663 = vmatpush1.msra.mxu0 %v1411
        %1664 = vmatprep.subr.mxu0 0.0
        %1665 = vmatpush1.msra.mxu0 %v1412
        %1666 = vmatprep.subr.mxu0 0.0
        %1667 = vmatpush1.msra.mxu0 %v1413
        %1668 = vmatprep.subr.mxu0 0.0
        %1669 = vmatpush1.msra.mxu0 %v1414
        %1670 = vmatprep.subr.mxu0 0.0
        %1671 = vmatpush1.msra.mxu0 %v1415
        %1672 = vmatprep.subr.mxu0 0.0
        %1673 = vmatpush1.msra.mxu0 %v1416
        %1674 = vmatprep.subr.mxu0 0.0
        %1675 = vmatpush1.msra.mxu0 %v1417
        %1676 = vmatprep.subr.mxu0 0.0
        %1677 = vmatpush1.msra.mxu0 0.0
        %1678 = vmatprep.subr.mxu0 0.0
        %1679 = vmatpush1.msra.mxu0 0.0
        %1680 = vmatprep.subr.mxu0 0.0
        %1681 = vmatpush1.msra.mxu0 0.0
        %1682 = vmatprep.subr.mxu0 0.0
        %1683 = vmatpush1.msra.mxu0 0.0
        %1684 = vmatprep.subr.mxu0 0.0
        %1685 = vmatpush1.msra.mxu0 0.0
        %1686 = vmatprep.subr.mxu0 0.0
        %1687 = vmatpush1.msra.mxu0 0.0
        %1688 = vmatprep.subr.mxu0 0.0
        %1689 = vmatpush1.msra.mxu0 0.0
        %1690 = vmatprep.subr.mxu0 0.0
        %1691 = vmatpush1.msra.mxu0 0.0
        %1692 = vmatprep.subr.mxu0 0.0
        %1693 = vmatpush1.msra.mxu0 0.0
        %1694 = vmatprep.subr.mxu0 0.0
        %1695 = vmatpush1.msra.mxu0 0.0
        %1696 = vmatprep.subr.mxu0 0.0
        %1697 = vmatpush1.msra.mxu0 0.0
        %1698 = vmatprep.subr.mxu0 0.0
        %1699 = vmatpush1.msra.mxu0 0.0
        %1700 = vmatprep.subr.mxu0 0.0
        %1701 = vmatpush1.msra.mxu0 0.0
        %1702 = vmatprep.subr.mxu0 0.0
        %1703 = vmatpush1.msra.mxu0 0.0
        %1704 = vmatprep.subr.mxu0 0.0
        %1705 = vmatpush1.msra.mxu0 0.0
        %1706 = vmatprep.subr.mxu0 0.0
        %1707 = vmatpush1.msra.mxu0 0.0
        %1708 = vmatprep.subr.mxu0 0.0
        %1709 = vmatpush1.msra.mxu0 0.0
        %1710 = vmatprep.subr.mxu0 0.0
        %1711 = vmatpush1.msra.mxu0 0.0
        %1712 = vmatprep.subr.mxu0 0.0
        %1713 = vmatpush1.msra.mxu0 0.0
        %1714 = vmatprep.subr.mxu0 0.0
        %1715 = vmatpush1.msra.mxu0 0.0
        %1716 = vmatprep.subr.mxu0 0.0
        %1717 = vmatpush1.msra.mxu0 0.0
        %1718 = vmatprep.subr.mxu0 0.0
        %1719 = vmatpush1.msra.mxu0 0.0
        %1720 = vmatprep.subr.mxu0 0.0
        %1721 = vmatpush1.msra.mxu0 0.0
        %1722 = vmatprep.subr.mxu0 0.0
        %1723 = vmatpush1.msra.mxu0 0.0
        %1724 = vmatprep.mubr.f32.mxu0 0.0
        %1725 = vmatmul.mubr.f32.gmra.mrb[0].mxu0 %v1427
        %v1726 = vpop.f32.mrb[0].mxu0
        %v1727 = vadd.f32 %v1622, %v1726
        %v1728 = vpop.f32.mrb[0].mxu0
        %1729 = vmatprep.mubr.f32.mxu0 0.0
        %1730 = vmatmul.mubr.f32.gmra.mrb[0].mxu0 %v1430
        %v1731 = vpop.f32.mrb[0].mxu0
        %v1732 = vadd.f32 %v1627, %v1731
        %v1733 = vpop.f32.mrb[0].mxu0
        %1734 = vmatprep.mubr.f32.mxu0 0.0
        %1735 = vmatmul.mubr.f32.gmra.mrb[0].mxu0 %v1433
        %v1736 = vpop.f32.mrb[0].mxu0
        %v1737 = vadd.f32 %v1632, %v1736
        %v1738 = vpop.f32.mrb[0].mxu0
        %1739 = vmatprep.mubr.f32.mxu0 0.0
        %1740 = vmatmul.mubr.f32.gmra.mrb[0].mxu0 %v1436
        %v1741 = vpop.f32.mrb[0].mxu0
        %v1742 = vadd.f32 %v1637, %v1741
        %v1743 = vpop.f32.mrb[0].mxu0
        %1744 = vmatprep.mubr.f32.mxu0 0.0
        %1745 = vmatmul.mubr.f32.gmra.mrb[0].mxu0 %v1439
        %v1746 = vpop.f32.mrb[0].mxu0
        %v1747 = vadd.f32 %v1642, %v1746
        %v1748 = vpop.f32.mrb[0].mxu0
        %1749 = vmatprep.mubr.f32.mxu0 0.0
        %1750 = vmatmul.mubr.f32.gmra.mrb[0].mxu0 %v1442
        %v1751 = vpop.f32.mrb[0].mxu0
        %v1752 = vadd.f32 %v1647, %v1751
        %v1753 = vpop.f32.mrb[0].mxu0
        %1754 = vmatprep.mubr.f32.mxu0 0.0
        %1755 = vmatmul.mubr.f32.gmra.mrb[0].mxu0 %v1445
        %v1756 = vpop.f32.mrb[0].mxu0
        %v1757 = vadd.f32 %v1652, %v1756
        %v1758 = vpop.f32.mrb[0].mxu0
        %1759 = vmatprep.mubr.f32.mxu0 0.0
        %1760 = vmatmul.mubr.f32.gmra.mrb[0].mxu0 %v1448
        %v1761 = vpop.f32.mrb[0].mxu0
        %v1762 = vadd.f32 %v1657, %v1761
        %v1763 = vpop.f32.mrb[0].mxu0
        %1764 = vdwg.mxu0
        %vm1765 = vcmp.gt.f32.partialorder %v1727, 0.0
        %vm1766 = vcmp.gt.f32.partialorder %v1732, 0.0
        %vm1767 = vcmp.gt.f32.partialorder %v1737, 0.0
        %vm1768 = vcmp.gt.f32.partialorder %v1742, 0.0
        %vm1769 = vcmp.gt.f32.partialorder %v1747, 0.0
        %vm1770 = vcmp.gt.f32.partialorder %v1752, 0.0
        %vm1771 = vcmp.gt.f32.partialorder %v1757, 0.0
        %vm1772 = vcmp.gt.f32.partialorder %v1762, 0.0
        %v1773 = vmul.f32 %v1727, 0.01
        %v1774 = vmul.f32 %v1732, 0.01
        %v1775 = vmul.f32 %v1737, 0.01
        %v1776 = vmul.f32 %v1742, 0.01
        %v1777 = vmul.f32 %v1747, 0.01
        %v1778 = vmul.f32 %v1752, 0.01
        %v1779 = vmul.f32 %v1757, 0.01
        %v1780 = vmul.f32 %v1762, 0.01
        %v1781 = vsel %vm1765, %v1727, %v1773
        %v1782 = vsel %vm1766, %v1732, %v1774
        %v1783 = vsel %vm1767, %v1737, %v1775
        %v1784 = vsel %vm1768, %v1742, %v1776
        %v1785 = vsel %vm1769, %v1747, %v1777
        %v1786 = vsel %vm1770, %v1752, %v1778
        %v1787 = vsel %vm1771, %v1757, %v1779
        %v1788 = vsel %vm1772, %v1762, %v1780
        %v1789 = vadd.f32 %v1781, %v413
        %v1790 = vadd.f32 %v1782, %v414
        %v1791 = vadd.f32 %v1783, %v415
        %v1792 = vadd.f32 %v1784, %v416
        %v1793 = vadd.f32 %v1785, %v417
        %v1794 = vadd.f32 %v1786, %v418
        %v1795 = vadd.f32 %v1787, %v419
        %v1796 = vadd.f32 %v1788, %v420
        %vm1797 = vcmp.gt.f32.partialorder %v1789, 0.0
        %vm1798 = vcmp.gt.f32.partialorder %v1790, 0.0
        %vm1799 = vcmp.gt.f32.partialorder %v1791, 0.0
        %vm1800 = vcmp.gt.f32.partialorder %v1792, 0.0
        %vm1801 = vcmp.gt.f32.partialorder %v1793, 0.0
        %vm1802 = vcmp.gt.f32.partialorder %v1794, 0.0
        %vm1803 = vcmp.gt.f32.partialorder %v1795, 0.0
        %vm1804 = vcmp.gt.f32.partialorder %v1796, 0.0
        %v1805 = vmul.f32 %v1789, 0.01
        %v1806 = vmul.f32 %v1790, 0.01
        %v1807 = vmul.f32 %v1791, 0.01
        %v1808 = vmul.f32 %v1792, 0.01
        %v1809 = vmul.f32 %v1793, 0.01
        %v1810 = vmul.f32 %v1794, 0.01
        %v1811 = vmul.f32 %v1795, 0.01
        %v1812 = vmul.f32 %v1796, 0.01
        %v1813 = vsel %vm1797, %v1789, %v1805
        %v1814 = vsel %vm1798, %v1790, %v1806
        %v1815 = vsel %vm1799, %v1791, %v1807
        %v1816 = vsel %vm1800, %v1792, %v1808
        %v1817 = vsel %vm1801, %v1793, %v1809
        %v1818 = vsel %vm1802, %v1794, %v1810
        %v1819 = vsel %vm1803, %v1795, %v1811
        %v1820 = vsel %vm1804, %v1796, %v1812
        %1821 = vst.msk [vmem:[%s421 + $0x1] sm:$0xff] %vm223, %v1813
        %1822 = vst.msk [vmem:[%s421 + $0x11] sm:$0xff] %vm223, %v1814
        %1823 = vst.msk [vmem:[%s421 + $0x21] sm:$0xff] %vm223, %v1815
        %1824 = vst.msk [vmem:[%s421 + $0x31] sm:$0xff] %vm223, %v1816
        %1825 = vst.msk [vmem:[%s421 + $0x41] sm:$0xff] %vm223, %v1817
        %1826 = vst.msk [vmem:[%s421 + $0x51] sm:$0xff] %vm223, %v1818
        %1827 = vst.msk [vmem:[%s421 + $0x61] sm:$0xff] %vm223, %v1819
        %1828 = vst.msk [vmem:[%s421 + $0x71] sm:$0xff] %vm223, %v1820
        %v1829 = vld [vmem:[#allocation2] sm:$0xff]
        %v1830 = vld [vmem:[#allocation2 + $0x10] sm:$0xff]
        %v1831 = vld [vmem:[#allocation2 + $0x20] sm:$0xff]
        %v1832 = vld [vmem:[#allocation2 + $0x30] sm:$0xff]
        %v1833 = vld [vmem:[#allocation2 + $0x40] sm:$0xff]
        %v1834 = vld [vmem:[#allocation2 + $0x50] sm:$0xff]
        %v1835 = vld [vmem:[#allocation2 + $0x60] sm:$0xff]
        %v1836 = vld [vmem:[#allocation2 + $0x70] sm:$0xff]
        %v1837 = vld [vmem:[#allocation2 + $0x1] sm:$0xff]
        %v1838 = vld [vmem:[#allocation2 + $0x11] sm:$0xff]
        %v1839 = vld [vmem:[#allocation2 + $0x21] sm:$0xff]
        %v1840 = vld [vmem:[#allocation2 + $0x31] sm:$0xff]
        %v1841 = vld [vmem:[#allocation2 + $0x41] sm:$0xff]
        %v1842 = vld [vmem:[#allocation2 + $0x51] sm:$0xff]
        %v1843 = vld [vmem:[#allocation2 + $0x61] sm:$0xff]
        %v1844 = vld [vmem:[#allocation2 + $0x71] sm:$0xff]
        %v1845 = vld [vmem:[#allocation2 + $0x2] sm:$0xff]
        %v1846 = vld [vmem:[#allocation2 + $0x12] sm:$0xff]
        %v1847 = vld [vmem:[#allocation2 + $0x22] sm:$0xff]
        %v1848 = vld [vmem:[#allocation2 + $0x32] sm:$0xff]
        %v1849 = vld [vmem:[#allocation2 + $0x42] sm:$0xff]
        %v1850 = vld [vmem:[#allocation2 + $0x52] sm:$0xff]
        %v1851 = vld [vmem:[#allocation2 + $0x62] sm:$0xff]
        %v1852 = vld [vmem:[#allocation2 + $0x72] sm:$0xff]
        %v1853 = vld [vmem:[%s421] sm:$0xff]
        %v1854 = vld [vmem:[%s421 + $0x10] sm:$0xff]
        %v1855 = vld [vmem:[%s421 + $0x20] sm:$0xff]
        %v1856 = vld [vmem:[%s421 + $0x30] sm:$0xff]
        %v1857 = vld [vmem:[%s421 + $0x40] sm:$0xff]
        %v1858 = vld [vmem:[%s421 + $0x50] sm:$0xff]
        %v1859 = vld [vmem:[%s421 + $0x60] sm:$0xff]
        %v1860 = vld [vmem:[%s421 + $0x70] sm:$0xff]
        %v1861 = vld [vmem:[%s421 + $0x1] sm:$0xff]
        %v1862 = vld [vmem:[%s421 + $0x11] sm:$0xff]
        %v1863 = vld [vmem:[%s421 + $0x21] sm:$0xff]
        %v1864 = vld [vmem:[%s421 + $0x31] sm:$0xff]
        %v1865 = vld [vmem:[%s421 + $0x41] sm:$0xff]
        %v1866 = vld [vmem:[%s421 + $0x51] sm:$0xff]
        %v1867 = vld [vmem:[%s421 + $0x61] sm:$0xff]
        %v1868 = vld [vmem:[%s421 + $0x71] sm:$0xff]
        %v1869 = vld [vmem:[%s421 + $0x2] sm:$0xff]
        %v1870 = vld [vmem:[%s421 + $0x12] sm:$0xff]
        %v1871 = vld [vmem:[%s421 + $0x22] sm:$0xff]
        %v1872 = vld [vmem:[%s421 + $0x32] sm:$0xff]
        %v1873 = vld [vmem:[%s421 + $0x42] sm:$0xff]
        %v1874 = vld [vmem:[%s421 + $0x52] sm:$0xff]
        %v1875 = vld [vmem:[%s421 + $0x62] sm:$0xff]
        %v1876 = vld [vmem:[%s421 + $0x72] sm:$0xff]
        %v1877 = vld [vmem:[%s478] sm:$0xff]
        %v1878 = vld [vmem:[%s478 + $0x10] sm:$0xff]
        %v1879 = vld [vmem:[%s478 + $0x20] sm:$0xff]
        %v1880 = vld [vmem:[%s478 + $0x30] sm:$0xff]
        %v1881 = vld [vmem:[%s478 + $0x40] sm:$0xff]
        %v1882 = vld [vmem:[%s478 + $0x50] sm:$0xff]
        %v1883 = vld [vmem:[%s478 + $0x60] sm:$0xff]
        %v1884 = vld [vmem:[%s478 + $0x70] sm:$0xff]
        %v1885 = vld [vmem:[%s478 + $0x1] sm:$0xff]
        %v1886 = vld [vmem:[%s478 + $0x11] sm:$0xff]
        %v1887 = vld [vmem:[%s478 + $0x21] sm:$0xff]
        %v1888 = vld [vmem:[%s478 + $0x31] sm:$0xff]
        %v1889 = vld [vmem:[%s478 + $0x41] sm:$0xff]
        %v1890 = vld [vmem:[%s478 + $0x51] sm:$0xff]
        %v1891 = vld [vmem:[%s478 + $0x61] sm:$0xff]
        %v1892 = vld [vmem:[%s478 + $0x71] sm:$0xff]
        %v1893 = vld [vmem:[%s478 + $0x2] sm:$0xff]
        %v1894 = vld [vmem:[%s478 + $0x12] sm:$0xff]
        %v1895 = vld [vmem:[%s478 + $0x22] sm:$0xff]
        %v1896 = vld [vmem:[%s478 + $0x32] sm:$0xff]
        %v1897 = vld [vmem:[%s478 + $0x42] sm:$0xff]
        %v1898 = vld [vmem:[%s478 + $0x52] sm:$0xff]
        %v1899 = vld [vmem:[%s478 + $0x62] sm:$0xff]
        %v1900 = vld [vmem:[%s478 + $0x72] sm:$0xff]
        %1909 = vrot.lane.b32.xlu0 %v1837, 64
        %v1910 = vpop.permute.xlu0 %1909
        %1911 = vrot.lane.b32.xlu0 %v1838, 64
        %v1912 = vpop.permute.xlu0 %1911
        %1913 = vrot.lane.b32.xlu0 %v1839, 64
        %v1914 = vpop.permute.xlu0 %1913
        %1915 = vrot.lane.b32.xlu0 %v1840, 64
        %v1916 = vpop.permute.xlu0 %1915
        %1917 = vrot.lane.b32.xlu0 %v1841, 64
        %v1918 = vpop.permute.xlu0 %1917
        %1919 = vrot.lane.b32.xlu0 %v1842, 64
        %v1920 = vpop.permute.xlu0 %1919
        %1921 = vrot.lane.b32.xlu0 %v1843, 64
        %v1922 = vpop.permute.xlu0 %1921
        %1923 = vrot.lane.b32.xlu0 %v1844, 64
        %v1924 = vpop.permute.xlu0 %1923
        %1941 = vrot.lane.b32.xlu0 %v1853, 64
        %v1942 = vpop.permute.xlu0 %1941
        %1943 = vrot.lane.b32.xlu0 %v1854, 64
        %v1944 = vpop.permute.xlu0 %1943
        %1945 = vrot.lane.b32.xlu0 %v1855, 64
        %v1946 = vpop.permute.xlu0 %1945
        %1947 = vrot.lane.b32.xlu0 %v1856, 64
        %v1948 = vpop.permute.xlu0 %1947
        %1949 = vrot.lane.b32.xlu0 %v1857, 64
        %v1950 = vpop.permute.xlu0 %1949
        %1951 = vrot.lane.b32.xlu0 %v1858, 64
        %v1952 = vpop.permute.xlu0 %1951
        %1953 = vrot.lane.b32.xlu0 %v1859, 64
        %v1954 = vpop.permute.xlu0 %1953
        %1955 = vrot.lane.b32.xlu0 %v1860, 64
        %v1956 = vpop.permute.xlu0 %1955
        %1973 = vrot.lane.b32.xlu0 %v1869, 64
        %v1974 = vpop.permute.xlu0 %1973
        %1975 = vrot.lane.b32.xlu0 %v1870, 64
        %v1976 = vpop.permute.xlu0 %1975
        %1977 = vrot.lane.b32.xlu0 %v1871, 64
        %v1978 = vpop.permute.xlu0 %1977
        %1979 = vrot.lane.b32.xlu0 %v1872, 64
        %v1980 = vpop.permute.xlu0 %1979
        %1981 = vrot.lane.b32.xlu0 %v1873, 64
        %v1982 = vpop.permute.xlu0 %1981
        %1983 = vrot.lane.b32.xlu0 %v1874, 64
        %v1984 = vpop.permute.xlu0 %1983
        %1985 = vrot.lane.b32.xlu0 %v1875, 64
        %v1986 = vpop.permute.xlu0 %1985
        %1987 = vrot.lane.b32.xlu0 %v1876, 64
        %v1988 = vpop.permute.xlu0 %1987
        %2005 = vrot.lane.b32.xlu0 %v1885, 64
        %v2006 = vpop.permute.xlu0 %2005
        %2007 = vrot.lane.b32.xlu0 %v1886, 64
        %v2008 = vpop.permute.xlu0 %2007
        %2009 = vrot.lane.b32.xlu0 %v1887, 64
        %v2010 = vpop.permute.xlu0 %2009
        %2011 = vrot.lane.b32.xlu0 %v1888, 64
        %v2012 = vpop.permute.xlu0 %2011
        %2013 = vrot.lane.b32.xlu0 %v1889, 64
        %v2014 = vpop.permute.xlu0 %2013
        %2015 = vrot.lane.b32.xlu0 %v1890, 64
        %v2016 = vpop.permute.xlu0 %2015
        %2017 = vrot.lane.b32.xlu0 %v1891, 64
        %v2018 = vpop.permute.xlu0 %2017
        %2019 = vrot.lane.b32.xlu0 %v1892, 64
        %v2020 = vpop.permute.xlu0 %2019
        %v2029 = vsel %vm223, %v1829, %v1910
        %v2030 = vsel %vm223, %v1830, %v1912
        %v2031 = vsel %vm223, %v1831, %v1914
        %v2032 = vsel %vm223, %v1832, %v1916
        %v2033 = vsel %vm223, %v1833, %v1918
        %v2034 = vsel %vm223, %v1834, %v1920
        %v2035 = vsel %vm223, %v1835, %v1922
        %v2036 = vsel %vm223, %v1836, %v1924
        %v2037 = vsel %vm223, %v1845, %v1942
        %v2038 = vsel %vm223, %v1846, %v1944
        %v2039 = vsel %vm223, %v1847, %v1946
        %v2040 = vsel %vm223, %v1848, %v1948
        %v2041 = vsel %vm223, %v1849, %v1950
        %v2042 = vsel %vm223, %v1850, %v1952
        %v2043 = vsel %vm223, %v1851, %v1954
        %v2044 = vsel %vm223, %v1852, %v1956
        %v2045 = vsel %vm223, %v1861, %v1974
        %v2046 = vsel %vm223, %v1862, %v1976
        %v2047 = vsel %vm223, %v1863, %v1978
        %v2048 = vsel %vm223, %v1864, %v1980
        %v2049 = vsel %vm223, %v1865, %v1982
        %v2050 = vsel %vm223, %v1866, %v1984
        %v2051 = vsel %vm223, %v1867, %v1986
        %v2052 = vsel %vm223, %v1868, %v1988
        %v2053 = vsel %vm223, %v1877, %v2006
        %v2054 = vsel %vm223, %v1878, %v2008
        %v2055 = vsel %vm223, %v1879, %v2010
        %v2056 = vsel %vm223, %v1880, %v2012
        %v2057 = vsel %vm223, %v1881, %v2014
        %v2058 = vsel %vm223, %v1882, %v2016
        %v2059 = vsel %vm223, %v1883, %v2018
        %v2060 = vsel %vm223, %v1884, %v2020
        %s2061 = scalar_lea.vmem %s3, 1152
        %v2062 = vld [vmem:[%s2061] sm:$0xff]
        %v2063 = vld [vmem:[%s2061 + $0x8] sm:$0xff]
        %v2064 = vld [vmem:[%s2061 + $0x10] sm:$0xff]
        %v2065 = vld [vmem:[%s2061 + $0x18] sm:$0xff]
        %v2066 = vld [vmem:[%s2061 + $0x20] sm:$0xff]
        %v2067 = vld [vmem:[%s2061 + $0x28] sm:$0xff]
        %v2068 = vld [vmem:[%s2061 + $0x30] sm:$0xff]
        %v2069 = vld [vmem:[%s2061 + $0x38] sm:$0xff]
        %v2070 = vld [vmem:[%s2061 + $0x40] sm:$0xff]
        %v2071 = vld [vmem:[%s2061 + $0x48] sm:$0xff]
        %v2072 = vld [vmem:[%s2061 + $0x50] sm:$0xff]
        %v2073 = vld [vmem:[%s2061 + $0x58] sm:$0xff]
        %v2074 = vld [vmem:[%s2061 + $0x60] sm:$0xff]
        %v2075 = vld [vmem:[%s2061 + $0x68] sm:$0xff]
        %v2076 = vld [vmem:[%s2061 + $0x70] sm:$0xff]
        %v2077 = vld [vmem:[%s2061 + $0x78] sm:$0xff]
        %v2078 = vld [vmem:[%s2061 + $0x80] sm:$0xff]
        %v2079 = vld [vmem:[%s2061 + $0x88] sm:$0xff]
        %v2080 = vld [vmem:[%s2061 + $0x90] sm:$0xff]
        %v2081 = vld [vmem:[%s2061 + $0x98] sm:$0xff]
        %v2082 = vld [vmem:[%s2061 + $0xa0] sm:$0xff]
        %v2083 = vld [vmem:[%s2061 + $0xa8] sm:$0xff]
        %v2084 = vld [vmem:[%s2061 + $0xb0] sm:$0xff]
        %v2085 = vld [vmem:[%s2061 + $0xb8] sm:$0xff]
        %v2086 = vld [vmem:[%s2061 + $0xc0] sm:$0xff]
        %v2087 = vld [vmem:[%s2061 + $0xc8] sm:$0xff]
        %v2088 = vld [vmem:[%s2061 + $0xd0] sm:$0xff]
        %v2089 = vld [vmem:[%s2061 + $0xd8] sm:$0xff]
        %v2090 = vld [vmem:[%s2061 + $0xe0] sm:$0xff]
        %v2091 = vld [vmem:[%s2061 + $0xe8] sm:$0xff]
        %v2092 = vld [vmem:[%s2061 + $0xf0] sm:$0xff]
        %v2093 = vld [vmem:[%s2061 + $0xf8] sm:$0xff]
        %v2094 = vld [vmem:[%s2061 + $0x100] sm:$0xff]
        %v2095 = vld [vmem:[%s2061 + $0x108] sm:$0xff]
        %v2096 = vld [vmem:[%s2061 + $0x110] sm:$0xff]
        %v2097 = vld [vmem:[%s2061 + $0x118] sm:$0xff]
        %v2098 = vld [vmem:[%s2061 + $0x120] sm:$0xff]
        %v2099 = vld [vmem:[%s2061 + $0x128] sm:$0xff]
        %v2100 = vld [vmem:[%s2061 + $0x130] sm:$0xff]
        %v2101 = vld [vmem:[%s2061 + $0x138] sm:$0xff]
        %v2102 = vld [vmem:[%s2061 + $0x140] sm:$0xff]
        %v2103 = vld [vmem:[%s2061 + $0x148] sm:$0xff]
        %v2104 = vld [vmem:[%s2061 + $0x150] sm:$0xff]
        %v2105 = vld [vmem:[%s2061 + $0x158] sm:$0xff]
        %v2106 = vld [vmem:[%s2061 + $0x160] sm:$0xff]
        %v2107 = vld [vmem:[%s2061 + $0x168] sm:$0xff]
        %v2108 = vld [vmem:[%s2061 + $0x170] sm:$0xff]
        %v2109 = vld [vmem:[%s2061 + $0x178] sm:$0xff]
        %v2110 = vld [vmem:[%s2061 + $0x180] sm:$0xff]
        %v2111 = vld [vmem:[%s2061 + $0x188] sm:$0xff]
        %v2112 = vld [vmem:[%s2061 + $0x190] sm:$0xff]
        %v2113 = vld [vmem:[%s2061 + $0x198] sm:$0xff]
        %v2114 = vld [vmem:[%s2061 + $0x1a0] sm:$0xff]
        %v2115 = vld [vmem:[%s2061 + $0x1a8] sm:$0xff]
        %v2116 = vld [vmem:[%s2061 + $0x1b0] sm:$0xff]
        %v2117 = vld [vmem:[%s2061 + $0x1b8] sm:$0xff]
        %v2118 = vld [vmem:[%s2061 + $0x1c0] sm:$0xff]
        %v2119 = vld [vmem:[%s2061 + $0x1c8] sm:$0xff]
        %v2120 = vld [vmem:[%s2061 + $0x1d0] sm:$0xff]
        %v2121 = vld [vmem:[%s2061 + $0x1d8] sm:$0xff]
        %v2122 = vld [vmem:[%s2061 + $0x1e0] sm:$0xff]
        %v2123 = vld [vmem:[%s2061 + $0x1e8] sm:$0xff]
        %v2124 = vld [vmem:[%s2061 + $0x1f0] sm:$0xff]
        %v2125 = vld [vmem:[%s2061 + $0x1f8] sm:$0xff]
        %v2126 = vld [vmem:[%s2061 + $0x200] sm:$0xff]
        %v2127 = vld [vmem:[%s2061 + $0x208] sm:$0xff]
        %v2128 = vld [vmem:[%s2061 + $0x210] sm:$0xff]
        %v2129 = vld [vmem:[%s2061 + $0x218] sm:$0xff]
        %v2130 = vld [vmem:[%s2061 + $0x220] sm:$0xff]
        %v2131 = vld [vmem:[%s2061 + $0x228] sm:$0xff]
        %v2132 = vld [vmem:[%s2061 + $0x230] sm:$0xff]
        %v2133 = vld [vmem:[%s2061 + $0x238] sm:$0xff]
        %s2134 = scalar_lea.vmem %s4, 2
        %v2135 = vld [vmem:[%s2134] sm:$0x1]
        %v2137 = vlaneseq
        %v2138 = vshrl.u32 %v2137, 7
        %v2139 = vsub.s32 0, %v2138
        %v2140 = vrot.slane %v2135, %v2139
        %v2143 = vsel %vm223, %v1893, 0
        %v2146 = vsel %vm223, %v1894, 0
        %v2149 = vsel %vm223, %v1895, 0
        %v2152 = vsel %vm223, %v1896, 0
        %v2155 = vsel %vm223, %v1897, 0
        %v2158 = vsel %vm223, %v1898, 0
        %v2161 = vsel %vm223, %v1899, 0
        %v2164 = vsel %vm223, %v1900, 0
        %2166 = vmatprep.subr.mxu0 0.0
        %2167 = vmatpush1.msra.mxu0 %v2062
        %2168 = vmatprep.subr.mxu0 0.0
        %2169 = vmatpush1.msra.mxu0 %v2063
        %2170 = vmatprep.subr.mxu0 0.0
        %2171 = vmatpush1.msra.mxu0 %v2064
        %2172 = vmatprep.subr.mxu0 0.0
        %2173 = vmatpush1.msra.mxu0 %v2065
        %2174 = vmatprep.subr.mxu0 0.0
        %2175 = vmatpush1.msra.mxu0 %v2066
        %2176 = vmatprep.subr.mxu0 0.0
        %2177 = vmatpush1.msra.mxu0 %v2067
        %2178 = vmatprep.subr.mxu0 0.0
        %2179 = vmatpush1.msra.mxu0 %v2068
        %2180 = vmatprep.subr.mxu0 0.0
        %2181 = vmatpush1.msra.mxu0 %v2069
        %2182 = vmatprep.subr.mxu0 0.0
        %2183 = vmatpush1.msra.mxu0 %v2070
        %2184 = vmatprep.subr.mxu0 0.0
        %2185 = vmatpush1.msra.mxu0 %v2071
        %2186 = vmatprep.subr.mxu0 0.0
        %2187 = vmatpush1.msra.mxu0 %v2072
        %2188 = vmatprep.subr.mxu0 0.0
        %2189 = vmatpush1.msra.mxu0 %v2073
        %2190 = vmatprep.subr.mxu0 0.0
        %2191 = vmatpush1.msra.mxu0 %v2074
        %2192 = vmatprep.subr.mxu0 0.0
        %2193 = vmatpush1.msra.mxu0 %v2075
        %2194 = vmatprep.subr.mxu0 0.0
        %2195 = vmatpush1.msra.mxu0 %v2076
        %2196 = vmatprep.subr.mxu0 0.0
        %2197 = vmatpush1.msra.mxu0 %v2077
        %2198 = vmatprep.subr.mxu0 0.0
        %2199 = vmatpush1.msra.mxu0 %v2078
        %2200 = vmatprep.subr.mxu0 0.0
        %2201 = vmatpush1.msra.mxu0 %v2079
        %2202 = vmatprep.subr.mxu0 0.0
        %2203 = vmatpush1.msra.mxu0 %v2080
        %2204 = vmatprep.subr.mxu0 0.0
        %2205 = vmatpush1.msra.mxu0 %v2081
        %2206 = vmatprep.subr.mxu0 0.0
        %2207 = vmatpush1.msra.mxu0 %v2082
        %2208 = vmatprep.subr.mxu0 0.0
        %2209 = vmatpush1.msra.mxu0 %v2083
        %2210 = vmatprep.subr.mxu0 0.0
        %2211 = vmatpush1.msra.mxu0 %v2084
        %2212 = vmatprep.subr.mxu0 0.0
        %2213 = vmatpush1.msra.mxu0 %v2085
        %2214 = vmatprep.subr.mxu0 0.0
        %2215 = vmatpush1.msra.mxu0 %v2086
        %2216 = vmatprep.subr.mxu0 0.0
        %2217 = vmatpush1.msra.mxu0 %v2087
        %2218 = vmatprep.subr.mxu0 0.0
        %2219 = vmatpush1.msra.mxu0 %v2088
        %2220 = vmatprep.subr.mxu0 0.0
        %2221 = vmatpush1.msra.mxu0 %v2089
        %2222 = vmatprep.subr.mxu0 0.0
        %2223 = vmatpush1.msra.mxu0 %v2090
        %2224 = vmatprep.subr.mxu0 0.0
        %2225 = vmatpush1.msra.mxu0 %v2091
        %2226 = vmatprep.subr.mxu0 0.0
        %2227 = vmatpush1.msra.mxu0 %v2092
        %2228 = vmatprep.subr.mxu0 0.0
        %2229 = vmatpush1.msra.mxu0 %v2093
        %2230 = vmatprep.mubr.f32.mxu0 %v2037
        %2231 = vmatmul.mubr.f32.gmra.mrb[0].mxu0 %v2029
        %v2232 = vpop.f32.mrb[0].mxu0
        %v2233 = vadd.f32 %v2140, %v2232
        %v2234 = vpop.f32.mrb[0].mxu0
        %2235 = vmatprep.mubr.f32.mxu0 %v2038
        %2236 = vmatmul.mubr.f32.gmra.mrb[0].mxu0 %v2030
        %v2237 = vpop.f32.mrb[0].mxu0
        %v2238 = vadd.f32 %v2140, %v2237
        %v2239 = vpop.f32.mrb[0].mxu0
        %2240 = vmatprep.mubr.f32.mxu0 %v2039
        %2241 = vmatmul.mubr.f32.gmra.mrb[0].mxu0 %v2031
        %v2242 = vpop.f32.mrb[0].mxu0
        %v2243 = vadd.f32 %v2140, %v2242
        %v2244 = vpop.f32.mrb[0].mxu0
        %2245 = vmatprep.mubr.f32.mxu0 %v2040
        %2246 = vmatmul.mubr.f32.gmra.mrb[0].mxu0 %v2032
        %v2247 = vpop.f32.mrb[0].mxu0
        %v2248 = vadd.f32 %v2140, %v2247
        %v2249 = vpop.f32.mrb[0].mxu0
        %2250 = vmatprep.mubr.f32.mxu0 %v2041
        %2251 = vmatmul.mubr.f32.gmra.mrb[0].mxu0 %v2033
        %v2252 = vpop.f32.mrb[0].mxu0
        %v2253 = vadd.f32 %v2140, %v2252
        %v2254 = vpop.f32.mrb[0].mxu0
        %2255 = vmatprep.mubr.f32.mxu0 %v2042
        %2256 = vmatmul.mubr.f32.gmra.mrb[0].mxu0 %v2034
        %v2257 = vpop.f32.mrb[0].mxu0
        %v2258 = vadd.f32 %v2140, %v2257
        %v2259 = vpop.f32.mrb[0].mxu0
        %2260 = vmatprep.mubr.f32.mxu0 %v2043
        %2261 = vmatmul.mubr.f32.gmra.mrb[0].mxu0 %v2035
        %v2262 = vpop.f32.mrb[0].mxu0
        %v2263 = vadd.f32 %v2140, %v2262
        %v2264 = vpop.f32.mrb[0].mxu0
        %2265 = vmatprep.mubr.f32.mxu0 %v2044
        %2266 = vmatmul.mubr.f32.gmra.mrb[0].mxu0 %v2036
        %v2267 = vpop.f32.mrb[0].mxu0
        %v2268 = vadd.f32 %v2140, %v2267
        %v2269 = vpop.f32.mrb[0].mxu0
        %2270 = vdwg.mxu0
        %2271 = vmatprep.subr.mxu0 0.0
        %2272 = vmatpush1.msra.mxu0 %v2094
        %2273 = vmatprep.subr.mxu0 0.0
        %2274 = vmatpush1.msra.mxu0 %v2095
        %2275 = vmatprep.subr.mxu0 0.0
        %2276 = vmatpush1.msra.mxu0 %v2096
        %2277 = vmatprep.subr.mxu0 0.0
        %2278 = vmatpush1.msra.mxu0 %v2097
        %2279 = vmatprep.subr.mxu0 0.0
        %2280 = vmatpush1.msra.mxu0 %v2098
        %2281 = vmatprep.subr.mxu0 0.0
        %2282 = vmatpush1.msra.mxu0 %v2099
        %2283 = vmatprep.subr.mxu0 0.0
        %2284 = vmatpush1.msra.mxu0 %v2100
        %2285 = vmatprep.subr.mxu0 0.0
        %2286 = vmatpush1.msra.mxu0 %v2101
        %2287 = vmatprep.subr.mxu0 0.0
        %2288 = vmatpush1.msra.mxu0 %v2102
        %2289 = vmatprep.subr.mxu0 0.0
        %2290 = vmatpush1.msra.mxu0 %v2103
        %2291 = vmatprep.subr.mxu0 0.0
        %2292 = vmatpush1.msra.mxu0 %v2104
        %2293 = vmatprep.subr.mxu0 0.0
        %2294 = vmatpush1.msra.mxu0 %v2105
        %2295 = vmatprep.subr.mxu0 0.0
        %2296 = vmatpush1.msra.mxu0 %v2106
        %2297 = vmatprep.subr.mxu0 0.0
        %2298 = vmatpush1.msra.mxu0 %v2107
        %2299 = vmatprep.subr.mxu0 0.0
        %2300 = vmatpush1.msra.mxu0 %v2108
        %2301 = vmatprep.subr.mxu0 0.0
        %2302 = vmatpush1.msra.mxu0 %v2109
        %2303 = vmatprep.subr.mxu0 0.0
        %2304 = vmatpush1.msra.mxu0 %v2110
        %2305 = vmatprep.subr.mxu0 0.0
        %2306 = vmatpush1.msra.mxu0 %v2111
        %2307 = vmatprep.subr.mxu0 0.0
        %2308 = vmatpush1.msra.mxu0 %v2112
        %2309 = vmatprep.subr.mxu0 0.0
        %2310 = vmatpush1.msra.mxu0 %v2113
        %2311 = vmatprep.subr.mxu0 0.0
        %2312 = vmatpush1.msra.mxu0 %v2114
        %2313 = vmatprep.subr.mxu0 0.0
        %2314 = vmatpush1.msra.mxu0 %v2115
        %2315 = vmatprep.subr.mxu0 0.0
        %2316 = vmatpush1.msra.mxu0 %v2116
        %2317 = vmatprep.subr.mxu0 0.0
        %2318 = vmatpush1.msra.mxu0 %v2117
        %2319 = vmatprep.subr.mxu0 0.0
        %2320 = vmatpush1.msra.mxu0 %v2118
        %2321 = vmatprep.subr.mxu0 0.0
        %2322 = vmatpush1.msra.mxu0 %v2119
        %2323 = vmatprep.subr.mxu0 0.0
        %2324 = vmatpush1.msra.mxu0 %v2120
        %2325 = vmatprep.subr.mxu0 0.0
        %2326 = vmatpush1.msra.mxu0 %v2121
        %2327 = vmatprep.subr.mxu0 0.0
        %2328 = vmatpush1.msra.mxu0 %v2122
        %2329 = vmatprep.subr.mxu0 0.0
        %2330 = vmatpush1.msra.mxu0 %v2123
        %2331 = vmatprep.subr.mxu0 0.0
        %2332 = vmatpush1.msra.mxu0 %v2124
        %2333 = vmatprep.subr.mxu0 0.0
        %2334 = vmatpush1.msra.mxu0 %v2125
        %2335 = vmatprep.mubr.f32.mxu0 %v2053
        %2336 = vmatmul.mubr.f32.gmra.mrb[0].mxu0 %v2045
        %v2337 = vpop.f32.mrb[0].mxu0
        %v2338 = vadd.f32 %v2233, %v2337
        %v2339 = vpop.f32.mrb[0].mxu0
        %2340 = vmatprep.mubr.f32.mxu0 %v2054
        %2341 = vmatmul.mubr.f32.gmra.mrb[0].mxu0 %v2046
        %v2342 = vpop.f32.mrb[0].mxu0
        %v2343 = vadd.f32 %v2238, %v2342
        %v2344 = vpop.f32.mrb[0].mxu0
        %2345 = vmatprep.mubr.f32.mxu0 %v2055
        %2346 = vmatmul.mubr.f32.gmra.mrb[0].mxu0 %v2047
        %v2347 = vpop.f32.mrb[0].mxu0
        %v2348 = vadd.f32 %v2243, %v2347
        %v2349 = vpop.f32.mrb[0].mxu0
        %2350 = vmatprep.mubr.f32.mxu0 %v2056
        %2351 = vmatmul.mubr.f32.gmra.mrb[0].mxu0 %v2048
        %v2352 = vpop.f32.mrb[0].mxu0
        %v2353 = vadd.f32 %v2248, %v2352
        %v2354 = vpop.f32.mrb[0].mxu0
        %2355 = vmatprep.mubr.f32.mxu0 %v2057
        %2356 = vmatmul.mubr.f32.gmra.mrb[0].mxu0 %v2049
        %v2357 = vpop.f32.mrb[0].mxu0
        %v2358 = vadd.f32 %v2253, %v2357
        %v2359 = vpop.f32.mrb[0].mxu0
        %2360 = vmatprep.mubr.f32.mxu0 %v2058
        %2361 = vmatmul.mubr.f32.gmra.mrb[0].mxu0 %v2050
        %v2362 = vpop.f32.mrb[0].mxu0
        %v2363 = vadd.f32 %v2258, %v2362
        %v2364 = vpop.f32.mrb[0].mxu0
        %2365 = vmatprep.mubr.f32.mxu0 %v2059
        %2366 = vmatmul.mubr.f32.gmra.mrb[0].mxu0 %v2051
        %v2367 = vpop.f32.mrb[0].mxu0
        %v2368 = vadd.f32 %v2263, %v2367
        %v2369 = vpop.f32.mrb[0].mxu0
        %2370 = vmatprep.mubr.f32.mxu0 %v2060
        %2371 = vmatmul.mubr.f32.gmra.mrb[0].mxu0 %v2052
        %v2372 = vpop.f32.mrb[0].mxu0
        %v2373 = vadd.f32 %v2268, %v2372
        %v2374 = vpop.f32.mrb[0].mxu0
        %2375 = vdwg.mxu0
        %2376 = vmatprep.subr.mxu0 0.0
        %2377 = vmatpush1.msra.mxu0 %v2126
        %2378 = vmatprep.subr.mxu0 0.0
        %2379 = vmatpush1.msra.mxu0 %v2127
        %2380 = vmatprep.subr.mxu0 0.0
        %2381 = vmatpush1.msra.mxu0 %v2128
        %2382 = vmatprep.subr.mxu0 0.0
        %2383 = vmatpush1.msra.mxu0 %v2129
        %2384 = vmatprep.subr.mxu0 0.0
        %2385 = vmatpush1.msra.mxu0 %v2130
        %2386 = vmatprep.subr.mxu0 0.0
        %2387 = vmatpush1.msra.mxu0 %v2131
        %2388 = vmatprep.subr.mxu0 0.0
        %2389 = vmatpush1.msra.mxu0 %v2132
        %2390 = vmatprep.subr.mxu0 0.0
        %2391 = vmatpush1.msra.mxu0 %v2133
        %2392 = vmatprep.subr.mxu0 0.0
        %2393 = vmatpush1.msra.mxu0 0.0
        %2394 = vmatprep.subr.mxu0 0.0
        %2395 = vmatpush1.msra.mxu0 0.0
        %2396 = vmatprep.subr.mxu0 0.0
        %2397 = vmatpush1.msra.mxu0 0.0
        %2398 = vmatprep.subr.mxu0 0.0
        %2399 = vmatpush1.msra.mxu0 0.0
        %2400 = vmatprep.subr.mxu0 0.0
        %2401 = vmatpush1.msra.mxu0 0.0
        %2402 = vmatprep.subr.mxu0 0.0
        %2403 = vmatpush1.msra.mxu0 0.0
        %2404 = vmatprep.subr.mxu0 0.0
        %2405 = vmatpush1.msra.mxu0 0.0
        %2406 = vmatprep.subr.mxu0 0.0
        %2407 = vmatpush1.msra.mxu0 0.0
        %2408 = vmatprep.subr.mxu0 0.0
        %2409 = vmatpush1.msra.mxu0 0.0
        %2410 = vmatprep.subr.mxu0 0.0
        %2411 = vmatpush1.msra.mxu0 0.0
        %2412 = vmatprep.subr.mxu0 0.0
        %2413 = vmatpush1.msra.mxu0 0.0
        %2414 = vmatprep.subr.mxu0 0.0
        %2415 = vmatpush1.msra.mxu0 0.0
        %2416 = vmatprep.subr.mxu0 0.0
        %2417 = vmatpush1.msra.mxu0 0.0
        %2418 = vmatprep.subr.mxu0 0.0
        %2419 = vmatpush1.msra.mxu0 0.0
        %2420 = vmatprep.subr.mxu0 0.0
        %2421 = vmatpush1.msra.mxu0 0.0
        %2422 = vmatprep.subr.mxu0 0.0
        %2423 = vmatpush1.msra.mxu0 0.0
        %2424 = vmatprep.subr.mxu0 0.0
        %2425 = vmatpush1.msra.mxu0 0.0
        %2426 = vmatprep.subr.mxu0 0.0
        %2427 = vmatpush1.msra.mxu0 0.0
        %2428 = vmatprep.subr.mxu0 0.0
        %2429 = vmatpush1.msra.mxu0 0.0
        %2430 = vmatprep.subr.mxu0 0.0
        %2431 = vmatpush1.msra.mxu0 0.0
        %2432 = vmatprep.subr.mxu0 0.0
        %2433 = vmatpush1.msra.mxu0 0.0
        %2434 = vmatprep.subr.mxu0 0.0
        %2435 = vmatpush1.msra.mxu0 0.0
        %2436 = vmatprep.subr.mxu0 0.0
        %2437 = vmatpush1.msra.mxu0 0.0
        %2438 = vmatprep.subr.mxu0 0.0
        %2439 = vmatpush1.msra.mxu0 0.0
        %2440 = vmatprep.mubr.f32.mxu0 0.0
        %2441 = vmatmul.mubr.f32.gmra.mrb[0].mxu0 %v2143
        %v2442 = vpop.f32.mrb[0].mxu0
        %v2443 = vadd.f32 %v2338, %v2442
        %v2444 = vpop.f32.mrb[0].mxu0
        %2445 = vmatprep.mubr.f32.mxu0 0.0
        %2446 = vmatmul.mubr.f32.gmra.mrb[0].mxu0 %v2146
        %v2447 = vpop.f32.mrb[0].mxu0
        %v2448 = vadd.f32 %v2343, %v2447
        %v2449 = vpop.f32.mrb[0].mxu0
        %2450 = vmatprep.mubr.f32.mxu0 0.0
        %2451 = vmatmul.mubr.f32.gmra.mrb[0].mxu0 %v2149
        %v2452 = vpop.f32.mrb[0].mxu0
        %v2453 = vadd.f32 %v2348, %v2452
        %v2454 = vpop.f32.mrb[0].mxu0
        %2455 = vmatprep.mubr.f32.mxu0 0.0
        %2456 = vmatmul.mubr.f32.gmra.mrb[0].mxu0 %v2152
        %v2457 = vpop.f32.mrb[0].mxu0
        %v2458 = vadd.f32 %v2353, %v2457
        %v2459 = vpop.f32.mrb[0].mxu0
        %2460 = vmatprep.mubr.f32.mxu0 0.0
        %2461 = vmatmul.mubr.f32.gmra.mrb[0].mxu0 %v2155
        %v2462 = vpop.f32.mrb[0].mxu0
        %v2463 = vadd.f32 %v2358, %v2462
        %v2464 = vpop.f32.mrb[0].mxu0
        %2465 = vmatprep.mubr.f32.mxu0 0.0
        %2466 = vmatmul.mubr.f32.gmra.mrb[0].mxu0 %v2158
        %v2467 = vpop.f32.mrb[0].mxu0
        %v2468 = vadd.f32 %v2363, %v2467
        %v2469 = vpop.f32.mrb[0].mxu0
        %2470 = vmatprep.mubr.f32.mxu0 0.0
        %2471 = vmatmul.mubr.f32.gmra.mrb[0].mxu0 %v2161
        %v2472 = vpop.f32.mrb[0].mxu0
        %v2473 = vadd.f32 %v2368, %v2472
        %v2474 = vpop.f32.mrb[0].mxu0
        %2475 = vmatprep.mubr.f32.mxu0 0.0
        %2476 = vmatmul.mubr.f32.gmra.mrb[0].mxu0 %v2164
        %v2477 = vpop.f32.mrb[0].mxu0
        %v2478 = vadd.f32 %v2373, %v2477
        %v2479 = vpop.f32.mrb[0].mxu0
        %2480 = vdwg.mxu0
        %vm2481 = vcmp.gt.f32.partialorder %v2443, 0.0
        %vm2482 = vcmp.gt.f32.partialorder %v2448, 0.0
        %vm2483 = vcmp.gt.f32.partialorder %v2453, 0.0
        %vm2484 = vcmp.gt.f32.partialorder %v2458, 0.0
        %vm2485 = vcmp.gt.f32.partialorder %v2463, 0.0
        %vm2486 = vcmp.gt.f32.partialorder %v2468, 0.0
        %vm2487 = vcmp.gt.f32.partialorder %v2473, 0.0
        %vm2488 = vcmp.gt.f32.partialorder %v2478, 0.0
        %v2489 = vmul.f32 %v2443, 0.01
        %v2490 = vmul.f32 %v2448, 0.01
        %v2491 = vmul.f32 %v2453, 0.01
        %v2492 = vmul.f32 %v2458, 0.01
        %v2493 = vmul.f32 %v2463, 0.01
        %v2494 = vmul.f32 %v2468, 0.01
        %v2495 = vmul.f32 %v2473, 0.01
        %v2496 = vmul.f32 %v2478, 0.01
        %v2497 = vsel %vm2481, %v2443, %v2489
        %v2498 = vsel %vm2482, %v2448, %v2490
        %v2499 = vsel %vm2483, %v2453, %v2491
        %v2500 = vsel %vm2484, %v2458, %v2492
        %v2501 = vsel %vm2485, %v2463, %v2493
        %v2502 = vsel %vm2486, %v2468, %v2494
        %v2503 = vsel %vm2487, %v2473, %v2495
        %v2504 = vsel %vm2488, %v2478, %v2496
        %2505 = vst.msk [vmem:[%s421 + $0x1] sm:$0xff] %vm223, %v2497
        %2506 = vst.msk [vmem:[%s421 + $0x11] sm:$0xff] %vm223, %v2498
        %2507 = vst.msk [vmem:[%s421 + $0x21] sm:$0xff] %vm223, %v2499
        %2508 = vst.msk [vmem:[%s421 + $0x31] sm:$0xff] %vm223, %v2500
        %2509 = vst.msk [vmem:[%s421 + $0x41] sm:$0xff] %vm223, %v2501
        %2510 = vst.msk [vmem:[%s421 + $0x51] sm:$0xff] %vm223, %v2502
        %2511 = vst.msk [vmem:[%s421 + $0x61] sm:$0xff] %vm223, %v2503
        %2512 = vst.msk [vmem:[%s421 + $0x71] sm:$0xff] %vm223, %v2504
        %v2513 = vld [vmem:[#allocation2] sm:$0xff]
        %v2514 = vld [vmem:[#allocation2 + $0x10] sm:$0xff]
        %v2515 = vld [vmem:[#allocation2 + $0x20] sm:$0xff]
        %v2516 = vld [vmem:[#allocation2 + $0x30] sm:$0xff]
        %v2517 = vld [vmem:[#allocation2 + $0x40] sm:$0xff]
        %v2518 = vld [vmem:[#allocation2 + $0x50] sm:$0xff]
        %v2519 = vld [vmem:[#allocation2 + $0x60] sm:$0xff]
        %v2520 = vld [vmem:[#allocation2 + $0x70] sm:$0xff]
        %v2521 = vld [vmem:[#allocation2 + $0x1] sm:$0xff]
        %v2522 = vld [vmem:[#allocation2 + $0x11] sm:$0xff]
        %v2523 = vld [vmem:[#allocation2 + $0x21] sm:$0xff]
        %v2524 = vld [vmem:[#allocation2 + $0x31] sm:$0xff]
        %v2525 = vld [vmem:[#allocation2 + $0x41] sm:$0xff]
        %v2526 = vld [vmem:[#allocation2 + $0x51] sm:$0xff]
        %v2527 = vld [vmem:[#allocation2 + $0x61] sm:$0xff]
        %v2528 = vld [vmem:[#allocation2 + $0x71] sm:$0xff]
        %v2529 = vld [vmem:[#allocation2 + $0x2] sm:$0xff]
        %v2530 = vld [vmem:[#allocation2 + $0x12] sm:$0xff]
        %v2531 = vld [vmem:[#allocation2 + $0x22] sm:$0xff]
        %v2532 = vld [vmem:[#allocation2 + $0x32] sm:$0xff]
        %v2533 = vld [vmem:[#allocation2 + $0x42] sm:$0xff]
        %v2534 = vld [vmem:[#allocation2 + $0x52] sm:$0xff]
        %v2535 = vld [vmem:[#allocation2 + $0x62] sm:$0xff]
        %v2536 = vld [vmem:[#allocation2 + $0x72] sm:$0xff]
        %v2537 = vld [vmem:[%s421] sm:$0xff]
        %v2538 = vld [vmem:[%s421 + $0x10] sm:$0xff]
        %v2539 = vld [vmem:[%s421 + $0x20] sm:$0xff]
        %v2540 = vld [vmem:[%s421 + $0x30] sm:$0xff]
        %v2541 = vld [vmem:[%s421 + $0x40] sm:$0xff]
        %v2542 = vld [vmem:[%s421 + $0x50] sm:$0xff]
        %v2543 = vld [vmem:[%s421 + $0x60] sm:$0xff]
        %v2544 = vld [vmem:[%s421 + $0x70] sm:$0xff]
        %v2545 = vld [vmem:[%s421 + $0x1] sm:$0xff]
        %v2546 = vld [vmem:[%s421 + $0x11] sm:$0xff]
        %v2547 = vld [vmem:[%s421 + $0x21] sm:$0xff]
        %v2548 = vld [vmem:[%s421 + $0x31] sm:$0xff]
        %v2549 = vld [vmem:[%s421 + $0x41] sm:$0xff]
        %v2550 = vld [vmem:[%s421 + $0x51] sm:$0xff]
        %v2551 = vld [vmem:[%s421 + $0x61] sm:$0xff]
        %v2552 = vld [vmem:[%s421 + $0x71] sm:$0xff]
        %v2553 = vld [vmem:[%s421 + $0x2] sm:$0xff]
        %v2554 = vld [vmem:[%s421 + $0x12] sm:$0xff]
        %v2555 = vld [vmem:[%s421 + $0x22] sm:$0xff]
        %v2556 = vld [vmem:[%s421 + $0x32] sm:$0xff]
        %v2557 = vld [vmem:[%s421 + $0x42] sm:$0xff]
        %v2558 = vld [vmem:[%s421 + $0x52] sm:$0xff]
        %v2559 = vld [vmem:[%s421 + $0x62] sm:$0xff]
        %v2560 = vld [vmem:[%s421 + $0x72] sm:$0xff]
        %v2561 = vld [vmem:[%s478] sm:$0xff]
        %v2562 = vld [vmem:[%s478 + $0x10] sm:$0xff]
        %v2563 = vld [vmem:[%s478 + $0x20] sm:$0xff]
        %v2564 = vld [vmem:[%s478 + $0x30] sm:$0xff]
        %v2565 = vld [vmem:[%s478 + $0x40] sm:$0xff]
        %v2566 = vld [vmem:[%s478 + $0x50] sm:$0xff]
        %v2567 = vld [vmem:[%s478 + $0x60] sm:$0xff]
        %v2568 = vld [vmem:[%s478 + $0x70] sm:$0xff]
        %v2569 = vld [vmem:[%s478 + $0x1] sm:$0xff]
        %v2570 = vld [vmem:[%s478 + $0x11] sm:$0xff]
        %v2571 = vld [vmem:[%s478 + $0x21] sm:$0xff]
        %v2572 = vld [vmem:[%s478 + $0x31] sm:$0xff]
        %v2573 = vld [vmem:[%s478 + $0x41] sm:$0xff]
        %v2574 = vld [vmem:[%s478 + $0x51] sm:$0xff]
        %v2575 = vld [vmem:[%s478 + $0x61] sm:$0xff]
        %v2576 = vld [vmem:[%s478 + $0x71] sm:$0xff]
        %v2577 = vld [vmem:[%s478 + $0x2] sm:$0xff]
        %v2578 = vld [vmem:[%s478 + $0x12] sm:$0xff]
        %v2579 = vld [vmem:[%s478 + $0x22] sm:$0xff]
        %v2580 = vld [vmem:[%s478 + $0x32] sm:$0xff]
        %v2581 = vld [vmem:[%s478 + $0x42] sm:$0xff]
        %v2582 = vld [vmem:[%s478 + $0x52] sm:$0xff]
        %v2583 = vld [vmem:[%s478 + $0x62] sm:$0xff]
        %v2584 = vld [vmem:[%s478 + $0x72] sm:$0xff]
        %2593 = vrot.lane.b32.xlu0 %v2521, 64
        %v2594 = vpop.permute.xlu0 %2593
        %2595 = vrot.lane.b32.xlu0 %v2522, 64
        %v2596 = vpop.permute.xlu0 %2595
        %2597 = vrot.lane.b32.xlu0 %v2523, 64
        %v2598 = vpop.permute.xlu0 %2597
        %2599 = vrot.lane.b32.xlu0 %v2524, 64
        %v2600 = vpop.permute.xlu0 %2599
        %2601 = vrot.lane.b32.xlu0 %v2525, 64
        %v2602 = vpop.permute.xlu0 %2601
        %2603 = vrot.lane.b32.xlu0 %v2526, 64
        %v2604 = vpop.permute.xlu0 %2603
        %2605 = vrot.lane.b32.xlu0 %v2527, 64
        %v2606 = vpop.permute.xlu0 %2605
        %2607 = vrot.lane.b32.xlu0 %v2528, 64
        %v2608 = vpop.permute.xlu0 %2607
        %2625 = vrot.lane.b32.xlu0 %v2537, 64
        %v2626 = vpop.permute.xlu0 %2625
        %2627 = vrot.lane.b32.xlu0 %v2538, 64
        %v2628 = vpop.permute.xlu0 %2627
        %2629 = vrot.lane.b32.xlu0 %v2539, 64
        %v2630 = vpop.permute.xlu0 %2629
        %2631 = vrot.lane.b32.xlu0 %v2540, 64
        %v2632 = vpop.permute.xlu0 %2631
        %2633 = vrot.lane.b32.xlu0 %v2541, 64
        %v2634 = vpop.permute.xlu0 %2633
        %2635 = vrot.lane.b32.xlu0 %v2542, 64
        %v2636 = vpop.permute.xlu0 %2635
        %2637 = vrot.lane.b32.xlu0 %v2543, 64
        %v2638 = vpop.permute.xlu0 %2637
        %2639 = vrot.lane.b32.xlu0 %v2544, 64
        %v2640 = vpop.permute.xlu0 %2639
        %2657 = vrot.lane.b32.xlu0 %v2553, 64
        %v2658 = vpop.permute.xlu0 %2657
        %2659 = vrot.lane.b32.xlu0 %v2554, 64
        %v2660 = vpop.permute.xlu0 %2659
        %2661 = vrot.lane.b32.xlu0 %v2555, 64
        %v2662 = vpop.permute.xlu0 %2661
        %2663 = vrot.lane.b32.xlu0 %v2556, 64
        %v2664 = vpop.permute.xlu0 %2663
        %2665 = vrot.lane.b32.xlu0 %v2557, 64
        %v2666 = vpop.permute.xlu0 %2665
        %2667 = vrot.lane.b32.xlu0 %v2558, 64
        %v2668 = vpop.permute.xlu0 %2667
        %2669 = vrot.lane.b32.xlu0 %v2559, 64
        %v2670 = vpop.permute.xlu0 %2669
        %2671 = vrot.lane.b32.xlu0 %v2560, 64
        %v2672 = vpop.permute.xlu0 %2671
        %2689 = vrot.lane.b32.xlu0 %v2569, 64
        %v2690 = vpop.permute.xlu0 %2689
        %2691 = vrot.lane.b32.xlu0 %v2570, 64
        %v2692 = vpop.permute.xlu0 %2691
        %2693 = vrot.lane.b32.xlu0 %v2571, 64
        %v2694 = vpop.permute.xlu0 %2693
        %2695 = vrot.lane.b32.xlu0 %v2572, 64
        %v2696 = vpop.permute.xlu0 %2695
        %2697 = vrot.lane.b32.xlu0 %v2573, 64
        %v2698 = vpop.permute.xlu0 %2697
        %2699 = vrot.lane.b32.xlu0 %v2574, 64
        %v2700 = vpop.permute.xlu0 %2699
        %2701 = vrot.lane.b32.xlu0 %v2575, 64
        %v2702 = vpop.permute.xlu0 %2701
        %2703 = vrot.lane.b32.xlu0 %v2576, 64
        %v2704 = vpop.permute.xlu0 %2703
        %v2713 = vsel %vm223, %v2513, %v2594
        %v2714 = vsel %vm223, %v2514, %v2596
        %v2715 = vsel %vm223, %v2515, %v2598
        %v2716 = vsel %vm223, %v2516, %v2600
        %v2717 = vsel %vm223, %v2517, %v2602
        %v2718 = vsel %vm223, %v2518, %v2604
        %v2719 = vsel %vm223, %v2519, %v2606
        %v2720 = vsel %vm223, %v2520, %v2608
        %v2721 = vsel %vm223, %v2529, %v2626
        %v2722 = vsel %vm223, %v2530, %v2628
        %v2723 = vsel %vm223, %v2531, %v2630
        %v2724 = vsel %vm223, %v2532, %v2632
        %v2725 = vsel %vm223, %v2533, %v2634
        %v2726 = vsel %vm223, %v2534, %v2636
        %v2727 = vsel %vm223, %v2535, %v2638
        %v2728 = vsel %vm223, %v2536, %v2640
        %v2729 = vsel %vm223, %v2545, %v2658
        %v2730 = vsel %vm223, %v2546, %v2660
        %v2731 = vsel %vm223, %v2547, %v2662
        %v2732 = vsel %vm223, %v2548, %v2664
        %v2733 = vsel %vm223, %v2549, %v2666
        %v2734 = vsel %vm223, %v2550, %v2668
        %v2735 = vsel %vm223, %v2551, %v2670
        %v2736 = vsel %vm223, %v2552, %v2672
        %v2737 = vsel %vm223, %v2561, %v2690
        %v2738 = vsel %vm223, %v2562, %v2692
        %v2739 = vsel %vm223, %v2563, %v2694
        %v2740 = vsel %vm223, %v2564, %v2696
        %v2741 = vsel %vm223, %v2565, %v2698
        %v2742 = vsel %vm223, %v2566, %v2700
        %v2743 = vsel %vm223, %v2567, %v2702
        %v2744 = vsel %vm223, %v2568, %v2704
        %s2745 = scalar_lea.vmem %s3, 1728
        %v2746 = vld [vmem:[%s2745] sm:$0xff]
        %v2747 = vld [vmem:[%s2745 + $0x8] sm:$0xff]
        %v2748 = vld [vmem:[%s2745 + $0x10] sm:$0xff]
        %v2749 = vld [vmem:[%s2745 + $0x18] sm:$0xff]
        %v2750 = vld [vmem:[%s2745 + $0x20] sm:$0xff]
        %v2751 = vld [vmem:[%s2745 + $0x28] sm:$0xff]
        %v2752 = vld [vmem:[%s2745 + $0x30] sm:$0xff]
        %v2753 = vld [vmem:[%s2745 + $0x38] sm:$0xff]
        %v2754 = vld [vmem:[%s2745 + $0x40] sm:$0xff]
        %v2755 = vld [vmem:[%s2745 + $0x48] sm:$0xff]
        %v2756 = vld [vmem:[%s2745 + $0x50] sm:$0xff]
        %v2757 = vld [vmem:[%s2745 + $0x58] sm:$0xff]
        %v2758 = vld [vmem:[%s2745 + $0x60] sm:$0xff]
        %v2759 = vld [vmem:[%s2745 + $0x68] sm:$0xff]
        %v2760 = vld [vmem:[%s2745 + $0x70] sm:$0xff]
        %v2761 = vld [vmem:[%s2745 + $0x78] sm:$0xff]
        %v2762 = vld [vmem:[%s2745 + $0x80] sm:$0xff]
        %v2763 = vld [vmem:[%s2745 + $0x88] sm:$0xff]
        %v2764 = vld [vmem:[%s2745 + $0x90] sm:$0xff]
        %v2765 = vld [vmem:[%s2745 + $0x98] sm:$0xff]
        %v2766 = vld [vmem:[%s2745 + $0xa0] sm:$0xff]
        %v2767 = vld [vmem:[%s2745 + $0xa8] sm:$0xff]
        %v2768 = vld [vmem:[%s2745 + $0xb0] sm:$0xff]
        %v2769 = vld [vmem:[%s2745 + $0xb8] sm:$0xff]
        %v2770 = vld [vmem:[%s2745 + $0xc0] sm:$0xff]
        %v2771 = vld [vmem:[%s2745 + $0xc8] sm:$0xff]
        %v2772 = vld [vmem:[%s2745 + $0xd0] sm:$0xff]
        %v2773 = vld [vmem:[%s2745 + $0xd8] sm:$0xff]
        %v2774 = vld [vmem:[%s2745 + $0xe0] sm:$0xff]
        %v2775 = vld [vmem:[%s2745 + $0xe8] sm:$0xff]
        %v2776 = vld [vmem:[%s2745 + $0xf0] sm:$0xff]
        %v2777 = vld [vmem:[%s2745 + $0xf8] sm:$0xff]
        %v2778 = vld [vmem:[%s2745 + $0x100] sm:$0xff]
        %v2779 = vld [vmem:[%s2745 + $0x108] sm:$0xff]
        %v2780 = vld [vmem:[%s2745 + $0x110] sm:$0xff]
        %v2781 = vld [vmem:[%s2745 + $0x118] sm:$0xff]
        %v2782 = vld [vmem:[%s2745 + $0x120] sm:$0xff]
        %v2783 = vld [vmem:[%s2745 + $0x128] sm:$0xff]
        %v2784 = vld [vmem:[%s2745 + $0x130] sm:$0xff]
        %v2785 = vld [vmem:[%s2745 + $0x138] sm:$0xff]
        %v2786 = vld [vmem:[%s2745 + $0x140] sm:$0xff]
        %v2787 = vld [vmem:[%s2745 + $0x148] sm:$0xff]
        %v2788 = vld [vmem:[%s2745 + $0x150] sm:$0xff]
        %v2789 = vld [vmem:[%s2745 + $0x158] sm:$0xff]
        %v2790 = vld [vmem:[%s2745 + $0x160] sm:$0xff]
        %v2791 = vld [vmem:[%s2745 + $0x168] sm:$0xff]
        %v2792 = vld [vmem:[%s2745 + $0x170] sm:$0xff]
        %v2793 = vld [vmem:[%s2745 + $0x178] sm:$0xff]
        %v2794 = vld [vmem:[%s2745 + $0x180] sm:$0xff]
        %v2795 = vld [vmem:[%s2745 + $0x188] sm:$0xff]
        %v2796 = vld [vmem:[%s2745 + $0x190] sm:$0xff]
        %v2797 = vld [vmem:[%s2745 + $0x198] sm:$0xff]
        %v2798 = vld [vmem:[%s2745 + $0x1a0] sm:$0xff]
        %v2799 = vld [vmem:[%s2745 + $0x1a8] sm:$0xff]
        %v2800 = vld [vmem:[%s2745 + $0x1b0] sm:$0xff]
        %v2801 = vld [vmem:[%s2745 + $0x1b8] sm:$0xff]
        %v2802 = vld [vmem:[%s2745 + $0x1c0] sm:$0xff]
        %v2803 = vld [vmem:[%s2745 + $0x1c8] sm:$0xff]
        %v2804 = vld [vmem:[%s2745 + $0x1d0] sm:$0xff]
        %v2805 = vld [vmem:[%s2745 + $0x1d8] sm:$0xff]
        %v2806 = vld [vmem:[%s2745 + $0x1e0] sm:$0xff]
        %v2807 = vld [vmem:[%s2745 + $0x1e8] sm:$0xff]
        %v2808 = vld [vmem:[%s2745 + $0x1f0] sm:$0xff]
        %v2809 = vld [vmem:[%s2745 + $0x1f8] sm:$0xff]
        %v2810 = vld [vmem:[%s2745 + $0x200] sm:$0xff]
        %v2811 = vld [vmem:[%s2745 + $0x208] sm:$0xff]
        %v2812 = vld [vmem:[%s2745 + $0x210] sm:$0xff]
        %v2813 = vld [vmem:[%s2745 + $0x218] sm:$0xff]
        %v2814 = vld [vmem:[%s2745 + $0x220] sm:$0xff]
        %v2815 = vld [vmem:[%s2745 + $0x228] sm:$0xff]
        %v2816 = vld [vmem:[%s2745 + $0x230] sm:$0xff]
        %v2817 = vld [vmem:[%s2745 + $0x238] sm:$0xff]
        %s2818 = scalar_lea.vmem %s4, 3
        %v2819 = vld [vmem:[%s2818] sm:$0x1]
        %v2821 = vlaneseq
        %v2822 = vshrl.u32 %v2821, 7
        %v2823 = vsub.s32 0, %v2822
        %v2824 = vrot.slane %v2819, %v2823
        %v2827 = vsel %vm223, %v2577, 0
        %v2830 = vsel %vm223, %v2578, 0
        %v2833 = vsel %vm223, %v2579, 0
        %v2836 = vsel %vm223, %v2580, 0
        %v2839 = vsel %vm223, %v2581, 0
        %v2842 = vsel %vm223, %v2582, 0
        %v2845 = vsel %vm223, %v2583, 0
        %v2848 = vsel %vm223, %v2584, 0
        %2850 = vmatprep.subr.mxu0 0.0
        %2851 = vmatpush1.msra.mxu0 %v2746
        %2852 = vmatprep.subr.mxu0 0.0
        %2853 = vmatpush1.msra.mxu0 %v2747
        %2854 = vmatprep.subr.mxu0 0.0
        %2855 = vmatpush1.msra.mxu0 %v2748
        %2856 = vmatprep.subr.mxu0 0.0
        %2857 = vmatpush1.msra.mxu0 %v2749
        %2858 = vmatprep.subr.mxu0 0.0
        %2859 = vmatpush1.msra.mxu0 %v2750
        %2860 = vmatprep.subr.mxu0 0.0
        %2861 = vmatpush1.msra.mxu0 %v2751
        %2862 = vmatprep.subr.mxu0 0.0
        %2863 = vmatpush1.msra.mxu0 %v2752
        %2864 = vmatprep.subr.mxu0 0.0
        %2865 = vmatpush1.msra.mxu0 %v2753
        %2866 = vmatprep.subr.mxu0 0.0
        %2867 = vmatpush1.msra.mxu0 %v2754
        %2868 = vmatprep.subr.mxu0 0.0
        %2869 = vmatpush1.msra.mxu0 %v2755
        %2870 = vmatprep.subr.mxu0 0.0
        %2871 = vmatpush1.msra.mxu0 %v2756
        %2872 = vmatprep.subr.mxu0 0.0
        %2873 = vmatpush1.msra.mxu0 %v2757
        %2874 = vmatprep.subr.mxu0 0.0
        %2875 = vmatpush1.msra.mxu0 %v2758
        %2876 = vmatprep.subr.mxu0 0.0
        %2877 = vmatpush1.msra.mxu0 %v2759
        %2878 = vmatprep.subr.mxu0 0.0
        %2879 = vmatpush1.msra.mxu0 %v2760
        %2880 = vmatprep.subr.mxu0 0.0
        %2881 = vmatpush1.msra.mxu0 %v2761
        %2882 = vmatprep.subr.mxu0 0.0
        %2883 = vmatpush1.msra.mxu0 %v2762
        %2884 = vmatprep.subr.mxu0 0.0
        %2885 = vmatpush1.msra.mxu0 %v2763
        %2886 = vmatprep.subr.mxu0 0.0
        %2887 = vmatpush1.msra.mxu0 %v2764
        %2888 = vmatprep.subr.mxu0 0.0
        %2889 = vmatpush1.msra.mxu0 %v2765
        %2890 = vmatprep.subr.mxu0 0.0
        %2891 = vmatpush1.msra.mxu0 %v2766
        %2892 = vmatprep.subr.mxu0 0.0
        %2893 = vmatpush1.msra.mxu0 %v2767
        %2894 = vmatprep.subr.mxu0 0.0
        %2895 = vmatpush1.msra.mxu0 %v2768
        %2896 = vmatprep.subr.mxu0 0.0
        %2897 = vmatpush1.msra.mxu0 %v2769
        %2898 = vmatprep.subr.mxu0 0.0
        %2899 = vmatpush1.msra.mxu0 %v2770
        %2900 = vmatprep.subr.mxu0 0.0
        %2901 = vmatpush1.msra.mxu0 %v2771
        %2902 = vmatprep.subr.mxu0 0.0
        %2903 = vmatpush1.msra.mxu0 %v2772
        %2904 = vmatprep.subr.mxu0 0.0
        %2905 = vmatpush1.msra.mxu0 %v2773
        %2906 = vmatprep.subr.mxu0 0.0
        %2907 = vmatpush1.msra.mxu0 %v2774
        %2908 = vmatprep.subr.mxu0 0.0
        %2909 = vmatpush1.msra.mxu0 %v2775
        %2910 = vmatprep.subr.mxu0 0.0
        %2911 = vmatpush1.msra.mxu0 %v2776
        %2912 = vmatprep.subr.mxu0 0.0
        %2913 = vmatpush1.msra.mxu0 %v2777
        %2914 = vmatprep.mubr.f32.mxu0 %v2721
        %2915 = vmatmul.mubr.f32.gmra.mrb[0].mxu0 %v2713
        %v2916 = vpop.f32.mrb[0].mxu0
        %v2917 = vadd.f32 %v2824, %v2916
        %v2918 = vpop.f32.mrb[0].mxu0
        %2919 = vmatprep.mubr.f32.mxu0 %v2722
        %2920 = vmatmul.mubr.f32.gmra.mrb[0].mxu0 %v2714
        %v2921 = vpop.f32.mrb[0].mxu0
        %v2922 = vadd.f32 %v2824, %v2921
        %v2923 = vpop.f32.mrb[0].mxu0
        %2924 = vmatprep.mubr.f32.mxu0 %v2723
        %2925 = vmatmul.mubr.f32.gmra.mrb[0].mxu0 %v2715
        %v2926 = vpop.f32.mrb[0].mxu0
        %v2927 = vadd.f32 %v2824, %v2926
        %v2928 = vpop.f32.mrb[0].mxu0
        %2929 = vmatprep.mubr.f32.mxu0 %v2724
        %2930 = vmatmul.mubr.f32.gmra.mrb[0].mxu0 %v2716
        %v2931 = vpop.f32.mrb[0].mxu0
        %v2932 = vadd.f32 %v2824, %v2931
        %v2933 = vpop.f32.mrb[0].mxu0
        %2934 = vmatprep.mubr.f32.mxu0 %v2725
        %2935 = vmatmul.mubr.f32.gmra.mrb[0].mxu0 %v2717
        %v2936 = vpop.f32.mrb[0].mxu0
        %v2937 = vadd.f32 %v2824, %v2936
        %v2938 = vpop.f32.mrb[0].mxu0
        %2939 = vmatprep.mubr.f32.mxu0 %v2726
        %2940 = vmatmul.mubr.f32.gmra.mrb[0].mxu0 %v2718
        %v2941 = vpop.f32.mrb[0].mxu0
        %v2942 = vadd.f32 %v2824, %v2941
        %v2943 = vpop.f32.mrb[0].mxu0
        %2944 = vmatprep.mubr.f32.mxu0 %v2727
        %2945 = vmatmul.mubr.f32.gmra.mrb[0].mxu0 %v2719
        %v2946 = vpop.f32.mrb[0].mxu0
        %v2947 = vadd.f32 %v2824, %v2946
        %v2948 = vpop.f32.mrb[0].mxu0
        %2949 = vmatprep.mubr.f32.mxu0 %v2728
        %2950 = vmatmul.mubr.f32.gmra.mrb[0].mxu0 %v2720
        %v2951 = vpop.f32.mrb[0].mxu0
        %v2952 = vadd.f32 %v2824, %v2951
        %v2953 = vpop.f32.mrb[0].mxu0
        %2954 = vdwg.mxu0
        %2955 = vmatprep.subr.mxu0 0.0
        %2956 = vmatpush1.msra.mxu0 %v2778
        %2957 = vmatprep.subr.mxu0 0.0
        %2958 = vmatpush1.msra.mxu0 %v2779
        %2959 = vmatprep.subr.mxu0 0.0
        %2960 = vmatpush1.msra.mxu0 %v2780
        %2961 = vmatprep.subr.mxu0 0.0
        %2962 = vmatpush1.msra.mxu0 %v2781
        %2963 = vmatprep.subr.mxu0 0.0
        %2964 = vmatpush1.msra.mxu0 %v2782
        %2965 = vmatprep.subr.mxu0 0.0
        %2966 = vmatpush1.msra.mxu0 %v2783
        %2967 = vmatprep.subr.mxu0 0.0
        %2968 = vmatpush1.msra.mxu0 %v2784
        %2969 = vmatprep.subr.mxu0 0.0
        %2970 = vmatpush1.msra.mxu0 %v2785
        %2971 = vmatprep.subr.mxu0 0.0
        %2972 = vmatpush1.msra.mxu0 %v2786
        %2973 = vmatprep.subr.mxu0 0.0
        %2974 = vmatpush1.msra.mxu0 %v2787
        %2975 = vmatprep.subr.mxu0 0.0
        %2976 = vmatpush1.msra.mxu0 %v2788
        %2977 = vmatprep.subr.mxu0 0.0
        %2978 = vmatpush1.msra.mxu0 %v2789
        %2979 = vmatprep.subr.mxu0 0.0
        %2980 = vmatpush1.msra.mxu0 %v2790
        %2981 = vmatprep.subr.mxu0 0.0
        %2982 = vmatpush1.msra.mxu0 %v2791
        %2983 = vmatprep.subr.mxu0 0.0
        %2984 = vmatpush1.msra.mxu0 %v2792
        %2985 = vmatprep.subr.mxu0 0.0
        %2986 = vmatpush1.msra.mxu0 %v2793
        %2987 = vmatprep.subr.mxu0 0.0
        %2988 = vmatpush1.msra.mxu0 %v2794
        %2989 = vmatprep.subr.mxu0 0.0
        %2990 = vmatpush1.msra.mxu0 %v2795
        %2991 = vmatprep.subr.mxu0 0.0
        %2992 = vmatpush1.msra.mxu0 %v2796
        %2993 = vmatprep.subr.mxu0 0.0
        %2994 = vmatpush1.msra.mxu0 %v2797
        %2995 = vmatprep.subr.mxu0 0.0
        %2996 = vmatpush1.msra.mxu0 %v2798
        %2997 = vmatprep.subr.mxu0 0.0
        %2998 = vmatpush1.msra.mxu0 %v2799
        %2999 = vmatprep.subr.mxu0 0.0
        %3000 = vmatpush1.msra.mxu0 %v2800
        %3001 = vmatprep.subr.mxu0 0.0
        %3002 = vmatpush1.msra.mxu0 %v2801
        %3003 = vmatprep.subr.mxu0 0.0
        %3004 = vmatpush1.msra.mxu0 %v2802
        %3005 = vmatprep.subr.mxu0 0.0
        %3006 = vmatpush1.msra.mxu0 %v2803
        %3007 = vmatprep.subr.mxu0 0.0
        %3008 = vmatpush1.msra.mxu0 %v2804
        %3009 = vmatprep.subr.mxu0 0.0
        %3010 = vmatpush1.msra.mxu0 %v2805
        %3011 = vmatprep.subr.mxu0 0.0
        %3012 = vmatpush1.msra.mxu0 %v2806
        %3013 = vmatprep.subr.mxu0 0.0
        %3014 = vmatpush1.msra.mxu0 %v2807
        %3015 = vmatprep.subr.mxu0 0.0
        %3016 = vmatpush1.msra.mxu0 %v2808
        %3017 = vmatprep.subr.mxu0 0.0
        %3018 = vmatpush1.msra.mxu0 %v2809
        %3019 = vmatprep.mubr.f32.mxu0 %v2737
        %3020 = vmatmul.mubr.f32.gmra.mrb[0].mxu0 %v2729
        %v3021 = vpop.f32.mrb[0].mxu0
        %v3022 = vadd.f32 %v2917, %v3021
        %v3023 = vpop.f32.mrb[0].mxu0
        %3024 = vmatprep.mubr.f32.mxu0 %v2738
        %3025 = vmatmul.mubr.f32.gmra.mrb[0].mxu0 %v2730
        %v3026 = vpop.f32.mrb[0].mxu0
        %v3027 = vadd.f32 %v2922, %v3026
        %v3028 = vpop.f32.mrb[0].mxu0
        %3029 = vmatprep.mubr.f32.mxu0 %v2739
        %3030 = vmatmul.mubr.f32.gmra.mrb[0].mxu0 %v2731
        %v3031 = vpop.f32.mrb[0].mxu0
        %v3032 = vadd.f32 %v2927, %v3031
        %v3033 = vpop.f32.mrb[0].mxu0
        %3034 = vmatprep.mubr.f32.mxu0 %v2740
        %3035 = vmatmul.mubr.f32.gmra.mrb[0].mxu0 %v2732
        %v3036 = vpop.f32.mrb[0].mxu0
        %v3037 = vadd.f32 %v2932, %v3036
        %v3038 = vpop.f32.mrb[0].mxu0
        %3039 = vmatprep.mubr.f32.mxu0 %v2741
        %3040 = vmatmul.mubr.f32.gmra.mrb[0].mxu0 %v2733
        %v3041 = vpop.f32.mrb[0].mxu0
        %v3042 = vadd.f32 %v2937, %v3041
        %v3043 = vpop.f32.mrb[0].mxu0
        %3044 = vmatprep.mubr.f32.mxu0 %v2742
        %3045 = vmatmul.mubr.f32.gmra.mrb[0].mxu0 %v2734
        %v3046 = vpop.f32.mrb[0].mxu0
        %v3047 = vadd.f32 %v2942, %v3046
        %v3048 = vpop.f32.mrb[0].mxu0
        %3049 = vmatprep.mubr.f32.mxu0 %v2743
        %3050 = vmatmul.mubr.f32.gmra.mrb[0].mxu0 %v2735
        %v3051 = vpop.f32.mrb[0].mxu0
        %v3052 = vadd.f32 %v2947, %v3051
        %v3053 = vpop.f32.mrb[0].mxu0
        %3054 = vmatprep.mubr.f32.mxu0 %v2744
        %3055 = vmatmul.mubr.f32.gmra.mrb[0].mxu0 %v2736
        %v3056 = vpop.f32.mrb[0].mxu0
        %v3057 = vadd.f32 %v2952, %v3056
        %v3058 = vpop.f32.mrb[0].mxu0
        %3059 = vdwg.mxu0
        %3060 = vmatprep.subr.mxu0 0.0
        %3061 = vmatpush1.msra.mxu0 %v2810
        %3062 = vmatprep.subr.mxu0 0.0
        %3063 = vmatpush1.msra.mxu0 %v2811
        %3064 = vmatprep.subr.mxu0 0.0
        %3065 = vmatpush1.msra.mxu0 %v2812
        %3066 = vmatprep.subr.mxu0 0.0
        %3067 = vmatpush1.msra.mxu0 %v2813
        %3068 = vmatprep.subr.mxu0 0.0
        %3069 = vmatpush1.msra.mxu0 %v2814
        %3070 = vmatprep.subr.mxu0 0.0
        %3071 = vmatpush1.msra.mxu0 %v2815
        %3072 = vmatprep.subr.mxu0 0.0
        %3073 = vmatpush1.msra.mxu0 %v2816
        %3074 = vmatprep.subr.mxu0 0.0
        %3075 = vmatpush1.msra.mxu0 %v2817
        %3076 = vmatprep.subr.mxu0 0.0
        %3077 = vmatpush1.msra.mxu0 0.0
        %3078 = vmatprep.subr.mxu0 0.0
        %3079 = vmatpush1.msra.mxu0 0.0
        %3080 = vmatprep.subr.mxu0 0.0
        %3081 = vmatpush1.msra.mxu0 0.0
        %3082 = vmatprep.subr.mxu0 0.0
        %3083 = vmatpush1.msra.mxu0 0.0
        %3084 = vmatprep.subr.mxu0 0.0
        %3085 = vmatpush1.msra.mxu0 0.0
        %3086 = vmatprep.subr.mxu0 0.0
        %3087 = vmatpush1.msra.mxu0 0.0
        %3088 = vmatprep.subr.mxu0 0.0
        %3089 = vmatpush1.msra.mxu0 0.0
        %3090 = vmatprep.subr.mxu0 0.0
        %3091 = vmatpush1.msra.mxu0 0.0
        %3092 = vmatprep.subr.mxu0 0.0
        %3093 = vmatpush1.msra.mxu0 0.0
        %3094 = vmatprep.subr.mxu0 0.0
        %3095 = vmatpush1.msra.mxu0 0.0
        %3096 = vmatprep.subr.mxu0 0.0
        %3097 = vmatpush1.msra.mxu0 0.0
        %3098 = vmatprep.subr.mxu0 0.0
        %3099 = vmatpush1.msra.mxu0 0.0
        %3100 = vmatprep.subr.mxu0 0.0
        %3101 = vmatpush1.msra.mxu0 0.0
        %3102 = vmatprep.subr.mxu0 0.0
        %3103 = vmatpush1.msra.mxu0 0.0
        %3104 = vmatprep.subr.mxu0 0.0
        %3105 = vmatpush1.msra.mxu0 0.0
        %3106 = vmatprep.subr.mxu0 0.0
        %3107 = vmatpush1.msra.mxu0 0.0
        %3108 = vmatprep.subr.mxu0 0.0
        %3109 = vmatpush1.msra.mxu0 0.0
        %3110 = vmatprep.subr.mxu0 0.0
        %3111 = vmatpush1.msra.mxu0 0.0
        %3112 = vmatprep.subr.mxu0 0.0
        %3113 = vmatpush1.msra.mxu0 0.0
        %3114 = vmatprep.subr.mxu0 0.0
        %3115 = vmatpush1.msra.mxu0 0.0
        %3116 = vmatprep.subr.mxu0 0.0
        %3117 = vmatpush1.msra.mxu0 0.0
        %3118 = vmatprep.subr.mxu0 0.0
        %3119 = vmatpush1.msra.mxu0 0.0
        %3120 = vmatprep.subr.mxu0 0.0
        %3121 = vmatpush1.msra.mxu0 0.0
        %3122 = vmatprep.subr.mxu0 0.0
        %3123 = vmatpush1.msra.mxu0 0.0
        %3124 = vmatprep.mubr.f32.mxu0 0.0
        %3125 = vmatmul.mubr.f32.gmra.mrb[0].mxu0 %v2827
        %v3126 = vpop.f32.mrb[0].mxu0
        %v3127 = vadd.f32 %v3022, %v3126
        %v3128 = vpop.f32.mrb[0].mxu0
        %3129 = vmatprep.mubr.f32.mxu0 0.0
        %3130 = vmatmul.mubr.f32.gmra.mrb[0].mxu0 %v2830
        %v3131 = vpop.f32.mrb[0].mxu0
        %v3132 = vadd.f32 %v3027, %v3131
        %v3133 = vpop.f32.mrb[0].mxu0
        %3134 = vmatprep.mubr.f32.mxu0 0.0
        %3135 = vmatmul.mubr.f32.gmra.mrb[0].mxu0 %v2833
        %v3136 = vpop.f32.mrb[0].mxu0
        %v3137 = vadd.f32 %v3032, %v3136
        %v3138 = vpop.f32.mrb[0].mxu0
        %3139 = vmatprep.mubr.f32.mxu0 0.0
        %3140 = vmatmul.mubr.f32.gmra.mrb[0].mxu0 %v2836
        %v3141 = vpop.f32.mrb[0].mxu0
        %v3142 = vadd.f32 %v3037, %v3141
        %v3143 = vpop.f32.mrb[0].mxu0
        %3144 = vmatprep.mubr.f32.mxu0 0.0
        %3145 = vmatmul.mubr.f32.gmra.mrb[0].mxu0 %v2839
        %v3146 = vpop.f32.mrb[0].mxu0
        %v3147 = vadd.f32 %v3042, %v3146
        %v3148 = vpop.f32.mrb[0].mxu0
        %3149 = vmatprep.mubr.f32.mxu0 0.0
        %3150 = vmatmul.mubr.f32.gmra.mrb[0].mxu0 %v2842
        %v3151 = vpop.f32.mrb[0].mxu0
        %v3152 = vadd.f32 %v3047, %v3151
        %v3153 = vpop.f32.mrb[0].mxu0
        %3154 = vmatprep.mubr.f32.mxu0 0.0
        %3155 = vmatmul.mubr.f32.gmra.mrb[0].mxu0 %v2845
        %v3156 = vpop.f32.mrb[0].mxu0
        %v3157 = vadd.f32 %v3052, %v3156
        %v3158 = vpop.f32.mrb[0].mxu0
        %3159 = vmatprep.mubr.f32.mxu0 0.0
        %3160 = vmatmul.mubr.f32.gmra.mrb[0].mxu0 %v2848
        %v3161 = vpop.f32.mrb[0].mxu0
        %v3162 = vadd.f32 %v3057, %v3161
        %v3163 = vpop.f32.mrb[0].mxu0
        %3164 = vdwg.mxu0
        %vm3165 = vcmp.gt.f32.partialorder %v3127, 0.0
        %vm3166 = vcmp.gt.f32.partialorder %v3132, 0.0
        %vm3167 = vcmp.gt.f32.partialorder %v3137, 0.0
        %vm3168 = vcmp.gt.f32.partialorder %v3142, 0.0
        %vm3169 = vcmp.gt.f32.partialorder %v3147, 0.0
        %vm3170 = vcmp.gt.f32.partialorder %v3152, 0.0
        %vm3171 = vcmp.gt.f32.partialorder %v3157, 0.0
        %vm3172 = vcmp.gt.f32.partialorder %v3162, 0.0
        %v3173 = vmul.f32 %v3127, 0.01
        %v3174 = vmul.f32 %v3132, 0.01
        %v3175 = vmul.f32 %v3137, 0.01
        %v3176 = vmul.f32 %v3142, 0.01
        %v3177 = vmul.f32 %v3147, 0.01
        %v3178 = vmul.f32 %v3152, 0.01
        %v3179 = vmul.f32 %v3157, 0.01
        %v3180 = vmul.f32 %v3162, 0.01
        %v3181 = vsel %vm3165, %v3127, %v3173
        %v3182 = vsel %vm3166, %v3132, %v3174
        %v3183 = vsel %vm3167, %v3137, %v3175
        %v3184 = vsel %vm3168, %v3142, %v3176
        %v3185 = vsel %vm3169, %v3147, %v3177
        %v3186 = vsel %vm3170, %v3152, %v3178
        %v3187 = vsel %vm3171, %v3157, %v3179
        %v3188 = vsel %vm3172, %v3162, %v3180
        %v3189 = vadd.f32 %v3181, %v1813
        %v3190 = vadd.f32 %v3182, %v1814
        %v3191 = vadd.f32 %v3183, %v1815
        %v3192 = vadd.f32 %v3184, %v1816
        %v3193 = vadd.f32 %v3185, %v1817
        %v3194 = vadd.f32 %v3186, %v1818
        %v3195 = vadd.f32 %v3187, %v1819
        %v3196 = vadd.f32 %v3188, %v1820
        %vm3197 = vcmp.gt.f32.partialorder %v3189, 0.0
        %vm3198 = vcmp.gt.f32.partialorder %v3190, 0.0
        %vm3199 = vcmp.gt.f32.partialorder %v3191, 0.0
        %vm3200 = vcmp.gt.f32.partialorder %v3192, 0.0
        %vm3201 = vcmp.gt.f32.partialorder %v3193, 0.0
        %vm3202 = vcmp.gt.f32.partialorder %v3194, 0.0
        %vm3203 = vcmp.gt.f32.partialorder %v3195, 0.0
        %vm3204 = vcmp.gt.f32.partialorder %v3196, 0.0
        %v3205 = vmul.f32 %v3189, 0.01
        %v3206 = vmul.f32 %v3190, 0.01
        %v3207 = vmul.f32 %v3191, 0.01
        %v3208 = vmul.f32 %v3192, 0.01
        %v3209 = vmul.f32 %v3193, 0.01
        %v3210 = vmul.f32 %v3194, 0.01
        %v3211 = vmul.f32 %v3195, 0.01
        %v3212 = vmul.f32 %v3196, 0.01
        %v3213 = vsel %vm3197, %v3189, %v3205
        %v3214 = vsel %vm3198, %v3190, %v3206
        %v3215 = vsel %vm3199, %v3191, %v3207
        %v3216 = vsel %vm3200, %v3192, %v3208
        %v3217 = vsel %vm3201, %v3193, %v3209
        %v3218 = vsel %vm3202, %v3194, %v3210
        %v3219 = vsel %vm3203, %v3195, %v3211
        %v3220 = vsel %vm3204, %v3196, %v3212
        %3221 = vst.msk [vmem:[%s421 + $0x1] sm:$0xff] %vm223, %v3213
        %3222 = vst.msk [vmem:[%s421 + $0x11] sm:$0xff] %vm223, %v3214
        %3223 = vst.msk [vmem:[%s421 + $0x21] sm:$0xff] %vm223, %v3215
        %3224 = vst.msk [vmem:[%s421 + $0x31] sm:$0xff] %vm223, %v3216
        %3225 = vst.msk [vmem:[%s421 + $0x41] sm:$0xff] %vm223, %v3217
        %3226 = vst.msk [vmem:[%s421 + $0x51] sm:$0xff] %vm223, %v3218
        %3227 = vst.msk [vmem:[%s421 + $0x61] sm:$0xff] %vm223, %v3219
        %3228 = vst.msk [vmem:[%s421 + $0x71] sm:$0xff] %vm223, %v3220
        %v3229 = vld [vmem:[#allocation2] sm:$0xff]
        %v3230 = vld [vmem:[#allocation2 + $0x10] sm:$0xff]
        %v3231 = vld [vmem:[#allocation2 + $0x20] sm:$0xff]
        %v3232 = vld [vmem:[#allocation2 + $0x30] sm:$0xff]
        %v3233 = vld [vmem:[#allocation2 + $0x40] sm:$0xff]
        %v3234 = vld [vmem:[#allocation2 + $0x50] sm:$0xff]
        %v3235 = vld [vmem:[#allocation2 + $0x60] sm:$0xff]
        %v3236 = vld [vmem:[#allocation2 + $0x70] sm:$0xff]
        %v3237 = vld [vmem:[#allocation2 + $0x1] sm:$0xff]
        %v3238 = vld [vmem:[#allocation2 + $0x11] sm:$0xff]
        %v3239 = vld [vmem:[#allocation2 + $0x21] sm:$0xff]
        %v3240 = vld [vmem:[#allocation2 + $0x31] sm:$0xff]
        %v3241 = vld [vmem:[#allocation2 + $0x41] sm:$0xff]
        %v3242 = vld [vmem:[#allocation2 + $0x51] sm:$0xff]
        %v3243 = vld [vmem:[#allocation2 + $0x61] sm:$0xff]
        %v3244 = vld [vmem:[#allocation2 + $0x71] sm:$0xff]
        %v3245 = vld [vmem:[#allocation2 + $0x2] sm:$0xff]
        %v3246 = vld [vmem:[#allocation2 + $0x12] sm:$0xff]
        %v3247 = vld [vmem:[#allocation2 + $0x22] sm:$0xff]
        %v3248 = vld [vmem:[#allocation2 + $0x32] sm:$0xff]
        %v3249 = vld [vmem:[#allocation2 + $0x42] sm:$0xff]
        %v3250 = vld [vmem:[#allocation2 + $0x52] sm:$0xff]
        %v3251 = vld [vmem:[#allocation2 + $0x62] sm:$0xff]
        %v3252 = vld [vmem:[#allocation2 + $0x72] sm:$0xff]
        %v3253 = vld [vmem:[%s421] sm:$0xff]
        %v3254 = vld [vmem:[%s421 + $0x10] sm:$0xff]
        %v3255 = vld [vmem:[%s421 + $0x20] sm:$0xff]
        %v3256 = vld [vmem:[%s421 + $0x30] sm:$0xff]
        %v3257 = vld [vmem:[%s421 + $0x40] sm:$0xff]
        %v3258 = vld [vmem:[%s421 + $0x50] sm:$0xff]
        %v3259 = vld [vmem:[%s421 + $0x60] sm:$0xff]
        %v3260 = vld [vmem:[%s421 + $0x70] sm:$0xff]
        %v3261 = vld [vmem:[%s421 + $0x1] sm:$0xff]
        %v3262 = vld [vmem:[%s421 + $0x11] sm:$0xff]
        %v3263 = vld [vmem:[%s421 + $0x21] sm:$0xff]
        %v3264 = vld [vmem:[%s421 + $0x31] sm:$0xff]
        %v3265 = vld [vmem:[%s421 + $0x41] sm:$0xff]
        %v3266 = vld [vmem:[%s421 + $0x51] sm:$0xff]
        %v3267 = vld [vmem:[%s421 + $0x61] sm:$0xff]
        %v3268 = vld [vmem:[%s421 + $0x71] sm:$0xff]
        %v3269 = vld [vmem:[%s421 + $0x2] sm:$0xff]
        %v3270 = vld [vmem:[%s421 + $0x12] sm:$0xff]
        %v3271 = vld [vmem:[%s421 + $0x22] sm:$0xff]
        %v3272 = vld [vmem:[%s421 + $0x32] sm:$0xff]
        %v3273 = vld [vmem:[%s421 + $0x42] sm:$0xff]
        %v3274 = vld [vmem:[%s421 + $0x52] sm:$0xff]
        %v3275 = vld [vmem:[%s421 + $0x62] sm:$0xff]
        %v3276 = vld [vmem:[%s421 + $0x72] sm:$0xff]
        %v3277 = vld [vmem:[%s478] sm:$0xff]
        %v3278 = vld [vmem:[%s478 + $0x10] sm:$0xff]
        %v3279 = vld [vmem:[%s478 + $0x20] sm:$0xff]
        %v3280 = vld [vmem:[%s478 + $0x30] sm:$0xff]
        %v3281 = vld [vmem:[%s478 + $0x40] sm:$0xff]
        %v3282 = vld [vmem:[%s478 + $0x50] sm:$0xff]
        %v3283 = vld [vmem:[%s478 + $0x60] sm:$0xff]
        %v3284 = vld [vmem:[%s478 + $0x70] sm:$0xff]
        %v3285 = vld [vmem:[%s478 + $0x1] sm:$0xff]
        %v3286 = vld [vmem:[%s478 + $0x11] sm:$0xff]
        %v3287 = vld [vmem:[%s478 + $0x21] sm:$0xff]
        %v3288 = vld [vmem:[%s478 + $0x31] sm:$0xff]
        %v3289 = vld [vmem:[%s478 + $0x41] sm:$0xff]
        %v3290 = vld [vmem:[%s478 + $0x51] sm:$0xff]
        %v3291 = vld [vmem:[%s478 + $0x61] sm:$0xff]
        %v3292 = vld [vmem:[%s478 + $0x71] sm:$0xff]
        %v3293 = vld [vmem:[%s478 + $0x2] sm:$0xff]
        %v3294 = vld [vmem:[%s478 + $0x12] sm:$0xff]
        %v3295 = vld [vmem:[%s478 + $0x22] sm:$0xff]
        %v3296 = vld [vmem:[%s478 + $0x32] sm:$0xff]
        %v3297 = vld [vmem:[%s478 + $0x42] sm:$0xff]
        %v3298 = vld [vmem:[%s478 + $0x52] sm:$0xff]
        %v3299 = vld [vmem:[%s478 + $0x62] sm:$0xff]
        %v3300 = vld [vmem:[%s478 + $0x72] sm:$0xff]
        %3309 = vrot.lane.b32.xlu0 %v3237, 64
        %v3310 = vpop.permute.xlu0 %3309
        %3311 = vrot.lane.b32.xlu0 %v3238, 64
        %v3312 = vpop.permute.xlu0 %3311
        %3313 = vrot.lane.b32.xlu0 %v3239, 64
        %v3314 = vpop.permute.xlu0 %3313
        %3315 = vrot.lane.b32.xlu0 %v3240, 64
        %v3316 = vpop.permute.xlu0 %3315
        %3317 = vrot.lane.b32.xlu0 %v3241, 64
        %v3318 = vpop.permute.xlu0 %3317
        %3319 = vrot.lane.b32.xlu0 %v3242, 64
        %v3320 = vpop.permute.xlu0 %3319
        %3321 = vrot.lane.b32.xlu0 %v3243, 64
        %v3322 = vpop.permute.xlu0 %3321
        %3323 = vrot.lane.b32.xlu0 %v3244, 64
        %v3324 = vpop.permute.xlu0 %3323
        %3341 = vrot.lane.b32.xlu0 %v3253, 64
        %v3342 = vpop.permute.xlu0 %3341
        %3343 = vrot.lane.b32.xlu0 %v3254, 64
        %v3344 = vpop.permute.xlu0 %3343
        %3345 = vrot.lane.b32.xlu0 %v3255, 64
        %v3346 = vpop.permute.xlu0 %3345
        %3347 = vrot.lane.b32.xlu0 %v3256, 64
        %v3348 = vpop.permute.xlu0 %3347
        %3349 = vrot.lane.b32.xlu0 %v3257, 64
        %v3350 = vpop.permute.xlu0 %3349
        %3351 = vrot.lane.b32.xlu0 %v3258, 64
        %v3352 = vpop.permute.xlu0 %3351
        %3353 = vrot.lane.b32.xlu0 %v3259, 64
        %v3354 = vpop.permute.xlu0 %3353
        %3355 = vrot.lane.b32.xlu0 %v3260, 64
        %v3356 = vpop.permute.xlu0 %3355
        %3373 = vrot.lane.b32.xlu0 %v3269, 64
        %v3374 = vpop.permute.xlu0 %3373
        %3375 = vrot.lane.b32.xlu0 %v3270, 64
        %v3376 = vpop.permute.xlu0 %3375
        %3377 = vrot.lane.b32.xlu0 %v3271, 64
        %v3378 = vpop.permute.xlu0 %3377
        %3379 = vrot.lane.b32.xlu0 %v3272, 64
        %v3380 = vpop.permute.xlu0 %3379
        %3381 = vrot.lane.b32.xlu0 %v3273, 64
        %v3382 = vpop.permute.xlu0 %3381
        %3383 = vrot.lane.b32.xlu0 %v3274, 64
        %v3384 = vpop.permute.xlu0 %3383
        %3385 = vrot.lane.b32.xlu0 %v3275, 64
        %v3386 = vpop.permute.xlu0 %3385
        %3387 = vrot.lane.b32.xlu0 %v3276, 64
        %v3388 = vpop.permute.xlu0 %3387
        %3405 = vrot.lane.b32.xlu0 %v3285, 64
        %v3406 = vpop.permute.xlu0 %3405
        %3407 = vrot.lane.b32.xlu0 %v3286, 64
        %v3408 = vpop.permute.xlu0 %3407
        %3409 = vrot.lane.b32.xlu0 %v3287, 64
        %v3410 = vpop.permute.xlu0 %3409
        %3411 = vrot.lane.b32.xlu0 %v3288, 64
        %v3412 = vpop.permute.xlu0 %3411
        %3413 = vrot.lane.b32.xlu0 %v3289, 64
        %v3414 = vpop.permute.xlu0 %3413
        %3415 = vrot.lane.b32.xlu0 %v3290, 64
        %v3416 = vpop.permute.xlu0 %3415
        %3417 = vrot.lane.b32.xlu0 %v3291, 64
        %v3418 = vpop.permute.xlu0 %3417
        %3419 = vrot.lane.b32.xlu0 %v3292, 64
        %v3420 = vpop.permute.xlu0 %3419
        %v3429 = vsel %vm223, %v3229, %v3310
        %v3430 = vsel %vm223, %v3230, %v3312
        %v3431 = vsel %vm223, %v3231, %v3314
        %v3432 = vsel %vm223, %v3232, %v3316
        %v3433 = vsel %vm223, %v3233, %v3318
        %v3434 = vsel %vm223, %v3234, %v3320
        %v3435 = vsel %vm223, %v3235, %v3322
        %v3436 = vsel %vm223, %v3236, %v3324
        %v3437 = vsel %vm223, %v3245, %v3342
        %v3438 = vsel %vm223, %v3246, %v3344
        %v3439 = vsel %vm223, %v3247, %v3346
        %v3440 = vsel %vm223, %v3248, %v3348
        %v3441 = vsel %vm223, %v3249, %v3350
        %v3442 = vsel %vm223, %v3250, %v3352
        %v3443 = vsel %vm223, %v3251, %v3354
        %v3444 = vsel %vm223, %v3252, %v3356
        %v3445 = vsel %vm223, %v3261, %v3374
        %v3446 = vsel %vm223, %v3262, %v3376
        %v3447 = vsel %vm223, %v3263, %v3378
        %v3448 = vsel %vm223, %v3264, %v3380
        %v3449 = vsel %vm223, %v3265, %v3382
        %v3450 = vsel %vm223, %v3266, %v3384
        %v3451 = vsel %vm223, %v3267, %v3386
        %v3452 = vsel %vm223, %v3268, %v3388
        %v3453 = vsel %vm223, %v3277, %v3406
        %v3454 = vsel %vm223, %v3278, %v3408
        %v3455 = vsel %vm223, %v3279, %v3410
        %v3456 = vsel %vm223, %v3280, %v3412
        %v3457 = vsel %vm223, %v3281, %v3414
        %v3458 = vsel %vm223, %v3282, %v3416
        %v3459 = vsel %vm223, %v3283, %v3418
        %v3460 = vsel %vm223, %v3284, %v3420
        %s3461 = scalar_lea.vmem %s3, 2304
        %v3462 = vld [vmem:[%s3461] sm:$0xff]
        %v3463 = vld [vmem:[%s3461 + $0x8] sm:$0xff]
        %v3464 = vld [vmem:[%s3461 + $0x10] sm:$0xff]
        %v3465 = vld [vmem:[%s3461 + $0x18] sm:$0xff]
        %v3466 = vld [vmem:[%s3461 + $0x20] sm:$0xff]
        %v3467 = vld [vmem:[%s3461 + $0x28] sm:$0xff]
        %v3468 = vld [vmem:[%s3461 + $0x30] sm:$0xff]
        %v3469 = vld [vmem:[%s3461 + $0x38] sm:$0xff]
        %v3470 = vld [vmem:[%s3461 + $0x40] sm:$0xff]
        %v3471 = vld [vmem:[%s3461 + $0x48] sm:$0xff]
        %v3472 = vld [vmem:[%s3461 + $0x50] sm:$0xff]
        %v3473 = vld [vmem:[%s3461 + $0x58] sm:$0xff]
        %v3474 = vld [vmem:[%s3461 + $0x60] sm:$0xff]
        %v3475 = vld [vmem:[%s3461 + $0x68] sm:$0xff]
        %v3476 = vld [vmem:[%s3461 + $0x70] sm:$0xff]
        %v3477 = vld [vmem:[%s3461 + $0x78] sm:$0xff]
        %v3478 = vld [vmem:[%s3461 + $0x80] sm:$0xff]
        %v3479 = vld [vmem:[%s3461 + $0x88] sm:$0xff]
        %v3480 = vld [vmem:[%s3461 + $0x90] sm:$0xff]
        %v3481 = vld [vmem:[%s3461 + $0x98] sm:$0xff]
        %v3482 = vld [vmem:[%s3461 + $0xa0] sm:$0xff]
        %v3483 = vld [vmem:[%s3461 + $0xa8] sm:$0xff]
        %v3484 = vld [vmem:[%s3461 + $0xb0] sm:$0xff]
        %v3485 = vld [vmem:[%s3461 + $0xb8] sm:$0xff]
        %v3486 = vld [vmem:[%s3461 + $0xc0] sm:$0xff]
        %v3487 = vld [vmem:[%s3461 + $0xc8] sm:$0xff]
        %v3488 = vld [vmem:[%s3461 + $0xd0] sm:$0xff]
        %v3489 = vld [vmem:[%s3461 + $0xd8] sm:$0xff]
        %v3490 = vld [vmem:[%s3461 + $0xe0] sm:$0xff]
        %v3491 = vld [vmem:[%s3461 + $0xe8] sm:$0xff]
        %v3492 = vld [vmem:[%s3461 + $0xf0] sm:$0xff]
        %v3493 = vld [vmem:[%s3461 + $0xf8] sm:$0xff]
        %v3494 = vld [vmem:[%s3461 + $0x100] sm:$0xff]
        %v3495 = vld [vmem:[%s3461 + $0x108] sm:$0xff]
        %v3496 = vld [vmem:[%s3461 + $0x110] sm:$0xff]
        %v3497 = vld [vmem:[%s3461 + $0x118] sm:$0xff]
        %v3498 = vld [vmem:[%s3461 + $0x120] sm:$0xff]
        %v3499 = vld [vmem:[%s3461 + $0x128] sm:$0xff]
        %v3500 = vld [vmem:[%s3461 + $0x130] sm:$0xff]
        %v3501 = vld [vmem:[%s3461 + $0x138] sm:$0xff]
        %v3502 = vld [vmem:[%s3461 + $0x140] sm:$0xff]
        %v3503 = vld [vmem:[%s3461 + $0x148] sm:$0xff]
        %v3504 = vld [vmem:[%s3461 + $0x150] sm:$0xff]
        %v3505 = vld [vmem:[%s3461 + $0x158] sm:$0xff]
        %v3506 = vld [vmem:[%s3461 + $0x160] sm:$0xff]
        %v3507 = vld [vmem:[%s3461 + $0x168] sm:$0xff]
        %v3508 = vld [vmem:[%s3461 + $0x170] sm:$0xff]
        %v3509 = vld [vmem:[%s3461 + $0x178] sm:$0xff]
        %v3510 = vld [vmem:[%s3461 + $0x180] sm:$0xff]
        %v3511 = vld [vmem:[%s3461 + $0x188] sm:$0xff]
        %v3512 = vld [vmem:[%s3461 + $0x190] sm:$0xff]
        %v3513 = vld [vmem:[%s3461 + $0x198] sm:$0xff]
        %v3514 = vld [vmem:[%s3461 + $0x1a0] sm:$0xff]
        %v3515 = vld [vmem:[%s3461 + $0x1a8] sm:$0xff]
        %v3516 = vld [vmem:[%s3461 + $0x1b0] sm:$0xff]
        %v3517 = vld [vmem:[%s3461 + $0x1b8] sm:$0xff]
        %v3518 = vld [vmem:[%s3461 + $0x1c0] sm:$0xff]
        %v3519 = vld [vmem:[%s3461 + $0x1c8] sm:$0xff]
        %v3520 = vld [vmem:[%s3461 + $0x1d0] sm:$0xff]
        %v3521 = vld [vmem:[%s3461 + $0x1d8] sm:$0xff]
        %v3522 = vld [vmem:[%s3461 + $0x1e0] sm:$0xff]
        %v3523 = vld [vmem:[%s3461 + $0x1e8] sm:$0xff]
        %v3524 = vld [vmem:[%s3461 + $0x1f0] sm:$0xff]
        %v3525 = vld [vmem:[%s3461 + $0x1f8] sm:$0xff]
        %v3526 = vld [vmem:[%s3461 + $0x200] sm:$0xff]
        %v3527 = vld [vmem:[%s3461 + $0x208] sm:$0xff]
        %v3528 = vld [vmem:[%s3461 + $0x210] sm:$0xff]
        %v3529 = vld [vmem:[%s3461 + $0x218] sm:$0xff]
        %v3530 = vld [vmem:[%s3461 + $0x220] sm:$0xff]
        %v3531 = vld [vmem:[%s3461 + $0x228] sm:$0xff]
        %v3532 = vld [vmem:[%s3461 + $0x230] sm:$0xff]
        %v3533 = vld [vmem:[%s3461 + $0x238] sm:$0xff]
        %s3534 = scalar_lea.vmem %s4, 4
        %v3535 = vld [vmem:[%s3534] sm:$0x1]
        %v3537 = vlaneseq
        %v3538 = vshrl.u32 %v3537, 7
        %v3539 = vsub.s32 0, %v3538
        %v3540 = vrot.slane %v3535, %v3539
        %v3543 = vsel %vm223, %v3293, 0
        %v3546 = vsel %vm223, %v3294, 0
        %v3549 = vsel %vm223, %v3295, 0
        %v3552 = vsel %vm223, %v3296, 0
        %v3555 = vsel %vm223, %v3297, 0
        %v3558 = vsel %vm223, %v3298, 0
        %v3561 = vsel %vm223, %v3299, 0
        %v3564 = vsel %vm223, %v3300, 0
        %3566 = vmatprep.subr.mxu0 0.0
        %3567 = vmatpush1.msra.mxu0 %v3462
        %3568 = vmatprep.subr.mxu0 0.0
        %3569 = vmatpush1.msra.mxu0 %v3463
        %3570 = vmatprep.subr.mxu0 0.0
        %3571 = vmatpush1.msra.mxu0 %v3464
        %3572 = vmatprep.subr.mxu0 0.0
        %3573 = vmatpush1.msra.mxu0 %v3465
        %3574 = vmatprep.subr.mxu0 0.0
        %3575 = vmatpush1.msra.mxu0 %v3466
        %3576 = vmatprep.subr.mxu0 0.0
        %3577 = vmatpush1.msra.mxu0 %v3467
        %3578 = vmatprep.subr.mxu0 0.0
        %3579 = vmatpush1.msra.mxu0 %v3468
        %3580 = vmatprep.subr.mxu0 0.0
        %3581 = vmatpush1.msra.mxu0 %v3469
        %3582 = vmatprep.subr.mxu0 0.0
        %3583 = vmatpush1.msra.mxu0 %v3470
        %3584 = vmatprep.subr.mxu0 0.0
        %3585 = vmatpush1.msra.mxu0 %v3471
        %3586 = vmatprep.subr.mxu0 0.0
        %3587 = vmatpush1.msra.mxu0 %v3472
        %3588 = vmatprep.subr.mxu0 0.0
        %3589 = vmatpush1.msra.mxu0 %v3473
        %3590 = vmatprep.subr.mxu0 0.0
        %3591 = vmatpush1.msra.mxu0 %v3474
        %3592 = vmatprep.subr.mxu0 0.0
        %3593 = vmatpush1.msra.mxu0 %v3475
        %3594 = vmatprep.subr.mxu0 0.0
        %3595 = vmatpush1.msra.mxu0 %v3476
        %3596 = vmatprep.subr.mxu0 0.0
        %3597 = vmatpush1.msra.mxu0 %v3477
        %3598 = vmatprep.subr.mxu0 0.0
        %3599 = vmatpush1.msra.mxu0 %v3478
        %3600 = vmatprep.subr.mxu0 0.0
        %3601 = vmatpush1.msra.mxu0 %v3479
        %3602 = vmatprep.subr.mxu0 0.0
        %3603 = vmatpush1.msra.mxu0 %v3480
        %3604 = vmatprep.subr.mxu0 0.0
        %3605 = vmatpush1.msra.mxu0 %v3481
        %3606 = vmatprep.subr.mxu0 0.0
        %3607 = vmatpush1.msra.mxu0 %v3482
        %3608 = vmatprep.subr.mxu0 0.0
        %3609 = vmatpush1.msra.mxu0 %v3483
        %3610 = vmatprep.subr.mxu0 0.0
        %3611 = vmatpush1.msra.mxu0 %v3484
        %3612 = vmatprep.subr.mxu0 0.0
        %3613 = vmatpush1.msra.mxu0 %v3485
        %3614 = vmatprep.subr.mxu0 0.0
        %3615 = vmatpush1.msra.mxu0 %v3486
        %3616 = vmatprep.subr.mxu0 0.0
        %3617 = vmatpush1.msra.mxu0 %v3487
        %3618 = vmatprep.subr.mxu0 0.0
        %3619 = vmatpush1.msra.mxu0 %v3488
        %3620 = vmatprep.subr.mxu0 0.0
        %3621 = vmatpush1.msra.mxu0 %v3489
        %3622 = vmatprep.subr.mxu0 0.0
        %3623 = vmatpush1.msra.mxu0 %v3490
        %3624 = vmatprep.subr.mxu0 0.0
        %3625 = vmatpush1.msra.mxu0 %v3491
        %3626 = vmatprep.subr.mxu0 0.0
        %3627 = vmatpush1.msra.mxu0 %v3492
        %3628 = vmatprep.subr.mxu0 0.0
        %3629 = vmatpush1.msra.mxu0 %v3493
        %3630 = vmatprep.mubr.f32.mxu0 %v3437
        %3631 = vmatmul.mubr.f32.gmra.mrb[0].mxu0 %v3429
        %v3632 = vpop.f32.mrb[0].mxu0
        %v3633 = vadd.f32 %v3540, %v3632
        %v3634 = vpop.f32.mrb[0].mxu0
        %3635 = vmatprep.mubr.f32.mxu0 %v3438
        %3636 = vmatmul.mubr.f32.gmra.mrb[0].mxu0 %v3430
        %v3637 = vpop.f32.mrb[0].mxu0
        %v3638 = vadd.f32 %v3540, %v3637
        %v3639 = vpop.f32.mrb[0].mxu0
        %3640 = vmatprep.mubr.f32.mxu0 %v3439
        %3641 = vmatmul.mubr.f32.gmra.mrb[0].mxu0 %v3431
        %v3642 = vpop.f32.mrb[0].mxu0
        %v3643 = vadd.f32 %v3540, %v3642
        %v3644 = vpop.f32.mrb[0].mxu0
        %3645 = vmatprep.mubr.f32.mxu0 %v3440
        %3646 = vmatmul.mubr.f32.gmra.mrb[0].mxu0 %v3432
        %v3647 = vpop.f32.mrb[0].mxu0
        %v3648 = vadd.f32 %v3540, %v3647
        %v3649 = vpop.f32.mrb[0].mxu0
        %3650 = vmatprep.mubr.f32.mxu0 %v3441
        %3651 = vmatmul.mubr.f32.gmra.mrb[0].mxu0 %v3433
        %v3652 = vpop.f32.mrb[0].mxu0
        %v3653 = vadd.f32 %v3540, %v3652
        %v3654 = vpop.f32.mrb[0].mxu0
        %3655 = vmatprep.mubr.f32.mxu0 %v3442
        %3656 = vmatmul.mubr.f32.gmra.mrb[0].mxu0 %v3434
        %v3657 = vpop.f32.mrb[0].mxu0
        %v3658 = vadd.f32 %v3540, %v3657
        %v3659 = vpop.f32.mrb[0].mxu0
        %3660 = vmatprep.mubr.f32.mxu0 %v3443
        %3661 = vmatmul.mubr.f32.gmra.mrb[0].mxu0 %v3435
        %v3662 = vpop.f32.mrb[0].mxu0
        %v3663 = vadd.f32 %v3540, %v3662
        %v3664 = vpop.f32.mrb[0].mxu0
        %3665 = vmatprep.mubr.f32.mxu0 %v3444
        %3666 = vmatmul.mubr.f32.gmra.mrb[0].mxu0 %v3436
        %v3667 = vpop.f32.mrb[0].mxu0
        %v3668 = vadd.f32 %v3540, %v3667
        %v3669 = vpop.f32.mrb[0].mxu0
        %3670 = vdwg.mxu0
        %3671 = vmatprep.subr.mxu0 0.0
        %3672 = vmatpush1.msra.mxu0 %v3494
        %3673 = vmatprep.subr.mxu0 0.0
        %3674 = vmatpush1.msra.mxu0 %v3495
        %3675 = vmatprep.subr.mxu0 0.0
        %3676 = vmatpush1.msra.mxu0 %v3496
        %3677 = vmatprep.subr.mxu0 0.0
        %3678 = vmatpush1.msra.mxu0 %v3497
        %3679 = vmatprep.subr.mxu0 0.0
        %3680 = vmatpush1.msra.mxu0 %v3498
        %3681 = vmatprep.subr.mxu0 0.0
        %3682 = vmatpush1.msra.mxu0 %v3499
        %3683 = vmatprep.subr.mxu0 0.0
        %3684 = vmatpush1.msra.mxu0 %v3500
        %3685 = vmatprep.subr.mxu0 0.0
        %3686 = vmatpush1.msra.mxu0 %v3501
        %3687 = vmatprep.subr.mxu0 0.0
        %3688 = vmatpush1.msra.mxu0 %v3502
        %3689 = vmatprep.subr.mxu0 0.0
        %3690 = vmatpush1.msra.mxu0 %v3503
        %3691 = vmatprep.subr.mxu0 0.0
        %3692 = vmatpush1.msra.mxu0 %v3504
        %3693 = vmatprep.subr.mxu0 0.0
        %3694 = vmatpush1.msra.mxu0 %v3505
        %3695 = vmatprep.subr.mxu0 0.0
        %3696 = vmatpush1.msra.mxu0 %v3506
        %3697 = vmatprep.subr.mxu0 0.0
        %3698 = vmatpush1.msra.mxu0 %v3507
        %3699 = vmatprep.subr.mxu0 0.0
        %3700 = vmatpush1.msra.mxu0 %v3508
        %3701 = vmatprep.subr.mxu0 0.0
        %3702 = vmatpush1.msra.mxu0 %v3509
        %3703 = vmatprep.subr.mxu0 0.0
        %3704 = vmatpush1.msra.mxu0 %v3510
        %3705 = vmatprep.subr.mxu0 0.0
        %3706 = vmatpush1.msra.mxu0 %v3511
        %3707 = vmatprep.subr.mxu0 0.0
        %3708 = vmatpush1.msra.mxu0 %v3512
        %3709 = vmatprep.subr.mxu0 0.0
        %3710 = vmatpush1.msra.mxu0 %v3513
        %3711 = vmatprep.subr.mxu0 0.0
        %3712 = vmatpush1.msra.mxu0 %v3514
        %3713 = vmatprep.subr.mxu0 0.0
        %3714 = vmatpush1.msra.mxu0 %v3515
        %3715 = vmatprep.subr.mxu0 0.0
        %3716 = vmatpush1.msra.mxu0 %v3516
        %3717 = vmatprep.subr.mxu0 0.0
        %3718 = vmatpush1.msra.mxu0 %v3517
        %3719 = vmatprep.subr.mxu0 0.0
        %3720 = vmatpush1.msra.mxu0 %v3518
        %3721 = vmatprep.subr.mxu0 0.0
        %3722 = vmatpush1.msra.mxu0 %v3519
        %3723 = vmatprep.subr.mxu0 0.0
        %3724 = vmatpush1.msra.mxu0 %v3520
        %3725 = vmatprep.subr.mxu0 0.0
        %3726 = vmatpush1.msra.mxu0 %v3521
        %3727 = vmatprep.subr.mxu0 0.0
        %3728 = vmatpush1.msra.mxu0 %v3522
        %3729 = vmatprep.subr.mxu0 0.0
        %3730 = vmatpush1.msra.mxu0 %v3523
        %3731 = vmatprep.subr.mxu0 0.0
        %3732 = vmatpush1.msra.mxu0 %v3524
        %3733 = vmatprep.subr.mxu0 0.0
        %3734 = vmatpush1.msra.mxu0 %v3525
        %3735 = vmatprep.mubr.f32.mxu0 %v3453
        %3736 = vmatmul.mubr.f32.gmra.mrb[0].mxu0 %v3445
        %v3737 = vpop.f32.mrb[0].mxu0
        %v3738 = vadd.f32 %v3633, %v3737
        %v3739 = vpop.f32.mrb[0].mxu0
        %3740 = vmatprep.mubr.f32.mxu0 %v3454
        %3741 = vmatmul.mubr.f32.gmra.mrb[0].mxu0 %v3446
        %v3742 = vpop.f32.mrb[0].mxu0
        %v3743 = vadd.f32 %v3638, %v3742
        %v3744 = vpop.f32.mrb[0].mxu0
        %3745 = vmatprep.mubr.f32.mxu0 %v3455
        %3746 = vmatmul.mubr.f32.gmra.mrb[0].mxu0 %v3447
        %v3747 = vpop.f32.mrb[0].mxu0
        %v3748 = vadd.f32 %v3643, %v3747
        %v3749 = vpop.f32.mrb[0].mxu0
        %3750 = vmatprep.mubr.f32.mxu0 %v3456
        %3751 = vmatmul.mubr.f32.gmra.mrb[0].mxu0 %v3448
        %v3752 = vpop.f32.mrb[0].mxu0
        %v3753 = vadd.f32 %v3648, %v3752
        %v3754 = vpop.f32.mrb[0].mxu0
        %3755 = vmatprep.mubr.f32.mxu0 %v3457
        %3756 = vmatmul.mubr.f32.gmra.mrb[0].mxu0 %v3449
        %v3757 = vpop.f32.mrb[0].mxu0
        %v3758 = vadd.f32 %v3653, %v3757
        %v3759 = vpop.f32.mrb[0].mxu0
        %3760 = vmatprep.mubr.f32.mxu0 %v3458
        %3761 = vmatmul.mubr.f32.gmra.mrb[0].mxu0 %v3450
        %v3762 = vpop.f32.mrb[0].mxu0
        %v3763 = vadd.f32 %v3658, %v3762
        %v3764 = vpop.f32.mrb[0].mxu0
        %3765 = vmatprep.mubr.f32.mxu0 %v3459
        %3766 = vmatmul.mubr.f32.gmra.mrb[0].mxu0 %v3451
        %v3767 = vpop.f32.mrb[0].mxu0
        %v3768 = vadd.f32 %v3663, %v3767
        %v3769 = vpop.f32.mrb[0].mxu0
        %3770 = vmatprep.mubr.f32.mxu0 %v3460
        %3771 = vmatmul.mubr.f32.gmra.mrb[0].mxu0 %v3452
        %v3772 = vpop.f32.mrb[0].mxu0
        %v3773 = vadd.f32 %v3668, %v3772
        %v3774 = vpop.f32.mrb[0].mxu0
        %3775 = vdwg.mxu0
        %3776 = vmatprep.subr.mxu0 0.0
        %3777 = vmatpush1.msra.mxu0 %v3526
        %3778 = vmatprep.subr.mxu0 0.0
        %3779 = vmatpush1.msra.mxu0 %v3527
        %3780 = vmatprep.subr.mxu0 0.0
        %3781 = vmatpush1.msra.mxu0 %v3528
        %3782 = vmatprep.subr.mxu0 0.0
        %3783 = vmatpush1.msra.mxu0 %v3529
        %3784 = vmatprep.subr.mxu0 0.0
        %3785 = vmatpush1.msra.mxu0 %v3530
        %3786 = vmatprep.subr.mxu0 0.0
        %3787 = vmatpush1.msra.mxu0 %v3531
        %3788 = vmatprep.subr.mxu0 0.0
        %3789 = vmatpush1.msra.mxu0 %v3532
        %3790 = vmatprep.subr.mxu0 0.0
        %3791 = vmatpush1.msra.mxu0 %v3533
        %3792 = vmatprep.subr.mxu0 0.0
        %3793 = vmatpush1.msra.mxu0 0.0
        %3794 = vmatprep.subr.mxu0 0.0
        %3795 = vmatpush1.msra.mxu0 0.0
        %3796 = vmatprep.subr.mxu0 0.0
        %3797 = vmatpush1.msra.mxu0 0.0
        %3798 = vmatprep.subr.mxu0 0.0
        %3799 = vmatpush1.msra.mxu0 0.0
        %3800 = vmatprep.subr.mxu0 0.0
        %3801 = vmatpush1.msra.mxu0 0.0
        %3802 = vmatprep.subr.mxu0 0.0
        %3803 = vmatpush1.msra.mxu0 0.0
        %3804 = vmatprep.subr.mxu0 0.0
        %3805 = vmatpush1.msra.mxu0 0.0
        %3806 = vmatprep.subr.mxu0 0.0
        %3807 = vmatpush1.msra.mxu0 0.0
        %3808 = vmatprep.subr.mxu0 0.0
        %3809 = vmatpush1.msra.mxu0 0.0
        %3810 = vmatprep.subr.mxu0 0.0
        %3811 = vmatpush1.msra.mxu0 0.0
        %3812 = vmatprep.subr.mxu0 0.0
        %3813 = vmatpush1.msra.mxu0 0.0
        %3814 = vmatprep.subr.mxu0 0.0
        %3815 = vmatpush1.msra.mxu0 0.0
        %3816 = vmatprep.subr.mxu0 0.0
        %3817 = vmatpush1.msra.mxu0 0.0
        %3818 = vmatprep.subr.mxu0 0.0
        %3819 = vmatpush1.msra.mxu0 0.0
        %3820 = vmatprep.subr.mxu0 0.0
        %3821 = vmatpush1.msra.mxu0 0.0
        %3822 = vmatprep.subr.mxu0 0.0
        %3823 = vmatpush1.msra.mxu0 0.0
        %3824 = vmatprep.subr.mxu0 0.0
        %3825 = vmatpush1.msra.mxu0 0.0
        %3826 = vmatprep.subr.mxu0 0.0
        %3827 = vmatpush1.msra.mxu0 0.0
        %3828 = vmatprep.subr.mxu0 0.0
        %3829 = vmatpush1.msra.mxu0 0.0
        %3830 = vmatprep.subr.mxu0 0.0
        %3831 = vmatpush1.msra.mxu0 0.0
        %3832 = vmatprep.subr.mxu0 0.0
        %3833 = vmatpush1.msra.mxu0 0.0
        %3834 = vmatprep.subr.mxu0 0.0
        %3835 = vmatpush1.msra.mxu0 0.0
        %3836 = vmatprep.subr.mxu0 0.0
        %3837 = vmatpush1.msra.mxu0 0.0
        %3838 = vmatprep.subr.mxu0 0.0
        %3839 = vmatpush1.msra.mxu0 0.0
        %3840 = vmatprep.mubr.f32.mxu0 0.0
        %3841 = vmatmul.mubr.f32.gmra.mrb[0].mxu0 %v3543
        %v3842 = vpop.f32.mrb[0].mxu0
        %v3843 = vadd.f32 %v3738, %v3842
        %v3844 = vpop.f32.mrb[0].mxu0
        %3845 = vmatprep.mubr.f32.mxu0 0.0
        %3846 = vmatmul.mubr.f32.gmra.mrb[0].mxu0 %v3546
        %v3847 = vpop.f32.mrb[0].mxu0
        %v3848 = vadd.f32 %v3743, %v3847
        %v3849 = vpop.f32.mrb[0].mxu0
        %3850 = vmatprep.mubr.f32.mxu0 0.0
        %3851 = vmatmul.mubr.f32.gmra.mrb[0].mxu0 %v3549
        %v3852 = vpop.f32.mrb[0].mxu0
        %v3853 = vadd.f32 %v3748, %v3852
        %v3854 = vpop.f32.mrb[0].mxu0
        %3855 = vmatprep.mubr.f32.mxu0 0.0
        %3856 = vmatmul.mubr.f32.gmra.mrb[0].mxu0 %v3552
        %v3857 = vpop.f32.mrb[0].mxu0
        %v3858 = vadd.f32 %v3753, %v3857
        %v3859 = vpop.f32.mrb[0].mxu0
        %3860 = vmatprep.mubr.f32.mxu0 0.0
        %3861 = vmatmul.mubr.f32.gmra.mrb[0].mxu0 %v3555
        %v3862 = vpop.f32.mrb[0].mxu0
        %v3863 = vadd.f32 %v3758, %v3862
        %v3864 = vpop.f32.mrb[0].mxu0
        %3865 = vmatprep.mubr.f32.mxu0 0.0
        %3866 = vmatmul.mubr.f32.gmra.mrb[0].mxu0 %v3558
        %v3867 = vpop.f32.mrb[0].mxu0
        %v3868 = vadd.f32 %v3763, %v3867
        %v3869 = vpop.f32.mrb[0].mxu0
        %3870 = vmatprep.mubr.f32.mxu0 0.0
        %3871 = vmatmul.mubr.f32.gmra.mrb[0].mxu0 %v3561
        %v3872 = vpop.f32.mrb[0].mxu0
        %v3873 = vadd.f32 %v3768, %v3872
        %v3874 = vpop.f32.mrb[0].mxu0
        %3875 = vmatprep.mubr.f32.mxu0 0.0
        %3876 = vmatmul.mubr.f32.gmra.mrb[0].mxu0 %v3564
        %v3877 = vpop.f32.mrb[0].mxu0
        %v3878 = vadd.f32 %v3773, %v3877
        %v3879 = vpop.f32.mrb[0].mxu0
        %3880 = vdwg.mxu0
        %vm3881 = vcmp.gt.f32.partialorder %v3843, 0.0
        %vm3882 = vcmp.gt.f32.partialorder %v3848, 0.0
        %vm3883 = vcmp.gt.f32.partialorder %v3853, 0.0
        %vm3884 = vcmp.gt.f32.partialorder %v3858, 0.0
        %vm3885 = vcmp.gt.f32.partialorder %v3863, 0.0
        %vm3886 = vcmp.gt.f32.partialorder %v3868, 0.0
        %vm3887 = vcmp.gt.f32.partialorder %v3873, 0.0
        %vm3888 = vcmp.gt.f32.partialorder %v3878, 0.0
        %v3889 = vmul.f32 %v3843, 0.01
        %v3890 = vmul.f32 %v3848, 0.01
        %v3891 = vmul.f32 %v3853, 0.01
        %v3892 = vmul.f32 %v3858, 0.01
        %v3893 = vmul.f32 %v3863, 0.01
        %v3894 = vmul.f32 %v3868, 0.01
        %v3895 = vmul.f32 %v3873, 0.01
        %v3896 = vmul.f32 %v3878, 0.01
        %v3897 = vsel %vm3881, %v3843, %v3889
        %v3898 = vsel %vm3882, %v3848, %v3890
        %v3899 = vsel %vm3883, %v3853, %v3891
        %v3900 = vsel %vm3884, %v3858, %v3892
        %v3901 = vsel %vm3885, %v3863, %v3893
        %v3902 = vsel %vm3886, %v3868, %v3894
        %v3903 = vsel %vm3887, %v3873, %v3895
        %v3904 = vsel %vm3888, %v3878, %v3896
        %3905 = vst.msk [vmem:[%s421 + $0x1] sm:$0xff] %vm223, %v3897
        %3906 = vst.msk [vmem:[%s421 + $0x11] sm:$0xff] %vm223, %v3898
        %3907 = vst.msk [vmem:[%s421 + $0x21] sm:$0xff] %vm223, %v3899
        %3908 = vst.msk [vmem:[%s421 + $0x31] sm:$0xff] %vm223, %v3900
        %3909 = vst.msk [vmem:[%s421 + $0x41] sm:$0xff] %vm223, %v3901
        %3910 = vst.msk [vmem:[%s421 + $0x51] sm:$0xff] %vm223, %v3902
        %3911 = vst.msk [vmem:[%s421 + $0x61] sm:$0xff] %vm223, %v3903
        %3912 = vst.msk [vmem:[%s421 + $0x71] sm:$0xff] %vm223, %v3904
        %v3913 = vld [vmem:[#allocation2] sm:$0xff]
        %v3914 = vld [vmem:[#allocation2 + $0x10] sm:$0xff]
        %v3915 = vld [vmem:[#allocation2 + $0x20] sm:$0xff]
        %v3916 = vld [vmem:[#allocation2 + $0x30] sm:$0xff]
        %v3917 = vld [vmem:[#allocation2 + $0x40] sm:$0xff]
        %v3918 = vld [vmem:[#allocation2 + $0x50] sm:$0xff]
        %v3919 = vld [vmem:[#allocation2 + $0x60] sm:$0xff]
        %v3920 = vld [vmem:[#allocation2 + $0x70] sm:$0xff]
        %v3921 = vld [vmem:[#allocation2 + $0x1] sm:$0xff]
        %v3922 = vld [vmem:[#allocation2 + $0x11] sm:$0xff]
        %v3923 = vld [vmem:[#allocation2 + $0x21] sm:$0xff]
        %v3924 = vld [vmem:[#allocation2 + $0x31] sm:$0xff]
        %v3925 = vld [vmem:[#allocation2 + $0x41] sm:$0xff]
        %v3926 = vld [vmem:[#allocation2 + $0x51] sm:$0xff]
        %v3927 = vld [vmem:[#allocation2 + $0x61] sm:$0xff]
        %v3928 = vld [vmem:[#allocation2 + $0x71] sm:$0xff]
        %v3929 = vld [vmem:[#allocation2 + $0x2] sm:$0xff]
        %v3930 = vld [vmem:[#allocation2 + $0x12] sm:$0xff]
        %v3931 = vld [vmem:[#allocation2 + $0x22] sm:$0xff]
        %v3932 = vld [vmem:[#allocation2 + $0x32] sm:$0xff]
        %v3933 = vld [vmem:[#allocation2 + $0x42] sm:$0xff]
        %v3934 = vld [vmem:[#allocation2 + $0x52] sm:$0xff]
        %v3935 = vld [vmem:[#allocation2 + $0x62] sm:$0xff]
        %v3936 = vld [vmem:[#allocation2 + $0x72] sm:$0xff]
        %v3937 = vld [vmem:[%s421] sm:$0xff]
        %v3938 = vld [vmem:[%s421 + $0x10] sm:$0xff]
        %v3939 = vld [vmem:[%s421 + $0x20] sm:$0xff]
        %v3940 = vld [vmem:[%s421 + $0x30] sm:$0xff]
        %v3941 = vld [vmem:[%s421 + $0x40] sm:$0xff]
        %v3942 = vld [vmem:[%s421 + $0x50] sm:$0xff]
        %v3943 = vld [vmem:[%s421 + $0x60] sm:$0xff]
        %v3944 = vld [vmem:[%s421 + $0x70] sm:$0xff]
        %v3945 = vld [vmem:[%s421 + $0x1] sm:$0xff]
        %v3946 = vld [vmem:[%s421 + $0x11] sm:$0xff]
        %v3947 = vld [vmem:[%s421 + $0x21] sm:$0xff]
        %v3948 = vld [vmem:[%s421 + $0x31] sm:$0xff]
        %v3949 = vld [vmem:[%s421 + $0x41] sm:$0xff]
        %v3950 = vld [vmem:[%s421 + $0x51] sm:$0xff]
        %v3951 = vld [vmem:[%s421 + $0x61] sm:$0xff]
        %v3952 = vld [vmem:[%s421 + $0x71] sm:$0xff]
        %v3953 = vld [vmem:[%s421 + $0x2] sm:$0xff]
        %v3954 = vld [vmem:[%s421 + $0x12] sm:$0xff]
        %v3955 = vld [vmem:[%s421 + $0x22] sm:$0xff]
        %v3956 = vld [vmem:[%s421 + $0x32] sm:$0xff]
        %v3957 = vld [vmem:[%s421 + $0x42] sm:$0xff]
        %v3958 = vld [vmem:[%s421 + $0x52] sm:$0xff]
        %v3959 = vld [vmem:[%s421 + $0x62] sm:$0xff]
        %v3960 = vld [vmem:[%s421 + $0x72] sm:$0xff]
        %v3961 = vld [vmem:[%s478] sm:$0xff]
        %v3962 = vld [vmem:[%s478 + $0x10] sm:$0xff]
        %v3963 = vld [vmem:[%s478 + $0x20] sm:$0xff]
        %v3964 = vld [vmem:[%s478 + $0x30] sm:$0xff]
        %v3965 = vld [vmem:[%s478 + $0x40] sm:$0xff]
        %v3966 = vld [vmem:[%s478 + $0x50] sm:$0xff]
        %v3967 = vld [vmem:[%s478 + $0x60] sm:$0xff]
        %v3968 = vld [vmem:[%s478 + $0x70] sm:$0xff]
        %v3969 = vld [vmem:[%s478 + $0x1] sm:$0xff]
        %v3970 = vld [vmem:[%s478 + $0x11] sm:$0xff]
        %v3971 = vld [vmem:[%s478 + $0x21] sm:$0xff]
        %v3972 = vld [vmem:[%s478 + $0x31] sm:$0xff]
        %v3973 = vld [vmem:[%s478 + $0x41] sm:$0xff]
        %v3974 = vld [vmem:[%s478 + $0x51] sm:$0xff]
        %v3975 = vld [vmem:[%s478 + $0x61] sm:$0xff]
        %v3976 = vld [vmem:[%s478 + $0x71] sm:$0xff]
        %v3977 = vld [vmem:[%s478 + $0x2] sm:$0xff]
        %v3978 = vld [vmem:[%s478 + $0x12] sm:$0xff]
        %v3979 = vld [vmem:[%s478 + $0x22] sm:$0xff]
        %v3980 = vld [vmem:[%s478 + $0x32] sm:$0xff]
        %v3981 = vld [vmem:[%s478 + $0x42] sm:$0xff]
        %v3982 = vld [vmem:[%s478 + $0x52] sm:$0xff]
        %v3983 = vld [vmem:[%s478 + $0x62] sm:$0xff]
        %v3984 = vld [vmem:[%s478 + $0x72] sm:$0xff]
        %3993 = vrot.lane.b32.xlu0 %v3921, 64
        %v3994 = vpop.permute.xlu0 %3993
        %3995 = vrot.lane.b32.xlu0 %v3922, 64
        %v3996 = vpop.permute.xlu0 %3995
        %3997 = vrot.lane.b32.xlu0 %v3923, 64
        %v3998 = vpop.permute.xlu0 %3997
        %3999 = vrot.lane.b32.xlu0 %v3924, 64
        %v4000 = vpop.permute.xlu0 %3999
        %4001 = vrot.lane.b32.xlu0 %v3925, 64
        %v4002 = vpop.permute.xlu0 %4001
        %4003 = vrot.lane.b32.xlu0 %v3926, 64
        %v4004 = vpop.permute.xlu0 %4003
        %4005 = vrot.lane.b32.xlu0 %v3927, 64
        %v4006 = vpop.permute.xlu0 %4005
        %4007 = vrot.lane.b32.xlu0 %v3928, 64
        %v4008 = vpop.permute.xlu0 %4007
        %4025 = vrot.lane.b32.xlu0 %v3937, 64
        %v4026 = vpop.permute.xlu0 %4025
        %4027 = vrot.lane.b32.xlu0 %v3938, 64
        %v4028 = vpop.permute.xlu0 %4027
        %4029 = vrot.lane.b32.xlu0 %v3939, 64
        %v4030 = vpop.permute.xlu0 %4029
        %4031 = vrot.lane.b32.xlu0 %v3940, 64
        %v4032 = vpop.permute.xlu0 %4031
        %4033 = vrot.lane.b32.xlu0 %v3941, 64
        %v4034 = vpop.permute.xlu0 %4033
        %4035 = vrot.lane.b32.xlu0 %v3942, 64
        %v4036 = vpop.permute.xlu0 %4035
        %4037 = vrot.lane.b32.xlu0 %v3943, 64
        %v4038 = vpop.permute.xlu0 %4037
        %4039 = vrot.lane.b32.xlu0 %v3944, 64
        %v4040 = vpop.permute.xlu0 %4039
        %4057 = vrot.lane.b32.xlu0 %v3953, 64
        %v4058 = vpop.permute.xlu0 %4057
        %4059 = vrot.lane.b32.xlu0 %v3954, 64
        %v4060 = vpop.permute.xlu0 %4059
        %4061 = vrot.lane.b32.xlu0 %v3955, 64
        %v4062 = vpop.permute.xlu0 %4061
        %4063 = vrot.lane.b32.xlu0 %v3956, 64
        %v4064 = vpop.permute.xlu0 %4063
        %4065 = vrot.lane.b32.xlu0 %v3957, 64
        %v4066 = vpop.permute.xlu0 %4065
        %4067 = vrot.lane.b32.xlu0 %v3958, 64
        %v4068 = vpop.permute.xlu0 %4067
        %4069 = vrot.lane.b32.xlu0 %v3959, 64
        %v4070 = vpop.permute.xlu0 %4069
        %4071 = vrot.lane.b32.xlu0 %v3960, 64
        %v4072 = vpop.permute.xlu0 %4071
        %4089 = vrot.lane.b32.xlu0 %v3969, 64
        %v4090 = vpop.permute.xlu0 %4089
        %4091 = vrot.lane.b32.xlu0 %v3970, 64
        %v4092 = vpop.permute.xlu0 %4091
        %4093 = vrot.lane.b32.xlu0 %v3971, 64
        %v4094 = vpop.permute.xlu0 %4093
        %4095 = vrot.lane.b32.xlu0 %v3972, 64
        %v4096 = vpop.permute.xlu0 %4095
        %4097 = vrot.lane.b32.xlu0 %v3973, 64
        %v4098 = vpop.permute.xlu0 %4097
        %4099 = vrot.lane.b32.xlu0 %v3974, 64
        %v4100 = vpop.permute.xlu0 %4099
        %4101 = vrot.lane.b32.xlu0 %v3975, 64
        %v4102 = vpop.permute.xlu0 %4101
        %4103 = vrot.lane.b32.xlu0 %v3976, 64
        %v4104 = vpop.permute.xlu0 %4103
        %v4113 = vsel %vm223, %v3913, %v3994
        %v4114 = vsel %vm223, %v3914, %v3996
        %v4115 = vsel %vm223, %v3915, %v3998
        %v4116 = vsel %vm223, %v3916, %v4000
        %v4117 = vsel %vm223, %v3917, %v4002
        %v4118 = vsel %vm223, %v3918, %v4004
        %v4119 = vsel %vm223, %v3919, %v4006
        %v4120 = vsel %vm223, %v3920, %v4008
        %v4121 = vsel %vm223, %v3929, %v4026
        %v4122 = vsel %vm223, %v3930, %v4028
        %v4123 = vsel %vm223, %v3931, %v4030
        %v4124 = vsel %vm223, %v3932, %v4032
        %v4125 = vsel %vm223, %v3933, %v4034
        %v4126 = vsel %vm223, %v3934, %v4036
        %v4127 = vsel %vm223, %v3935, %v4038
        %v4128 = vsel %vm223, %v3936, %v4040
        %v4129 = vsel %vm223, %v3945, %v4058
        %v4130 = vsel %vm223, %v3946, %v4060
        %v4131 = vsel %vm223, %v3947, %v4062
        %v4132 = vsel %vm223, %v3948, %v4064
        %v4133 = vsel %vm223, %v3949, %v4066
        %v4134 = vsel %vm223, %v3950, %v4068
        %v4135 = vsel %vm223, %v3951, %v4070
        %v4136 = vsel %vm223, %v3952, %v4072
        %v4137 = vsel %vm223, %v3961, %v4090
        %v4138 = vsel %vm223, %v3962, %v4092
        %v4139 = vsel %vm223, %v3963, %v4094
        %v4140 = vsel %vm223, %v3964, %v4096
        %v4141 = vsel %vm223, %v3965, %v4098
        %v4142 = vsel %vm223, %v3966, %v4100
        %v4143 = vsel %vm223, %v3967, %v4102
        %v4144 = vsel %vm223, %v3968, %v4104
        %s4145 = scalar_lea.vmem %s3, 2880
        %v4146 = vld [vmem:[%s4145] sm:$0xff]
        %v4147 = vld [vmem:[%s4145 + $0x8] sm:$0xff]
        %v4148 = vld [vmem:[%s4145 + $0x10] sm:$0xff]
        %v4149 = vld [vmem:[%s4145 + $0x18] sm:$0xff]
        %v4150 = vld [vmem:[%s4145 + $0x20] sm:$0xff]
        %v4151 = vld [vmem:[%s4145 + $0x28] sm:$0xff]
        %v4152 = vld [vmem:[%s4145 + $0x30] sm:$0xff]
        %v4153 = vld [vmem:[%s4145 + $0x38] sm:$0xff]
        %v4154 = vld [vmem:[%s4145 + $0x40] sm:$0xff]
        %v4155 = vld [vmem:[%s4145 + $0x48] sm:$0xff]
        %v4156 = vld [vmem:[%s4145 + $0x50] sm:$0xff]
        %v4157 = vld [vmem:[%s4145 + $0x58] sm:$0xff]
        %v4158 = vld [vmem:[%s4145 + $0x60] sm:$0xff]
        %v4159 = vld [vmem:[%s4145 + $0x68] sm:$0xff]
        %v4160 = vld [vmem:[%s4145 + $0x70] sm:$0xff]
        %v4161 = vld [vmem:[%s4145 + $0x78] sm:$0xff]
        %v4162 = vld [vmem:[%s4145 + $0x80] sm:$0xff]
        %v4163 = vld [vmem:[%s4145 + $0x88] sm:$0xff]
        %v4164 = vld [vmem:[%s4145 + $0x90] sm:$0xff]
        %v4165 = vld [vmem:[%s4145 + $0x98] sm:$0xff]
        %v4166 = vld [vmem:[%s4145 + $0xa0] sm:$0xff]
        %v4167 = vld [vmem:[%s4145 + $0xa8] sm:$0xff]
        %v4168 = vld [vmem:[%s4145 + $0xb0] sm:$0xff]
        %v4169 = vld [vmem:[%s4145 + $0xb8] sm:$0xff]
        %v4170 = vld [vmem:[%s4145 + $0xc0] sm:$0xff]
        %v4171 = vld [vmem:[%s4145 + $0xc8] sm:$0xff]
        %v4172 = vld [vmem:[%s4145 + $0xd0] sm:$0xff]
        %v4173 = vld [vmem:[%s4145 + $0xd8] sm:$0xff]
        %v4174 = vld [vmem:[%s4145 + $0xe0] sm:$0xff]
        %v4175 = vld [vmem:[%s4145 + $0xe8] sm:$0xff]
        %v4176 = vld [vmem:[%s4145 + $0xf0] sm:$0xff]
        %v4177 = vld [vmem:[%s4145 + $0xf8] sm:$0xff]
        %v4178 = vld [vmem:[%s4145 + $0x100] sm:$0xff]
        %v4179 = vld [vmem:[%s4145 + $0x108] sm:$0xff]
        %v4180 = vld [vmem:[%s4145 + $0x110] sm:$0xff]
        %v4181 = vld [vmem:[%s4145 + $0x118] sm:$0xff]
        %v4182 = vld [vmem:[%s4145 + $0x120] sm:$0xff]
        %v4183 = vld [vmem:[%s4145 + $0x128] sm:$0xff]
        %v4184 = vld [vmem:[%s4145 + $0x130] sm:$0xff]
        %v4185 = vld [vmem:[%s4145 + $0x138] sm:$0xff]
        %v4186 = vld [vmem:[%s4145 + $0x140] sm:$0xff]
        %v4187 = vld [vmem:[%s4145 + $0x148] sm:$0xff]
        %v4188 = vld [vmem:[%s4145 + $0x150] sm:$0xff]
        %v4189 = vld [vmem:[%s4145 + $0x158] sm:$0xff]
        %v4190 = vld [vmem:[%s4145 + $0x160] sm:$0xff]
        %v4191 = vld [vmem:[%s4145 + $0x168] sm:$0xff]
        %v4192 = vld [vmem:[%s4145 + $0x170] sm:$0xff]
        %v4193 = vld [vmem:[%s4145 + $0x178] sm:$0xff]
        %v4194 = vld [vmem:[%s4145 + $0x180] sm:$0xff]
        %v4195 = vld [vmem:[%s4145 + $0x188] sm:$0xff]
        %v4196 = vld [vmem:[%s4145 + $0x190] sm:$0xff]
        %v4197 = vld [vmem:[%s4145 + $0x198] sm:$0xff]
        %v4198 = vld [vmem:[%s4145 + $0x1a0] sm:$0xff]
        %v4199 = vld [vmem:[%s4145 + $0x1a8] sm:$0xff]
        %v4200 = vld [vmem:[%s4145 + $0x1b0] sm:$0xff]
        %v4201 = vld [vmem:[%s4145 + $0x1b8] sm:$0xff]
        %v4202 = vld [vmem:[%s4145 + $0x1c0] sm:$0xff]
        %v4203 = vld [vmem:[%s4145 + $0x1c8] sm:$0xff]
        %v4204 = vld [vmem:[%s4145 + $0x1d0] sm:$0xff]
        %v4205 = vld [vmem:[%s4145 + $0x1d8] sm:$0xff]
        %v4206 = vld [vmem:[%s4145 + $0x1e0] sm:$0xff]
        %v4207 = vld [vmem:[%s4145 + $0x1e8] sm:$0xff]
        %v4208 = vld [vmem:[%s4145 + $0x1f0] sm:$0xff]
        %v4209 = vld [vmem:[%s4145 + $0x1f8] sm:$0xff]
        %v4210 = vld [vmem:[%s4145 + $0x200] sm:$0xff]
        %v4211 = vld [vmem:[%s4145 + $0x208] sm:$0xff]
        %v4212 = vld [vmem:[%s4145 + $0x210] sm:$0xff]
        %v4213 = vld [vmem:[%s4145 + $0x218] sm:$0xff]
        %v4214 = vld [vmem:[%s4145 + $0x220] sm:$0xff]
        %v4215 = vld [vmem:[%s4145 + $0x228] sm:$0xff]
        %v4216 = vld [vmem:[%s4145 + $0x230] sm:$0xff]
        %v4217 = vld [vmem:[%s4145 + $0x238] sm:$0xff]
        %s4218 = scalar_lea.vmem %s4, 5
        %v4219 = vld [vmem:[%s4218] sm:$0x1]
        %v4221 = vlaneseq
        %v4222 = vshrl.u32 %v4221, 7
        %v4223 = vsub.s32 0, %v4222
        %v4224 = vrot.slane %v4219, %v4223
        %v4227 = vsel %vm223, %v3977, 0
        %v4230 = vsel %vm223, %v3978, 0
        %v4233 = vsel %vm223, %v3979, 0
        %v4236 = vsel %vm223, %v3980, 0
        %v4239 = vsel %vm223, %v3981, 0
        %v4242 = vsel %vm223, %v3982, 0
        %v4245 = vsel %vm223, %v3983, 0
        %v4248 = vsel %vm223, %v3984, 0
        %4250 = vmatprep.subr.mxu0 0.0
        %4251 = vmatpush1.msra.mxu0 %v4146
        %4252 = vmatprep.subr.mxu0 0.0
        %4253 = vmatpush1.msra.mxu0 %v4147
        %4254 = vmatprep.subr.mxu0 0.0
        %4255 = vmatpush1.msra.mxu0 %v4148
        %4256 = vmatprep.subr.mxu0 0.0
        %4257 = vmatpush1.msra.mxu0 %v4149
        %4258 = vmatprep.subr.mxu0 0.0
        %4259 = vmatpush1.msra.mxu0 %v4150
        %4260 = vmatprep.subr.mxu0 0.0
        %4261 = vmatpush1.msra.mxu0 %v4151
        %4262 = vmatprep.subr.mxu0 0.0
        %4263 = vmatpush1.msra.mxu0 %v4152
        %4264 = vmatprep.subr.mxu0 0.0
        %4265 = vmatpush1.msra.mxu0 %v4153
        %4266 = vmatprep.subr.mxu0 0.0
        %4267 = vmatpush1.msra.mxu0 %v4154
        %4268 = vmatprep.subr.mxu0 0.0
        %4269 = vmatpush1.msra.mxu0 %v4155
        %4270 = vmatprep.subr.mxu0 0.0
        %4271 = vmatpush1.msra.mxu0 %v4156
        %4272 = vmatprep.subr.mxu0 0.0
        %4273 = vmatpush1.msra.mxu0 %v4157
        %4274 = vmatprep.subr.mxu0 0.0
        %4275 = vmatpush1.msra.mxu0 %v4158
        %4276 = vmatprep.subr.mxu0 0.0
        %4277 = vmatpush1.msra.mxu0 %v4159
        %4278 = vmatprep.subr.mxu0 0.0
        %4279 = vmatpush1.msra.mxu0 %v4160
        %4280 = vmatprep.subr.mxu0 0.0
        %4281 = vmatpush1.msra.mxu0 %v4161
        %4282 = vmatprep.subr.mxu0 0.0
        %4283 = vmatpush1.msra.mxu0 %v4162
        %4284 = vmatprep.subr.mxu0 0.0
        %4285 = vmatpush1.msra.mxu0 %v4163
        %4286 = vmatprep.subr.mxu0 0.0
        %4287 = vmatpush1.msra.mxu0 %v4164
        %4288 = vmatprep.subr.mxu0 0.0
        %4289 = vmatpush1.msra.mxu0 %v4165
        %4290 = vmatprep.subr.mxu0 0.0
        %4291 = vmatpush1.msra.mxu0 %v4166
        %4292 = vmatprep.subr.mxu0 0.0
        %4293 = vmatpush1.msra.mxu0 %v4167
        %4294 = vmatprep.subr.mxu0 0.0
        %4295 = vmatpush1.msra.mxu0 %v4168
        %4296 = vmatprep.subr.mxu0 0.0
        %4297 = vmatpush1.msra.mxu0 %v4169
        %4298 = vmatprep.subr.mxu0 0.0
        %4299 = vmatpush1.msra.mxu0 %v4170
        %4300 = vmatprep.subr.mxu0 0.0
        %4301 = vmatpush1.msra.mxu0 %v4171
        %4302 = vmatprep.subr.mxu0 0.0
        %4303 = vmatpush1.msra.mxu0 %v4172
        %4304 = vmatprep.subr.mxu0 0.0
        %4305 = vmatpush1.msra.mxu0 %v4173
        %4306 = vmatprep.subr.mxu0 0.0
        %4307 = vmatpush1.msra.mxu0 %v4174
        %4308 = vmatprep.subr.mxu0 0.0
        %4309 = vmatpush1.msra.mxu0 %v4175
        %4310 = vmatprep.subr.mxu0 0.0
        %4311 = vmatpush1.msra.mxu0 %v4176
        %4312 = vmatprep.subr.mxu0 0.0
        %4313 = vmatpush1.msra.mxu0 %v4177
        %4314 = vmatprep.mubr.f32.mxu0 %v4121
        %4315 = vmatmul.mubr.f32.gmra.mrb[0].mxu0 %v4113
        %v4316 = vpop.f32.mrb[0].mxu0
        %v4317 = vadd.f32 %v4224, %v4316
        %v4318 = vpop.f32.mrb[0].mxu0
        %4319 = vmatprep.mubr.f32.mxu0 %v4122
        %4320 = vmatmul.mubr.f32.gmra.mrb[0].mxu0 %v4114
        %v4321 = vpop.f32.mrb[0].mxu0
        %v4322 = vadd.f32 %v4224, %v4321
        %v4323 = vpop.f32.mrb[0].mxu0
        %4324 = vmatprep.mubr.f32.mxu0 %v4123
        %4325 = vmatmul.mubr.f32.gmra.mrb[0].mxu0 %v4115
        %v4326 = vpop.f32.mrb[0].mxu0
        %v4327 = vadd.f32 %v4224, %v4326
        %v4328 = vpop.f32.mrb[0].mxu0
        %4329 = vmatprep.mubr.f32.mxu0 %v4124
        %4330 = vmatmul.mubr.f32.gmra.mrb[0].mxu0 %v4116
        %v4331 = vpop.f32.mrb[0].mxu0
        %v4332 = vadd.f32 %v4224, %v4331
        %v4333 = vpop.f32.mrb[0].mxu0
        %4334 = vmatprep.mubr.f32.mxu0 %v4125
        %4335 = vmatmul.mubr.f32.gmra.mrb[0].mxu0 %v4117
        %v4336 = vpop.f32.mrb[0].mxu0
        %v4337 = vadd.f32 %v4224, %v4336
        %v4338 = vpop.f32.mrb[0].mxu0
        %4339 = vmatprep.mubr.f32.mxu0 %v4126
        %4340 = vmatmul.mubr.f32.gmra.mrb[0].mxu0 %v4118
        %v4341 = vpop.f32.mrb[0].mxu0
        %v4342 = vadd.f32 %v4224, %v4341
        %v4343 = vpop.f32.mrb[0].mxu0
        %4344 = vmatprep.mubr.f32.mxu0 %v4127
        %4345 = vmatmul.mubr.f32.gmra.mrb[0].mxu0 %v4119
        %v4346 = vpop.f32.mrb[0].mxu0
        %v4347 = vadd.f32 %v4224, %v4346
        %v4348 = vpop.f32.mrb[0].mxu0
        %4349 = vmatprep.mubr.f32.mxu0 %v4128
        %4350 = vmatmul.mubr.f32.gmra.mrb[0].mxu0 %v4120
        %v4351 = vpop.f32.mrb[0].mxu0
        %v4352 = vadd.f32 %v4224, %v4351
        %v4353 = vpop.f32.mrb[0].mxu0
        %4354 = vdwg.mxu0
        %4355 = vmatprep.subr.mxu0 0.0
        %4356 = vmatpush1.msra.mxu0 %v4178
        %4357 = vmatprep.subr.mxu0 0.0
        %4358 = vmatpush1.msra.mxu0 %v4179
        %4359 = vmatprep.subr.mxu0 0.0
        %4360 = vmatpush1.msra.mxu0 %v4180
        %4361 = vmatprep.subr.mxu0 0.0
        %4362 = vmatpush1.msra.mxu0 %v4181
        %4363 = vmatprep.subr.mxu0 0.0
        %4364 = vmatpush1.msra.mxu0 %v4182
        %4365 = vmatprep.subr.mxu0 0.0
        %4366 = vmatpush1.msra.mxu0 %v4183
        %4367 = vmatprep.subr.mxu0 0.0
        %4368 = vmatpush1.msra.mxu0 %v4184
        %4369 = vmatprep.subr.mxu0 0.0
        %4370 = vmatpush1.msra.mxu0 %v4185
        %4371 = vmatprep.subr.mxu0 0.0
        %4372 = vmatpush1.msra.mxu0 %v4186
        %4373 = vmatprep.subr.mxu0 0.0
        %4374 = vmatpush1.msra.mxu0 %v4187
        %4375 = vmatprep.subr.mxu0 0.0
        %4376 = vmatpush1.msra.mxu0 %v4188
        %4377 = vmatprep.subr.mxu0 0.0
        %4378 = vmatpush1.msra.mxu0 %v4189
        %4379 = vmatprep.subr.mxu0 0.0
        %4380 = vmatpush1.msra.mxu0 %v4190
        %4381 = vmatprep.subr.mxu0 0.0
        %4382 = vmatpush1.msra.mxu0 %v4191
        %4383 = vmatprep.subr.mxu0 0.0
        %4384 = vmatpush1.msra.mxu0 %v4192
        %4385 = vmatprep.subr.mxu0 0.0
        %4386 = vmatpush1.msra.mxu0 %v4193
        %4387 = vmatprep.subr.mxu0 0.0
        %4388 = vmatpush1.msra.mxu0 %v4194
        %4389 = vmatprep.subr.mxu0 0.0
        %4390 = vmatpush1.msra.mxu0 %v4195
        %4391 = vmatprep.subr.mxu0 0.0
        %4392 = vmatpush1.msra.mxu0 %v4196
        %4393 = vmatprep.subr.mxu0 0.0
        %4394 = vmatpush1.msra.mxu0 %v4197
        %4395 = vmatprep.subr.mxu0 0.0
        %4396 = vmatpush1.msra.mxu0 %v4198
        %4397 = vmatprep.subr.mxu0 0.0
        %4398 = vmatpush1.msra.mxu0 %v4199
        %4399 = vmatprep.subr.mxu0 0.0
        %4400 = vmatpush1.msra.mxu0 %v4200
        %4401 = vmatprep.subr.mxu0 0.0
        %4402 = vmatpush1.msra.mxu0 %v4201
        %4403 = vmatprep.subr.mxu0 0.0
        %4404 = vmatpush1.msra.mxu0 %v4202
        %4405 = vmatprep.subr.mxu0 0.0
        %4406 = vmatpush1.msra.mxu0 %v4203
        %4407 = vmatprep.subr.mxu0 0.0
        %4408 = vmatpush1.msra.mxu0 %v4204
        %4409 = vmatprep.subr.mxu0 0.0
        %4410 = vmatpush1.msra.mxu0 %v4205
        %4411 = vmatprep.subr.mxu0 0.0
        %4412 = vmatpush1.msra.mxu0 %v4206
        %4413 = vmatprep.subr.mxu0 0.0
        %4414 = vmatpush1.msra.mxu0 %v4207
        %4415 = vmatprep.subr.mxu0 0.0
        %4416 = vmatpush1.msra.mxu0 %v4208
        %4417 = vmatprep.subr.mxu0 0.0
        %4418 = vmatpush1.msra.mxu0 %v4209
        %4419 = vmatprep.mubr.f32.mxu0 %v4137
        %4420 = vmatmul.mubr.f32.gmra.mrb[0].mxu0 %v4129
        %v4421 = vpop.f32.mrb[0].mxu0
        %v4422 = vadd.f32 %v4317, %v4421
        %v4423 = vpop.f32.mrb[0].mxu0
        %4424 = vmatprep.mubr.f32.mxu0 %v4138
        %4425 = vmatmul.mubr.f32.gmra.mrb[0].mxu0 %v4130
        %v4426 = vpop.f32.mrb[0].mxu0
        %v4427 = vadd.f32 %v4322, %v4426
        %v4428 = vpop.f32.mrb[0].mxu0
        %4429 = vmatprep.mubr.f32.mxu0 %v4139
        %4430 = vmatmul.mubr.f32.gmra.mrb[0].mxu0 %v4131
        %v4431 = vpop.f32.mrb[0].mxu0
        %v4432 = vadd.f32 %v4327, %v4431
        %v4433 = vpop.f32.mrb[0].mxu0
        %4434 = vmatprep.mubr.f32.mxu0 %v4140
        %4435 = vmatmul.mubr.f32.gmra.mrb[0].mxu0 %v4132
        %v4436 = vpop.f32.mrb[0].mxu0
        %v4437 = vadd.f32 %v4332, %v4436
        %v4438 = vpop.f32.mrb[0].mxu0
        %4439 = vmatprep.mubr.f32.mxu0 %v4141
        %4440 = vmatmul.mubr.f32.gmra.mrb[0].mxu0 %v4133
        %v4441 = vpop.f32.mrb[0].mxu0
        %v4442 = vadd.f32 %v4337, %v4441
        %v4443 = vpop.f32.mrb[0].mxu0
        %4444 = vmatprep.mubr.f32.mxu0 %v4142
        %4445 = vmatmul.mubr.f32.gmra.mrb[0].mxu0 %v4134
        %v4446 = vpop.f32.mrb[0].mxu0
        %v4447 = vadd.f32 %v4342, %v4446
        %v4448 = vpop.f32.mrb[0].mxu0
        %4449 = vmatprep.mubr.f32.mxu0 %v4143
        %4450 = vmatmul.mubr.f32.gmra.mrb[0].mxu0 %v4135
        %v4451 = vpop.f32.mrb[0].mxu0
        %v4452 = vadd.f32 %v4347, %v4451
        %v4453 = vpop.f32.mrb[0].mxu0
        %4454 = vmatprep.mubr.f32.mxu0 %v4144
        %4455 = vmatmul.mubr.f32.gmra.mrb[0].mxu0 %v4136
        %v4456 = vpop.f32.mrb[0].mxu0
        %v4457 = vadd.f32 %v4352, %v4456
        %v4458 = vpop.f32.mrb[0].mxu0
        %4459 = vdwg.mxu0
        %4460 = vmatprep.subr.mxu0 0.0
        %4461 = vmatpush1.msra.mxu0 %v4210
        %4462 = vmatprep.subr.mxu0 0.0
        %4463 = vmatpush1.msra.mxu0 %v4211
        %4464 = vmatprep.subr.mxu0 0.0
        %4465 = vmatpush1.msra.mxu0 %v4212
        %4466 = vmatprep.subr.mxu0 0.0
        %4467 = vmatpush1.msra.mxu0 %v4213
        %4468 = vmatprep.subr.mxu0 0.0
        %4469 = vmatpush1.msra.mxu0 %v4214
        %4470 = vmatprep.subr.mxu0 0.0
        %4471 = vmatpush1.msra.mxu0 %v4215
        %4472 = vmatprep.subr.mxu0 0.0
        %4473 = vmatpush1.msra.mxu0 %v4216
        %4474 = vmatprep.subr.mxu0 0.0
        %4475 = vmatpush1.msra.mxu0 %v4217
        %4476 = vmatprep.subr.mxu0 0.0
        %4477 = vmatpush1.msra.mxu0 0.0
        %4478 = vmatprep.subr.mxu0 0.0
        %4479 = vmatpush1.msra.mxu0 0.0
        %4480 = vmatprep.subr.mxu0 0.0
        %4481 = vmatpush1.msra.mxu0 0.0
        %4482 = vmatprep.subr.mxu0 0.0
        %4483 = vmatpush1.msra.mxu0 0.0
        %4484 = vmatprep.subr.mxu0 0.0
        %4485 = vmatpush1.msra.mxu0 0.0
        %4486 = vmatprep.subr.mxu0 0.0
        %4487 = vmatpush1.msra.mxu0 0.0
        %4488 = vmatprep.subr.mxu0 0.0
        %4489 = vmatpush1.msra.mxu0 0.0
        %4490 = vmatprep.subr.mxu0 0.0
        %4491 = vmatpush1.msra.mxu0 0.0
        %4492 = vmatprep.subr.mxu0 0.0
        %4493 = vmatpush1.msra.mxu0 0.0
        %4494 = vmatprep.subr.mxu0 0.0
        %4495 = vmatpush1.msra.mxu0 0.0
        %4496 = vmatprep.subr.mxu0 0.0
        %4497 = vmatpush1.msra.mxu0 0.0
        %4498 = vmatprep.subr.mxu0 0.0
        %4499 = vmatpush1.msra.mxu0 0.0
        %4500 = vmatprep.subr.mxu0 0.0
        %4501 = vmatpush1.msra.mxu0 0.0
        %4502 = vmatprep.subr.mxu0 0.0
        %4503 = vmatpush1.msra.mxu0 0.0
        %4504 = vmatprep.subr.mxu0 0.0
        %4505 = vmatpush1.msra.mxu0 0.0
        %4506 = vmatprep.subr.mxu0 0.0
        %4507 = vmatpush1.msra.mxu0 0.0
        %4508 = vmatprep.subr.mxu0 0.0
        %4509 = vmatpush1.msra.mxu0 0.0
        %4510 = vmatprep.subr.mxu0 0.0
        %4511 = vmatpush1.msra.mxu0 0.0
        %4512 = vmatprep.subr.mxu0 0.0
        %4513 = vmatpush1.msra.mxu0 0.0
        %4514 = vmatprep.subr.mxu0 0.0
        %4515 = vmatpush1.msra.mxu0 0.0
        %4516 = vmatprep.subr.mxu0 0.0
        %4517 = vmatpush1.msra.mxu0 0.0
        %4518 = vmatprep.subr.mxu0 0.0
        %4519 = vmatpush1.msra.mxu0 0.0
        %4520 = vmatprep.subr.mxu0 0.0
        %4521 = vmatpush1.msra.mxu0 0.0
        %4522 = vmatprep.subr.mxu0 0.0
        %4523 = vmatpush1.msra.mxu0 0.0
        %4524 = vmatprep.mubr.f32.mxu0 0.0
        %4525 = vmatmul.mubr.f32.gmra.mrb[0].mxu0 %v4227
        %v4526 = vpop.f32.mrb[0].mxu0
        %v4527 = vadd.f32 %v4422, %v4526
        %v4528 = vpop.f32.mrb[0].mxu0
        %4529 = vmatprep.mubr.f32.mxu0 0.0
        %4530 = vmatmul.mubr.f32.gmra.mrb[0].mxu0 %v4230
        %v4531 = vpop.f32.mrb[0].mxu0
        %v4532 = vadd.f32 %v4427, %v4531
        %v4533 = vpop.f32.mrb[0].mxu0
        %4534 = vmatprep.mubr.f32.mxu0 0.0
        %4535 = vmatmul.mubr.f32.gmra.mrb[0].mxu0 %v4233
        %v4536 = vpop.f32.mrb[0].mxu0
        %v4537 = vadd.f32 %v4432, %v4536
        %v4538 = vpop.f32.mrb[0].mxu0
        %4539 = vmatprep.mubr.f32.mxu0 0.0
        %4540 = vmatmul.mubr.f32.gmra.mrb[0].mxu0 %v4236
        %v4541 = vpop.f32.mrb[0].mxu0
        %v4542 = vadd.f32 %v4437, %v4541
        %v4543 = vpop.f32.mrb[0].mxu0
        %4544 = vmatprep.mubr.f32.mxu0 0.0
        %4545 = vmatmul.mubr.f32.gmra.mrb[0].mxu0 %v4239
        %v4546 = vpop.f32.mrb[0].mxu0
        %v4547 = vadd.f32 %v4442, %v4546
        %v4548 = vpop.f32.mrb[0].mxu0
        %4549 = vmatprep.mubr.f32.mxu0 0.0
        %4550 = vmatmul.mubr.f32.gmra.mrb[0].mxu0 %v4242
        %v4551 = vpop.f32.mrb[0].mxu0
        %v4552 = vadd.f32 %v4447, %v4551
        %v4553 = vpop.f32.mrb[0].mxu0
        %4554 = vmatprep.mubr.f32.mxu0 0.0
        %4555 = vmatmul.mubr.f32.gmra.mrb[0].mxu0 %v4245
        %v4556 = vpop.f32.mrb[0].mxu0
        %v4557 = vadd.f32 %v4452, %v4556
        %v4558 = vpop.f32.mrb[0].mxu0
        %4559 = vmatprep.mubr.f32.mxu0 0.0
        %4560 = vmatmul.mubr.f32.gmra.mrb[0].mxu0 %v4248
        %v4561 = vpop.f32.mrb[0].mxu0
        %v4562 = vadd.f32 %v4457, %v4561
        %v4563 = vpop.f32.mrb[0].mxu0
        %4564 = vdwg.mxu0
        %vm4565 = vcmp.gt.f32.partialorder %v4527, 0.0
        %vm4566 = vcmp.gt.f32.partialorder %v4532, 0.0
        %vm4567 = vcmp.gt.f32.partialorder %v4537, 0.0
        %vm4568 = vcmp.gt.f32.partialorder %v4542, 0.0
        %vm4569 = vcmp.gt.f32.partialorder %v4547, 0.0
        %vm4570 = vcmp.gt.f32.partialorder %v4552, 0.0
        %vm4571 = vcmp.gt.f32.partialorder %v4557, 0.0
        %vm4572 = vcmp.gt.f32.partialorder %v4562, 0.0
        %v4573 = vmul.f32 %v4527, 0.01
        %v4574 = vmul.f32 %v4532, 0.01
        %v4575 = vmul.f32 %v4537, 0.01
        %v4576 = vmul.f32 %v4542, 0.01
        %v4577 = vmul.f32 %v4547, 0.01
        %v4578 = vmul.f32 %v4552, 0.01
        %v4579 = vmul.f32 %v4557, 0.01
        %v4580 = vmul.f32 %v4562, 0.01
        %v4581 = vsel %vm4565, %v4527, %v4573
        %v4582 = vsel %vm4566, %v4532, %v4574
        %v4583 = vsel %vm4567, %v4537, %v4575
        %v4584 = vsel %vm4568, %v4542, %v4576
        %v4585 = vsel %vm4569, %v4547, %v4577
        %v4586 = vsel %vm4570, %v4552, %v4578
        %v4587 = vsel %vm4571, %v4557, %v4579
        %v4588 = vsel %vm4572, %v4562, %v4580
        %v4589 = vadd.f32 %v4581, %v3213
        %v4590 = vadd.f32 %v4582, %v3214
        %v4591 = vadd.f32 %v4583, %v3215
        %v4592 = vadd.f32 %v4584, %v3216
        %v4593 = vadd.f32 %v4585, %v3217
        %v4594 = vadd.f32 %v4586, %v3218
        %v4595 = vadd.f32 %v4587, %v3219
        %v4596 = vadd.f32 %v4588, %v3220
        %vm4597 = vcmp.gt.f32.partialorder %v4589, 0.0
        %vm4598 = vcmp.gt.f32.partialorder %v4590, 0.0
        %vm4599 = vcmp.gt.f32.partialorder %v4591, 0.0
        %vm4600 = vcmp.gt.f32.partialorder %v4592, 0.0
        %vm4601 = vcmp.gt.f32.partialorder %v4593, 0.0
        %vm4602 = vcmp.gt.f32.partialorder %v4594, 0.0
        %vm4603 = vcmp.gt.f32.partialorder %v4595, 0.0
        %vm4604 = vcmp.gt.f32.partialorder %v4596, 0.0
        %v4605 = vmul.f32 %v4589, 0.01
        %v4606 = vmul.f32 %v4590, 0.01
        %v4607 = vmul.f32 %v4591, 0.01
        %v4608 = vmul.f32 %v4592, 0.01
        %v4609 = vmul.f32 %v4593, 0.01
        %v4610 = vmul.f32 %v4594, 0.01
        %v4611 = vmul.f32 %v4595, 0.01
        %v4612 = vmul.f32 %v4596, 0.01
        %v4613 = vsel %vm4597, %v4589, %v4605
        %v4614 = vsel %vm4598, %v4590, %v4606
        %v4615 = vsel %vm4599, %v4591, %v4607
        %v4616 = vsel %vm4600, %v4592, %v4608
        %v4617 = vsel %vm4601, %v4593, %v4609
        %v4618 = vsel %vm4602, %v4594, %v4610
        %v4619 = vsel %vm4603, %v4595, %v4611
        %v4620 = vsel %vm4604, %v4596, %v4612
        %4621 = vst.msk [vmem:[%s421 + $0x1] sm:$0xff] %vm223, %v4613
        %4622 = vst.msk [vmem:[%s421 + $0x11] sm:$0xff] %vm223, %v4614
        %4623 = vst.msk [vmem:[%s421 + $0x21] sm:$0xff] %vm223, %v4615
        %4624 = vst.msk [vmem:[%s421 + $0x31] sm:$0xff] %vm223, %v4616
        %4625 = vst.msk [vmem:[%s421 + $0x41] sm:$0xff] %vm223, %v4617
        %4626 = vst.msk [vmem:[%s421 + $0x51] sm:$0xff] %vm223, %v4618
        %4627 = vst.msk [vmem:[%s421 + $0x61] sm:$0xff] %vm223, %v4619
        %4628 = vst.msk [vmem:[%s421 + $0x71] sm:$0xff] %vm223, %v4620
        %v4629 = vld [vmem:[#allocation2] sm:$0xff]
        %v4630 = vld [vmem:[#allocation2 + $0x10] sm:$0xff]
        %v4631 = vld [vmem:[#allocation2 + $0x20] sm:$0xff]
        %v4632 = vld [vmem:[#allocation2 + $0x30] sm:$0xff]
        %v4633 = vld [vmem:[#allocation2 + $0x40] sm:$0xff]
        %v4634 = vld [vmem:[#allocation2 + $0x50] sm:$0xff]
        %v4635 = vld [vmem:[#allocation2 + $0x60] sm:$0xff]
        %v4636 = vld [vmem:[#allocation2 + $0x70] sm:$0xff]
        %v4637 = vld [vmem:[#allocation2 + $0x1] sm:$0xff]
        %v4638 = vld [vmem:[#allocation2 + $0x11] sm:$0xff]
        %v4639 = vld [vmem:[#allocation2 + $0x21] sm:$0xff]
        %v4640 = vld [vmem:[#allocation2 + $0x31] sm:$0xff]
        %v4641 = vld [vmem:[#allocation2 + $0x41] sm:$0xff]
        %v4642 = vld [vmem:[#allocation2 + $0x51] sm:$0xff]
        %v4643 = vld [vmem:[#allocation2 + $0x61] sm:$0xff]
        %v4644 = vld [vmem:[#allocation2 + $0x71] sm:$0xff]
        %v4645 = vld [vmem:[#allocation2 + $0x2] sm:$0xff]
        %v4646 = vld [vmem:[#allocation2 + $0x12] sm:$0xff]
        %v4647 = vld [vmem:[#allocation2 + $0x22] sm:$0xff]
        %v4648 = vld [vmem:[#allocation2 + $0x32] sm:$0xff]
        %v4649 = vld [vmem:[#allocation2 + $0x42] sm:$0xff]
        %v4650 = vld [vmem:[#allocation2 + $0x52] sm:$0xff]
        %v4651 = vld [vmem:[#allocation2 + $0x62] sm:$0xff]
        %v4652 = vld [vmem:[#allocation2 + $0x72] sm:$0xff]
        %v4653 = vld [vmem:[%s421] sm:$0xff]
        %v4654 = vld [vmem:[%s421 + $0x10] sm:$0xff]
        %v4655 = vld [vmem:[%s421 + $0x20] sm:$0xff]
        %v4656 = vld [vmem:[%s421 + $0x30] sm:$0xff]
        %v4657 = vld [vmem:[%s421 + $0x40] sm:$0xff]
        %v4658 = vld [vmem:[%s421 + $0x50] sm:$0xff]
        %v4659 = vld [vmem:[%s421 + $0x60] sm:$0xff]
        %v4660 = vld [vmem:[%s421 + $0x70] sm:$0xff]
        %v4661 = vld [vmem:[%s421 + $0x1] sm:$0xff]
        %v4662 = vld [vmem:[%s421 + $0x11] sm:$0xff]
        %v4663 = vld [vmem:[%s421 + $0x21] sm:$0xff]
        %v4664 = vld [vmem:[%s421 + $0x31] sm:$0xff]
        %v4665 = vld [vmem:[%s421 + $0x41] sm:$0xff]
        %v4666 = vld [vmem:[%s421 + $0x51] sm:$0xff]
        %v4667 = vld [vmem:[%s421 + $0x61] sm:$0xff]
        %v4668 = vld [vmem:[%s421 + $0x71] sm:$0xff]
        %v4669 = vld [vmem:[%s421 + $0x2] sm:$0xff]
        %v4670 = vld [vmem:[%s421 + $0x12] sm:$0xff]
        %v4671 = vld [vmem:[%s421 + $0x22] sm:$0xff]
        %v4672 = vld [vmem:[%s421 + $0x32] sm:$0xff]
        %v4673 = vld [vmem:[%s421 + $0x42] sm:$0xff]
        %v4674 = vld [vmem:[%s421 + $0x52] sm:$0xff]
        %v4675 = vld [vmem:[%s421 + $0x62] sm:$0xff]
        %v4676 = vld [vmem:[%s421 + $0x72] sm:$0xff]
        %v4677 = vld [vmem:[%s478] sm:$0xff]
        %v4678 = vld [vmem:[%s478 + $0x10] sm:$0xff]
        %v4679 = vld [vmem:[%s478 + $0x20] sm:$0xff]
        %v4680 = vld [vmem:[%s478 + $0x30] sm:$0xff]
        %v4681 = vld [vmem:[%s478 + $0x40] sm:$0xff]
        %v4682 = vld [vmem:[%s478 + $0x50] sm:$0xff]
        %v4683 = vld [vmem:[%s478 + $0x60] sm:$0xff]
        %v4684 = vld [vmem:[%s478 + $0x70] sm:$0xff]
        %v4685 = vld [vmem:[%s478 + $0x1] sm:$0xff]
        %v4686 = vld [vmem:[%s478 + $0x11] sm:$0xff]
        %v4687 = vld [vmem:[%s478 + $0x21] sm:$0xff]
        %v4688 = vld [vmem:[%s478 + $0x31] sm:$0xff]
        %v4689 = vld [vmem:[%s478 + $0x41] sm:$0xff]
        %v4690 = vld [vmem:[%s478 + $0x51] sm:$0xff]
        %v4691 = vld [vmem:[%s478 + $0x61] sm:$0xff]
        %v4692 = vld [vmem:[%s478 + $0x71] sm:$0xff]
        %v4693 = vld [vmem:[%s478 + $0x2] sm:$0xff]
        %v4694 = vld [vmem:[%s478 + $0x12] sm:$0xff]
        %v4695 = vld [vmem:[%s478 + $0x22] sm:$0xff]
        %v4696 = vld [vmem:[%s478 + $0x32] sm:$0xff]
        %v4697 = vld [vmem:[%s478 + $0x42] sm:$0xff]
        %v4698 = vld [vmem:[%s478 + $0x52] sm:$0xff]
        %v4699 = vld [vmem:[%s478 + $0x62] sm:$0xff]
        %v4700 = vld [vmem:[%s478 + $0x72] sm:$0xff]
        %4709 = vrot.lane.b32.xlu0 %v4637, 64
        %v4710 = vpop.permute.xlu0 %4709
        %4711 = vrot.lane.b32.xlu0 %v4638, 64
        %v4712 = vpop.permute.xlu0 %4711
        %4713 = vrot.lane.b32.xlu0 %v4639, 64
        %v4714 = vpop.permute.xlu0 %4713
        %4715 = vrot.lane.b32.xlu0 %v4640, 64
        %v4716 = vpop.permute.xlu0 %4715
        %4717 = vrot.lane.b32.xlu0 %v4641, 64
        %v4718 = vpop.permute.xlu0 %4717
        %4719 = vrot.lane.b32.xlu0 %v4642, 64
        %v4720 = vpop.permute.xlu0 %4719
        %4721 = vrot.lane.b32.xlu0 %v4643, 64
        %v4722 = vpop.permute.xlu0 %4721
        %4723 = vrot.lane.b32.xlu0 %v4644, 64
        %v4724 = vpop.permute.xlu0 %4723
        %4741 = vrot.lane.b32.xlu0 %v4653, 64
        %v4742 = vpop.permute.xlu0 %4741
        %4743 = vrot.lane.b32.xlu0 %v4654, 64
        %v4744 = vpop.permute.xlu0 %4743
        %4745 = vrot.lane.b32.xlu0 %v4655, 64
        %v4746 = vpop.permute.xlu0 %4745
        %4747 = vrot.lane.b32.xlu0 %v4656, 64
        %v4748 = vpop.permute.xlu0 %4747
        %4749 = vrot.lane.b32.xlu0 %v4657, 64
        %v4750 = vpop.permute.xlu0 %4749
        %4751 = vrot.lane.b32.xlu0 %v4658, 64
        %v4752 = vpop.permute.xlu0 %4751
        %4753 = vrot.lane.b32.xlu0 %v4659, 64
        %v4754 = vpop.permute.xlu0 %4753
        %4755 = vrot.lane.b32.xlu0 %v4660, 64
        %v4756 = vpop.permute.xlu0 %4755
        %4773 = vrot.lane.b32.xlu0 %v4669, 64
        %v4774 = vpop.permute.xlu0 %4773
        %4775 = vrot.lane.b32.xlu0 %v4670, 64
        %v4776 = vpop.permute.xlu0 %4775
        %4777 = vrot.lane.b32.xlu0 %v4671, 64
        %v4778 = vpop.permute.xlu0 %4777
        %4779 = vrot.lane.b32.xlu0 %v4672, 64
        %v4780 = vpop.permute.xlu0 %4779
        %4781 = vrot.lane.b32.xlu0 %v4673, 64
        %v4782 = vpop.permute.xlu0 %4781
        %4783 = vrot.lane.b32.xlu0 %v4674, 64
        %v4784 = vpop.permute.xlu0 %4783
        %4785 = vrot.lane.b32.xlu0 %v4675, 64
        %v4786 = vpop.permute.xlu0 %4785
        %4787 = vrot.lane.b32.xlu0 %v4676, 64
        %v4788 = vpop.permute.xlu0 %4787
        %4805 = vrot.lane.b32.xlu0 %v4685, 64
        %v4806 = vpop.permute.xlu0 %4805
        %4807 = vrot.lane.b32.xlu0 %v4686, 64
        %v4808 = vpop.permute.xlu0 %4807
        %4809 = vrot.lane.b32.xlu0 %v4687, 64
        %v4810 = vpop.permute.xlu0 %4809
        %4811 = vrot.lane.b32.xlu0 %v4688, 64
        %v4812 = vpop.permute.xlu0 %4811
        %4813 = vrot.lane.b32.xlu0 %v4689, 64
        %v4814 = vpop.permute.xlu0 %4813
        %4815 = vrot.lane.b32.xlu0 %v4690, 64
        %v4816 = vpop.permute.xlu0 %4815
        %4817 = vrot.lane.b32.xlu0 %v4691, 64
        %v4818 = vpop.permute.xlu0 %4817
        %4819 = vrot.lane.b32.xlu0 %v4692, 64
        %v4820 = vpop.permute.xlu0 %4819
        %v4829 = vsel %vm223, %v4629, %v4710
        %v4830 = vsel %vm223, %v4630, %v4712
        %v4831 = vsel %vm223, %v4631, %v4714
        %v4832 = vsel %vm223, %v4632, %v4716
        %v4833 = vsel %vm223, %v4633, %v4718
        %v4834 = vsel %vm223, %v4634, %v4720
        %v4835 = vsel %vm223, %v4635, %v4722
        %v4836 = vsel %vm223, %v4636, %v4724
        %v4837 = vsel %vm223, %v4645, %v4742
        %v4838 = vsel %vm223, %v4646, %v4744
        %v4839 = vsel %vm223, %v4647, %v4746
        %v4840 = vsel %vm223, %v4648, %v4748
        %v4841 = vsel %vm223, %v4649, %v4750
        %v4842 = vsel %vm223, %v4650, %v4752
        %v4843 = vsel %vm223, %v4651, %v4754
        %v4844 = vsel %vm223, %v4652, %v4756
        %v4845 = vsel %vm223, %v4661, %v4774
        %v4846 = vsel %vm223, %v4662, %v4776
        %v4847 = vsel %vm223, %v4663, %v4778
        %v4848 = vsel %vm223, %v4664, %v4780
        %v4849 = vsel %vm223, %v4665, %v4782
        %v4850 = vsel %vm223, %v4666, %v4784
        %v4851 = vsel %vm223, %v4667, %v4786
        %v4852 = vsel %vm223, %v4668, %v4788
        %v4853 = vsel %vm223, %v4677, %v4806
        %v4854 = vsel %vm223, %v4678, %v4808
        %v4855 = vsel %vm223, %v4679, %v4810
        %v4856 = vsel %vm223, %v4680, %v4812
        %v4857 = vsel %vm223, %v4681, %v4814
        %v4858 = vsel %vm223, %v4682, %v4816
        %v4859 = vsel %vm223, %v4683, %v4818
        %v4860 = vsel %vm223, %v4684, %v4820
        %s4861 = scalar_lea.vmem %s3, 3456
        %v4862 = vld [vmem:[%s4861] sm:$0xff]
        %v4863 = vld [vmem:[%s4861 + $0x8] sm:$0xff]
        %v4864 = vld [vmem:[%s4861 + $0x10] sm:$0xff]
        %v4865 = vld [vmem:[%s4861 + $0x18] sm:$0xff]
        %v4866 = vld [vmem:[%s4861 + $0x20] sm:$0xff]
        %v4867 = vld [vmem:[%s4861 + $0x28] sm:$0xff]
        %v4868 = vld [vmem:[%s4861 + $0x30] sm:$0xff]
        %v4869 = vld [vmem:[%s4861 + $0x38] sm:$0xff]
        %v4870 = vld [vmem:[%s4861 + $0x40] sm:$0xff]
        %v4871 = vld [vmem:[%s4861 + $0x48] sm:$0xff]
        %v4872 = vld [vmem:[%s4861 + $0x50] sm:$0xff]
        %v4873 = vld [vmem:[%s4861 + $0x58] sm:$0xff]
        %v4874 = vld [vmem:[%s4861 + $0x60] sm:$0xff]
        %v4875 = vld [vmem:[%s4861 + $0x68] sm:$0xff]
        %v4876 = vld [vmem:[%s4861 + $0x70] sm:$0xff]
        %v4877 = vld [vmem:[%s4861 + $0x78] sm:$0xff]
        %v4878 = vld [vmem:[%s4861 + $0x80] sm:$0xff]
        %v4879 = vld [vmem:[%s4861 + $0x88] sm:$0xff]
        %v4880 = vld [vmem:[%s4861 + $0x90] sm:$0xff]
        %v4881 = vld [vmem:[%s4861 + $0x98] sm:$0xff]
        %v4882 = vld [vmem:[%s4861 + $0xa0] sm:$0xff]
        %v4883 = vld [vmem:[%s4861 + $0xa8] sm:$0xff]
        %v4884 = vld [vmem:[%s4861 + $0xb0] sm:$0xff]
        %v4885 = vld [vmem:[%s4861 + $0xb8] sm:$0xff]
        %v4886 = vld [vmem:[%s4861 + $0xc0] sm:$0xff]
        %v4887 = vld [vmem:[%s4861 + $0xc8] sm:$0xff]
        %v4888 = vld [vmem:[%s4861 + $0xd0] sm:$0xff]
        %v4889 = vld [vmem:[%s4861 + $0xd8] sm:$0xff]
        %v4890 = vld [vmem:[%s4861 + $0xe0] sm:$0xff]
        %v4891 = vld [vmem:[%s4861 + $0xe8] sm:$0xff]
        %v4892 = vld [vmem:[%s4861 + $0xf0] sm:$0xff]
        %v4893 = vld [vmem:[%s4861 + $0xf8] sm:$0xff]
        %v4894 = vld [vmem:[%s4861 + $0x100] sm:$0xff]
        %v4895 = vld [vmem:[%s4861 + $0x108] sm:$0xff]
        %v4896 = vld [vmem:[%s4861 + $0x110] sm:$0xff]
        %v4897 = vld [vmem:[%s4861 + $0x118] sm:$0xff]
        %v4898 = vld [vmem:[%s4861 + $0x120] sm:$0xff]
        %v4899 = vld [vmem:[%s4861 + $0x128] sm:$0xff]
        %v4900 = vld [vmem:[%s4861 + $0x130] sm:$0xff]
        %v4901 = vld [vmem:[%s4861 + $0x138] sm:$0xff]
        %v4902 = vld [vmem:[%s4861 + $0x140] sm:$0xff]
        %v4903 = vld [vmem:[%s4861 + $0x148] sm:$0xff]
        %v4904 = vld [vmem:[%s4861 + $0x150] sm:$0xff]
        %v4905 = vld [vmem:[%s4861 + $0x158] sm:$0xff]
        %v4906 = vld [vmem:[%s4861 + $0x160] sm:$0xff]
        %v4907 = vld [vmem:[%s4861 + $0x168] sm:$0xff]
        %v4908 = vld [vmem:[%s4861 + $0x170] sm:$0xff]
        %v4909 = vld [vmem:[%s4861 + $0x178] sm:$0xff]
        %v4910 = vld [vmem:[%s4861 + $0x180] sm:$0xff]
        %v4911 = vld [vmem:[%s4861 + $0x188] sm:$0xff]
        %v4912 = vld [vmem:[%s4861 + $0x190] sm:$0xff]
        %v4913 = vld [vmem:[%s4861 + $0x198] sm:$0xff]
        %v4914 = vld [vmem:[%s4861 + $0x1a0] sm:$0xff]
        %v4915 = vld [vmem:[%s4861 + $0x1a8] sm:$0xff]
        %v4916 = vld [vmem:[%s4861 + $0x1b0] sm:$0xff]
        %v4917 = vld [vmem:[%s4861 + $0x1b8] sm:$0xff]
        %v4918 = vld [vmem:[%s4861 + $0x1c0] sm:$0xff]
        %v4919 = vld [vmem:[%s4861 + $0x1c8] sm:$0xff]
        %v4920 = vld [vmem:[%s4861 + $0x1d0] sm:$0xff]
        %v4921 = vld [vmem:[%s4861 + $0x1d8] sm:$0xff]
        %v4922 = vld [vmem:[%s4861 + $0x1e0] sm:$0xff]
        %v4923 = vld [vmem:[%s4861 + $0x1e8] sm:$0xff]
        %v4924 = vld [vmem:[%s4861 + $0x1f0] sm:$0xff]
        %v4925 = vld [vmem:[%s4861 + $0x1f8] sm:$0xff]
        %v4926 = vld [vmem:[%s4861 + $0x200] sm:$0xff]
        %v4927 = vld [vmem:[%s4861 + $0x208] sm:$0xff]
        %v4928 = vld [vmem:[%s4861 + $0x210] sm:$0xff]
        %v4929 = vld [vmem:[%s4861 + $0x218] sm:$0xff]
        %v4930 = vld [vmem:[%s4861 + $0x220] sm:$0xff]
        %v4931 = vld [vmem:[%s4861 + $0x228] sm:$0xff]
        %v4932 = vld [vmem:[%s4861 + $0x230] sm:$0xff]
        %v4933 = vld [vmem:[%s4861 + $0x238] sm:$0xff]
        %s4934 = scalar_lea.vmem %s4, 6
        %v4935 = vld [vmem:[%s4934] sm:$0x1]
        %v4937 = vlaneseq
        %v4938 = vshrl.u32 %v4937, 7
        %v4939 = vsub.s32 0, %v4938
        %v4940 = vrot.slane %v4935, %v4939
        %v4943 = vsel %vm223, %v4693, 0
        %v4946 = vsel %vm223, %v4694, 0
        %v4949 = vsel %vm223, %v4695, 0
        %v4952 = vsel %vm223, %v4696, 0
        %v4955 = vsel %vm223, %v4697, 0
        %v4958 = vsel %vm223, %v4698, 0
        %v4961 = vsel %vm223, %v4699, 0
        %v4964 = vsel %vm223, %v4700, 0
        %4966 = vmatprep.subr.mxu0 0.0
        %4967 = vmatpush1.msra.mxu0 %v4862
        %4968 = vmatprep.subr.mxu0 0.0
        %4969 = vmatpush1.msra.mxu0 %v4863
        %4970 = vmatprep.subr.mxu0 0.0
        %4971 = vmatpush1.msra.mxu0 %v4864
        %4972 = vmatprep.subr.mxu0 0.0
        %4973 = vmatpush1.msra.mxu0 %v4865
        %4974 = vmatprep.subr.mxu0 0.0
        %4975 = vmatpush1.msra.mxu0 %v4866
        %4976 = vmatprep.subr.mxu0 0.0
        %4977 = vmatpush1.msra.mxu0 %v4867
        %4978 = vmatprep.subr.mxu0 0.0
        %4979 = vmatpush1.msra.mxu0 %v4868
        %4980 = vmatprep.subr.mxu0 0.0
        %4981 = vmatpush1.msra.mxu0 %v4869
        %4982 = vmatprep.subr.mxu0 0.0
        %4983 = vmatpush1.msra.mxu0 %v4870
        %4984 = vmatprep.subr.mxu0 0.0
        %4985 = vmatpush1.msra.mxu0 %v4871
        %4986 = vmatprep.subr.mxu0 0.0
        %4987 = vmatpush1.msra.mxu0 %v4872
        %4988 = vmatprep.subr.mxu0 0.0
        %4989 = vmatpush1.msra.mxu0 %v4873
        %4990 = vmatprep.subr.mxu0 0.0
        %4991 = vmatpush1.msra.mxu0 %v4874
        %4992 = vmatprep.subr.mxu0 0.0
        %4993 = vmatpush1.msra.mxu0 %v4875
        %4994 = vmatprep.subr.mxu0 0.0
        %4995 = vmatpush1.msra.mxu0 %v4876
        %4996 = vmatprep.subr.mxu0 0.0
        %4997 = vmatpush1.msra.mxu0 %v4877
        %4998 = vmatprep.subr.mxu0 0.0
        %4999 = vmatpush1.msra.mxu0 %v4878
        %5000 = vmatprep.subr.mxu0 0.0
        %5001 = vmatpush1.msra.mxu0 %v4879
        %5002 = vmatprep.subr.mxu0 0.0
        %5003 = vmatpush1.msra.mxu0 %v4880
        %5004 = vmatprep.subr.mxu0 0.0
        %5005 = vmatpush1.msra.mxu0 %v4881
        %5006 = vmatprep.subr.mxu0 0.0
        %5007 = vmatpush1.msra.mxu0 %v4882
        %5008 = vmatprep.subr.mxu0 0.0
        %5009 = vmatpush1.msra.mxu0 %v4883
        %5010 = vmatprep.subr.mxu0 0.0
        %5011 = vmatpush1.msra.mxu0 %v4884
        %5012 = vmatprep.subr.mxu0 0.0
        %5013 = vmatpush1.msra.mxu0 %v4885
        %5014 = vmatprep.subr.mxu0 0.0
        %5015 = vmatpush1.msra.mxu0 %v4886
        %5016 = vmatprep.subr.mxu0 0.0
        %5017 = vmatpush1.msra.mxu0 %v4887
        %5018 = vmatprep.subr.mxu0 0.0
        %5019 = vmatpush1.msra.mxu0 %v4888
        %5020 = vmatprep.subr.mxu0 0.0
        %5021 = vmatpush1.msra.mxu0 %v4889
        %5022 = vmatprep.subr.mxu0 0.0
        %5023 = vmatpush1.msra.mxu0 %v4890
        %5024 = vmatprep.subr.mxu0 0.0
        %5025 = vmatpush1.msra.mxu0 %v4891
        %5026 = vmatprep.subr.mxu0 0.0
        %5027 = vmatpush1.msra.mxu0 %v4892
        %5028 = vmatprep.subr.mxu0 0.0
        %5029 = vmatpush1.msra.mxu0 %v4893
        %5030 = vmatprep.mubr.f32.mxu0 %v4837
        %5031 = vmatmul.mubr.f32.gmra.mrb[0].mxu0 %v4829
        %v5032 = vpop.f32.mrb[0].mxu0
        %v5033 = vadd.f32 %v4940, %v5032
        %v5034 = vpop.f32.mrb[0].mxu0
        %5035 = vmatprep.mubr.f32.mxu0 %v4838
        %5036 = vmatmul.mubr.f32.gmra.mrb[0].mxu0 %v4830
        %v5037 = vpop.f32.mrb[0].mxu0
        %v5038 = vadd.f32 %v4940, %v5037
        %v5039 = vpop.f32.mrb[0].mxu0
        %5040 = vmatprep.mubr.f32.mxu0 %v4839
        %5041 = vmatmul.mubr.f32.gmra.mrb[0].mxu0 %v4831
        %v5042 = vpop.f32.mrb[0].mxu0
        %v5043 = vadd.f32 %v4940, %v5042
        %v5044 = vpop.f32.mrb[0].mxu0
        %5045 = vmatprep.mubr.f32.mxu0 %v4840
        %5046 = vmatmul.mubr.f32.gmra.mrb[0].mxu0 %v4832
        %v5047 = vpop.f32.mrb[0].mxu0
        %v5048 = vadd.f32 %v4940, %v5047
        %v5049 = vpop.f32.mrb[0].mxu0
        %5050 = vmatprep.mubr.f32.mxu0 %v4841
        %5051 = vmatmul.mubr.f32.gmra.mrb[0].mxu0 %v4833
        %v5052 = vpop.f32.mrb[0].mxu0
        %v5053 = vadd.f32 %v4940, %v5052
        %v5054 = vpop.f32.mrb[0].mxu0
        %5055 = vmatprep.mubr.f32.mxu0 %v4842
        %5056 = vmatmul.mubr.f32.gmra.mrb[0].mxu0 %v4834
        %v5057 = vpop.f32.mrb[0].mxu0
        %v5058 = vadd.f32 %v4940, %v5057
        %v5059 = vpop.f32.mrb[0].mxu0
        %5060 = vmatprep.mubr.f32.mxu0 %v4843
        %5061 = vmatmul.mubr.f32.gmra.mrb[0].mxu0 %v4835
        %v5062 = vpop.f32.mrb[0].mxu0
        %v5063 = vadd.f32 %v4940, %v5062
        %v5064 = vpop.f32.mrb[0].mxu0
        %5065 = vmatprep.mubr.f32.mxu0 %v4844
        %5066 = vmatmul.mubr.f32.gmra.mrb[0].mxu0 %v4836
        %v5067 = vpop.f32.mrb[0].mxu0
        %v5068 = vadd.f32 %v4940, %v5067
        %v5069 = vpop.f32.mrb[0].mxu0
        %5070 = vdwg.mxu0
        %5071 = vmatprep.subr.mxu0 0.0
        %5072 = vmatpush1.msra.mxu0 %v4894
        %5073 = vmatprep.subr.mxu0 0.0
        %5074 = vmatpush1.msra.mxu0 %v4895
        %5075 = vmatprep.subr.mxu0 0.0
        %5076 = vmatpush1.msra.mxu0 %v4896
        %5077 = vmatprep.subr.mxu0 0.0
        %5078 = vmatpush1.msra.mxu0 %v4897
        %5079 = vmatprep.subr.mxu0 0.0
        %5080 = vmatpush1.msra.mxu0 %v4898
        %5081 = vmatprep.subr.mxu0 0.0
        %5082 = vmatpush1.msra.mxu0 %v4899
        %5083 = vmatprep.subr.mxu0 0.0
        %5084 = vmatpush1.msra.mxu0 %v4900
        %5085 = vmatprep.subr.mxu0 0.0
        %5086 = vmatpush1.msra.mxu0 %v4901
        %5087 = vmatprep.subr.mxu0 0.0
        %5088 = vmatpush1.msra.mxu0 %v4902
        %5089 = vmatprep.subr.mxu0 0.0
        %5090 = vmatpush1.msra.mxu0 %v4903
        %5091 = vmatprep.subr.mxu0 0.0
        %5092 = vmatpush1.msra.mxu0 %v4904
        %5093 = vmatprep.subr.mxu0 0.0
        %5094 = vmatpush1.msra.mxu0 %v4905
        %5095 = vmatprep.subr.mxu0 0.0
        %5096 = vmatpush1.msra.mxu0 %v4906
        %5097 = vmatprep.subr.mxu0 0.0
        %5098 = vmatpush1.msra.mxu0 %v4907
        %5099 = vmatprep.subr.mxu0 0.0
        %5100 = vmatpush1.msra.mxu0 %v4908
        %5101 = vmatprep.subr.mxu0 0.0
        %5102 = vmatpush1.msra.mxu0 %v4909
        %5103 = vmatprep.subr.mxu0 0.0
        %5104 = vmatpush1.msra.mxu0 %v4910
        %5105 = vmatprep.subr.mxu0 0.0
        %5106 = vmatpush1.msra.mxu0 %v4911
        %5107 = vmatprep.subr.mxu0 0.0
        %5108 = vmatpush1.msra.mxu0 %v4912
        %5109 = vmatprep.subr.mxu0 0.0
        %5110 = vmatpush1.msra.mxu0 %v4913
        %5111 = vmatprep.subr.mxu0 0.0
        %5112 = vmatpush1.msra.mxu0 %v4914
        %5113 = vmatprep.subr.mxu0 0.0
        %5114 = vmatpush1.msra.mxu0 %v4915
        %5115 = vmatprep.subr.mxu0 0.0
        %5116 = vmatpush1.msra.mxu0 %v4916
        %5117 = vmatprep.subr.mxu0 0.0
        %5118 = vmatpush1.msra.mxu0 %v4917
        %5119 = vmatprep.subr.mxu0 0.0
        %5120 = vmatpush1.msra.mxu0 %v4918
        %5121 = vmatprep.subr.mxu0 0.0
        %5122 = vmatpush1.msra.mxu0 %v4919
        %5123 = vmatprep.subr.mxu0 0.0
        %5124 = vmatpush1.msra.mxu0 %v4920
        %5125 = vmatprep.subr.mxu0 0.0
        %5126 = vmatpush1.msra.mxu0 %v4921
        %5127 = vmatprep.subr.mxu0 0.0
        %5128 = vmatpush1.msra.mxu0 %v4922
        %5129 = vmatprep.subr.mxu0 0.0
        %5130 = vmatpush1.msra.mxu0 %v4923
        %5131 = vmatprep.subr.mxu0 0.0
        %5132 = vmatpush1.msra.mxu0 %v4924
        %5133 = vmatprep.subr.mxu0 0.0
        %5134 = vmatpush1.msra.mxu0 %v4925
        %5135 = vmatprep.mubr.f32.mxu0 %v4853
        %5136 = vmatmul.mubr.f32.gmra.mrb[0].mxu0 %v4845
        %v5137 = vpop.f32.mrb[0].mxu0
        %v5138 = vadd.f32 %v5033, %v5137
        %v5139 = vpop.f32.mrb[0].mxu0
        %5140 = vmatprep.mubr.f32.mxu0 %v4854
        %5141 = vmatmul.mubr.f32.gmra.mrb[0].mxu0 %v4846
        %v5142 = vpop.f32.mrb[0].mxu0
        %v5143 = vadd.f32 %v5038, %v5142
        %v5144 = vpop.f32.mrb[0].mxu0
        %5145 = vmatprep.mubr.f32.mxu0 %v4855
        %5146 = vmatmul.mubr.f32.gmra.mrb[0].mxu0 %v4847
        %v5147 = vpop.f32.mrb[0].mxu0
        %v5148 = vadd.f32 %v5043, %v5147
        %v5149 = vpop.f32.mrb[0].mxu0
        %5150 = vmatprep.mubr.f32.mxu0 %v4856
        %5151 = vmatmul.mubr.f32.gmra.mrb[0].mxu0 %v4848
        %v5152 = vpop.f32.mrb[0].mxu0
        %v5153 = vadd.f32 %v5048, %v5152
        %v5154 = vpop.f32.mrb[0].mxu0
        %5155 = vmatprep.mubr.f32.mxu0 %v4857
        %5156 = vmatmul.mubr.f32.gmra.mrb[0].mxu0 %v4849
        %v5157 = vpop.f32.mrb[0].mxu0
        %v5158 = vadd.f32 %v5053, %v5157
        %v5159 = vpop.f32.mrb[0].mxu0
        %5160 = vmatprep.mubr.f32.mxu0 %v4858
        %5161 = vmatmul.mubr.f32.gmra.mrb[0].mxu0 %v4850
        %v5162 = vpop.f32.mrb[0].mxu0
        %v5163 = vadd.f32 %v5058, %v5162
        %v5164 = vpop.f32.mrb[0].mxu0
        %5165 = vmatprep.mubr.f32.mxu0 %v4859
        %5166 = vmatmul.mubr.f32.gmra.mrb[0].mxu0 %v4851
        %v5167 = vpop.f32.mrb[0].mxu0
        %v5168 = vadd.f32 %v5063, %v5167
        %v5169 = vpop.f32.mrb[0].mxu0
        %5170 = vmatprep.mubr.f32.mxu0 %v4860
        %5171 = vmatmul.mubr.f32.gmra.mrb[0].mxu0 %v4852
        %v5172 = vpop.f32.mrb[0].mxu0
        %v5173 = vadd.f32 %v5068, %v5172
        %v5174 = vpop.f32.mrb[0].mxu0
        %5175 = vdwg.mxu0
        %5176 = vmatprep.subr.mxu0 0.0
        %5177 = vmatpush1.msra.mxu0 %v4926
        %5178 = vmatprep.subr.mxu0 0.0
        %5179 = vmatpush1.msra.mxu0 %v4927
        %5180 = vmatprep.subr.mxu0 0.0
        %5181 = vmatpush1.msra.mxu0 %v4928
        %5182 = vmatprep.subr.mxu0 0.0
        %5183 = vmatpush1.msra.mxu0 %v4929
        %5184 = vmatprep.subr.mxu0 0.0
        %5185 = vmatpush1.msra.mxu0 %v4930
        %5186 = vmatprep.subr.mxu0 0.0
        %5187 = vmatpush1.msra.mxu0 %v4931
        %5188 = vmatprep.subr.mxu0 0.0
        %5189 = vmatpush1.msra.mxu0 %v4932
        %5190 = vmatprep.subr.mxu0 0.0
        %5191 = vmatpush1.msra.mxu0 %v4933
        %5192 = vmatprep.subr.mxu0 0.0
        %5193 = vmatpush1.msra.mxu0 0.0
        %5194 = vmatprep.subr.mxu0 0.0
        %5195 = vmatpush1.msra.mxu0 0.0
        %5196 = vmatprep.subr.mxu0 0.0
        %5197 = vmatpush1.msra.mxu0 0.0
        %5198 = vmatprep.subr.mxu0 0.0
        %5199 = vmatpush1.msra.mxu0 0.0
        %5200 = vmatprep.subr.mxu0 0.0
        %5201 = vmatpush1.msra.mxu0 0.0
        %5202 = vmatprep.subr.mxu0 0.0
        %5203 = vmatpush1.msra.mxu0 0.0
        %5204 = vmatprep.subr.mxu0 0.0
        %5205 = vmatpush1.msra.mxu0 0.0
        %5206 = vmatprep.subr.mxu0 0.0
        %5207 = vmatpush1.msra.mxu0 0.0
        %5208 = vmatprep.subr.mxu0 0.0
        %5209 = vmatpush1.msra.mxu0 0.0
        %5210 = vmatprep.subr.mxu0 0.0
        %5211 = vmatpush1.msra.mxu0 0.0
        %5212 = vmatprep.subr.mxu0 0.0
        %5213 = vmatpush1.msra.mxu0 0.0
        %5214 = vmatprep.subr.mxu0 0.0
        %5215 = vmatpush1.msra.mxu0 0.0
        %5216 = vmatprep.subr.mxu0 0.0
        %5217 = vmatpush1.msra.mxu0 0.0
        %5218 = vmatprep.subr.mxu0 0.0
        %5219 = vmatpush1.msra.mxu0 0.0
        %5220 = vmatprep.subr.mxu0 0.0
        %5221 = vmatpush1.msra.mxu0 0.0
        %5222 = vmatprep.subr.mxu0 0.0
        %5223 = vmatpush1.msra.mxu0 0.0
        %5224 = vmatprep.subr.mxu0 0.0
        %5225 = vmatpush1.msra.mxu0 0.0
        %5226 = vmatprep.subr.mxu0 0.0
        %5227 = vmatpush1.msra.mxu0 0.0
        %5228 = vmatprep.subr.mxu0 0.0
        %5229 = vmatpush1.msra.mxu0 0.0
        %5230 = vmatprep.subr.mxu0 0.0
        %5231 = vmatpush1.msra.mxu0 0.0
        %5232 = vmatprep.subr.mxu0 0.0
        %5233 = vmatpush1.msra.mxu0 0.0
        %5234 = vmatprep.subr.mxu0 0.0
        %5235 = vmatpush1.msra.mxu0 0.0
        %5236 = vmatprep.subr.mxu0 0.0
        %5237 = vmatpush1.msra.mxu0 0.0
        %5238 = vmatprep.subr.mxu0 0.0
        %5239 = vmatpush1.msra.mxu0 0.0
        %5240 = vmatprep.mubr.f32.mxu0 0.0
        %5241 = vmatmul.mubr.f32.gmra.mrb[0].mxu0 %v4943
        %v5242 = vpop.f32.mrb[0].mxu0
        %v5243 = vadd.f32 %v5138, %v5242
        %v5244 = vpop.f32.mrb[0].mxu0
        %5245 = vmatprep.mubr.f32.mxu0 0.0
        %5246 = vmatmul.mubr.f32.gmra.mrb[0].mxu0 %v4946
        %v5247 = vpop.f32.mrb[0].mxu0
        %v5248 = vadd.f32 %v5143, %v5247
        %v5249 = vpop.f32.mrb[0].mxu0
        %5250 = vmatprep.mubr.f32.mxu0 0.0
        %5251 = vmatmul.mubr.f32.gmra.mrb[0].mxu0 %v4949
        %v5252 = vpop.f32.mrb[0].mxu0
        %v5253 = vadd.f32 %v5148, %v5252
        %v5254 = vpop.f32.mrb[0].mxu0
        %5255 = vmatprep.mubr.f32.mxu0 0.0
        %5256 = vmatmul.mubr.f32.gmra.mrb[0].mxu0 %v4952
        %v5257 = vpop.f32.mrb[0].mxu0
        %v5258 = vadd.f32 %v5153, %v5257
        %v5259 = vpop.f32.mrb[0].mxu0
        %5260 = vmatprep.mubr.f32.mxu0 0.0
        %5261 = vmatmul.mubr.f32.gmra.mrb[0].mxu0 %v4955
        %v5262 = vpop.f32.mrb[0].mxu0
        %v5263 = vadd.f32 %v5158, %v5262
        %v5264 = vpop.f32.mrb[0].mxu0
        %5265 = vmatprep.mubr.f32.mxu0 0.0
        %5266 = vmatmul.mubr.f32.gmra.mrb[0].mxu0 %v4958
        %v5267 = vpop.f32.mrb[0].mxu0
        %v5268 = vadd.f32 %v5163, %v5267
        %v5269 = vpop.f32.mrb[0].mxu0
        %5270 = vmatprep.mubr.f32.mxu0 0.0
        %5271 = vmatmul.mubr.f32.gmra.mrb[0].mxu0 %v4961
        %v5272 = vpop.f32.mrb[0].mxu0
        %v5273 = vadd.f32 %v5168, %v5272
        %v5274 = vpop.f32.mrb[0].mxu0
        %5275 = vmatprep.mubr.f32.mxu0 0.0
        %5276 = vmatmul.mubr.f32.gmra.mrb[0].mxu0 %v4964
        %v5277 = vpop.f32.mrb[0].mxu0
        %v5278 = vadd.f32 %v5173, %v5277
        %v5279 = vpop.f32.mrb[0].mxu0
        %5280 = vdwg.mxu0
        %vm5281 = vcmp.gt.f32.partialorder %v5243, 0.0
        %vm5282 = vcmp.gt.f32.partialorder %v5248, 0.0
        %vm5283 = vcmp.gt.f32.partialorder %v5253, 0.0
        %vm5284 = vcmp.gt.f32.partialorder %v5258, 0.0
        %vm5285 = vcmp.gt.f32.partialorder %v5263, 0.0
        %vm5286 = vcmp.gt.f32.partialorder %v5268, 0.0
        %vm5287 = vcmp.gt.f32.partialorder %v5273, 0.0
        %vm5288 = vcmp.gt.f32.partialorder %v5278, 0.0
        %v5289 = vmul.f32 %v5243, 0.01
        %v5290 = vmul.f32 %v5248, 0.01
        %v5291 = vmul.f32 %v5253, 0.01
        %v5292 = vmul.f32 %v5258, 0.01
        %v5293 = vmul.f32 %v5263, 0.01
        %v5294 = vmul.f32 %v5268, 0.01
        %v5295 = vmul.f32 %v5273, 0.01
        %v5296 = vmul.f32 %v5278, 0.01
        %v5297 = vsel %vm5281, %v5243, %v5289
        %v5298 = vsel %vm5282, %v5248, %v5290
        %v5299 = vsel %vm5283, %v5253, %v5291
        %v5300 = vsel %vm5284, %v5258, %v5292
        %v5301 = vsel %vm5285, %v5263, %v5293
        %v5302 = vsel %vm5286, %v5268, %v5294
        %v5303 = vsel %vm5287, %v5273, %v5295
        %v5304 = vsel %vm5288, %v5278, %v5296
        %5305 = vst.msk [vmem:[%s421 + $0x1] sm:$0xff] %vm223, %v5297
        %5306 = vst.msk [vmem:[%s421 + $0x11] sm:$0xff] %vm223, %v5298
        %5307 = vst.msk [vmem:[%s421 + $0x21] sm:$0xff] %vm223, %v5299
        %5308 = vst.msk [vmem:[%s421 + $0x31] sm:$0xff] %vm223, %v5300
        %5309 = vst.msk [vmem:[%s421 + $0x41] sm:$0xff] %vm223, %v5301
        %5310 = vst.msk [vmem:[%s421 + $0x51] sm:$0xff] %vm223, %v5302
        %5311 = vst.msk [vmem:[%s421 + $0x61] sm:$0xff] %vm223, %v5303
        %5312 = vst.msk [vmem:[%s421 + $0x71] sm:$0xff] %vm223, %v5304
        %v5313 = vld [vmem:[#allocation2] sm:$0xff]
        %v5314 = vld [vmem:[#allocation2 + $0x10] sm:$0xff]
        %v5315 = vld [vmem:[#allocation2 + $0x20] sm:$0xff]
        %v5316 = vld [vmem:[#allocation2 + $0x30] sm:$0xff]
        %v5317 = vld [vmem:[#allocation2 + $0x40] sm:$0xff]
        %v5318 = vld [vmem:[#allocation2 + $0x50] sm:$0xff]
        %v5319 = vld [vmem:[#allocation2 + $0x60] sm:$0xff]
        %v5320 = vld [vmem:[#allocation2 + $0x70] sm:$0xff]
        %v5321 = vld [vmem:[#allocation2 + $0x1] sm:$0xff]
        %v5322 = vld [vmem:[#allocation2 + $0x11] sm:$0xff]
        %v5323 = vld [vmem:[#allocation2 + $0x21] sm:$0xff]
        %v5324 = vld [vmem:[#allocation2 + $0x31] sm:$0xff]
        %v5325 = vld [vmem:[#allocation2 + $0x41] sm:$0xff]
        %v5326 = vld [vmem:[#allocation2 + $0x51] sm:$0xff]
        %v5327 = vld [vmem:[#allocation2 + $0x61] sm:$0xff]
        %v5328 = vld [vmem:[#allocation2 + $0x71] sm:$0xff]
        %v5329 = vld [vmem:[#allocation2 + $0x2] sm:$0xff]
        %v5330 = vld [vmem:[#allocation2 + $0x12] sm:$0xff]
        %v5331 = vld [vmem:[#allocation2 + $0x22] sm:$0xff]
        %v5332 = vld [vmem:[#allocation2 + $0x32] sm:$0xff]
        %v5333 = vld [vmem:[#allocation2 + $0x42] sm:$0xff]
        %v5334 = vld [vmem:[#allocation2 + $0x52] sm:$0xff]
        %v5335 = vld [vmem:[#allocation2 + $0x62] sm:$0xff]
        %v5336 = vld [vmem:[#allocation2 + $0x72] sm:$0xff]
        %v5337 = vld [vmem:[%s421] sm:$0xff]
        %v5338 = vld [vmem:[%s421 + $0x10] sm:$0xff]
        %v5339 = vld [vmem:[%s421 + $0x20] sm:$0xff]
        %v5340 = vld [vmem:[%s421 + $0x30] sm:$0xff]
        %v5341 = vld [vmem:[%s421 + $0x40] sm:$0xff]
        %v5342 = vld [vmem:[%s421 + $0x50] sm:$0xff]
        %v5343 = vld [vmem:[%s421 + $0x60] sm:$0xff]
        %v5344 = vld [vmem:[%s421 + $0x70] sm:$0xff]
        %v5345 = vld [vmem:[%s421 + $0x1] sm:$0xff]
        %v5346 = vld [vmem:[%s421 + $0x11] sm:$0xff]
        %v5347 = vld [vmem:[%s421 + $0x21] sm:$0xff]
        %v5348 = vld [vmem:[%s421 + $0x31] sm:$0xff]
        %v5349 = vld [vmem:[%s421 + $0x41] sm:$0xff]
        %v5350 = vld [vmem:[%s421 + $0x51] sm:$0xff]
        %v5351 = vld [vmem:[%s421 + $0x61] sm:$0xff]
        %v5352 = vld [vmem:[%s421 + $0x71] sm:$0xff]
        %v5353 = vld [vmem:[%s421 + $0x2] sm:$0xff]
        %v5354 = vld [vmem:[%s421 + $0x12] sm:$0xff]
        %v5355 = vld [vmem:[%s421 + $0x22] sm:$0xff]
        %v5356 = vld [vmem:[%s421 + $0x32] sm:$0xff]
        %v5357 = vld [vmem:[%s421 + $0x42] sm:$0xff]
        %v5358 = vld [vmem:[%s421 + $0x52] sm:$0xff]
        %v5359 = vld [vmem:[%s421 + $0x62] sm:$0xff]
        %v5360 = vld [vmem:[%s421 + $0x72] sm:$0xff]
        %v5361 = vld [vmem:[%s478] sm:$0xff]
        %v5362 = vld [vmem:[%s478 + $0x10] sm:$0xff]
        %v5363 = vld [vmem:[%s478 + $0x20] sm:$0xff]
        %v5364 = vld [vmem:[%s478 + $0x30] sm:$0xff]
        %v5365 = vld [vmem:[%s478 + $0x40] sm:$0xff]
        %v5366 = vld [vmem:[%s478 + $0x50] sm:$0xff]
        %v5367 = vld [vmem:[%s478 + $0x60] sm:$0xff]
        %v5368 = vld [vmem:[%s478 + $0x70] sm:$0xff]
        %v5369 = vld [vmem:[%s478 + $0x1] sm:$0xff]
        %v5370 = vld [vmem:[%s478 + $0x11] sm:$0xff]
        %v5371 = vld [vmem:[%s478 + $0x21] sm:$0xff]
        %v5372 = vld [vmem:[%s478 + $0x31] sm:$0xff]
        %v5373 = vld [vmem:[%s478 + $0x41] sm:$0xff]
        %v5374 = vld [vmem:[%s478 + $0x51] sm:$0xff]
        %v5375 = vld [vmem:[%s478 + $0x61] sm:$0xff]
        %v5376 = vld [vmem:[%s478 + $0x71] sm:$0xff]
        %v5377 = vld [vmem:[%s478 + $0x2] sm:$0xff]
        %v5378 = vld [vmem:[%s478 + $0x12] sm:$0xff]
        %v5379 = vld [vmem:[%s478 + $0x22] sm:$0xff]
        %v5380 = vld [vmem:[%s478 + $0x32] sm:$0xff]
        %v5381 = vld [vmem:[%s478 + $0x42] sm:$0xff]
        %v5382 = vld [vmem:[%s478 + $0x52] sm:$0xff]
        %v5383 = vld [vmem:[%s478 + $0x62] sm:$0xff]
        %v5384 = vld [vmem:[%s478 + $0x72] sm:$0xff]
        %5393 = vrot.lane.b32.xlu0 %v5321, 64
        %v5394 = vpop.permute.xlu0 %5393
        %5395 = vrot.lane.b32.xlu0 %v5322, 64
        %v5396 = vpop.permute.xlu0 %5395
        %5397 = vrot.lane.b32.xlu0 %v5323, 64
        %v5398 = vpop.permute.xlu0 %5397
        %5399 = vrot.lane.b32.xlu0 %v5324, 64
        %v5400 = vpop.permute.xlu0 %5399
        %5401 = vrot.lane.b32.xlu0 %v5325, 64
        %v5402 = vpop.permute.xlu0 %5401
        %5403 = vrot.lane.b32.xlu0 %v5326, 64
        %v5404 = vpop.permute.xlu0 %5403
        %5405 = vrot.lane.b32.xlu0 %v5327, 64
        %v5406 = vpop.permute.xlu0 %5405
        %5407 = vrot.lane.b32.xlu0 %v5328, 64
        %v5408 = vpop.permute.xlu0 %5407
        %5425 = vrot.lane.b32.xlu0 %v5337, 64
        %v5426 = vpop.permute.xlu0 %5425
        %5427 = vrot.lane.b32.xlu0 %v5338, 64
        %v5428 = vpop.permute.xlu0 %5427
        %5429 = vrot.lane.b32.xlu0 %v5339, 64
        %v5430 = vpop.permute.xlu0 %5429
        %5431 = vrot.lane.b32.xlu0 %v5340, 64
        %v5432 = vpop.permute.xlu0 %5431
        %5433 = vrot.lane.b32.xlu0 %v5341, 64
        %v5434 = vpop.permute.xlu0 %5433
        %5435 = vrot.lane.b32.xlu0 %v5342, 64
        %v5436 = vpop.permute.xlu0 %5435
        %5437 = vrot.lane.b32.xlu0 %v5343, 64
        %v5438 = vpop.permute.xlu0 %5437
        %5439 = vrot.lane.b32.xlu0 %v5344, 64
        %v5440 = vpop.permute.xlu0 %5439
        %5457 = vrot.lane.b32.xlu0 %v5353, 64
        %v5458 = vpop.permute.xlu0 %5457
        %5459 = vrot.lane.b32.xlu0 %v5354, 64
        %v5460 = vpop.permute.xlu0 %5459
        %5461 = vrot.lane.b32.xlu0 %v5355, 64
        %v5462 = vpop.permute.xlu0 %5461
        %5463 = vrot.lane.b32.xlu0 %v5356, 64
        %v5464 = vpop.permute.xlu0 %5463
        %5465 = vrot.lane.b32.xlu0 %v5357, 64
        %v5466 = vpop.permute.xlu0 %5465
        %5467 = vrot.lane.b32.xlu0 %v5358, 64
        %v5468 = vpop.permute.xlu0 %5467
        %5469 = vrot.lane.b32.xlu0 %v5359, 64
        %v5470 = vpop.permute.xlu0 %5469
        %5471 = vrot.lane.b32.xlu0 %v5360, 64
        %v5472 = vpop.permute.xlu0 %5471
        %5489 = vrot.lane.b32.xlu0 %v5369, 64
        %v5490 = vpop.permute.xlu0 %5489
        %5491 = vrot.lane.b32.xlu0 %v5370, 64
        %v5492 = vpop.permute.xlu0 %5491
        %5493 = vrot.lane.b32.xlu0 %v5371, 64
        %v5494 = vpop.permute.xlu0 %5493
        %5495 = vrot.lane.b32.xlu0 %v5372, 64
        %v5496 = vpop.permute.xlu0 %5495
        %5497 = vrot.lane.b32.xlu0 %v5373, 64
        %v5498 = vpop.permute.xlu0 %5497
        %5499 = vrot.lane.b32.xlu0 %v5374, 64
        %v5500 = vpop.permute.xlu0 %5499
        %5501 = vrot.lane.b32.xlu0 %v5375, 64
        %v5502 = vpop.permute.xlu0 %5501
        %5503 = vrot.lane.b32.xlu0 %v5376, 64
        %v5504 = vpop.permute.xlu0 %5503
        %v5513 = vsel %vm223, %v5313, %v5394
        %v5514 = vsel %vm223, %v5314, %v5396
        %v5515 = vsel %vm223, %v5315, %v5398
        %v5516 = vsel %vm223, %v5316, %v5400
        %v5517 = vsel %vm223, %v5317, %v5402
        %v5518 = vsel %vm223, %v5318, %v5404
        %v5519 = vsel %vm223, %v5319, %v5406
        %v5520 = vsel %vm223, %v5320, %v5408
        %v5521 = vsel %vm223, %v5329, %v5426
        %v5522 = vsel %vm223, %v5330, %v5428
        %v5523 = vsel %vm223, %v5331, %v5430
        %v5524 = vsel %vm223, %v5332, %v5432
        %v5525 = vsel %vm223, %v5333, %v5434
        %v5526 = vsel %vm223, %v5334, %v5436
        %v5527 = vsel %vm223, %v5335, %v5438
        %v5528 = vsel %vm223, %v5336, %v5440
        %v5529 = vsel %vm223, %v5345, %v5458
        %v5530 = vsel %vm223, %v5346, %v5460
        %v5531 = vsel %vm223, %v5347, %v5462
        %v5532 = vsel %vm223, %v5348, %v5464
        %v5533 = vsel %vm223, %v5349, %v5466
        %v5534 = vsel %vm223, %v5350, %v5468
        %v5535 = vsel %vm223, %v5351, %v5470
        %v5536 = vsel %vm223, %v5352, %v5472
        %v5537 = vsel %vm223, %v5361, %v5490
        %v5538 = vsel %vm223, %v5362, %v5492
        %v5539 = vsel %vm223, %v5363, %v5494
        %v5540 = vsel %vm223, %v5364, %v5496
        %v5541 = vsel %vm223, %v5365, %v5498
        %v5542 = vsel %vm223, %v5366, %v5500
        %v5543 = vsel %vm223, %v5367, %v5502
        %v5544 = vsel %vm223, %v5368, %v5504
        %s5545 = scalar_lea.vmem %s3, 4032
        %v5546 = vld [vmem:[%s5545] sm:$0xff]
        %v5547 = vld [vmem:[%s5545 + $0x8] sm:$0xff]
        %v5548 = vld [vmem:[%s5545 + $0x10] sm:$0xff]
        %v5549 = vld [vmem:[%s5545 + $0x18] sm:$0xff]
        %v5550 = vld [vmem:[%s5545 + $0x20] sm:$0xff]
        %v5551 = vld [vmem:[%s5545 + $0x28] sm:$0xff]
        %v5552 = vld [vmem:[%s5545 + $0x30] sm:$0xff]
        %v5553 = vld [vmem:[%s5545 + $0x38] sm:$0xff]
        %v5554 = vld [vmem:[%s5545 + $0x40] sm:$0xff]
        %v5555 = vld [vmem:[%s5545 + $0x48] sm:$0xff]
        %v5556 = vld [vmem:[%s5545 + $0x50] sm:$0xff]
        %v5557 = vld [vmem:[%s5545 + $0x58] sm:$0xff]
        %v5558 = vld [vmem:[%s5545 + $0x60] sm:$0xff]
        %v5559 = vld [vmem:[%s5545 + $0x68] sm:$0xff]
        %v5560 = vld [vmem:[%s5545 + $0x70] sm:$0xff]
        %v5561 = vld [vmem:[%s5545 + $0x78] sm:$0xff]
        %v5562 = vld [vmem:[%s5545 + $0x80] sm:$0xff]
        %v5563 = vld [vmem:[%s5545 + $0x88] sm:$0xff]
        %v5564 = vld [vmem:[%s5545 + $0x90] sm:$0xff]
        %v5565 = vld [vmem:[%s5545 + $0x98] sm:$0xff]
        %v5566 = vld [vmem:[%s5545 + $0xa0] sm:$0xff]
        %v5567 = vld [vmem:[%s5545 + $0xa8] sm:$0xff]
        %v5568 = vld [vmem:[%s5545 + $0xb0] sm:$0xff]
        %v5569 = vld [vmem:[%s5545 + $0xb8] sm:$0xff]
        %v5570 = vld [vmem:[%s5545 + $0xc0] sm:$0xff]
        %v5571 = vld [vmem:[%s5545 + $0xc8] sm:$0xff]
        %v5572 = vld [vmem:[%s5545 + $0xd0] sm:$0xff]
        %v5573 = vld [vmem:[%s5545 + $0xd8] sm:$0xff]
        %v5574 = vld [vmem:[%s5545 + $0xe0] sm:$0xff]
        %v5575 = vld [vmem:[%s5545 + $0xe8] sm:$0xff]
        %v5576 = vld [vmem:[%s5545 + $0xf0] sm:$0xff]
        %v5577 = vld [vmem:[%s5545 + $0xf8] sm:$0xff]
        %v5578 = vld [vmem:[%s5545 + $0x100] sm:$0xff]
        %v5579 = vld [vmem:[%s5545 + $0x108] sm:$0xff]
        %v5580 = vld [vmem:[%s5545 + $0x110] sm:$0xff]
        %v5581 = vld [vmem:[%s5545 + $0x118] sm:$0xff]
        %v5582 = vld [vmem:[%s5545 + $0x120] sm:$0xff]
        %v5583 = vld [vmem:[%s5545 + $0x128] sm:$0xff]
        %v5584 = vld [vmem:[%s5545 + $0x130] sm:$0xff]
        %v5585 = vld [vmem:[%s5545 + $0x138] sm:$0xff]
        %v5586 = vld [vmem:[%s5545 + $0x140] sm:$0xff]
        %v5587 = vld [vmem:[%s5545 + $0x148] sm:$0xff]
        %v5588 = vld [vmem:[%s5545 + $0x150] sm:$0xff]
        %v5589 = vld [vmem:[%s5545 + $0x158] sm:$0xff]
        %v5590 = vld [vmem:[%s5545 + $0x160] sm:$0xff]
        %v5591 = vld [vmem:[%s5545 + $0x168] sm:$0xff]
        %v5592 = vld [vmem:[%s5545 + $0x170] sm:$0xff]
        %v5593 = vld [vmem:[%s5545 + $0x178] sm:$0xff]
        %v5594 = vld [vmem:[%s5545 + $0x180] sm:$0xff]
        %v5595 = vld [vmem:[%s5545 + $0x188] sm:$0xff]
        %v5596 = vld [vmem:[%s5545 + $0x190] sm:$0xff]
        %v5597 = vld [vmem:[%s5545 + $0x198] sm:$0xff]
        %v5598 = vld [vmem:[%s5545 + $0x1a0] sm:$0xff]
        %v5599 = vld [vmem:[%s5545 + $0x1a8] sm:$0xff]
        %v5600 = vld [vmem:[%s5545 + $0x1b0] sm:$0xff]
        %v5601 = vld [vmem:[%s5545 + $0x1b8] sm:$0xff]
        %v5602 = vld [vmem:[%s5545 + $0x1c0] sm:$0xff]
        %v5603 = vld [vmem:[%s5545 + $0x1c8] sm:$0xff]
        %v5604 = vld [vmem:[%s5545 + $0x1d0] sm:$0xff]
        %v5605 = vld [vmem:[%s5545 + $0x1d8] sm:$0xff]
        %v5606 = vld [vmem:[%s5545 + $0x1e0] sm:$0xff]
        %v5607 = vld [vmem:[%s5545 + $0x1e8] sm:$0xff]
        %v5608 = vld [vmem:[%s5545 + $0x1f0] sm:$0xff]
        %v5609 = vld [vmem:[%s5545 + $0x1f8] sm:$0xff]
        %v5610 = vld [vmem:[%s5545 + $0x200] sm:$0xff]
        %v5611 = vld [vmem:[%s5545 + $0x208] sm:$0xff]
        %v5612 = vld [vmem:[%s5545 + $0x210] sm:$0xff]
        %v5613 = vld [vmem:[%s5545 + $0x218] sm:$0xff]
        %v5614 = vld [vmem:[%s5545 + $0x220] sm:$0xff]
        %v5615 = vld [vmem:[%s5545 + $0x228] sm:$0xff]
        %v5616 = vld [vmem:[%s5545 + $0x230] sm:$0xff]
        %v5617 = vld [vmem:[%s5545 + $0x238] sm:$0xff]
        %s5618 = scalar_lea.vmem %s4, 7
        %v5619 = vld [vmem:[%s5618] sm:$0x1]
        %v5621 = vlaneseq
        %v5622 = vshrl.u32 %v5621, 7
        %v5623 = vsub.s32 0, %v5622
        %v5624 = vrot.slane %v5619, %v5623
        %v5627 = vsel %vm223, %v5377, 0
        %v5630 = vsel %vm223, %v5378, 0
        %v5633 = vsel %vm223, %v5379, 0
        %v5636 = vsel %vm223, %v5380, 0
        %v5639 = vsel %vm223, %v5381, 0
        %v5642 = vsel %vm223, %v5382, 0
        %v5645 = vsel %vm223, %v5383, 0
        %v5648 = vsel %vm223, %v5384, 0
        %5650 = vmatprep.subr.mxu0 0.0
        %5651 = vmatpush1.msra.mxu0 %v5546
        %5652 = vmatprep.subr.mxu0 0.0
        %5653 = vmatpush1.msra.mxu0 %v5547
        %5654 = vmatprep.subr.mxu0 0.0
        %5655 = vmatpush1.msra.mxu0 %v5548
        %5656 = vmatprep.subr.mxu0 0.0
        %5657 = vmatpush1.msra.mxu0 %v5549
        %5658 = vmatprep.subr.mxu0 0.0
        %5659 = vmatpush1.msra.mxu0 %v5550
        %5660 = vmatprep.subr.mxu0 0.0
        %5661 = vmatpush1.msra.mxu0 %v5551
        %5662 = vmatprep.subr.mxu0 0.0
        %5663 = vmatpush1.msra.mxu0 %v5552
        %5664 = vmatprep.subr.mxu0 0.0
        %5665 = vmatpush1.msra.mxu0 %v5553
        %5666 = vmatprep.subr.mxu0 0.0
        %5667 = vmatpush1.msra.mxu0 %v5554
        %5668 = vmatprep.subr.mxu0 0.0
        %5669 = vmatpush1.msra.mxu0 %v5555
        %5670 = vmatprep.subr.mxu0 0.0
        %5671 = vmatpush1.msra.mxu0 %v5556
        %5672 = vmatprep.subr.mxu0 0.0
        %5673 = vmatpush1.msra.mxu0 %v5557
        %5674 = vmatprep.subr.mxu0 0.0
        %5675 = vmatpush1.msra.mxu0 %v5558
        %5676 = vmatprep.subr.mxu0 0.0
        %5677 = vmatpush1.msra.mxu0 %v5559
        %5678 = vmatprep.subr.mxu0 0.0
        %5679 = vmatpush1.msra.mxu0 %v5560
        %5680 = vmatprep.subr.mxu0 0.0
        %5681 = vmatpush1.msra.mxu0 %v5561
        %5682 = vmatprep.subr.mxu0 0.0
        %5683 = vmatpush1.msra.mxu0 %v5562
        %5684 = vmatprep.subr.mxu0 0.0
        %5685 = vmatpush1.msra.mxu0 %v5563
        %5686 = vmatprep.subr.mxu0 0.0
        %5687 = vmatpush1.msra.mxu0 %v5564
        %5688 = vmatprep.subr.mxu0 0.0
        %5689 = vmatpush1.msra.mxu0 %v5565
        %5690 = vmatprep.subr.mxu0 0.0
        %5691 = vmatpush1.msra.mxu0 %v5566
        %5692 = vmatprep.subr.mxu0 0.0
        %5693 = vmatpush1.msra.mxu0 %v5567
        %5694 = vmatprep.subr.mxu0 0.0
        %5695 = vmatpush1.msra.mxu0 %v5568
        %5696 = vmatprep.subr.mxu0 0.0
        %5697 = vmatpush1.msra.mxu0 %v5569
        %5698 = vmatprep.subr.mxu0 0.0
        %5699 = vmatpush1.msra.mxu0 %v5570
        %5700 = vmatprep.subr.mxu0 0.0
        %5701 = vmatpush1.msra.mxu0 %v5571
        %5702 = vmatprep.subr.mxu0 0.0
        %5703 = vmatpush1.msra.mxu0 %v5572
        %5704 = vmatprep.subr.mxu0 0.0
        %5705 = vmatpush1.msra.mxu0 %v5573
        %5706 = vmatprep.subr.mxu0 0.0
        %5707 = vmatpush1.msra.mxu0 %v5574
        %5708 = vmatprep.subr.mxu0 0.0
        %5709 = vmatpush1.msra.mxu0 %v5575
        %5710 = vmatprep.subr.mxu0 0.0
        %5711 = vmatpush1.msra.mxu0 %v5576
        %5712 = vmatprep.subr.mxu0 0.0
        %5713 = vmatpush1.msra.mxu0 %v5577
        %5714 = vmatprep.mubr.f32.mxu0 %v5521
        %5715 = vmatmul.mubr.f32.gmra.mrb[0].mxu0 %v5513
        %v5716 = vpop.f32.mrb[0].mxu0
        %v5717 = vadd.f32 %v5624, %v5716
        %v5718 = vpop.f32.mrb[0].mxu0
        %5719 = vmatprep.mubr.f32.mxu0 %v5522
        %5720 = vmatmul.mubr.f32.gmra.mrb[0].mxu0 %v5514
        %v5721 = vpop.f32.mrb[0].mxu0
        %v5722 = vadd.f32 %v5624, %v5721
        %v5723 = vpop.f32.mrb[0].mxu0
        %5724 = vmatprep.mubr.f32.mxu0 %v5523
        %5725 = vmatmul.mubr.f32.gmra.mrb[0].mxu0 %v5515
        %v5726 = vpop.f32.mrb[0].mxu0
        %v5727 = vadd.f32 %v5624, %v5726
        %v5728 = vpop.f32.mrb[0].mxu0
        %5729 = vmatprep.mubr.f32.mxu0 %v5524
        %5730 = vmatmul.mubr.f32.gmra.mrb[0].mxu0 %v5516
        %v5731 = vpop.f32.mrb[0].mxu0
        %v5732 = vadd.f32 %v5624, %v5731
        %v5733 = vpop.f32.mrb[0].mxu0
        %5734 = vmatprep.mubr.f32.mxu0 %v5525
        %5735 = vmatmul.mubr.f32.gmra.mrb[0].mxu0 %v5517
        %v5736 = vpop.f32.mrb[0].mxu0
        %v5737 = vadd.f32 %v5624, %v5736
        %v5738 = vpop.f32.mrb[0].mxu0
        %5739 = vmatprep.mubr.f32.mxu0 %v5526
        %5740 = vmatmul.mubr.f32.gmra.mrb[0].mxu0 %v5518
        %v5741 = vpop.f32.mrb[0].mxu0
        %v5742 = vadd.f32 %v5624, %v5741
        %v5743 = vpop.f32.mrb[0].mxu0
        %5744 = vmatprep.mubr.f32.mxu0 %v5527
        %5745 = vmatmul.mubr.f32.gmra.mrb[0].mxu0 %v5519
        %v5746 = vpop.f32.mrb[0].mxu0
        %v5747 = vadd.f32 %v5624, %v5746
        %v5748 = vpop.f32.mrb[0].mxu0
        %5749 = vmatprep.mubr.f32.mxu0 %v5528
        %5750 = vmatmul.mubr.f32.gmra.mrb[0].mxu0 %v5520
        %v5751 = vpop.f32.mrb[0].mxu0
        %v5752 = vadd.f32 %v5624, %v5751
        %v5753 = vpop.f32.mrb[0].mxu0
        %5754 = vdwg.mxu0
        %5755 = vmatprep.subr.mxu0 0.0
        %5756 = vmatpush1.msra.mxu0 %v5578
        %5757 = vmatprep.subr.mxu0 0.0
        %5758 = vmatpush1.msra.mxu0 %v5579
        %5759 = vmatprep.subr.mxu0 0.0
        %5760 = vmatpush1.msra.mxu0 %v5580
        %5761 = vmatprep.subr.mxu0 0.0
        %5762 = vmatpush1.msra.mxu0 %v5581
        %5763 = vmatprep.subr.mxu0 0.0
        %5764 = vmatpush1.msra.mxu0 %v5582
        %5765 = vmatprep.subr.mxu0 0.0
        %5766 = vmatpush1.msra.mxu0 %v5583
        %5767 = vmatprep.subr.mxu0 0.0
        %5768 = vmatpush1.msra.mxu0 %v5584
        %5769 = vmatprep.subr.mxu0 0.0
        %5770 = vmatpush1.msra.mxu0 %v5585
        %5771 = vmatprep.subr.mxu0 0.0
        %5772 = vmatpush1.msra.mxu0 %v5586
        %5773 = vmatprep.subr.mxu0 0.0
        %5774 = vmatpush1.msra.mxu0 %v5587
        %5775 = vmatprep.subr.mxu0 0.0
        %5776 = vmatpush1.msra.mxu0 %v5588
        %5777 = vmatprep.subr.mxu0 0.0
        %5778 = vmatpush1.msra.mxu0 %v5589
        %5779 = vmatprep.subr.mxu0 0.0
        %5780 = vmatpush1.msra.mxu0 %v5590
        %5781 = vmatprep.subr.mxu0 0.0
        %5782 = vmatpush1.msra.mxu0 %v5591
        %5783 = vmatprep.subr.mxu0 0.0
        %5784 = vmatpush1.msra.mxu0 %v5592
        %5785 = vmatprep.subr.mxu0 0.0
        %5786 = vmatpush1.msra.mxu0 %v5593
        %5787 = vmatprep.subr.mxu0 0.0
        %5788 = vmatpush1.msra.mxu0 %v5594
        %5789 = vmatprep.subr.mxu0 0.0
        %5790 = vmatpush1.msra.mxu0 %v5595
        %5791 = vmatprep.subr.mxu0 0.0
        %5792 = vmatpush1.msra.mxu0 %v5596
        %5793 = vmatprep.subr.mxu0 0.0
        %5794 = vmatpush1.msra.mxu0 %v5597
        %5795 = vmatprep.subr.mxu0 0.0
        %5796 = vmatpush1.msra.mxu0 %v5598
        %5797 = vmatprep.subr.mxu0 0.0
        %5798 = vmatpush1.msra.mxu0 %v5599
        %5799 = vmatprep.subr.mxu0 0.0
        %5800 = vmatpush1.msra.mxu0 %v5600
        %5801 = vmatprep.subr.mxu0 0.0
        %5802 = vmatpush1.msra.mxu0 %v5601
        %5803 = vmatprep.subr.mxu0 0.0
        %5804 = vmatpush1.msra.mxu0 %v5602
        %5805 = vmatprep.subr.mxu0 0.0
        %5806 = vmatpush1.msra.mxu0 %v5603
        %5807 = vmatprep.subr.mxu0 0.0
        %5808 = vmatpush1.msra.mxu0 %v5604
        %5809 = vmatprep.subr.mxu0 0.0
        %5810 = vmatpush1.msra.mxu0 %v5605
        %5811 = vmatprep.subr.mxu0 0.0
        %5812 = vmatpush1.msra.mxu0 %v5606
        %5813 = vmatprep.subr.mxu0 0.0
        %5814 = vmatpush1.msra.mxu0 %v5607
        %5815 = vmatprep.subr.mxu0 0.0
        %5816 = vmatpush1.msra.mxu0 %v5608
        %5817 = vmatprep.subr.mxu0 0.0
        %5818 = vmatpush1.msra.mxu0 %v5609
        %5819 = vmatprep.mubr.f32.mxu0 %v5537
        %5820 = vmatmul.mubr.f32.gmra.mrb[0].mxu0 %v5529
        %v5821 = vpop.f32.mrb[0].mxu0
        %v5822 = vadd.f32 %v5717, %v5821
        %v5823 = vpop.f32.mrb[0].mxu0
        %5824 = vmatprep.mubr.f32.mxu0 %v5538
        %5825 = vmatmul.mubr.f32.gmra.mrb[0].mxu0 %v5530
        %v5826 = vpop.f32.mrb[0].mxu0
        %v5827 = vadd.f32 %v5722, %v5826
        %v5828 = vpop.f32.mrb[0].mxu0
        %5829 = vmatprep.mubr.f32.mxu0 %v5539
        %5830 = vmatmul.mubr.f32.gmra.mrb[0].mxu0 %v5531
        %v5831 = vpop.f32.mrb[0].mxu0
        %v5832 = vadd.f32 %v5727, %v5831
        %v5833 = vpop.f32.mrb[0].mxu0
        %5834 = vmatprep.mubr.f32.mxu0 %v5540
        %5835 = vmatmul.mubr.f32.gmra.mrb[0].mxu0 %v5532
        %v5836 = vpop.f32.mrb[0].mxu0
        %v5837 = vadd.f32 %v5732, %v5836
        %v5838 = vpop.f32.mrb[0].mxu0
        %5839 = vmatprep.mubr.f32.mxu0 %v5541
        %5840 = vmatmul.mubr.f32.gmra.mrb[0].mxu0 %v5533
        %v5841 = vpop.f32.mrb[0].mxu0
        %v5842 = vadd.f32 %v5737, %v5841
        %v5843 = vpop.f32.mrb[0].mxu0
        %5844 = vmatprep.mubr.f32.mxu0 %v5542
        %5845 = vmatmul.mubr.f32.gmra.mrb[0].mxu0 %v5534
        %v5846 = vpop.f32.mrb[0].mxu0
        %v5847 = vadd.f32 %v5742, %v5846
        %v5848 = vpop.f32.mrb[0].mxu0
        %5849 = vmatprep.mubr.f32.mxu0 %v5543
        %5850 = vmatmul.mubr.f32.gmra.mrb[0].mxu0 %v5535
        %v5851 = vpop.f32.mrb[0].mxu0
        %v5852 = vadd.f32 %v5747, %v5851
        %v5853 = vpop.f32.mrb[0].mxu0
        %5854 = vmatprep.mubr.f32.mxu0 %v5544
        %5855 = vmatmul.mubr.f32.gmra.mrb[0].mxu0 %v5536
        %v5856 = vpop.f32.mrb[0].mxu0
        %v5857 = vadd.f32 %v5752, %v5856
        %v5858 = vpop.f32.mrb[0].mxu0
        %5859 = vdwg.mxu0
        %5860 = vmatprep.subr.mxu0 0.0
        %5861 = vmatpush1.msra.mxu0 %v5610
        %5862 = vmatprep.subr.mxu0 0.0
        %5863 = vmatpush1.msra.mxu0 %v5611
        %5864 = vmatprep.subr.mxu0 0.0
        %5865 = vmatpush1.msra.mxu0 %v5612
        %5866 = vmatprep.subr.mxu0 0.0
        %5867 = vmatpush1.msra.mxu0 %v5613
        %5868 = vmatprep.subr.mxu0 0.0
        %5869 = vmatpush1.msra.mxu0 %v5614
        %5870 = vmatprep.subr.mxu0 0.0
        %5871 = vmatpush1.msra.mxu0 %v5615
        %5872 = vmatprep.subr.mxu0 0.0
        %5873 = vmatpush1.msra.mxu0 %v5616
        %5874 = vmatprep.subr.mxu0 0.0
        %5875 = vmatpush1.msra.mxu0 %v5617
        %5876 = vmatprep.subr.mxu0 0.0
        %5877 = vmatpush1.msra.mxu0 0.0
        %5878 = vmatprep.subr.mxu0 0.0
        %5879 = vmatpush1.msra.mxu0 0.0
        %5880 = vmatprep.subr.mxu0 0.0
        %5881 = vmatpush1.msra.mxu0 0.0
        %5882 = vmatprep.subr.mxu0 0.0
        %5883 = vmatpush1.msra.mxu0 0.0
        %5884 = vmatprep.subr.mxu0 0.0
        %5885 = vmatpush1.msra.mxu0 0.0
        %5886 = vmatprep.subr.mxu0 0.0
        %5887 = vmatpush1.msra.mxu0 0.0
        %5888 = vmatprep.subr.mxu0 0.0
        %5889 = vmatpush1.msra.mxu0 0.0
        %5890 = vmatprep.subr.mxu0 0.0
        %5891 = vmatpush1.msra.mxu0 0.0
        %5892 = vmatprep.subr.mxu0 0.0
        %5893 = vmatpush1.msra.mxu0 0.0
        %5894 = vmatprep.subr.mxu0 0.0
        %5895 = vmatpush1.msra.mxu0 0.0
        %5896 = vmatprep.subr.mxu0 0.0
        %5897 = vmatpush1.msra.mxu0 0.0
        %5898 = vmatprep.subr.mxu0 0.0
        %5899 = vmatpush1.msra.mxu0 0.0
        %5900 = vmatprep.subr.mxu0 0.0
        %5901 = vmatpush1.msra.mxu0 0.0
        %5902 = vmatprep.subr.mxu0 0.0
        %5903 = vmatpush1.msra.mxu0 0.0
        %5904 = vmatprep.subr.mxu0 0.0
        %5905 = vmatpush1.msra.mxu0 0.0
        %5906 = vmatprep.subr.mxu0 0.0
        %5907 = vmatpush1.msra.mxu0 0.0
        %5908 = vmatprep.subr.mxu0 0.0
        %5909 = vmatpush1.msra.mxu0 0.0
        %5910 = vmatprep.subr.mxu0 0.0
        %5911 = vmatpush1.msra.mxu0 0.0
        %5912 = vmatprep.subr.mxu0 0.0
        %5913 = vmatpush1.msra.mxu0 0.0
        %5914 = vmatprep.subr.mxu0 0.0
        %5915 = vmatpush1.msra.mxu0 0.0
        %5916 = vmatprep.subr.mxu0 0.0
        %5917 = vmatpush1.msra.mxu0 0.0
        %5918 = vmatprep.subr.mxu0 0.0
        %5919 = vmatpush1.msra.mxu0 0.0
        %5920 = vmatprep.subr.mxu0 0.0
        %5921 = vmatpush1.msra.mxu0 0.0
        %5922 = vmatprep.subr.mxu0 0.0
        %5923 = vmatpush1.msra.mxu0 0.0
        %5924 = vmatprep.mubr.f32.mxu0 0.0
        %5925 = vmatmul.mubr.f32.gmra.mrb[0].mxu0 %v5627
        %v5926 = vpop.f32.mrb[0].mxu0
        %v5927 = vadd.f32 %v5822, %v5926
        %v5928 = vpop.f32.mrb[0].mxu0
        %5929 = vmatprep.mubr.f32.mxu0 0.0
        %5930 = vmatmul.mubr.f32.gmra.mrb[0].mxu0 %v5630
        %v5931 = vpop.f32.mrb[0].mxu0
        %v5932 = vadd.f32 %v5827, %v5931
        %v5933 = vpop.f32.mrb[0].mxu0
        %5934 = vmatprep.mubr.f32.mxu0 0.0
        %5935 = vmatmul.mubr.f32.gmra.mrb[0].mxu0 %v5633
        %v5936 = vpop.f32.mrb[0].mxu0
        %v5937 = vadd.f32 %v5832, %v5936
        %v5938 = vpop.f32.mrb[0].mxu0
        %5939 = vmatprep.mubr.f32.mxu0 0.0
        %5940 = vmatmul.mubr.f32.gmra.mrb[0].mxu0 %v5636
        %v5941 = vpop.f32.mrb[0].mxu0
        %v5942 = vadd.f32 %v5837, %v5941
        %v5943 = vpop.f32.mrb[0].mxu0
        %5944 = vmatprep.mubr.f32.mxu0 0.0
        %5945 = vmatmul.mubr.f32.gmra.mrb[0].mxu0 %v5639
        %v5946 = vpop.f32.mrb[0].mxu0
        %v5947 = vadd.f32 %v5842, %v5946
        %v5948 = vpop.f32.mrb[0].mxu0
        %5949 = vmatprep.mubr.f32.mxu0 0.0
        %5950 = vmatmul.mubr.f32.gmra.mrb[0].mxu0 %v5642
        %v5951 = vpop.f32.mrb[0].mxu0
        %v5952 = vadd.f32 %v5847, %v5951
        %v5953 = vpop.f32.mrb[0].mxu0
        %5954 = vmatprep.mubr.f32.mxu0 0.0
        %5955 = vmatmul.mubr.f32.gmra.mrb[0].mxu0 %v5645
        %v5956 = vpop.f32.mrb[0].mxu0
        %v5957 = vadd.f32 %v5852, %v5956
        %v5958 = vpop.f32.mrb[0].mxu0
        %5959 = vmatprep.mubr.f32.mxu0 0.0
        %5960 = vmatmul.mubr.f32.gmra.mrb[0].mxu0 %v5648
        %v5961 = vpop.f32.mrb[0].mxu0
        %v5962 = vadd.f32 %v5857, %v5961
        %v5963 = vpop.f32.mrb[0].mxu0
        %5964 = vdwg.mxu0
        %vm5965 = vcmp.gt.f32.partialorder %v5927, 0.0
        %vm5966 = vcmp.gt.f32.partialorder %v5932, 0.0
        %vm5967 = vcmp.gt.f32.partialorder %v5937, 0.0
        %vm5968 = vcmp.gt.f32.partialorder %v5942, 0.0
        %vm5969 = vcmp.gt.f32.partialorder %v5947, 0.0
        %vm5970 = vcmp.gt.f32.partialorder %v5952, 0.0
        %vm5971 = vcmp.gt.f32.partialorder %v5957, 0.0
        %vm5972 = vcmp.gt.f32.partialorder %v5962, 0.0
        %v5973 = vmul.f32 %v5927, 0.01
        %v5974 = vmul.f32 %v5932, 0.01
        %v5975 = vmul.f32 %v5937, 0.01
        %v5976 = vmul.f32 %v5942, 0.01
        %v5977 = vmul.f32 %v5947, 0.01
        %v5978 = vmul.f32 %v5952, 0.01
        %v5979 = vmul.f32 %v5957, 0.01
        %v5980 = vmul.f32 %v5962, 0.01
        %v5981 = vsel %vm5965, %v5927, %v5973
        %v5982 = vsel %vm5966, %v5932, %v5974
        %v5983 = vsel %vm5967, %v5937, %v5975
        %v5984 = vsel %vm5968, %v5942, %v5976
        %v5985 = vsel %vm5969, %v5947, %v5977
        %v5986 = vsel %vm5970, %v5952, %v5978
        %v5987 = vsel %vm5971, %v5957, %v5979
        %v5988 = vsel %vm5972, %v5962, %v5980
        %v5989 = vadd.f32 %v5981, %v4613
        %v5990 = vadd.f32 %v5982, %v4614
        %v5991 = vadd.f32 %v5983, %v4615
        %v5992 = vadd.f32 %v5984, %v4616
        %v5993 = vadd.f32 %v5985, %v4617
        %v5994 = vadd.f32 %v5986, %v4618
        %v5995 = vadd.f32 %v5987, %v4619
        %v5996 = vadd.f32 %v5988, %v4620
        %vm5997 = vcmp.gt.f32.partialorder %v5989, 0.0
        %vm5998 = vcmp.gt.f32.partialorder %v5990, 0.0
        %vm5999 = vcmp.gt.f32.partialorder %v5991, 0.0
        %vm6000 = vcmp.gt.f32.partialorder %v5992, 0.0
        %vm6001 = vcmp.gt.f32.partialorder %v5993, 0.0
        %vm6002 = vcmp.gt.f32.partialorder %v5994, 0.0
        %vm6003 = vcmp.gt.f32.partialorder %v5995, 0.0
        %vm6004 = vcmp.gt.f32.partialorder %v5996, 0.0
        %v6005 = vmul.f32 %v5989, 0.01
        %v6006 = vmul.f32 %v5990, 0.01
        %v6007 = vmul.f32 %v5991, 0.01
        %v6008 = vmul.f32 %v5992, 0.01
        %v6009 = vmul.f32 %v5993, 0.01
        %v6010 = vmul.f32 %v5994, 0.01
        %v6011 = vmul.f32 %v5995, 0.01
        %v6012 = vmul.f32 %v5996, 0.01
        %v6013 = vsel %vm5997, %v5989, %v6005
        %v6014 = vsel %vm5998, %v5990, %v6006
        %v6015 = vsel %vm5999, %v5991, %v6007
        %v6016 = vsel %vm6000, %v5992, %v6008
        %v6017 = vsel %vm6001, %v5993, %v6009
        %v6018 = vsel %vm6002, %v5994, %v6010
        %v6019 = vsel %vm6003, %v5995, %v6011
        %v6020 = vsel %vm6004, %v5996, %v6012
        %6021 = vst.msk [vmem:[%s421 + $0x1] sm:$0xff] %vm223, %v6013
        %6022 = vst.msk [vmem:[%s421 + $0x11] sm:$0xff] %vm223, %v6014
        %6023 = vst.msk [vmem:[%s421 + $0x21] sm:$0xff] %vm223, %v6015
        %6024 = vst.msk [vmem:[%s421 + $0x31] sm:$0xff] %vm223, %v6016
        %6025 = vst.msk [vmem:[%s421 + $0x41] sm:$0xff] %vm223, %v6017
        %6026 = vst.msk [vmem:[%s421 + $0x51] sm:$0xff] %vm223, %v6018
        %6027 = vst.msk [vmem:[%s421 + $0x61] sm:$0xff] %vm223, %v6019
        %6028 = vst.msk [vmem:[%s421 + $0x71] sm:$0xff] %vm223, %v6020
        %v6029 = vld [vmem:[#allocation2] sm:$0xff]
        %v6030 = vld [vmem:[#allocation2 + $0x10] sm:$0xff]
        %v6031 = vld [vmem:[#allocation2 + $0x20] sm:$0xff]
        %v6032 = vld [vmem:[#allocation2 + $0x30] sm:$0xff]
        %v6033 = vld [vmem:[#allocation2 + $0x40] sm:$0xff]
        %v6034 = vld [vmem:[#allocation2 + $0x50] sm:$0xff]
        %v6035 = vld [vmem:[#allocation2 + $0x60] sm:$0xff]
        %v6036 = vld [vmem:[#allocation2 + $0x70] sm:$0xff]
        %v6037 = vld [vmem:[#allocation2 + $0x1] sm:$0xff]
        %v6038 = vld [vmem:[#allocation2 + $0x11] sm:$0xff]
        %v6039 = vld [vmem:[#allocation2 + $0x21] sm:$0xff]
        %v6040 = vld [vmem:[#allocation2 + $0x31] sm:$0xff]
        %v6041 = vld [vmem:[#allocation2 + $0x41] sm:$0xff]
        %v6042 = vld [vmem:[#allocation2 + $0x51] sm:$0xff]
        %v6043 = vld [vmem:[#allocation2 + $0x61] sm:$0xff]
        %v6044 = vld [vmem:[#allocation2 + $0x71] sm:$0xff]
        %v6045 = vld [vmem:[#allocation2 + $0x2] sm:$0xff]
        %v6046 = vld [vmem:[#allocation2 + $0x12] sm:$0xff]
        %v6047 = vld [vmem:[#allocation2 + $0x22] sm:$0xff]
        %v6048 = vld [vmem:[#allocation2 + $0x32] sm:$0xff]
        %v6049 = vld [vmem:[#allocation2 + $0x42] sm:$0xff]
        %v6050 = vld [vmem:[#allocation2 + $0x52] sm:$0xff]
        %v6051 = vld [vmem:[#allocation2 + $0x62] sm:$0xff]
        %v6052 = vld [vmem:[#allocation2 + $0x72] sm:$0xff]
        %v6053 = vld [vmem:[%s421] sm:$0xff]
        %v6054 = vld [vmem:[%s421 + $0x10] sm:$0xff]
        %v6055 = vld [vmem:[%s421 + $0x20] sm:$0xff]
        %v6056 = vld [vmem:[%s421 + $0x30] sm:$0xff]
        %v6057 = vld [vmem:[%s421 + $0x40] sm:$0xff]
        %v6058 = vld [vmem:[%s421 + $0x50] sm:$0xff]
        %v6059 = vld [vmem:[%s421 + $0x60] sm:$0xff]
        %v6060 = vld [vmem:[%s421 + $0x70] sm:$0xff]
        %v6061 = vld [vmem:[%s421 + $0x1] sm:$0xff]
        %v6062 = vld [vmem:[%s421 + $0x11] sm:$0xff]
        %v6063 = vld [vmem:[%s421 + $0x21] sm:$0xff]
        %v6064 = vld [vmem:[%s421 + $0x31] sm:$0xff]
        %v6065 = vld [vmem:[%s421 + $0x41] sm:$0xff]
        %v6066 = vld [vmem:[%s421 + $0x51] sm:$0xff]
        %v6067 = vld [vmem:[%s421 + $0x61] sm:$0xff]
        %v6068 = vld [vmem:[%s421 + $0x71] sm:$0xff]
        %v6069 = vld [vmem:[%s421 + $0x2] sm:$0xff]
        %v6070 = vld [vmem:[%s421 + $0x12] sm:$0xff]
        %v6071 = vld [vmem:[%s421 + $0x22] sm:$0xff]
        %v6072 = vld [vmem:[%s421 + $0x32] sm:$0xff]
        %v6073 = vld [vmem:[%s421 + $0x42] sm:$0xff]
        %v6074 = vld [vmem:[%s421 + $0x52] sm:$0xff]
        %v6075 = vld [vmem:[%s421 + $0x62] sm:$0xff]
        %v6076 = vld [vmem:[%s421 + $0x72] sm:$0xff]
        %v6077 = vld [vmem:[%s478] sm:$0xff]
        %v6078 = vld [vmem:[%s478 + $0x10] sm:$0xff]
        %v6079 = vld [vmem:[%s478 + $0x20] sm:$0xff]
        %v6080 = vld [vmem:[%s478 + $0x30] sm:$0xff]
        %v6081 = vld [vmem:[%s478 + $0x40] sm:$0xff]
        %v6082 = vld [vmem:[%s478 + $0x50] sm:$0xff]
        %v6083 = vld [vmem:[%s478 + $0x60] sm:$0xff]
        %v6084 = vld [vmem:[%s478 + $0x70] sm:$0xff]
        %v6085 = vld [vmem:[%s478 + $0x1] sm:$0xff]
        %v6086 = vld [vmem:[%s478 + $0x11] sm:$0xff]
        %v6087 = vld [vmem:[%s478 + $0x21] sm:$0xff]
        %v6088 = vld [vmem:[%s478 + $0x31] sm:$0xff]
        %v6089 = vld [vmem:[%s478 + $0x41] sm:$0xff]
        %v6090 = vld [vmem:[%s478 + $0x51] sm:$0xff]
        %v6091 = vld [vmem:[%s478 + $0x61] sm:$0xff]
        %v6092 = vld [vmem:[%s478 + $0x71] sm:$0xff]
        %v6093 = vld [vmem:[%s478 + $0x2] sm:$0xff]
        %v6094 = vld [vmem:[%s478 + $0x12] sm:$0xff]
        %v6095 = vld [vmem:[%s478 + $0x22] sm:$0xff]
        %v6096 = vld [vmem:[%s478 + $0x32] sm:$0xff]
        %v6097 = vld [vmem:[%s478 + $0x42] sm:$0xff]
        %v6098 = vld [vmem:[%s478 + $0x52] sm:$0xff]
        %v6099 = vld [vmem:[%s478 + $0x62] sm:$0xff]
        %v6100 = vld [vmem:[%s478 + $0x72] sm:$0xff]
        %6109 = vrot.lane.b32.xlu0 %v6037, 64
        %v6110 = vpop.permute.xlu0 %6109
        %6111 = vrot.lane.b32.xlu0 %v6038, 64
        %v6112 = vpop.permute.xlu0 %6111
        %6113 = vrot.lane.b32.xlu0 %v6039, 64
        %v6114 = vpop.permute.xlu0 %6113
        %6115 = vrot.lane.b32.xlu0 %v6040, 64
        %v6116 = vpop.permute.xlu0 %6115
        %6117 = vrot.lane.b32.xlu0 %v6041, 64
        %v6118 = vpop.permute.xlu0 %6117
        %6119 = vrot.lane.b32.xlu0 %v6042, 64
        %v6120 = vpop.permute.xlu0 %6119
        %6121 = vrot.lane.b32.xlu0 %v6043, 64
        %v6122 = vpop.permute.xlu0 %6121
        %6123 = vrot.lane.b32.xlu0 %v6044, 64
        %v6124 = vpop.permute.xlu0 %6123
        %6141 = vrot.lane.b32.xlu0 %v6053, 64
        %v6142 = vpop.permute.xlu0 %6141
        %6143 = vrot.lane.b32.xlu0 %v6054, 64
        %v6144 = vpop.permute.xlu0 %6143
        %6145 = vrot.lane.b32.xlu0 %v6055, 64
        %v6146 = vpop.permute.xlu0 %6145
        %6147 = vrot.lane.b32.xlu0 %v6056, 64
        %v6148 = vpop.permute.xlu0 %6147
        %6149 = vrot.lane.b32.xlu0 %v6057, 64
        %v6150 = vpop.permute.xlu0 %6149
        %6151 = vrot.lane.b32.xlu0 %v6058, 64
        %v6152 = vpop.permute.xlu0 %6151
        %6153 = vrot.lane.b32.xlu0 %v6059, 64
        %v6154 = vpop.permute.xlu0 %6153
        %6155 = vrot.lane.b32.xlu0 %v6060, 64
        %v6156 = vpop.permute.xlu0 %6155
        %6173 = vrot.lane.b32.xlu0 %v6069, 64
        %v6174 = vpop.permute.xlu0 %6173
        %6175 = vrot.lane.b32.xlu0 %v6070, 64
        %v6176 = vpop.permute.xlu0 %6175
        %6177 = vrot.lane.b32.xlu0 %v6071, 64
        %v6178 = vpop.permute.xlu0 %6177
        %6179 = vrot.lane.b32.xlu0 %v6072, 64
        %v6180 = vpop.permute.xlu0 %6179
        %6181 = vrot.lane.b32.xlu0 %v6073, 64
        %v6182 = vpop.permute.xlu0 %6181
        %6183 = vrot.lane.b32.xlu0 %v6074, 64
        %v6184 = vpop.permute.xlu0 %6183
        %6185 = vrot.lane.b32.xlu0 %v6075, 64
        %v6186 = vpop.permute.xlu0 %6185
        %6187 = vrot.lane.b32.xlu0 %v6076, 64
        %v6188 = vpop.permute.xlu0 %6187
        %6205 = vrot.lane.b32.xlu0 %v6085, 64
        %v6206 = vpop.permute.xlu0 %6205
        %6207 = vrot.lane.b32.xlu0 %v6086, 64
        %v6208 = vpop.permute.xlu0 %6207
        %6209 = vrot.lane.b32.xlu0 %v6087, 64
        %v6210 = vpop.permute.xlu0 %6209
        %6211 = vrot.lane.b32.xlu0 %v6088, 64
        %v6212 = vpop.permute.xlu0 %6211
        %6213 = vrot.lane.b32.xlu0 %v6089, 64
        %v6214 = vpop.permute.xlu0 %6213
        %6215 = vrot.lane.b32.xlu0 %v6090, 64
        %v6216 = vpop.permute.xlu0 %6215
        %6217 = vrot.lane.b32.xlu0 %v6091, 64
        %v6218 = vpop.permute.xlu0 %6217
        %6219 = vrot.lane.b32.xlu0 %v6092, 64
        %v6220 = vpop.permute.xlu0 %6219
        %v6229 = vsel %vm223, %v6029, %v6110
        %v6230 = vsel %vm223, %v6030, %v6112
        %v6231 = vsel %vm223, %v6031, %v6114
        %v6232 = vsel %vm223, %v6032, %v6116
        %v6233 = vsel %vm223, %v6033, %v6118
        %v6234 = vsel %vm223, %v6034, %v6120
        %v6235 = vsel %vm223, %v6035, %v6122
        %v6236 = vsel %vm223, %v6036, %v6124
        %v6237 = vsel %vm223, %v6045, %v6142
        %v6238 = vsel %vm223, %v6046, %v6144
        %v6239 = vsel %vm223, %v6047, %v6146
        %v6240 = vsel %vm223, %v6048, %v6148
        %v6241 = vsel %vm223, %v6049, %v6150
        %v6242 = vsel %vm223, %v6050, %v6152
        %v6243 = vsel %vm223, %v6051, %v6154
        %v6244 = vsel %vm223, %v6052, %v6156
        %v6245 = vsel %vm223, %v6061, %v6174
        %v6246 = vsel %vm223, %v6062, %v6176
        %v6247 = vsel %vm223, %v6063, %v6178
        %v6248 = vsel %vm223, %v6064, %v6180
        %v6249 = vsel %vm223, %v6065, %v6182
        %v6250 = vsel %vm223, %v6066, %v6184
        %v6251 = vsel %vm223, %v6067, %v6186
        %v6252 = vsel %vm223, %v6068, %v6188
        %v6253 = vsel %vm223, %v6077, %v6206
        %v6254 = vsel %vm223, %v6078, %v6208
        %v6255 = vsel %vm223, %v6079, %v6210
        %v6256 = vsel %vm223, %v6080, %v6212
        %v6257 = vsel %vm223, %v6081, %v6214
        %v6258 = vsel %vm223, %v6082, %v6216
        %v6259 = vsel %vm223, %v6083, %v6218
        %v6260 = vsel %vm223, %v6084, %v6220
        %s6261 = scalar_lea.vmem %s3, 4608
        %v6262 = vld [vmem:[%s6261] sm:$0xff]
        %v6263 = vld [vmem:[%s6261 + $0x8] sm:$0xff]
        %v6264 = vld [vmem:[%s6261 + $0x10] sm:$0xff]
        %v6265 = vld [vmem:[%s6261 + $0x18] sm:$0xff]
        %v6266 = vld [vmem:[%s6261 + $0x20] sm:$0xff]
        %v6267 = vld [vmem:[%s6261 + $0x28] sm:$0xff]
        %v6268 = vld [vmem:[%s6261 + $0x30] sm:$0xff]
        %v6269 = vld [vmem:[%s6261 + $0x38] sm:$0xff]
        %v6270 = vld [vmem:[%s6261 + $0x40] sm:$0xff]
        %v6271 = vld [vmem:[%s6261 + $0x48] sm:$0xff]
        %v6272 = vld [vmem:[%s6261 + $0x50] sm:$0xff]
        %v6273 = vld [vmem:[%s6261 + $0x58] sm:$0xff]
        %v6274 = vld [vmem:[%s6261 + $0x60] sm:$0xff]
        %v6275 = vld [vmem:[%s6261 + $0x68] sm:$0xff]
        %v6276 = vld [vmem:[%s6261 + $0x70] sm:$0xff]
        %v6277 = vld [vmem:[%s6261 + $0x78] sm:$0xff]
        %v6278 = vld [vmem:[%s6261 + $0x80] sm:$0xff]
        %v6279 = vld [vmem:[%s6261 + $0x88] sm:$0xff]
        %v6280 = vld [vmem:[%s6261 + $0x90] sm:$0xff]
        %v6281 = vld [vmem:[%s6261 + $0x98] sm:$0xff]
        %v6282 = vld [vmem:[%s6261 + $0xa0] sm:$0xff]
        %v6283 = vld [vmem:[%s6261 + $0xa8] sm:$0xff]
        %v6284 = vld [vmem:[%s6261 + $0xb0] sm:$0xff]
        %v6285 = vld [vmem:[%s6261 + $0xb8] sm:$0xff]
        %v6286 = vld [vmem:[%s6261 + $0xc0] sm:$0xff]
        %v6287 = vld [vmem:[%s6261 + $0xc8] sm:$0xff]
        %v6288 = vld [vmem:[%s6261 + $0xd0] sm:$0xff]
        %v6289 = vld [vmem:[%s6261 + $0xd8] sm:$0xff]
        %v6290 = vld [vmem:[%s6261 + $0xe0] sm:$0xff]
        %v6291 = vld [vmem:[%s6261 + $0xe8] sm:$0xff]
        %v6292 = vld [vmem:[%s6261 + $0xf0] sm:$0xff]
        %v6293 = vld [vmem:[%s6261 + $0xf8] sm:$0xff]
        %v6294 = vld [vmem:[%s6261 + $0x100] sm:$0xff]
        %v6295 = vld [vmem:[%s6261 + $0x108] sm:$0xff]
        %v6296 = vld [vmem:[%s6261 + $0x110] sm:$0xff]
        %v6297 = vld [vmem:[%s6261 + $0x118] sm:$0xff]
        %v6298 = vld [vmem:[%s6261 + $0x120] sm:$0xff]
        %v6299 = vld [vmem:[%s6261 + $0x128] sm:$0xff]
        %v6300 = vld [vmem:[%s6261 + $0x130] sm:$0xff]
        %v6301 = vld [vmem:[%s6261 + $0x138] sm:$0xff]
        %v6302 = vld [vmem:[%s6261 + $0x140] sm:$0xff]
        %v6303 = vld [vmem:[%s6261 + $0x148] sm:$0xff]
        %v6304 = vld [vmem:[%s6261 + $0x150] sm:$0xff]
        %v6305 = vld [vmem:[%s6261 + $0x158] sm:$0xff]
        %v6306 = vld [vmem:[%s6261 + $0x160] sm:$0xff]
        %v6307 = vld [vmem:[%s6261 + $0x168] sm:$0xff]
        %v6308 = vld [vmem:[%s6261 + $0x170] sm:$0xff]
        %v6309 = vld [vmem:[%s6261 + $0x178] sm:$0xff]
        %v6310 = vld [vmem:[%s6261 + $0x180] sm:$0xff]
        %v6311 = vld [vmem:[%s6261 + $0x188] sm:$0xff]
        %v6312 = vld [vmem:[%s6261 + $0x190] sm:$0xff]
        %v6313 = vld [vmem:[%s6261 + $0x198] sm:$0xff]
        %v6314 = vld [vmem:[%s6261 + $0x1a0] sm:$0xff]
        %v6315 = vld [vmem:[%s6261 + $0x1a8] sm:$0xff]
        %v6316 = vld [vmem:[%s6261 + $0x1b0] sm:$0xff]
        %v6317 = vld [vmem:[%s6261 + $0x1b8] sm:$0xff]
        %v6318 = vld [vmem:[%s6261 + $0x1c0] sm:$0xff]
        %v6319 = vld [vmem:[%s6261 + $0x1c8] sm:$0xff]
        %v6320 = vld [vmem:[%s6261 + $0x1d0] sm:$0xff]
        %v6321 = vld [vmem:[%s6261 + $0x1d8] sm:$0xff]
        %v6322 = vld [vmem:[%s6261 + $0x1e0] sm:$0xff]
        %v6323 = vld [vmem:[%s6261 + $0x1e8] sm:$0xff]
        %v6324 = vld [vmem:[%s6261 + $0x1f0] sm:$0xff]
        %v6325 = vld [vmem:[%s6261 + $0x1f8] sm:$0xff]
        %v6326 = vld [vmem:[%s6261 + $0x200] sm:$0xff]
        %v6327 = vld [vmem:[%s6261 + $0x208] sm:$0xff]
        %v6328 = vld [vmem:[%s6261 + $0x210] sm:$0xff]
        %v6329 = vld [vmem:[%s6261 + $0x218] sm:$0xff]
        %v6330 = vld [vmem:[%s6261 + $0x220] sm:$0xff]
        %v6331 = vld [vmem:[%s6261 + $0x228] sm:$0xff]
        %v6332 = vld [vmem:[%s6261 + $0x230] sm:$0xff]
        %v6333 = vld [vmem:[%s6261 + $0x238] sm:$0xff]
        %s6334 = scalar_lea.vmem %s4, 8
        %v6335 = vld [vmem:[%s6334] sm:$0x1]
        %v6337 = vlaneseq
        %v6338 = vshrl.u32 %v6337, 7
        %v6339 = vsub.s32 0, %v6338
        %v6340 = vrot.slane %v6335, %v6339
        %v6343 = vsel %vm223, %v6093, 0
        %v6346 = vsel %vm223, %v6094, 0
        %v6349 = vsel %vm223, %v6095, 0
        %v6352 = vsel %vm223, %v6096, 0
        %v6355 = vsel %vm223, %v6097, 0
        %v6358 = vsel %vm223, %v6098, 0
        %v6361 = vsel %vm223, %v6099, 0
        %v6364 = vsel %vm223, %v6100, 0
        %6366 = vmatprep.subr.mxu0 0.0
        %6367 = vmatpush1.msra.mxu0 %v6262
        %6368 = vmatprep.subr.mxu0 0.0
        %6369 = vmatpush1.msra.mxu0 %v6263
        %6370 = vmatprep.subr.mxu0 0.0
        %6371 = vmatpush1.msra.mxu0 %v6264
        %6372 = vmatprep.subr.mxu0 0.0
        %6373 = vmatpush1.msra.mxu0 %v6265
        %6374 = vmatprep.subr.mxu0 0.0
        %6375 = vmatpush1.msra.mxu0 %v6266
        %6376 = vmatprep.subr.mxu0 0.0
        %6377 = vmatpush1.msra.mxu0 %v6267
        %6378 = vmatprep.subr.mxu0 0.0
        %6379 = vmatpush1.msra.mxu0 %v6268
        %6380 = vmatprep.subr.mxu0 0.0
        %6381 = vmatpush1.msra.mxu0 %v6269
        %6382 = vmatprep.subr.mxu0 0.0
        %6383 = vmatpush1.msra.mxu0 %v6270
        %6384 = vmatprep.subr.mxu0 0.0
        %6385 = vmatpush1.msra.mxu0 %v6271
        %6386 = vmatprep.subr.mxu0 0.0
        %6387 = vmatpush1.msra.mxu0 %v6272
        %6388 = vmatprep.subr.mxu0 0.0
        %6389 = vmatpush1.msra.mxu0 %v6273
        %6390 = vmatprep.subr.mxu0 0.0
        %6391 = vmatpush1.msra.mxu0 %v6274
        %6392 = vmatprep.subr.mxu0 0.0
        %6393 = vmatpush1.msra.mxu0 %v6275
        %6394 = vmatprep.subr.mxu0 0.0
        %6395 = vmatpush1.msra.mxu0 %v6276
        %6396 = vmatprep.subr.mxu0 0.0
        %6397 = vmatpush1.msra.mxu0 %v6277
        %6398 = vmatprep.subr.mxu0 0.0
        %6399 = vmatpush1.msra.mxu0 %v6278
        %6400 = vmatprep.subr.mxu0 0.0
        %6401 = vmatpush1.msra.mxu0 %v6279
        %6402 = vmatprep.subr.mxu0 0.0
        %6403 = vmatpush1.msra.mxu0 %v6280
        %6404 = vmatprep.subr.mxu0 0.0
        %6405 = vmatpush1.msra.mxu0 %v6281
        %6406 = vmatprep.subr.mxu0 0.0
        %6407 = vmatpush1.msra.mxu0 %v6282
        %6408 = vmatprep.subr.mxu0 0.0
        %6409 = vmatpush1.msra.mxu0 %v6283
        %6410 = vmatprep.subr.mxu0 0.0
        %6411 = vmatpush1.msra.mxu0 %v6284
        %6412 = vmatprep.subr.mxu0 0.0
        %6413 = vmatpush1.msra.mxu0 %v6285
        %6414 = vmatprep.subr.mxu0 0.0
        %6415 = vmatpush1.msra.mxu0 %v6286
        %6416 = vmatprep.subr.mxu0 0.0
        %6417 = vmatpush1.msra.mxu0 %v6287
        %6418 = vmatprep.subr.mxu0 0.0
        %6419 = vmatpush1.msra.mxu0 %v6288
        %6420 = vmatprep.subr.mxu0 0.0
        %6421 = vmatpush1.msra.mxu0 %v6289
        %6422 = vmatprep.subr.mxu0 0.0
        %6423 = vmatpush1.msra.mxu0 %v6290
        %6424 = vmatprep.subr.mxu0 0.0
        %6425 = vmatpush1.msra.mxu0 %v6291
        %6426 = vmatprep.subr.mxu0 0.0
        %6427 = vmatpush1.msra.mxu0 %v6292
        %6428 = vmatprep.subr.mxu0 0.0
        %6429 = vmatpush1.msra.mxu0 %v6293
        %6430 = vmatprep.mubr.f32.mxu0 %v6237
        %6431 = vmatmul.mubr.f32.gmra.mrb[0].mxu0 %v6229
        %v6432 = vpop.f32.mrb[0].mxu0
        %v6433 = vadd.f32 %v6340, %v6432
        %v6434 = vpop.f32.mrb[0].mxu0
        %6435 = vmatprep.mubr.f32.mxu0 %v6238
        %6436 = vmatmul.mubr.f32.gmra.mrb[0].mxu0 %v6230
        %v6437 = vpop.f32.mrb[0].mxu0
        %v6438 = vadd.f32 %v6340, %v6437
        %v6439 = vpop.f32.mrb[0].mxu0
        %6440 = vmatprep.mubr.f32.mxu0 %v6239
        %6441 = vmatmul.mubr.f32.gmra.mrb[0].mxu0 %v6231
        %v6442 = vpop.f32.mrb[0].mxu0
        %v6443 = vadd.f32 %v6340, %v6442
        %v6444 = vpop.f32.mrb[0].mxu0
        %6445 = vmatprep.mubr.f32.mxu0 %v6240
        %6446 = vmatmul.mubr.f32.gmra.mrb[0].mxu0 %v6232
        %v6447 = vpop.f32.mrb[0].mxu0
        %v6448 = vadd.f32 %v6340, %v6447
        %v6449 = vpop.f32.mrb[0].mxu0
        %6450 = vmatprep.mubr.f32.mxu0 %v6241
        %6451 = vmatmul.mubr.f32.gmra.mrb[0].mxu0 %v6233
        %v6452 = vpop.f32.mrb[0].mxu0
        %v6453 = vadd.f32 %v6340, %v6452
        %v6454 = vpop.f32.mrb[0].mxu0
        %6455 = vmatprep.mubr.f32.mxu0 %v6242
        %6456 = vmatmul.mubr.f32.gmra.mrb[0].mxu0 %v6234
        %v6457 = vpop.f32.mrb[0].mxu0
        %v6458 = vadd.f32 %v6340, %v6457
        %v6459 = vpop.f32.mrb[0].mxu0
        %6460 = vmatprep.mubr.f32.mxu0 %v6243
        %6461 = vmatmul.mubr.f32.gmra.mrb[0].mxu0 %v6235
        %v6462 = vpop.f32.mrb[0].mxu0
        %v6463 = vadd.f32 %v6340, %v6462
        %v6464 = vpop.f32.mrb[0].mxu0
        %6465 = vmatprep.mubr.f32.mxu0 %v6244
        %6466 = vmatmul.mubr.f32.gmra.mrb[0].mxu0 %v6236
        %v6467 = vpop.f32.mrb[0].mxu0
        %v6468 = vadd.f32 %v6340, %v6467
        %v6469 = vpop.f32.mrb[0].mxu0
        %6470 = vdwg.mxu0
        %6471 = vmatprep.subr.mxu0 0.0
        %6472 = vmatpush1.msra.mxu0 %v6294
        %6473 = vmatprep.subr.mxu0 0.0
        %6474 = vmatpush1.msra.mxu0 %v6295
        %6475 = vmatprep.subr.mxu0 0.0
        %6476 = vmatpush1.msra.mxu0 %v6296
        %6477 = vmatprep.subr.mxu0 0.0
        %6478 = vmatpush1.msra.mxu0 %v6297
        %6479 = vmatprep.subr.mxu0 0.0
        %6480 = vmatpush1.msra.mxu0 %v6298
        %6481 = vmatprep.subr.mxu0 0.0
        %6482 = vmatpush1.msra.mxu0 %v6299
        %6483 = vmatprep.subr.mxu0 0.0
        %6484 = vmatpush1.msra.mxu0 %v6300
        %6485 = vmatprep.subr.mxu0 0.0
        %6486 = vmatpush1.msra.mxu0 %v6301
        %6487 = vmatprep.subr.mxu0 0.0
        %6488 = vmatpush1.msra.mxu0 %v6302
        %6489 = vmatprep.subr.mxu0 0.0
        %6490 = vmatpush1.msra.mxu0 %v6303
        %6491 = vmatprep.subr.mxu0 0.0
        %6492 = vmatpush1.msra.mxu0 %v6304
        %6493 = vmatprep.subr.mxu0 0.0
        %6494 = vmatpush1.msra.mxu0 %v6305
        %6495 = vmatprep.subr.mxu0 0.0
        %6496 = vmatpush1.msra.mxu0 %v6306
        %6497 = vmatprep.subr.mxu0 0.0
        %6498 = vmatpush1.msra.mxu0 %v6307
        %6499 = vmatprep.subr.mxu0 0.0
        %6500 = vmatpush1.msra.mxu0 %v6308
        %6501 = vmatprep.subr.mxu0 0.0
        %6502 = vmatpush1.msra.mxu0 %v6309
        %6503 = vmatprep.subr.mxu0 0.0
        %6504 = vmatpush1.msra.mxu0 %v6310
        %6505 = vmatprep.subr.mxu0 0.0
        %6506 = vmatpush1.msra.mxu0 %v6311
        %6507 = vmatprep.subr.mxu0 0.0
        %6508 = vmatpush1.msra.mxu0 %v6312
        %6509 = vmatprep.subr.mxu0 0.0
        %6510 = vmatpush1.msra.mxu0 %v6313
        %6511 = vmatprep.subr.mxu0 0.0
        %6512 = vmatpush1.msra.mxu0 %v6314
        %6513 = vmatprep.subr.mxu0 0.0
        %6514 = vmatpush1.msra.mxu0 %v6315
        %6515 = vmatprep.subr.mxu0 0.0
        %6516 = vmatpush1.msra.mxu0 %v6316
        %6517 = vmatprep.subr.mxu0 0.0
        %6518 = vmatpush1.msra.mxu0 %v6317
        %6519 = vmatprep.subr.mxu0 0.0
        %6520 = vmatpush1.msra.mxu0 %v6318
        %6521 = vmatprep.subr.mxu0 0.0
        %6522 = vmatpush1.msra.mxu0 %v6319
        %6523 = vmatprep.subr.mxu0 0.0
        %6524 = vmatpush1.msra.mxu0 %v6320
        %6525 = vmatprep.subr.mxu0 0.0
        %6526 = vmatpush1.msra.mxu0 %v6321
        %6527 = vmatprep.subr.mxu0 0.0
        %6528 = vmatpush1.msra.mxu0 %v6322
        %6529 = vmatprep.subr.mxu0 0.0
        %6530 = vmatpush1.msra.mxu0 %v6323
        %6531 = vmatprep.subr.mxu0 0.0
        %6532 = vmatpush1.msra.mxu0 %v6324
        %6533 = vmatprep.subr.mxu0 0.0
        %6534 = vmatpush1.msra.mxu0 %v6325
        %6535 = vmatprep.mubr.f32.mxu0 %v6253
        %6536 = vmatmul.mubr.f32.gmra.mrb[0].mxu0 %v6245
        %v6537 = vpop.f32.mrb[0].mxu0
        %v6538 = vadd.f32 %v6433, %v6537
        %v6539 = vpop.f32.mrb[0].mxu0
        %6540 = vmatprep.mubr.f32.mxu0 %v6254
        %6541 = vmatmul.mubr.f32.gmra.mrb[0].mxu0 %v6246
        %v6542 = vpop.f32.mrb[0].mxu0
        %v6543 = vadd.f32 %v6438, %v6542
        %v6544 = vpop.f32.mrb[0].mxu0
        %6545 = vmatprep.mubr.f32.mxu0 %v6255
        %6546 = vmatmul.mubr.f32.gmra.mrb[0].mxu0 %v6247
        %v6547 = vpop.f32.mrb[0].mxu0
        %v6548 = vadd.f32 %v6443, %v6547
        %v6549 = vpop.f32.mrb[0].mxu0
        %6550 = vmatprep.mubr.f32.mxu0 %v6256
        %6551 = vmatmul.mubr.f32.gmra.mrb[0].mxu0 %v6248
        %v6552 = vpop.f32.mrb[0].mxu0
        %v6553 = vadd.f32 %v6448, %v6552
        %v6554 = vpop.f32.mrb[0].mxu0
        %6555 = vmatprep.mubr.f32.mxu0 %v6257
        %6556 = vmatmul.mubr.f32.gmra.mrb[0].mxu0 %v6249
        %v6557 = vpop.f32.mrb[0].mxu0
        %v6558 = vadd.f32 %v6453, %v6557
        %v6559 = vpop.f32.mrb[0].mxu0
        %6560 = vmatprep.mubr.f32.mxu0 %v6258
        %6561 = vmatmul.mubr.f32.gmra.mrb[0].mxu0 %v6250
        %v6562 = vpop.f32.mrb[0].mxu0
        %v6563 = vadd.f32 %v6458, %v6562
        %v6564 = vpop.f32.mrb[0].mxu0
        %6565 = vmatprep.mubr.f32.mxu0 %v6259
        %6566 = vmatmul.mubr.f32.gmra.mrb[0].mxu0 %v6251
        %v6567 = vpop.f32.mrb[0].mxu0
        %v6568 = vadd.f32 %v6463, %v6567
        %v6569 = vpop.f32.mrb[0].mxu0
        %6570 = vmatprep.mubr.f32.mxu0 %v6260
        %6571 = vmatmul.mubr.f32.gmra.mrb[0].mxu0 %v6252
        %v6572 = vpop.f32.mrb[0].mxu0
        %v6573 = vadd.f32 %v6468, %v6572
        %v6574 = vpop.f32.mrb[0].mxu0
        %6575 = vdwg.mxu0
        %6576 = vmatprep.subr.mxu0 0.0
        %6577 = vmatpush1.msra.mxu0 %v6326
        %6578 = vmatprep.subr.mxu0 0.0
        %6579 = vmatpush1.msra.mxu0 %v6327
        %6580 = vmatprep.subr.mxu0 0.0
        %6581 = vmatpush1.msra.mxu0 %v6328
        %6582 = vmatprep.subr.mxu0 0.0
        %6583 = vmatpush1.msra.mxu0 %v6329
        %6584 = vmatprep.subr.mxu0 0.0
        %6585 = vmatpush1.msra.mxu0 %v6330
        %6586 = vmatprep.subr.mxu0 0.0
        %6587 = vmatpush1.msra.mxu0 %v6331
        %6588 = vmatprep.subr.mxu0 0.0
        %6589 = vmatpush1.msra.mxu0 %v6332
        %6590 = vmatprep.subr.mxu0 0.0
        %6591 = vmatpush1.msra.mxu0 %v6333
        %6592 = vmatprep.subr.mxu0 0.0
        %6593 = vmatpush1.msra.mxu0 0.0
        %6594 = vmatprep.subr.mxu0 0.0
        %6595 = vmatpush1.msra.mxu0 0.0
        %6596 = vmatprep.subr.mxu0 0.0
        %6597 = vmatpush1.msra.mxu0 0.0
        %6598 = vmatprep.subr.mxu0 0.0
        %6599 = vmatpush1.msra.mxu0 0.0
        %6600 = vmatprep.subr.mxu0 0.0
        %6601 = vmatpush1.msra.mxu0 0.0
        %6602 = vmatprep.subr.mxu0 0.0
        %6603 = vmatpush1.msra.mxu0 0.0
        %6604 = vmatprep.subr.mxu0 0.0
        %6605 = vmatpush1.msra.mxu0 0.0
        %6606 = vmatprep.subr.mxu0 0.0
        %6607 = vmatpush1.msra.mxu0 0.0
        %6608 = vmatprep.subr.mxu0 0.0
        %6609 = vmatpush1.msra.mxu0 0.0
        %6610 = vmatprep.subr.mxu0 0.0
        %6611 = vmatpush1.msra.mxu0 0.0
        %6612 = vmatprep.subr.mxu0 0.0
        %6613 = vmatpush1.msra.mxu0 0.0
        %6614 = vmatprep.subr.mxu0 0.0
        %6615 = vmatpush1.msra.mxu0 0.0
        %6616 = vmatprep.subr.mxu0 0.0
        %6617 = vmatpush1.msra.mxu0 0.0
        %6618 = vmatprep.subr.mxu0 0.0
        %6619 = vmatpush1.msra.mxu0 0.0
        %6620 = vmatprep.subr.mxu0 0.0
        %6621 = vmatpush1.msra.mxu0 0.0
        %6622 = vmatprep.subr.mxu0 0.0
        %6623 = vmatpush1.msra.mxu0 0.0
        %6624 = vmatprep.subr.mxu0 0.0
        %6625 = vmatpush1.msra.mxu0 0.0
        %6626 = vmatprep.subr.mxu0 0.0
        %6627 = vmatpush1.msra.mxu0 0.0
        %6628 = vmatprep.subr.mxu0 0.0
        %6629 = vmatpush1.msra.mxu0 0.0
        %6630 = vmatprep.subr.mxu0 0.0
        %6631 = vmatpush1.msra.mxu0 0.0
        %6632 = vmatprep.subr.mxu0 0.0
        %6633 = vmatpush1.msra.mxu0 0.0
        %6634 = vmatprep.subr.mxu0 0.0
        %6635 = vmatpush1.msra.mxu0 0.0
        %6636 = vmatprep.subr.mxu0 0.0
        %6637 = vmatpush1.msra.mxu0 0.0
        %6638 = vmatprep.subr.mxu0 0.0
        %6639 = vmatpush1.msra.mxu0 0.0
        %6640 = vmatprep.mubr.f32.mxu0 0.0
        %6641 = vmatmul.mubr.f32.gmra.mrb[0].mxu0 %v6343
        %v6642 = vpop.f32.mrb[0].mxu0
        %v6643 = vadd.f32 %v6538, %v6642
        %v6644 = vpop.f32.mrb[0].mxu0
        %6645 = vmatprep.mubr.f32.mxu0 0.0
        %6646 = vmatmul.mubr.f32.gmra.mrb[0].mxu0 %v6346
        %v6647 = vpop.f32.mrb[0].mxu0
        %v6648 = vadd.f32 %v6543, %v6647
        %v6649 = vpop.f32.mrb[0].mxu0
        %6650 = vmatprep.mubr.f32.mxu0 0.0
        %6651 = vmatmul.mubr.f32.gmra.mrb[0].mxu0 %v6349
        %v6652 = vpop.f32.mrb[0].mxu0
        %v6653 = vadd.f32 %v6548, %v6652
        %v6654 = vpop.f32.mrb[0].mxu0
        %6655 = vmatprep.mubr.f32.mxu0 0.0
        %6656 = vmatmul.mubr.f32.gmra.mrb[0].mxu0 %v6352
        %v6657 = vpop.f32.mrb[0].mxu0
        %v6658 = vadd.f32 %v6553, %v6657
        %v6659 = vpop.f32.mrb[0].mxu0
        %6660 = vmatprep.mubr.f32.mxu0 0.0
        %6661 = vmatmul.mubr.f32.gmra.mrb[0].mxu0 %v6355
        %v6662 = vpop.f32.mrb[0].mxu0
        %v6663 = vadd.f32 %v6558, %v6662
        %v6664 = vpop.f32.mrb[0].mxu0
        %6665 = vmatprep.mubr.f32.mxu0 0.0
        %6666 = vmatmul.mubr.f32.gmra.mrb[0].mxu0 %v6358
        %v6667 = vpop.f32.mrb[0].mxu0
        %v6668 = vadd.f32 %v6563, %v6667
        %v6669 = vpop.f32.mrb[0].mxu0
        %6670 = vmatprep.mubr.f32.mxu0 0.0
        %6671 = vmatmul.mubr.f32.gmra.mrb[0].mxu0 %v6361
        %v6672 = vpop.f32.mrb[0].mxu0
        %v6673 = vadd.f32 %v6568, %v6672
        %v6674 = vpop.f32.mrb[0].mxu0
        %6675 = vmatprep.mubr.f32.mxu0 0.0
        %6676 = vmatmul.mubr.f32.gmra.mrb[0].mxu0 %v6364
        %v6677 = vpop.f32.mrb[0].mxu0
        %v6678 = vadd.f32 %v6573, %v6677
        %v6679 = vpop.f32.mrb[0].mxu0
        %6680 = vdwg.mxu0
        %vm6681 = vcmp.gt.f32.partialorder %v6643, 0.0
        %vm6682 = vcmp.gt.f32.partialorder %v6648, 0.0
        %vm6683 = vcmp.gt.f32.partialorder %v6653, 0.0
        %vm6684 = vcmp.gt.f32.partialorder %v6658, 0.0
        %vm6685 = vcmp.gt.f32.partialorder %v6663, 0.0
        %vm6686 = vcmp.gt.f32.partialorder %v6668, 0.0
        %vm6687 = vcmp.gt.f32.partialorder %v6673, 0.0
        %vm6688 = vcmp.gt.f32.partialorder %v6678, 0.0
        %v6689 = vmul.f32 %v6643, 0.01
        %v6690 = vmul.f32 %v6648, 0.01
        %v6691 = vmul.f32 %v6653, 0.01
        %v6692 = vmul.f32 %v6658, 0.01
        %v6693 = vmul.f32 %v6663, 0.01
        %v6694 = vmul.f32 %v6668, 0.01
        %v6695 = vmul.f32 %v6673, 0.01
        %v6696 = vmul.f32 %v6678, 0.01
        %v6697 = vsel %vm6681, %v6643, %v6689
        %v6698 = vsel %vm6682, %v6648, %v6690
        %v6699 = vsel %vm6683, %v6653, %v6691
        %v6700 = vsel %vm6684, %v6658, %v6692
        %v6701 = vsel %vm6685, %v6663, %v6693
        %v6702 = vsel %vm6686, %v6668, %v6694
        %v6703 = vsel %vm6687, %v6673, %v6695
        %v6704 = vsel %vm6688, %v6678, %v6696
        %6705 = vst.msk [vmem:[%s217] sm:$0xff] %vm223, %v6697
        %6706 = vst.msk [vmem:[%s217 + $0x8] sm:$0xff] %vm223, %v6698
        %6707 = vst.msk [vmem:[%s217 + $0x10] sm:$0xff] %vm223, %v6699
        %6708 = vst.msk [vmem:[%s217 + $0x18] sm:$0xff] %vm223, %v6700
        %6709 = vst.msk [vmem:[%s217 + $0x20] sm:$0xff] %vm223, %v6701
        %6710 = vst.msk [vmem:[%s217 + $0x28] sm:$0xff] %vm223, %v6702
        %6711 = vst.msk [vmem:[%s217 + $0x30] sm:$0xff] %vm223, %v6703
        %6712 = vst.msk [vmem:[%s217 + $0x38] sm:$0xff] %vm223, %v6704
        %s6713 = sand.u32 %s137, 1
        %s6714 = scalar_lea.sflag [#allocation4], %s6713
        %s6715 = sand.u32 %s137, 1
        %s6716 = smul.addr %s6715, 64
        %s6717 = scalar_lea.vmem [#allocation3], %s6716
        // Predicated region
        $region41: #{move_processor.1} parent=39 // pred_check
          %p6718 = pneg %p147
        $region42: #{move_processor.1} parent=39 // pred_check_branch
          %6720 = sbr.rel (%p6718) target = $region44
        $region43: #{move_processor.1} parent=39 // pred_region
          %s6722 = ssub.s32 1024, 1024
          %6723 = vsyncadd %s6714, %s6722
          %s6724 = smul.addr %s19, 8
          %s6725 = smul.addr %s6724, 128
          %s6726 = scalar_lea.hbm %s5, %s6725
          %s6727 = sshll.u32 %s6717, 4
          %s6728 = int_to_ptr.vmem [resolvable:$true] %s6727
          %6733 = dma.vmem_to_hbm [thread:$0]  %s6728, 1024, %s6726, %s6714, 128, 128, 8
        $region44: #{move_processor.1} parent=39 // pred_fallthru
          _
      $region40: #{move_processor.1} parent=5 // pred_fallthru
        _
      %p6734 = scmp.le.s32.totalorder 2, %s14
      // Predicated region
      $region45: #{move_processor.1} parent=5 // pred_check
        %p6735 = pneg %p6734
      $region46: #{move_processor.1} parent=5 // pred_check_branch
        %6737 = sbr.rel (%p6735) target = $region48
      $region47: #{move_processor.1} parent=5 // pred_region
        %s6738 = ssub.s32 %s14, 2
        // Predicated region
        $region49: #{move_processor.1} parent=47 // pred_check
          %p6739 = pneg %p153
        $region50: #{move_processor.1} parent=47 // pred_check_branch
          %6741 = sbr.rel (%p6739) target = $region52
        $region51: #{move_processor.1} parent=47 // pred_region
          %s6742 = sand.u32 %s138, 1
          %s6743 = scalar_lea.sflag [#allocation4], %s6742
          %s6744 = sand.u32 %s138, 1
          %s6745 = smul.addr %s6744, 64
          %s6746 = scalar_lea.vmem [#allocation3], %s6745
          %6747 = dma.done %s6743, 1024
        $region52: #{move_processor.1} parent=47 // pred_fallthru
          _
      $region48: #{move_processor.1} parent=5 // pred_fallthru
        _
    $region6: #{move_processor.1} parent=1 // loop_footer
      %s18 = sadd.s32 1, %s14
    $region7: #{move_processor.1} parent=1 // loop_footer_branch
      %13 = sbr.rel target = $region3
    $region8: #{move_processor.1} parent=1 // loop_exit
      _
    %6748 = vsyncpa [#allocation4], 1
    %s6749 = scalar_lea.sflag [#allocation4], 1
    %6750 = vsyncpa %s6749, 1

</llo_original>
